<compile_context>
chip_gen: v5e
topology: v5e:2x2
jax: 0.10.0
libtpu: 0.0.40
codegen_flags: <defaults>
</compile_context>

<pallas_src>
import functools
import math

import jax
import jax.numpy as jnp
import numpy as np
from jax import lax
from jax.experimental import pallas as pl
from jax.experimental.pallas import tpu as pltpu

# GyroLoss.__init__ hyper-parameters (the module has no learnable weights).
DELTA = 0.005
DT = 1.0 / 200.0
T_FULL = 64
CHUNK = 8                      # time samples folded per inner step (power of 2)
# TODO(synk): self.g = [0, 0, 9.80804] is created in __init__ but never used in
# forward(), so it is intentionally omitted.


# ------------------------- per-lane 3x3 helpers ------------------------------
# A field of 3x3 matrices is a 9-tuple of (rows, lanes) arrays in row-major
# order (m00, m01, m02, m10, ..., m22): one dense VPU tile per component.

def _mm9(A, B):
    """C = A @ B per lane."""
    a00, a01, a02, a10, a11, a12, a20, a21, a22 = A
    b00, b01, b02, b10, b11, b12, b20, b21, b22 = B
    return (a00*b00 + a01*b10 + a02*b20,
            a00*b01 + a01*b11 + a02*b21,
            a00*b02 + a01*b12 + a02*b22,
            a10*b00 + a11*b10 + a12*b20,
            a10*b01 + a11*b11 + a12*b21,
            a10*b02 + a11*b12 + a12*b22,
            a20*b00 + a21*b10 + a22*b20,
            a20*b01 + a21*b11 + a22*b21,
            a20*b02 + a21*b12 + a22*b22)


def _mm9_tn(A, B):
    """C = A^T @ B per lane (einsum '...ij,...ik->...jk')."""
    a00, a01, a02, a10, a11, a12, a20, a21, a22 = A
    b00, b01, b02, b10, b11, b12, b20, b21, b22 = B
    return (a00*b00 + a10*b10 + a20*b20,
            a00*b01 + a10*b11 + a20*b21,
            a00*b02 + a10*b12 + a20*b22,
            a01*b00 + a11*b10 + a21*b20,
            a01*b01 + a11*b11 + a21*b21,
            a01*b02 + a11*b12 + a21*b22,
            a02*b00 + a12*b10 + a22*b20,
            a02*b01 + a12*b11 + a22*b21,
            a02*b02 + a12*b12 + a22*b22)


def _acos_newton(c, s):
    """arccos(c) given s = sqrt(1 - c^2), from sin/cos/sqrt only.

    Newton on sin(th - theta*) = 0 has cubic convergence; with |c| <= 1 - 1e-6
    the initial error of (pi/2 - c) is < 0.58 rad, so 3 steps reach f32 noise.
    (No guaranteed arccos lowering on Mosaic.)
    """
    th = (jnp.pi / 2.0) - c
    for _ in range(3):
        th = th - (jnp.sin(th) * c - jnp.cos(th) * s)
    return th


def _so3_log9(D):
    """SO3.log of a 9-tuple rotation field -> 3 arrays (rows, lanes)."""
    d00, d01, d02, d10, d11, d12, d20, d21, d22 = D
    tr = d00 + d11 + d22
    # NOTE: a 1e-8 clip rounds to +-1.0 in f32 (=> sin == 0 => NaN).  1e-6
    # keeps sin >= ~1.4e-3; for angles below that the factor tends to 0.5, so
    # the result is still correct (and exactly 0 for identity-padded lanes).
    cos_a = jnp.clip(0.5 * tr - 0.5, -1.0 + 1e-6, 1.0 - 1e-6)
    sin_a = jnp.sqrt(jnp.maximum(1.0 - cos_a * cos_a, 1e-12))
    ang = _acos_newton(cos_a, sin_a)
    fac = (0.5 * ang) * pl.reciprocal(sin_a, approx=True)
    return (fac * (d21 - d12), fac * (d02 - d20), fac * (d10 - d01))


def _huber_sum(x, delta):
    ax = jnp.abs(x)
    per = jnp.where(ax <= delta, 0.5 * x * x, delta * (ax - 0.5 * delta))
    return jnp.sum(per)


# ---------------------------------- kernel ----------------------------------
def _gyro_loss_kernel(g_ref, r_ref, out_ref, *, dt, delta, n_chunks, blk):
    def chunk_rotation(c):
        """Rodrigues + ordered in-chunk tree product for CHUNK time samples."""
        g = g_ref[:, pl.ds(c * CHUNK, CHUNK), :]            # (3, CHUNK, 2*blk)
        wx = g[0] * dt
        wy = g[1] * dt
        wz = g[2] * dt
        ang2 = jnp.maximum(wx * wx + wy * wy + wz * wz, 1e-12)
        ang = jnp.sqrt(ang2)
        ca = jnp.cos(ang)
        sa = jnp.sin(ang)
        k2 = (1.0 - ca) * pl.reciprocal(ang2, approx=True)   # (1 - cos) / ang^2
        sf = sa * lax.rsqrt(ang2)                            # sin / ang
        xx = k2 * wx * wx; yy = k2 * wy * wy; zz = k2 * wz * wz
        xy = k2 * wx * wy; xz = k2 * wx * wz; yz = k2 * wy * wz
        sx = sf * wx; sy = sf * wy; sz = sf * wz
        P = (ca + xx, xy - sz, xz + sy,
             xy + sz, ca + yy, yz - sx,
             xz - sy, yz + sx, ca + zz)                      # nine (CHUNK, 2*blk)
        # Time was bit-reversed within each chunk in the wrapper, so the
        # "top half @ bottom half" tree yields the ordered product R_0..R_7.
        n = CHUNK
        while n > 1:
            h = n // 2
            P = _mm9(tuple(p[:h] for p in P), tuple(p[h:] for p in P))
            n = h
        return P                                             # nine (1, 2*blk)

    # Ordered chain over chunks: acc = chunk_0 @ chunk_1 @ ... (left to right).
    acc = chunk_rotation(0)
    for c in range(1, n_chunks):
        acc = _mm9(acc, chunk_rotation(c))

    # Targets are loaded only now (deferred): they do not occupy registers
    # during the Rodrigues / chain-product phase.
    R = tuple(r_ref[pl.ds(i, 1), :] for i in range(9))       # nine (1, 2*blk)

    # l1: Huber over SO3.log(hat^T @ target) for all 2*blk groups of the block.
    e1 = _so3_log9(_mm9_tn(acc, R))
    s1 = sum(_huber_sum(e, delta) for e in e1)

    # l2: pair even/odd halves (static lane slices at a 128 multiple).
    A_e = tuple(a[:, :blk] for a in acc)
    A_o = tuple(a[:, blk:] for a in acc)
    R_e = tuple(r[:, :blk] for r in R)
    R_o = tuple(r[:, blk:] for r in R)
    e2 = _so3_log9(_mm9_tn(_mm9(A_e, A_o), _mm9(R_e, R_o)))
    s2 = sum(_huber_sum(e, delta) for e in e2)

    # Per-block partial sums -> lanes 0 / 1 of this block's (8, 128) output row.
    lane = lax.broadcasted_iota(jnp.int32, (1, 8, 128), 2)
    out_ref[...] = jnp.where(lane == 0, s1, jnp.where(lane == 1, s2, 0.0))


# --------------------------------- wrapper -----------------------------------
_BITREV3 = np.array([0, 4, 2, 6, 1, 5, 3, 7], np.int32)


def _chunk_bitrev_perm(t_pad):
    return np.concatenate([c * CHUNK + _BITREV3 for c in range(t_pad // CHUNK)])


def gyro_loss_pallas(hat_gyro, rots, *, delta=DELTA, dt=DT, T=T_FULL,
                     block_pairs=128):
    """hat_gyro: (B, N, 3) angular rates; rots: (B, N, 3, 3) target rotations."""
    t_half = T // 2
    B, N, _ = hat_gyro.shape
    assert N % T == 0, "n_samples must be a multiple of T"
    G = N // t_half              # rotation groups per batch (even)
    G2 = G // 2
    M = B * G2                   # even/odd group pairs (lane axis)

    hat_gyro = hat_gyro.astype(jnp.float32)
    rots = rots.astype(jnp.float32)

    # Time axis: pad to a multiple of CHUNK with zero increments (exp = I, the
    # chain product is unchanged) and bit-reverse within each chunk so the
    # in-kernel halving tree yields the ordered product.
    t_pad = -(-t_half // CHUNK) * CHUNK
    n_chunks = t_pad // CHUNK
    g = hat_gyro.reshape(B, G, t_half, 3)
    if t_pad != t_half:
        g = jnp.pad(g, ((0, 0), (0, 0), (0, t_pad - t_half), (0, 0)))
    g = g[:, :, _chunk_bitrev_perm(t_pad), :]

    # Lane blocking: `blk` pairs per grid step (multiple of 128).  128 keeps
    # live registers ~50 vregs and gives the "parallel" grid one step per 128
    # pairs (both v7x TensorCores busy whenever M > 128).
    assert block_pairs % 128 == 0
    blk = min(block_pairs, -(-M // 128) * 128)
    m_pad = -(-M // blk) * blk
    nblk = m_pad // blk
    L = 2 * blk

    # Gyro: (3, t_pad, nblk*2*blk); block i lanes = [even pairs | odd pairs].
    # Padded pairs are zero gyro (-> identity rotations).
    def pack_g(gg):              # (B, G2, t_pad, 3) -> (3, t_pad, nblk, blk)
        x = jnp.transpose(gg, (3, 2, 0, 1)).reshape(3, t_pad, M)
        x = jnp.pad(x, ((0, 0), (0, 0), (0, m_pad - M)))
        return x.reshape(3, t_pad, nblk, blk)

    g_packed = jnp.stack([pack_g(g[:, 0::2]), pack_g(g[:, 1::2])],
                         axis=3).reshape(3, t_pad, nblk * L)

    # Targets: 9 row-major components on the sublane axis (padded to 16 rows);
    # padded lanes are identity so they contribute exactly 0 to both sums.
    r = rots[:, ::t_half]        # (B, G, 3, 3)

    def pack_r(rr):              # (B, G2, 3, 3) -> (16, nblk, blk)
        x = jnp.transpose(rr, (2, 3, 0, 1)).reshape(9, M)
        if m_pad > M:
            eye = jnp.broadcast_to(
                jnp.eye(3, dtype=jnp.float32).reshape(9, 1), (9, m_pad - M))
            x = jnp.concatenate([x, eye], axis=1)
        x = jnp.pad(x, ((0, 16 - 9), (0, 0)))
        return x.reshape(16, nblk, blk)

    r_packed = jnp.stack([pack_r(r[:, 0::2]), pack_r(r[:, 1::2])],
                         axis=2).reshape(16, nblk * L)

    kernel = functools.partial(_gyro_loss_kernel, dt=dt, delta=delta,
                               n_chunks=n_chunks, blk=blk)
    partials = pl.pallas_call(
        kernel,
        grid=(nblk,),
        in_specs=[
            pl.BlockSpec((3, t_pad, L), lambda i: (0, 0, i)),
            pl.BlockSpec((16, L), lambda i: (0, i)),
        ],
        out_specs=pl.BlockSpec((1, 8, 128), lambda i: (i, 0, 0)),
        out_shape=jax.ShapeDtypeStruct((nblk, 8, 128), jnp.float32),
        compiler_params=pltpu.CompilerParams(
            dimension_semantics=("parallel",)),
    )(g_packed, r_packed)

    s1 = jnp.sum(partials[:, 0, 0])    # Huber sum over all 2*M groups (l1)
    s2 = jnp.sum(partials[:, 0, 1])    # Huber sum over the M pairs (l2)
    l1 = s1 / jnp.float32(3 * 2 * M)
    l2 = s2 / jnp.float32(3 * M)
    return (l1 + 0.5 * l2) * 100000.0


def gyro_loss_forward(pred, targ, *, delta=DELTA, dt=DT, T=T_FULL):
    """Mirrors GyroLoss.forward(pred, targ) tuple unpacking."""
    _, _, hat_gyro, _ = pred
    _, (_, _, rots, _, _) = targ
    return gyro_loss_pallas(hat_gyro, rots, delta=delta, dt=dt, T=T)


# --------------------- pure-JAX reference (for checking) ---------------------
def _so3_exp_batch(phi):
    ang = jnp.linalg.norm(phi, axis=1, keepdims=True)
    small = ang[:, 0] < 1e-7
    ang_safe = jnp.where(ang < 1e-7, 1.0, ang)
    axis = phi / ang_safe
    c = jnp.cos(ang)[..., None]
    s = jnp.sin(ang)[..., None]

    def wedge(v):
        x, y, z = v[:, 0], v[:, 1], v[:, 2]
        o = jnp.zeros_like(x)
        return jnp.stack([jnp.stack([o, -z, y], -1),
                          jnp.stack([z, o, -x], -1),
                          jnp.stack([-y, x, o], -1)], -2)

    eye = jnp.eye(3, dtype=phi.dtype)
    outer = axis[:, :, None] * axis[:, None, :]
    big = c * eye + (1.0 - c) * outer + s * wedge(axis)
    sml = eye + wedge(phi)
    return jnp.where(small[:, None, None], sml, big)


def _so3_log_batch(R):
    tr = jnp.trace(R, axis1=1, axis2=2)
    cos_a = jnp.clip(0.5 * tr - 0.5, -1.0 + 1e-8, 1.0 - 1e-8)
    ang = jnp.arccos(cos_a)
    small = ang < 1e-14

    def vee(P):
        return jnp.stack([P[:, 2, 1], P[:, 0, 2], P[:, 1, 0]], axis=1)

    fac = jnp.where(small, 0.0, 0.5 * ang / jnp.sin(ang))
    big = fac[:, None] * vee(R - jnp.transpose(R, (0, 2, 1)))
    sml = vee(R - jnp.eye(3, dtype=R.dtype))
    return jnp.where(small[:, None], sml, big)


def gyro_loss_ref(hat_gyro, rots, *, delta=DELTA, dt=DT, T=T_FULL):
    t_half = T // 2
    B, N, _ = hat_gyro.shape
    hat_rots = _so3_exp_batch(hat_gyro.reshape(-1, 3) * dt).reshape(B, N, 3, 3)
    r = rots[:, ::t_half]
    for _ in range(int(math.log2(t_half))):
        hat_rots = jnp.einsum('bnij,bnjk->bnik',
                              hat_rots[:, ::2], hat_rots[:, 1::2])

    def f_loss(x):
        ax = jnp.abs(x)
        h = jnp.where(ax <= delta, 0.5 * x * x, delta * (ax - 0.5 * delta))
        return jnp.mean(h) * 100000.0

    d1 = _so3_log_batch(jnp.einsum('bnij,bnik->bnjk',
                                   hat_rots, r).reshape(-1, 3, 3))
    l1 = f_loss(d1)
    hat2 = jnp.einsum('bnij,bnjk->bnik', hat_rots[:, ::2], hat_rots[:, 1::2])
    r2 = jnp.einsum('bnij,bnjk->bnik', r[:, ::2], r[:, 1::2])
    d2 = _so3_log_batch(jnp.einsum('bnij,bnik->bnjk',
                                   hat2, r2).reshape(-1, 3, 3))
    l2 = f_loss(d2)
    return l1 + l2 / 2


# ----------------------------------- main ------------------------------------
if __name__ == "__main__":
    key = jax.random.PRNGKey(0)
    k1, k2 = jax.random.split(key)

    B, N = 2, 256                            # n_samples multiple of T = 64
    hat_gyro = jax.random.normal(k1, (B, N, 3), jnp.float32) * 0.5   # rad/s
    # Deterministic valid target rotation matrices (no checkpoint loading).
    phi_t = jax.random.normal(k2, (B * N, 3), jnp.float32) * 0.02
    rots = _so3_exp_batch(phi_t).reshape(B, N, 3, 3)

    pred = (None, None, hat_gyro, None)
    targ = (None, (None, None, rots, None, None))

    loss = jax.block_until_ready(gyro_loss_forward(pred, targ))
    ref = jax.block_until_ready(gyro_loss_ref(hat_gyro, rots))

    np.testing.assert_allclose(np.asarray(loss), np.asarray(ref),
                               rtol=5e-2, atol=1e-2)
    assert bool(jnp.isfinite(loss))
    print("KERNEL_OK")
</pallas_src>

<mosaic_0001>
module attributes {stable_mosaic.version = 11 : i64} {
  func.func @_gyro_loss_kernel(%arg0: i32, %arg1: memref<3x32x256xf32, #tpu.memory_space<vmem>>, %arg2: memref<16x256xf32, #tpu.memory_space<vmem>>, %arg3: memref<1x8x128xf32, #tpu.memory_space<vmem>>) attributes {dimension_semantics = [#tpu.dimension_semantics<parallel>], iteration_bounds = array<i64: 1>, scalar_prefetch = 0 : i64, scratch_operands = 0 : i64, tpu.core_type = #tpu.core_type<tc>, window_params = [{transform_indices = @transform_0, window_bounds = array<i64: 3, 32, 256>}, {transform_indices = @transform_1, window_bounds = array<i64: 16, 256>}, {transform_indices = @transform_2, window_bounds = array<i64: 1, 8, 128>}]} {
    %c0 = arith.constant 0 : index
    %c0_0 = arith.constant 0 : index
    %c0_1 = arith.constant 0 : index
    %0 = vector.load %arg1[%c0, %c0_0, %c0_1] : memref<3x32x256xf32, #tpu.memory_space<vmem>>, vector<3x8x256xf32>
    %1 = vector.extract_strided_slice %0 {offsets = [0, 0, 0], sizes = [1, 8, 256], strides = [1, 1, 1]} : vector<3x8x256xf32> to vector<1x8x256xf32>
    %2 = vector.shape_cast %1 : vector<1x8x256xf32> to vector<8x256xf32>
    %cst = arith.constant 5.000000e-03 : f32
    %3 = vector.broadcast %cst : f32 to vector<8x256xf32>
    %4 = arith.mulf %2, %3 : vector<8x256xf32>
    %5 = vector.extract_strided_slice %0 {offsets = [1, 0, 0], sizes = [1, 8, 256], strides = [1, 1, 1]} : vector<3x8x256xf32> to vector<1x8x256xf32>
    %6 = vector.shape_cast %5 : vector<1x8x256xf32> to vector<8x256xf32>
    %cst_2 = arith.constant 5.000000e-03 : f32
    %7 = vector.broadcast %cst_2 : f32 to vector<8x256xf32>
    %8 = arith.mulf %6, %7 : vector<8x256xf32>
    %9 = vector.extract_strided_slice %0 {offsets = [2, 0, 0], sizes = [1, 8, 256], strides = [1, 1, 1]} : vector<3x8x256xf32> to vector<1x8x256xf32>
    %10 = vector.shape_cast %9 : vector<1x8x256xf32> to vector<8x256xf32>
    %cst_3 = arith.constant 5.000000e-03 : f32
    %11 = vector.broadcast %cst_3 : f32 to vector<8x256xf32>
    %12 = arith.mulf %10, %11 : vector<8x256xf32>
    %13 = arith.mulf %4, %4 : vector<8x256xf32>
    %14 = arith.mulf %8, %8 : vector<8x256xf32>
    %15 = arith.addf %13, %14 : vector<8x256xf32>
    %16 = arith.mulf %12, %12 : vector<8x256xf32>
    %17 = arith.addf %15, %16 : vector<8x256xf32>
    %cst_4 = arith.constant 9.99999996E-13 : f32
    %18 = vector.broadcast %cst_4 : f32 to vector<8x256xf32>
    %19 = arith.maximumf %17, %18 : vector<8x256xf32>
    %20 = math.sqrt %19 : vector<8x256xf32>
    %21 = math.cos %20 : vector<8x256xf32>
    %22 = math.sin %20 : vector<8x256xf32>
    %cst_5 = arith.constant 1.000000e+00 : f32
    %23 = vector.broadcast %cst_5 : f32 to vector<8x256xf32>
    %24 = arith.subf %23, %21 : vector<8x256xf32>
    %25 = tpu.reciprocal %19 {approx = true} : vector<8x256xf32> -> vector<8x256xf32>
    %26 = arith.mulf %24, %25 : vector<8x256xf32>
    %27 = math.rsqrt %19 : vector<8x256xf32>
    %28 = arith.mulf %22, %27 : vector<8x256xf32>
    %29 = arith.mulf %26, %4 : vector<8x256xf32>
    %30 = arith.mulf %29, %4 : vector<8x256xf32>
    %31 = arith.mulf %26, %8 : vector<8x256xf32>
    %32 = arith.mulf %31, %8 : vector<8x256xf32>
    %33 = arith.mulf %26, %12 : vector<8x256xf32>
    %34 = arith.mulf %33, %12 : vector<8x256xf32>
    %35 = arith.mulf %26, %4 : vector<8x256xf32>
    %36 = arith.mulf %35, %8 : vector<8x256xf32>
    %37 = arith.mulf %26, %4 : vector<8x256xf32>
    %38 = arith.mulf %37, %12 : vector<8x256xf32>
    %39 = arith.mulf %26, %8 : vector<8x256xf32>
    %40 = arith.mulf %39, %12 : vector<8x256xf32>
    %41 = arith.mulf %28, %4 : vector<8x256xf32>
    %42 = arith.mulf %28, %8 : vector<8x256xf32>
    %43 = arith.mulf %28, %12 : vector<8x256xf32>
    %44 = arith.addf %21, %30 : vector<8x256xf32>
    %45 = arith.subf %36, %43 : vector<8x256xf32>
    %46 = arith.addf %38, %42 : vector<8x256xf32>
    %47 = arith.addf %36, %43 : vector<8x256xf32>
    %48 = arith.addf %21, %32 : vector<8x256xf32>
    %49 = arith.subf %40, %41 : vector<8x256xf32>
    %50 = arith.subf %38, %42 : vector<8x256xf32>
    %51 = arith.addf %40, %41 : vector<8x256xf32>
    %52 = arith.addf %21, %34 : vector<8x256xf32>
    %53 = vector.extract_strided_slice %44 {offsets = [0, 0], sizes = [4, 256], strides = [1, 1]} : vector<8x256xf32> to vector<4x256xf32>
    %54 = vector.extract_strided_slice %45 {offsets = [0, 0], sizes = [4, 256], strides = [1, 1]} : vector<8x256xf32> to vector<4x256xf32>
    %55 = vector.extract_strided_slice %46 {offsets = [0, 0], sizes = [4, 256], strides = [1, 1]} : vector<8x256xf32> to vector<4x256xf32>
    %56 = vector.extract_strided_slice %47 {offsets = [0, 0], sizes = [4, 256], strides = [1, 1]} : vector<8x256xf32> to vector<4x256xf32>
    %57 = vector.extract_strided_slice %48 {offsets = [0, 0], sizes = [4, 256], strides = [1, 1]} : vector<8x256xf32> to vector<4x256xf32>
    %58 = vector.extract_strided_slice %49 {offsets = [0, 0], sizes = [4, 256], strides = [1, 1]} : vector<8x256xf32> to vector<4x256xf32>
    %59 = vector.extract_strided_slice %50 {offsets = [0, 0], sizes = [4, 256], strides = [1, 1]} : vector<8x256xf32> to vector<4x256xf32>
    %60 = vector.extract_strided_slice %51 {offsets = [0, 0], sizes = [4, 256], strides = [1, 1]} : vector<8x256xf32> to vector<4x256xf32>
    %61 = vector.extract_strided_slice %52 {offsets = [0, 0], sizes = [4, 256], strides = [1, 1]} : vector<8x256xf32> to vector<4x256xf32>
    %62 = vector.extract_strided_slice %44 {offsets = [4, 0], sizes = [4, 256], strides = [1, 1]} : vector<8x256xf32> to vector<4x256xf32>
    %63 = vector.extract_strided_slice %45 {offsets = [4, 0], sizes = [4, 256], strides = [1, 1]} : vector<8x256xf32> to vector<4x256xf32>
    %64 = vector.extract_strided_slice %46 {offsets = [4, 0], sizes = [4, 256], strides = [1, 1]} : vector<8x256xf32> to vector<4x256xf32>
    %65 = vector.extract_strided_slice %47 {offsets = [4, 0], sizes = [4, 256], strides = [1, 1]} : vector<8x256xf32> to vector<4x256xf32>
    %66 = vector.extract_strided_slice %48 {offsets = [4, 0], sizes = [4, 256], strides = [1, 1]} : vector<8x256xf32> to vector<4x256xf32>
    %67 = vector.extract_strided_slice %49 {offsets = [4, 0], sizes = [4, 256], strides = [1, 1]} : vector<8x256xf32> to vector<4x256xf32>
    %68 = vector.extract_strided_slice %50 {offsets = [4, 0], sizes = [4, 256], strides = [1, 1]} : vector<8x256xf32> to vector<4x256xf32>
    %69 = vector.extract_strided_slice %51 {offsets = [4, 0], sizes = [4, 256], strides = [1, 1]} : vector<8x256xf32> to vector<4x256xf32>
    %70 = vector.extract_strided_slice %52 {offsets = [4, 0], sizes = [4, 256], strides = [1, 1]} : vector<8x256xf32> to vector<4x256xf32>
    %71 = arith.mulf %53, %62 : vector<4x256xf32>
    %72 = arith.mulf %54, %65 : vector<4x256xf32>
    %73 = arith.addf %71, %72 : vector<4x256xf32>
    %74 = arith.mulf %55, %68 : vector<4x256xf32>
    %75 = arith.addf %73, %74 : vector<4x256xf32>
    %76 = arith.mulf %53, %63 : vector<4x256xf32>
    %77 = arith.mulf %54, %66 : vector<4x256xf32>
    %78 = arith.addf %76, %77 : vector<4x256xf32>
    %79 = arith.mulf %55, %69 : vector<4x256xf32>
    %80 = arith.addf %78, %79 : vector<4x256xf32>
    %81 = arith.mulf %53, %64 : vector<4x256xf32>
    %82 = arith.mulf %54, %67 : vector<4x256xf32>
    %83 = arith.addf %81, %82 : vector<4x256xf32>
    %84 = arith.mulf %55, %70 : vector<4x256xf32>
    %85 = arith.addf %83, %84 : vector<4x256xf32>
    %86 = arith.mulf %56, %62 : vector<4x256xf32>
    %87 = arith.mulf %57, %65 : vector<4x256xf32>
    %88 = arith.addf %86, %87 : vector<4x256xf32>
    %89 = arith.mulf %58, %68 : vector<4x256xf32>
    %90 = arith.addf %88, %89 : vector<4x256xf32>
    %91 = arith.mulf %56, %63 : vector<4x256xf32>
    %92 = arith.mulf %57, %66 : vector<4x256xf32>
    %93 = arith.addf %91, %92 : vector<4x256xf32>
    %94 = arith.mulf %58, %69 : vector<4x256xf32>
    %95 = arith.addf %93, %94 : vector<4x256xf32>
    %96 = arith.mulf %56, %64 : vector<4x256xf32>
    %97 = arith.mulf %57, %67 : vector<4x256xf32>
    %98 = arith.addf %96, %97 : vector<4x256xf32>
    %99 = arith.mulf %58, %70 : vector<4x256xf32>
    %100 = arith.addf %98, %99 : vector<4x256xf32>
    %101 = arith.mulf %59, %62 : vector<4x256xf32>
    %102 = arith.mulf %60, %65 : vector<4x256xf32>
    %103 = arith.addf %101, %102 : vector<4x256xf32>
    %104 = arith.mulf %61, %68 : vector<4x256xf32>
    %105 = arith.addf %103, %104 : vector<4x256xf32>
    %106 = arith.mulf %59, %63 : vector<4x256xf32>
    %107 = arith.mulf %60, %66 : vector<4x256xf32>
    %108 = arith.addf %106, %107 : vector<4x256xf32>
    %109 = arith.mulf %61, %69 : vector<4x256xf32>
    %110 = arith.addf %108, %109 : vector<4x256xf32>
    %111 = arith.mulf %59, %64 : vector<4x256xf32>
    %112 = arith.mulf %60, %67 : vector<4x256xf32>
    %113 = arith.addf %111, %112 : vector<4x256xf32>
    %114 = arith.mulf %61, %70 : vector<4x256xf32>
    %115 = arith.addf %113, %114 : vector<4x256xf32>
    %116 = vector.extract_strided_slice %75 {offsets = [0, 0], sizes = [2, 256], strides = [1, 1]} : vector<4x256xf32> to vector<2x256xf32>
    %117 = vector.extract_strided_slice %80 {offsets = [0, 0], sizes = [2, 256], strides = [1, 1]} : vector<4x256xf32> to vector<2x256xf32>
    %118 = vector.extract_strided_slice %85 {offsets = [0, 0], sizes = [2, 256], strides = [1, 1]} : vector<4x256xf32> to vector<2x256xf32>
    %119 = vector.extract_strided_slice %90 {offsets = [0, 0], sizes = [2, 256], strides = [1, 1]} : vector<4x256xf32> to vector<2x256xf32>
    %120 = vector.extract_strided_slice %95 {offsets = [0, 0], sizes = [2, 256], strides = [1, 1]} : vector<4x256xf32> to vector<2x256xf32>
    %121 = vector.extract_strided_slice %100 {offsets = [0, 0], sizes = [2, 256], strides = [1, 1]} : vector<4x256xf32> to vector<2x256xf32>
    %122 = vector.extract_strided_slice %105 {offsets = [0, 0], sizes = [2, 256], strides = [1, 1]} : vector<4x256xf32> to vector<2x256xf32>
    %123 = vector.extract_strided_slice %110 {offsets = [0, 0], sizes = [2, 256], strides = [1, 1]} : vector<4x256xf32> to vector<2x256xf32>
    %124 = vector.extract_strided_slice %115 {offsets = [0, 0], sizes = [2, 256], strides = [1, 1]} : vector<4x256xf32> to vector<2x256xf32>
    %125 = vector.extract_strided_slice %75 {offsets = [2, 0], sizes = [2, 256], strides = [1, 1]} : vector<4x256xf32> to vector<2x256xf32>
    %126 = vector.extract_strided_slice %80 {offsets = [2, 0], sizes = [2, 256], strides = [1, 1]} : vector<4x256xf32> to vector<2x256xf32>
    %127 = vector.extract_strided_slice %85 {offsets = [2, 0], sizes = [2, 256], strides = [1, 1]} : vector<4x256xf32> to vector<2x256xf32>
    %128 = vector.extract_strided_slice %90 {offsets = [2, 0], sizes = [2, 256], strides = [1, 1]} : vector<4x256xf32> to vector<2x256xf32>
    %129 = vector.extract_strided_slice %95 {offsets = [2, 0], sizes = [2, 256], strides = [1, 1]} : vector<4x256xf32> to vector<2x256xf32>
    %130 = vector.extract_strided_slice %100 {offsets = [2, 0], sizes = [2, 256], strides = [1, 1]} : vector<4x256xf32> to vector<2x256xf32>
    %131 = vector.extract_strided_slice %105 {offsets = [2, 0], sizes = [2, 256], strides = [1, 1]} : vector<4x256xf32> to vector<2x256xf32>
    %132 = vector.extract_strided_slice %110 {offsets = [2, 0], sizes = [2, 256], strides = [1, 1]} : vector<4x256xf32> to vector<2x256xf32>
    %133 = vector.extract_strided_slice %115 {offsets = [2, 0], sizes = [2, 256], strides = [1, 1]} : vector<4x256xf32> to vector<2x256xf32>
    %134 = arith.mulf %116, %125 : vector<2x256xf32>
    %135 = arith.mulf %117, %128 : vector<2x256xf32>
    %136 = arith.addf %134, %135 : vector<2x256xf32>
    %137 = arith.mulf %118, %131 : vector<2x256xf32>
    %138 = arith.addf %136, %137 : vector<2x256xf32>
    %139 = arith.mulf %116, %126 : vector<2x256xf32>
    %140 = arith.mulf %117, %129 : vector<2x256xf32>
    %141 = arith.addf %139, %140 : vector<2x256xf32>
    %142 = arith.mulf %118, %132 : vector<2x256xf32>
    %143 = arith.addf %141, %142 : vector<2x256xf32>
    %144 = arith.mulf %116, %127 : vector<2x256xf32>
    %145 = arith.mulf %117, %130 : vector<2x256xf32>
    %146 = arith.addf %144, %145 : vector<2x256xf32>
    %147 = arith.mulf %118, %133 : vector<2x256xf32>
    %148 = arith.addf %146, %147 : vector<2x256xf32>
    %149 = arith.mulf %119, %125 : vector<2x256xf32>
    %150 = arith.mulf %120, %128 : vector<2x256xf32>
    %151 = arith.addf %149, %150 : vector<2x256xf32>
    %152 = arith.mulf %121, %131 : vector<2x256xf32>
    %153 = arith.addf %151, %152 : vector<2x256xf32>
    %154 = arith.mulf %119, %126 : vector<2x256xf32>
    %155 = arith.mulf %120, %129 : vector<2x256xf32>
    %156 = arith.addf %154, %155 : vector<2x256xf32>
    %157 = arith.mulf %121, %132 : vector<2x256xf32>
    %158 = arith.addf %156, %157 : vector<2x256xf32>
    %159 = arith.mulf %119, %127 : vector<2x256xf32>
    %160 = arith.mulf %120, %130 : vector<2x256xf32>
    %161 = arith.addf %159, %160 : vector<2x256xf32>
    %162 = arith.mulf %121, %133 : vector<2x256xf32>
    %163 = arith.addf %161, %162 : vector<2x256xf32>
    %164 = arith.mulf %122, %125 : vector<2x256xf32>
    %165 = arith.mulf %123, %128 : vector<2x256xf32>
    %166 = arith.addf %164, %165 : vector<2x256xf32>
    %167 = arith.mulf %124, %131 : vector<2x256xf32>
    %168 = arith.addf %166, %167 : vector<2x256xf32>
    %169 = arith.mulf %122, %126 : vector<2x256xf32>
    %170 = arith.mulf %123, %129 : vector<2x256xf32>
    %171 = arith.addf %169, %170 : vector<2x256xf32>
    %172 = arith.mulf %124, %132 : vector<2x256xf32>
    %173 = arith.addf %171, %172 : vector<2x256xf32>
    %174 = arith.mulf %122, %127 : vector<2x256xf32>
    %175 = arith.mulf %123, %130 : vector<2x256xf32>
    %176 = arith.addf %174, %175 : vector<2x256xf32>
    %177 = arith.mulf %124, %133 : vector<2x256xf32>
    %178 = arith.addf %176, %177 : vector<2x256xf32>
    %179 = vector.extract_strided_slice %138 {offsets = [0, 0], sizes = [1, 256], strides = [1, 1]} : vector<2x256xf32> to vector<1x256xf32>
    %180 = vector.extract_strided_slice %143 {offsets = [0, 0], sizes = [1, 256], strides = [1, 1]} : vector<2x256xf32> to vector<1x256xf32>
    %181 = vector.extract_strided_slice %148 {offsets = [0, 0], sizes = [1, 256], strides = [1, 1]} : vector<2x256xf32> to vector<1x256xf32>
    %182 = vector.extract_strided_slice %153 {offsets = [0, 0], sizes = [1, 256], strides = [1, 1]} : vector<2x256xf32> to vector<1x256xf32>
    %183 = vector.extract_strided_slice %158 {offsets = [0, 0], sizes = [1, 256], strides = [1, 1]} : vector<2x256xf32> to vector<1x256xf32>
    %184 = vector.extract_strided_slice %163 {offsets = [0, 0], sizes = [1, 256], strides = [1, 1]} : vector<2x256xf32> to vector<1x256xf32>
    %185 = vector.extract_strided_slice %168 {offsets = [0, 0], sizes = [1, 256], strides = [1, 1]} : vector<2x256xf32> to vector<1x256xf32>
    %186 = vector.extract_strided_slice %173 {offsets = [0, 0], sizes = [1, 256], strides = [1, 1]} : vector<2x256xf32> to vector<1x256xf32>
    %187 = vector.extract_strided_slice %178 {offsets = [0, 0], sizes = [1, 256], strides = [1, 1]} : vector<2x256xf32> to vector<1x256xf32>
    %188 = vector.extract_strided_slice %138 {offsets = [1, 0], sizes = [1, 256], strides = [1, 1]} : vector<2x256xf32> to vector<1x256xf32>
    %189 = vector.extract_strided_slice %143 {offsets = [1, 0], sizes = [1, 256], strides = [1, 1]} : vector<2x256xf32> to vector<1x256xf32>
    %190 = vector.extract_strided_slice %148 {offsets = [1, 0], sizes = [1, 256], strides = [1, 1]} : vector<2x256xf32> to vector<1x256xf32>
    %191 = vector.extract_strided_slice %153 {offsets = [1, 0], sizes = [1, 256], strides = [1, 1]} : vector<2x256xf32> to vector<1x256xf32>
    %192 = vector.extract_strided_slice %158 {offsets = [1, 0], sizes = [1, 256], strides = [1, 1]} : vector<2x256xf32> to vector<1x256xf32>
    %193 = vector.extract_strided_slice %163 {offsets = [1, 0], sizes = [1, 256], strides = [1, 1]} : vector<2x256xf32> to vector<1x256xf32>
    %194 = vector.extract_strided_slice %168 {offsets = [1, 0], sizes = [1, 256], strides = [1, 1]} : vector<2x256xf32> to vector<1x256xf32>
    %195 = vector.extract_strided_slice %173 {offsets = [1, 0], sizes = [1, 256], strides = [1, 1]} : vector<2x256xf32> to vector<1x256xf32>
    %196 = vector.extract_strided_slice %178 {offsets = [1, 0], sizes = [1, 256], strides = [1, 1]} : vector<2x256xf32> to vector<1x256xf32>
    %197 = arith.mulf %179, %188 : vector<1x256xf32>
    %198 = arith.mulf %180, %191 : vector<1x256xf32>
    %199 = arith.addf %197, %198 : vector<1x256xf32>
    %200 = arith.mulf %181, %194 : vector<1x256xf32>
    %201 = arith.addf %199, %200 : vector<1x256xf32>
    %202 = arith.mulf %179, %189 : vector<1x256xf32>
    %203 = arith.mulf %180, %192 : vector<1x256xf32>
    %204 = arith.addf %202, %203 : vector<1x256xf32>
    %205 = arith.mulf %181, %195 : vector<1x256xf32>
    %206 = arith.addf %204, %205 : vector<1x256xf32>
    %207 = arith.mulf %179, %190 : vector<1x256xf32>
    %208 = arith.mulf %180, %193 : vector<1x256xf32>
    %209 = arith.addf %207, %208 : vector<1x256xf32>
    %210 = arith.mulf %181, %196 : vector<1x256xf32>
    %211 = arith.addf %209, %210 : vector<1x256xf32>
    %212 = arith.mulf %182, %188 : vector<1x256xf32>
    %213 = arith.mulf %183, %191 : vector<1x256xf32>
    %214 = arith.addf %212, %213 : vector<1x256xf32>
    %215 = arith.mulf %184, %194 : vector<1x256xf32>
    %216 = arith.addf %214, %215 : vector<1x256xf32>
    %217 = arith.mulf %182, %189 : vector<1x256xf32>
    %218 = arith.mulf %183, %192 : vector<1x256xf32>
    %219 = arith.addf %217, %218 : vector<1x256xf32>
    %220 = arith.mulf %184, %195 : vector<1x256xf32>
    %221 = arith.addf %219, %220 : vector<1x256xf32>
    %222 = arith.mulf %182, %190 : vector<1x256xf32>
    %223 = arith.mulf %183, %193 : vector<1x256xf32>
    %224 = arith.addf %222, %223 : vector<1x256xf32>
    %225 = arith.mulf %184, %196 : vector<1x256xf32>
    %226 = arith.addf %224, %225 : vector<1x256xf32>
    %227 = arith.mulf %185, %188 : vector<1x256xf32>
    %228 = arith.mulf %186, %191 : vector<1x256xf32>
    %229 = arith.addf %227, %228 : vector<1x256xf32>
    %230 = arith.mulf %187, %194 : vector<1x256xf32>
    %231 = arith.addf %229, %230 : vector<1x256xf32>
    %232 = arith.mulf %185, %189 : vector<1x256xf32>
    %233 = arith.mulf %186, %192 : vector<1x256xf32>
    %234 = arith.addf %232, %233 : vector<1x256xf32>
    %235 = arith.mulf %187, %195 : vector<1x256xf32>
    %236 = arith.addf %234, %235 : vector<1x256xf32>
    %237 = arith.mulf %185, %190 : vector<1x256xf32>
    %238 = arith.mulf %186, %193 : vector<1x256xf32>
    %239 = arith.addf %237, %238 : vector<1x256xf32>
    %240 = arith.mulf %187, %196 : vector<1x256xf32>
    %241 = arith.addf %239, %240 : vector<1x256xf32>
    %c0_6 = arith.constant 0 : index
    %c8 = arith.constant 8 : index
    %c0_7 = arith.constant 0 : index
    %242 = vector.load %arg1[%c0_6, %c8, %c0_7] : memref<3x32x256xf32, #tpu.memory_space<vmem>>, vector<3x8x256xf32>
    %243 = vector.extract_strided_slice %242 {offsets = [0, 0, 0], sizes = [1, 8, 256], strides = [1, 1, 1]} : vector<3x8x256xf32> to vector<1x8x256xf32>
    %244 = vector.shape_cast %243 : vector<1x8x256xf32> to vector<8x256xf32>
    %cst_8 = arith.constant 5.000000e-03 : f32
    %245 = vector.broadcast %cst_8 : f32 to vector<8x256xf32>
    %246 = arith.mulf %244, %245 : vector<8x256xf32>
    %247 = vector.extract_strided_slice %242 {offsets = [1, 0, 0], sizes = [1, 8, 256], strides = [1, 1, 1]} : vector<3x8x256xf32> to vector<1x8x256xf32>
    %248 = vector.shape_cast %247 : vector<1x8x256xf32> to vector<8x256xf32>
    %cst_9 = arith.constant 5.000000e-03 : f32
    %249 = vector.broadcast %cst_9 : f32 to vector<8x256xf32>
    %250 = arith.mulf %248, %249 : vector<8x256xf32>
    %251 = vector.extract_strided_slice %242 {offsets = [2, 0, 0], sizes = [1, 8, 256], strides = [1, 1, 1]} : vector<3x8x256xf32> to vector<1x8x256xf32>
    %252 = vector.shape_cast %251 : vector<1x8x256xf32> to vector<8x256xf32>
    %cst_10 = arith.constant 5.000000e-03 : f32
    %253 = vector.broadcast %cst_10 : f32 to vector<8x256xf32>
    %254 = arith.mulf %252, %253 : vector<8x256xf32>
    %255 = arith.mulf %246, %246 : vector<8x256xf32>
    %256 = arith.mulf %250, %250 : vector<8x256xf32>
    %257 = arith.addf %255, %256 : vector<8x256xf32>
    %258 = arith.mulf %254, %254 : vector<8x256xf32>
    %259 = arith.addf %257, %258 : vector<8x256xf32>
    %cst_11 = arith.constant 9.99999996E-13 : f32
    %260 = vector.broadcast %cst_11 : f32 to vector<8x256xf32>
    %261 = arith.maximumf %259, %260 : vector<8x256xf32>
    %262 = math.sqrt %261 : vector<8x256xf32>
    %263 = math.cos %262 : vector<8x256xf32>
    %264 = math.sin %262 : vector<8x256xf32>
    %cst_12 = arith.constant 1.000000e+00 : f32
    %265 = vector.broadcast %cst_12 : f32 to vector<8x256xf32>
    %266 = arith.subf %265, %263 : vector<8x256xf32>
    %267 = tpu.reciprocal %261 {approx = true} : vector<8x256xf32> -> vector<8x256xf32>
    %268 = arith.mulf %266, %267 : vector<8x256xf32>
    %269 = math.rsqrt %261 : vector<8x256xf32>
    %270 = arith.mulf %264, %269 : vector<8x256xf32>
    %271 = arith.mulf %268, %246 : vector<8x256xf32>
    %272 = arith.mulf %271, %246 : vector<8x256xf32>
    %273 = arith.mulf %268, %250 : vector<8x256xf32>
    %274 = arith.mulf %273, %250 : vector<8x256xf32>
    %275 = arith.mulf %268, %254 : vector<8x256xf32>
    %276 = arith.mulf %275, %254 : vector<8x256xf32>
    %277 = arith.mulf %268, %246 : vector<8x256xf32>
    %278 = arith.mulf %277, %250 : vector<8x256xf32>
    %279 = arith.mulf %268, %246 : vector<8x256xf32>
    %280 = arith.mulf %279, %254 : vector<8x256xf32>
    %281 = arith.mulf %268, %250 : vector<8x256xf32>
    %282 = arith.mulf %281, %254 : vector<8x256xf32>
    %283 = arith.mulf %270, %246 : vector<8x256xf32>
    %284 = arith.mulf %270, %250 : vector<8x256xf32>
    %285 = arith.mulf %270, %254 : vector<8x256xf32>
    %286 = arith.addf %263, %272 : vector<8x256xf32>
    %287 = arith.subf %278, %285 : vector<8x256xf32>
    %288 = arith.addf %280, %284 : vector<8x256xf32>
    %289 = arith.addf %278, %285 : vector<8x256xf32>
    %290 = arith.addf %263, %274 : vector<8x256xf32>
    %291 = arith.subf %282, %283 : vector<8x256xf32>
    %292 = arith.subf %280, %284 : vector<8x256xf32>
    %293 = arith.addf %282, %283 : vector<8x256xf32>
    %294 = arith.addf %263, %276 : vector<8x256xf32>
    %295 = vector.extract_strided_slice %286 {offsets = [0, 0], sizes = [4, 256], strides = [1, 1]} : vector<8x256xf32> to vector<4x256xf32>
    %296 = vector.extract_strided_slice %287 {offsets = [0, 0], sizes = [4, 256], strides = [1, 1]} : vector<8x256xf32> to vector<4x256xf32>
    %297 = vector.extract_strided_slice %288 {offsets = [0, 0], sizes = [4, 256], strides = [1, 1]} : vector<8x256xf32> to vector<4x256xf32>
    %298 = vector.extract_strided_slice %289 {offsets = [0, 0], sizes = [4, 256], strides = [1, 1]} : vector<8x256xf32> to vector<4x256xf32>
    %299 = vector.extract_strided_slice %290 {offsets = [0, 0], sizes = [4, 256], strides = [1, 1]} : vector<8x256xf32> to vector<4x256xf32>
    %300 = vector.extract_strided_slice %291 {offsets = [0, 0], sizes = [4, 256], strides = [1, 1]} : vector<8x256xf32> to vector<4x256xf32>
    %301 = vector.extract_strided_slice %292 {offsets = [0, 0], sizes = [4, 256], strides = [1, 1]} : vector<8x256xf32> to vector<4x256xf32>
    %302 = vector.extract_strided_slice %293 {offsets = [0, 0], sizes = [4, 256], strides = [1, 1]} : vector<8x256xf32> to vector<4x256xf32>
    %303 = vector.extract_strided_slice %294 {offsets = [0, 0], sizes = [4, 256], strides = [1, 1]} : vector<8x256xf32> to vector<4x256xf32>
    %304 = vector.extract_strided_slice %286 {offsets = [4, 0], sizes = [4, 256], strides = [1, 1]} : vector<8x256xf32> to vector<4x256xf32>
    %305 = vector.extract_strided_slice %287 {offsets = [4, 0], sizes = [4, 256], strides = [1, 1]} : vector<8x256xf32> to vector<4x256xf32>
    %306 = vector.extract_strided_slice %288 {offsets = [4, 0], sizes = [4, 256], strides = [1, 1]} : vector<8x256xf32> to vector<4x256xf32>
    %307 = vector.extract_strided_slice %289 {offsets = [4, 0], sizes = [4, 256], strides = [1, 1]} : vector<8x256xf32> to vector<4x256xf32>
    %308 = vector.extract_strided_slice %290 {offsets = [4, 0], sizes = [4, 256], strides = [1, 1]} : vector<8x256xf32> to vector<4x256xf32>
    %309 = vector.extract_strided_slice %291 {offsets = [4, 0], sizes = [4, 256], strides = [1, 1]} : vector<8x256xf32> to vector<4x256xf32>
    %310 = vector.extract_strided_slice %292 {offsets = [4, 0], sizes = [4, 256], strides = [1, 1]} : vector<8x256xf32> to vector<4x256xf32>
    %311 = vector.extract_strided_slice %293 {offsets = [4, 0], sizes = [4, 256], strides = [1, 1]} : vector<8x256xf32> to vector<4x256xf32>
    %312 = vector.extract_strided_slice %294 {offsets = [4, 0], sizes = [4, 256], strides = [1, 1]} : vector<8x256xf32> to vector<4x256xf32>
    %313 = arith.mulf %295, %304 : vector<4x256xf32>
    %314 = arith.mulf %296, %307 : vector<4x256xf32>
    %315 = arith.addf %313, %314 : vector<4x256xf32>
    %316 = arith.mulf %297, %310 : vector<4x256xf32>
    %317 = arith.addf %315, %316 : vector<4x256xf32>
    %318 = arith.mulf %295, %305 : vector<4x256xf32>
    %319 = arith.mulf %296, %308 : vector<4x256xf32>
    %320 = arith.addf %318, %319 : vector<4x256xf32>
    %321 = arith.mulf %297, %311 : vector<4x256xf32>
    %322 = arith.addf %320, %321 : vector<4x256xf32>
    %323 = arith.mulf %295, %306 : vector<4x256xf32>
    %324 = arith.mulf %296, %309 : vector<4x256xf32>
    %325 = arith.addf %323, %324 : vector<4x256xf32>
    %326 = arith.mulf %297, %312 : vector<4x256xf32>
    %327 = arith.addf %325, %326 : vector<4x256xf32>
    %328 = arith.mulf %298, %304 : vector<4x256xf32>
    %329 = arith.mulf %299, %307 : vector<4x256xf32>
    %330 = arith.addf %328, %329 : vector<4x256xf32>
    %331 = arith.mulf %300, %310 : vector<4x256xf32>
    %332 = arith.addf %330, %331 : vector<4x256xf32>
    %333 = arith.mulf %298, %305 : vector<4x256xf32>
    %334 = arith.mulf %299, %308 : vector<4x256xf32>
    %335 = arith.addf %333, %334 : vector<4x256xf32>
    %336 = arith.mulf %300, %311 : vector<4x256xf32>
    %337 = arith.addf %335, %336 : vector<4x256xf32>
    %338 = arith.mulf %298, %306 : vector<4x256xf32>
    %339 = arith.mulf %299, %309 : vector<4x256xf32>
    %340 = arith.addf %338, %339 : vector<4x256xf32>
    %341 = arith.mulf %300, %312 : vector<4x256xf32>
    %342 = arith.addf %340, %341 : vector<4x256xf32>
    %343 = arith.mulf %301, %304 : vector<4x256xf32>
    %344 = arith.mulf %302, %307 : vector<4x256xf32>
    %345 = arith.addf %343, %344 : vector<4x256xf32>
    %346 = arith.mulf %303, %310 : vector<4x256xf32>
    %347 = arith.addf %345, %346 : vector<4x256xf32>
    %348 = arith.mulf %301, %305 : vector<4x256xf32>
    %349 = arith.mulf %302, %308 : vector<4x256xf32>
    %350 = arith.addf %348, %349 : vector<4x256xf32>
    %351 = arith.mulf %303, %311 : vector<4x256xf32>
    %352 = arith.addf %350, %351 : vector<4x256xf32>
    %353 = arith.mulf %301, %306 : vector<4x256xf32>
    %354 = arith.mulf %302, %309 : vector<4x256xf32>
    %355 = arith.addf %353, %354 : vector<4x256xf32>
    %356 = arith.mulf %303, %312 : vector<4x256xf32>
    %357 = arith.addf %355, %356 : vector<4x256xf32>
    %358 = vector.extract_strided_slice %317 {offsets = [0, 0], sizes = [2, 256], strides = [1, 1]} : vector<4x256xf32> to vector<2x256xf32>
    %359 = vector.extract_strided_slice %322 {offsets = [0, 0], sizes = [2, 256], strides = [1, 1]} : vector<4x256xf32> to vector<2x256xf32>
    %360 = vector.extract_strided_slice %327 {offsets = [0, 0], sizes = [2, 256], strides = [1, 1]} : vector<4x256xf32> to vector<2x256xf32>
    %361 = vector.extract_strided_slice %332 {offsets = [0, 0], sizes = [2, 256], strides = [1, 1]} : vector<4x256xf32> to vector<2x256xf32>
    %362 = vector.extract_strided_slice %337 {offsets = [0, 0], sizes = [2, 256], strides = [1, 1]} : vector<4x256xf32> to vector<2x256xf32>
    %363 = vector.extract_strided_slice %342 {offsets = [0, 0], sizes = [2, 256], strides = [1, 1]} : vector<4x256xf32> to vector<2x256xf32>
    %364 = vector.extract_strided_slice %347 {offsets = [0, 0], sizes = [2, 256], strides = [1, 1]} : vector<4x256xf32> to vector<2x256xf32>
    %365 = vector.extract_strided_slice %352 {offsets = [0, 0], sizes = [2, 256], strides = [1, 1]} : vector<4x256xf32> to vector<2x256xf32>
    %366 = vector.extract_strided_slice %357 {offsets = [0, 0], sizes = [2, 256], strides = [1, 1]} : vector<4x256xf32> to vector<2x256xf32>
    %367 = vector.extract_strided_slice %317 {offsets = [2, 0], sizes = [2, 256], strides = [1, 1]} : vector<4x256xf32> to vector<2x256xf32>
    %368 = vector.extract_strided_slice %322 {offsets = [2, 0], sizes = [2, 256], strides = [1, 1]} : vector<4x256xf32> to vector<2x256xf32>
    %369 = vector.extract_strided_slice %327 {offsets = [2, 0], sizes = [2, 256], strides = [1, 1]} : vector<4x256xf32> to vector<2x256xf32>
    %370 = vector.extract_strided_slice %332 {offsets = [2, 0], sizes = [2, 256], strides = [1, 1]} : vector<4x256xf32> to vector<2x256xf32>
    %371 = vector.extract_strided_slice %337 {offsets = [2, 0], sizes = [2, 256], strides = [1, 1]} : vector<4x256xf32> to vector<2x256xf32>
    %372 = vector.extract_strided_slice %342 {offsets = [2, 0], sizes = [2, 256], strides = [1, 1]} : vector<4x256xf32> to vector<2x256xf32>
    %373 = vector.extract_strided_slice %347 {offsets = [2, 0], sizes = [2, 256], strides = [1, 1]} : vector<4x256xf32> to vector<2x256xf32>
    %374 = vector.extract_strided_slice %352 {offsets = [2, 0], sizes = [2, 256], strides = [1, 1]} : vector<4x256xf32> to vector<2x256xf32>
    %375 = vector.extract_strided_slice %357 {offsets = [2, 0], sizes = [2, 256], strides = [1, 1]} : vector<4x256xf32> to vector<2x256xf32>
    %376 = arith.mulf %358, %367 : vector<2x256xf32>
    %377 = arith.mulf %359, %370 : vector<2x256xf32>
    %378 = arith.addf %376, %377 : vector<2x256xf32>
    %379 = arith.mulf %360, %373 : vector<2x256xf32>
    %380 = arith.addf %378, %379 : vector<2x256xf32>
    %381 = arith.mulf %358, %368 : vector<2x256xf32>
    %382 = arith.mulf %359, %371 : vector<2x256xf32>
    %383 = arith.addf %381, %382 : vector<2x256xf32>
    %384 = arith.mulf %360, %374 : vector<2x256xf32>
    %385 = arith.addf %383, %384 : vector<2x256xf32>
    %386 = arith.mulf %358, %369 : vector<2x256xf32>
    %387 = arith.mulf %359, %372 : vector<2x256xf32>
    %388 = arith.addf %386, %387 : vector<2x256xf32>
    %389 = arith.mulf %360, %375 : vector<2x256xf32>
    %390 = arith.addf %388, %389 : vector<2x256xf32>
    %391 = arith.mulf %361, %367 : vector<2x256xf32>
    %392 = arith.mulf %362, %370 : vector<2x256xf32>
    %393 = arith.addf %391, %392 : vector<2x256xf32>
    %394 = arith.mulf %363, %373 : vector<2x256xf32>
    %395 = arith.addf %393, %394 : vector<2x256xf32>
    %396 = arith.mulf %361, %368 : vector<2x256xf32>
    %397 = arith.mulf %362, %371 : vector<2x256xf32>
    %398 = arith.addf %396, %397 : vector<2x256xf32>
    %399 = arith.mulf %363, %374 : vector<2x256xf32>
    %400 = arith.addf %398, %399 : vector<2x256xf32>
    %401 = arith.mulf %361, %369 : vector<2x256xf32>
    %402 = arith.mulf %362, %372 : vector<2x256xf32>
    %403 = arith.addf %401, %402 : vector<2x256xf32>
    %404 = arith.mulf %363, %375 : vector<2x256xf32>
    %405 = arith.addf %403, %404 : vector<2x256xf32>
    %406 = arith.mulf %364, %367 : vector<2x256xf32>
    %407 = arith.mulf %365, %370 : vector<2x256xf32>
    %408 = arith.addf %406, %407 : vector<2x256xf32>
    %409 = arith.mulf %366, %373 : vector<2x256xf32>
    %410 = arith.addf %408, %409 : vector<2x256xf32>
    %411 = arith.mulf %364, %368 : vector<2x256xf32>
    %412 = arith.mulf %365, %371 : vector<2x256xf32>
    %413 = arith.addf %411, %412 : vector<2x256xf32>
    %414 = arith.mulf %366, %374 : vector<2x256xf32>
    %415 = arith.addf %413, %414 : vector<2x256xf32>
    %416 = arith.mulf %364, %369 : vector<2x256xf32>
    %417 = arith.mulf %365, %372 : vector<2x256xf32>
    %418 = arith.addf %416, %417 : vector<2x256xf32>
    %419 = arith.mulf %366, %375 : vector<2x256xf32>
    %420 = arith.addf %418, %419 : vector<2x256xf32>
    %421 = vector.extract_strided_slice %380 {offsets = [0, 0], sizes = [1, 256], strides = [1, 1]} : vector<2x256xf32> to vector<1x256xf32>
    %422 = vector.extract_strided_slice %385 {offsets = [0, 0], sizes = [1, 256], strides = [1, 1]} : vector<2x256xf32> to vector<1x256xf32>
    %423 = vector.extract_strided_slice %390 {offsets = [0, 0], sizes = [1, 256], strides = [1, 1]} : vector<2x256xf32> to vector<1x256xf32>
    %424 = vector.extract_strided_slice %395 {offsets = [0, 0], sizes = [1, 256], strides = [1, 1]} : vector<2x256xf32> to vector<1x256xf32>
    %425 = vector.extract_strided_slice %400 {offsets = [0, 0], sizes = [1, 256], strides = [1, 1]} : vector<2x256xf32> to vector<1x256xf32>
    %426 = vector.extract_strided_slice %405 {offsets = [0, 0], sizes = [1, 256], strides = [1, 1]} : vector<2x256xf32> to vector<1x256xf32>
    %427 = vector.extract_strided_slice %410 {offsets = [0, 0], sizes = [1, 256], strides = [1, 1]} : vector<2x256xf32> to vector<1x256xf32>
    %428 = vector.extract_strided_slice %415 {offsets = [0, 0], sizes = [1, 256], strides = [1, 1]} : vector<2x256xf32> to vector<1x256xf32>
    %429 = vector.extract_strided_slice %420 {offsets = [0, 0], sizes = [1, 256], strides = [1, 1]} : vector<2x256xf32> to vector<1x256xf32>
    %430 = vector.extract_strided_slice %380 {offsets = [1, 0], sizes = [1, 256], strides = [1, 1]} : vector<2x256xf32> to vector<1x256xf32>
    %431 = vector.extract_strided_slice %385 {offsets = [1, 0], sizes = [1, 256], strides = [1, 1]} : vector<2x256xf32> to vector<1x256xf32>
    %432 = vector.extract_strided_slice %390 {offsets = [1, 0], sizes = [1, 256], strides = [1, 1]} : vector<2x256xf32> to vector<1x256xf32>
    %433 = vector.extract_strided_slice %395 {offsets = [1, 0], sizes = [1, 256], strides = [1, 1]} : vector<2x256xf32> to vector<1x256xf32>
    %434 = vector.extract_strided_slice %400 {offsets = [1, 0], sizes = [1, 256], strides = [1, 1]} : vector<2x256xf32> to vector<1x256xf32>
    %435 = vector.extract_strided_slice %405 {offsets = [1, 0], sizes = [1, 256], strides = [1, 1]} : vector<2x256xf32> to vector<1x256xf32>
    %436 = vector.extract_strided_slice %410 {offsets = [1, 0], sizes = [1, 256], strides = [1, 1]} : vector<2x256xf32> to vector<1x256xf32>
    %437 = vector.extract_strided_slice %415 {offsets = [1, 0], sizes = [1, 256], strides = [1, 1]} : vector<2x256xf32> to vector<1x256xf32>
    %438 = vector.extract_strided_slice %420 {offsets = [1, 0], sizes = [1, 256], strides = [1, 1]} : vector<2x256xf32> to vector<1x256xf32>
    %439 = arith.mulf %421, %430 : vector<1x256xf32>
    %440 = arith.mulf %422, %433 : vector<1x256xf32>
    %441 = arith.addf %439, %440 : vector<1x256xf32>
    %442 = arith.mulf %423, %436 : vector<1x256xf32>
    %443 = arith.addf %441, %442 : vector<1x256xf32>
    %444 = arith.mulf %421, %431 : vector<1x256xf32>
    %445 = arith.mulf %422, %434 : vector<1x256xf32>
    %446 = arith.addf %444, %445 : vector<1x256xf32>
    %447 = arith.mulf %423, %437 : vector<1x256xf32>
    %448 = arith.addf %446, %447 : vector<1x256xf32>
    %449 = arith.mulf %421, %432 : vector<1x256xf32>
    %450 = arith.mulf %422, %435 : vector<1x256xf32>
    %451 = arith.addf %449, %450 : vector<1x256xf32>
    %452 = arith.mulf %423, %438 : vector<1x256xf32>
    %453 = arith.addf %451, %452 : vector<1x256xf32>
    %454 = arith.mulf %424, %430 : vector<1x256xf32>
    %455 = arith.mulf %425, %433 : vector<1x256xf32>
    %456 = arith.addf %454, %455 : vector<1x256xf32>
    %457 = arith.mulf %426, %436 : vector<1x256xf32>
    %458 = arith.addf %456, %457 : vector<1x256xf32>
    %459 = arith.mulf %424, %431 : vector<1x256xf32>
    %460 = arith.mulf %425, %434 : vector<1x256xf32>
    %461 = arith.addf %459, %460 : vector<1x256xf32>
    %462 = arith.mulf %426, %437 : vector<1x256xf32>
    %463 = arith.addf %461, %462 : vector<1x256xf32>
    %464 = arith.mulf %424, %432 : vector<1x256xf32>
    %465 = arith.mulf %425, %435 : vector<1x256xf32>
    %466 = arith.addf %464, %465 : vector<1x256xf32>
    %467 = arith.mulf %426, %438 : vector<1x256xf32>
    %468 = arith.addf %466, %467 : vector<1x256xf32>
    %469 = arith.mulf %427, %430 : vector<1x256xf32>
    %470 = arith.mulf %428, %433 : vector<1x256xf32>
    %471 = arith.addf %469, %470 : vector<1x256xf32>
    %472 = arith.mulf %429, %436 : vector<1x256xf32>
    %473 = arith.addf %471, %472 : vector<1x256xf32>
    %474 = arith.mulf %427, %431 : vector<1x256xf32>
    %475 = arith.mulf %428, %434 : vector<1x256xf32>
    %476 = arith.addf %474, %475 : vector<1x256xf32>
    %477 = arith.mulf %429, %437 : vector<1x256xf32>
    %478 = arith.addf %476, %477 : vector<1x256xf32>
    %479 = arith.mulf %427, %432 : vector<1x256xf32>
    %480 = arith.mulf %428, %435 : vector<1x256xf32>
    %481 = arith.addf %479, %480 : vector<1x256xf32>
    %482 = arith.mulf %429, %438 : vector<1x256xf32>
    %483 = arith.addf %481, %482 : vector<1x256xf32>
    %484 = arith.mulf %201, %443 : vector<1x256xf32>
    %485 = arith.mulf %206, %458 : vector<1x256xf32>
    %486 = arith.addf %484, %485 : vector<1x256xf32>
    %487 = arith.mulf %211, %473 : vector<1x256xf32>
    %488 = arith.addf %486, %487 : vector<1x256xf32>
    %489 = arith.mulf %201, %448 : vector<1x256xf32>
    %490 = arith.mulf %206, %463 : vector<1x256xf32>
    %491 = arith.addf %489, %490 : vector<1x256xf32>
    %492 = arith.mulf %211, %478 : vector<1x256xf32>
    %493 = arith.addf %491, %492 : vector<1x256xf32>
    %494 = arith.mulf %201, %453 : vector<1x256xf32>
    %495 = arith.mulf %206, %468 : vector<1x256xf32>
    %496 = arith.addf %494, %495 : vector<1x256xf32>
    %497 = arith.mulf %211, %483 : vector<1x256xf32>
    %498 = arith.addf %496, %497 : vector<1x256xf32>
    %499 = arith.mulf %216, %443 : vector<1x256xf32>
    %500 = arith.mulf %221, %458 : vector<1x256xf32>
    %501 = arith.addf %499, %500 : vector<1x256xf32>
    %502 = arith.mulf %226, %473 : vector<1x256xf32>
    %503 = arith.addf %501, %502 : vector<1x256xf32>
    %504 = arith.mulf %216, %448 : vector<1x256xf32>
    %505 = arith.mulf %221, %463 : vector<1x256xf32>
    %506 = arith.addf %504, %505 : vector<1x256xf32>
    %507 = arith.mulf %226, %478 : vector<1x256xf32>
    %508 = arith.addf %506, %507 : vector<1x256xf32>
    %509 = arith.mulf %216, %453 : vector<1x256xf32>
    %510 = arith.mulf %221, %468 : vector<1x256xf32>
    %511 = arith.addf %509, %510 : vector<1x256xf32>
    %512 = arith.mulf %226, %483 : vector<1x256xf32>
    %513 = arith.addf %511, %512 : vector<1x256xf32>
    %514 = arith.mulf %231, %443 : vector<1x256xf32>
    %515 = arith.mulf %236, %458 : vector<1x256xf32>
    %516 = arith.addf %514, %515 : vector<1x256xf32>
    %517 = arith.mulf %241, %473 : vector<1x256xf32>
    %518 = arith.addf %516, %517 : vector<1x256xf32>
    %519 = arith.mulf %231, %448 : vector<1x256xf32>
    %520 = arith.mulf %236, %463 : vector<1x256xf32>
    %521 = arith.addf %519, %520 : vector<1x256xf32>
    %522 = arith.mulf %241, %478 : vector<1x256xf32>
    %523 = arith.addf %521, %522 : vector<1x256xf32>
    %524 = arith.mulf %231, %453 : vector<1x256xf32>
    %525 = arith.mulf %236, %468 : vector<1x256xf32>
    %526 = arith.addf %524, %525 : vector<1x256xf32>
    %527 = arith.mulf %241, %483 : vector<1x256xf32>
    %528 = arith.addf %526, %527 : vector<1x256xf32>
    %c0_13 = arith.constant 0 : index
    %c16 = arith.constant 16 : index
    %c0_14 = arith.constant 0 : index
    %529 = vector.load %arg1[%c0_13, %c16, %c0_14] : memref<3x32x256xf32, #tpu.memory_space<vmem>>, vector<3x8x256xf32>
    %530 = vector.extract_strided_slice %529 {offsets = [0, 0, 0], sizes = [1, 8, 256], strides = [1, 1, 1]} : vector<3x8x256xf32> to vector<1x8x256xf32>
    %531 = vector.shape_cast %530 : vector<1x8x256xf32> to vector<8x256xf32>
    %cst_15 = arith.constant 5.000000e-03 : f32
    %532 = vector.broadcast %cst_15 : f32 to vector<8x256xf32>
    %533 = arith.mulf %531, %532 : vector<8x256xf32>
    %534 = vector.extract_strided_slice %529 {offsets = [1, 0, 0], sizes = [1, 8, 256], strides = [1, 1, 1]} : vector<3x8x256xf32> to vector<1x8x256xf32>
    %535 = vector.shape_cast %534 : vector<1x8x256xf32> to vector<8x256xf32>
    %cst_16 = arith.constant 5.000000e-03 : f32
    %536 = vector.broadcast %cst_16 : f32 to vector<8x256xf32>
    %537 = arith.mulf %535, %536 : vector<8x256xf32>
    %538 = vector.extract_strided_slice %529 {offsets = [2, 0, 0], sizes = [1, 8, 256], strides = [1, 1, 1]} : vector<3x8x256xf32> to vector<1x8x256xf32>
    %539 = vector.shape_cast %538 : vector<1x8x256xf32> to vector<8x256xf32>
    %cst_17 = arith.constant 5.000000e-03 : f32
    %540 = vector.broadcast %cst_17 : f32 to vector<8x256xf32>
    %541 = arith.mulf %539, %540 : vector<8x256xf32>
    %542 = arith.mulf %533, %533 : vector<8x256xf32>
    %543 = arith.mulf %537, %537 : vector<8x256xf32>
    %544 = arith.addf %542, %543 : vector<8x256xf32>
    %545 = arith.mulf %541, %541 : vector<8x256xf32>
    %546 = arith.addf %544, %545 : vector<8x256xf32>
    %cst_18 = arith.constant 9.99999996E-13 : f32
    %547 = vector.broadcast %cst_18 : f32 to vector<8x256xf32>
    %548 = arith.maximumf %546, %547 : vector<8x256xf32>
    %549 = math.sqrt %548 : vector<8x256xf32>
    %550 = math.cos %549 : vector<8x256xf32>
    %551 = math.sin %549 : vector<8x256xf32>
    %cst_19 = arith.constant 1.000000e+00 : f32
    %552 = vector.broadcast %cst_19 : f32 to vector<8x256xf32>
    %553 = arith.subf %552, %550 : vector<8x256xf32>
    %554 = tpu.reciprocal %548 {approx = true} : vector<8x256xf32> -> vector<8x256xf32>
    %555 = arith.mulf %553, %554 : vector<8x256xf32>
    %556 = math.rsqrt %548 : vector<8x256xf32>
    %557 = arith.mulf %551, %556 : vector<8x256xf32>
    %558 = arith.mulf %555, %533 : vector<8x256xf32>
    %559 = arith.mulf %558, %533 : vector<8x256xf32>
    %560 = arith.mulf %555, %537 : vector<8x256xf32>
    %561 = arith.mulf %560, %537 : vector<8x256xf32>
    %562 = arith.mulf %555, %541 : vector<8x256xf32>
    %563 = arith.mulf %562, %541 : vector<8x256xf32>
    %564 = arith.mulf %555, %533 : vector<8x256xf32>
    %565 = arith.mulf %564, %537 : vector<8x256xf32>
    %566 = arith.mulf %555, %533 : vector<8x256xf32>
    %567 = arith.mulf %566, %541 : vector<8x256xf32>
    %568 = arith.mulf %555, %537 : vector<8x256xf32>
    %569 = arith.mulf %568, %541 : vector<8x256xf32>
    %570 = arith.mulf %557, %533 : vector<8x256xf32>
    %571 = arith.mulf %557, %537 : vector<8x256xf32>
    %572 = arith.mulf %557, %541 : vector<8x256xf32>
    %573 = arith.addf %550, %559 : vector<8x256xf32>
    %574 = arith.subf %565, %572 : vector<8x256xf32>
    %575 = arith.addf %567, %571 : vector<8x256xf32>
    %576 = arith.addf %565, %572 : vector<8x256xf32>
    %577 = arith.addf %550, %561 : vector<8x256xf32>
    %578 = arith.subf %569, %570 : vector<8x256xf32>
    %579 = arith.subf %567, %571 : vector<8x256xf32>
    %580 = arith.addf %569, %570 : vector<8x256xf32>
    %581 = arith.addf %550, %563 : vector<8x256xf32>
    %582 = vector.extract_strided_slice %573 {offsets = [0, 0], sizes = [4, 256], strides = [1, 1]} : vector<8x256xf32> to vector<4x256xf32>
    %583 = vector.extract_strided_slice %574 {offsets = [0, 0], sizes = [4, 256], strides = [1, 1]} : vector<8x256xf32> to vector<4x256xf32>
    %584 = vector.extract_strided_slice %575 {offsets = [0, 0], sizes = [4, 256], strides = [1, 1]} : vector<8x256xf32> to vector<4x256xf32>
    %585 = vector.extract_strided_slice %576 {offsets = [0, 0], sizes = [4, 256], strides = [1, 1]} : vector<8x256xf32> to vector<4x256xf32>
    %586 = vector.extract_strided_slice %577 {offsets = [0, 0], sizes = [4, 256], strides = [1, 1]} : vector<8x256xf32> to vector<4x256xf32>
    %587 = vector.extract_strided_slice %578 {offsets = [0, 0], sizes = [4, 256], strides = [1, 1]} : vector<8x256xf32> to vector<4x256xf32>
    %588 = vector.extract_strided_slice %579 {offsets = [0, 0], sizes = [4, 256], strides = [1, 1]} : vector<8x256xf32> to vector<4x256xf32>
    %589 = vector.extract_strided_slice %580 {offsets = [0, 0], sizes = [4, 256], strides = [1, 1]} : vector<8x256xf32> to vector<4x256xf32>
    %590 = vector.extract_strided_slice %581 {offsets = [0, 0], sizes = [4, 256], strides = [1, 1]} : vector<8x256xf32> to vector<4x256xf32>
    %591 = vector.extract_strided_slice %573 {offsets = [4, 0], sizes = [4, 256], strides = [1, 1]} : vector<8x256xf32> to vector<4x256xf32>
    %592 = vector.extract_strided_slice %574 {offsets = [4, 0], sizes = [4, 256], strides = [1, 1]} : vector<8x256xf32> to vector<4x256xf32>
    %593 = vector.extract_strided_slice %575 {offsets = [4, 0], sizes = [4, 256], strides = [1, 1]} : vector<8x256xf32> to vector<4x256xf32>
    %594 = vector.extract_strided_slice %576 {offsets = [4, 0], sizes = [4, 256], strides = [1, 1]} : vector<8x256xf32> to vector<4x256xf32>
    %595 = vector.extract_strided_slice %577 {offsets = [4, 0], sizes = [4, 256], strides = [1, 1]} : vector<8x256xf32> to vector<4x256xf32>
    %596 = vector.extract_strided_slice %578 {offsets = [4, 0], sizes = [4, 256], strides = [1, 1]} : vector<8x256xf32> to vector<4x256xf32>
    %597 = vector.extract_strided_slice %579 {offsets = [4, 0], sizes = [4, 256], strides = [1, 1]} : vector<8x256xf32> to vector<4x256xf32>
    %598 = vector.extract_strided_slice %580 {offsets = [4, 0], sizes = [4, 256], strides = [1, 1]} : vector<8x256xf32> to vector<4x256xf32>
    %599 = vector.extract_strided_slice %581 {offsets = [4, 0], sizes = [4, 256], strides = [1, 1]} : vector<8x256xf32> to vector<4x256xf32>
    %600 = arith.mulf %582, %591 : vector<4x256xf32>
    %601 = arith.mulf %583, %594 : vector<4x256xf32>
    %602 = arith.addf %600, %601 : vector<4x256xf32>
    %603 = arith.mulf %584, %597 : vector<4x256xf32>
    %604 = arith.addf %602, %603 : vector<4x256xf32>
    %605 = arith.mulf %582, %592 : vector<4x256xf32>
    %606 = arith.mulf %583, %595 : vector<4x256xf32>
    %607 = arith.addf %605, %606 : vector<4x256xf32>
    %608 = arith.mulf %584, %598 : vector<4x256xf32>
    %609 = arith.addf %607, %608 : vector<4x256xf32>
    %610 = arith.mulf %582, %593 : vector<4x256xf32>
    %611 = arith.mulf %583, %596 : vector<4x256xf32>
    %612 = arith.addf %610, %611 : vector<4x256xf32>
    %613 = arith.mulf %584, %599 : vector<4x256xf32>
    %614 = arith.addf %612, %613 : vector<4x256xf32>
    %615 = arith.mulf %585, %591 : vector<4x256xf32>
    %616 = arith.mulf %586, %594 : vector<4x256xf32>
    %617 = arith.addf %615, %616 : vector<4x256xf32>
    %618 = arith.mulf %587, %597 : vector<4x256xf32>
    %619 = arith.addf %617, %618 : vector<4x256xf32>
    %620 = arith.mulf %585, %592 : vector<4x256xf32>
    %621 = arith.mulf %586, %595 : vector<4x256xf32>
    %622 = arith.addf %620, %621 : vector<4x256xf32>
    %623 = arith.mulf %587, %598 : vector<4x256xf32>
    %624 = arith.addf %622, %623 : vector<4x256xf32>
    %625 = arith.mulf %585, %593 : vector<4x256xf32>
    %626 = arith.mulf %586, %596 : vector<4x256xf32>
    %627 = arith.addf %625, %626 : vector<4x256xf32>
    %628 = arith.mulf %587, %599 : vector<4x256xf32>
    %629 = arith.addf %627, %628 : vector<4x256xf32>
    %630 = arith.mulf %588, %591 : vector<4x256xf32>
    %631 = arith.mulf %589, %594 : vector<4x256xf32>
    %632 = arith.addf %630, %631 : vector<4x256xf32>
    %633 = arith.mulf %590, %597 : vector<4x256xf32>
    %634 = arith.addf %632, %633 : vector<4x256xf32>
    %635 = arith.mulf %588, %592 : vector<4x256xf32>
    %636 = arith.mulf %589, %595 : vector<4x256xf32>
    %637 = arith.addf %635, %636 : vector<4x256xf32>
    %638 = arith.mulf %590, %598 : vector<4x256xf32>
    %639 = arith.addf %637, %638 : vector<4x256xf32>
    %640 = arith.mulf %588, %593 : vector<4x256xf32>
    %641 = arith.mulf %589, %596 : vector<4x256xf32>
    %642 = arith.addf %640, %641 : vector<4x256xf32>
    %643 = arith.mulf %590, %599 : vector<4x256xf32>
    %644 = arith.addf %642, %643 : vector<4x256xf32>
    %645 = vector.extract_strided_slice %604 {offsets = [0, 0], sizes = [2, 256], strides = [1, 1]} : vector<4x256xf32> to vector<2x256xf32>
    %646 = vector.extract_strided_slice %609 {offsets = [0, 0], sizes = [2, 256], strides = [1, 1]} : vector<4x256xf32> to vector<2x256xf32>
    %647 = vector.extract_strided_slice %614 {offsets = [0, 0], sizes = [2, 256], strides = [1, 1]} : vector<4x256xf32> to vector<2x256xf32>
    %648 = vector.extract_strided_slice %619 {offsets = [0, 0], sizes = [2, 256], strides = [1, 1]} : vector<4x256xf32> to vector<2x256xf32>
    %649 = vector.extract_strided_slice %624 {offsets = [0, 0], sizes = [2, 256], strides = [1, 1]} : vector<4x256xf32> to vector<2x256xf32>
    %650 = vector.extract_strided_slice %629 {offsets = [0, 0], sizes = [2, 256], strides = [1, 1]} : vector<4x256xf32> to vector<2x256xf32>
    %651 = vector.extract_strided_slice %634 {offsets = [0, 0], sizes = [2, 256], strides = [1, 1]} : vector<4x256xf32> to vector<2x256xf32>
    %652 = vector.extract_strided_slice %639 {offsets = [0, 0], sizes = [2, 256], strides = [1, 1]} : vector<4x256xf32> to vector<2x256xf32>
    %653 = vector.extract_strided_slice %644 {offsets = [0, 0], sizes = [2, 256], strides = [1, 1]} : vector<4x256xf32> to vector<2x256xf32>
    %654 = vector.extract_strided_slice %604 {offsets = [2, 0], sizes = [2, 256], strides = [1, 1]} : vector<4x256xf32> to vector<2x256xf32>
    %655 = vector.extract_strided_slice %609 {offsets = [2, 0], sizes = [2, 256], strides = [1, 1]} : vector<4x256xf32> to vector<2x256xf32>
    %656 = vector.extract_strided_slice %614 {offsets = [2, 0], sizes = [2, 256], strides = [1, 1]} : vector<4x256xf32> to vector<2x256xf32>
    %657 = vector.extract_strided_slice %619 {offsets = [2, 0], sizes = [2, 256], strides = [1, 1]} : vector<4x256xf32> to vector<2x256xf32>
    %658 = vector.extract_strided_slice %624 {offsets = [2, 0], sizes = [2, 256], strides = [1, 1]} : vector<4x256xf32> to vector<2x256xf32>
    %659 = vector.extract_strided_slice %629 {offsets = [2, 0], sizes = [2, 256], strides = [1, 1]} : vector<4x256xf32> to vector<2x256xf32>
    %660 = vector.extract_strided_slice %634 {offsets = [2, 0], sizes = [2, 256], strides = [1, 1]} : vector<4x256xf32> to vector<2x256xf32>
    %661 = vector.extract_strided_slice %639 {offsets = [2, 0], sizes = [2, 256], strides = [1, 1]} : vector<4x256xf32> to vector<2x256xf32>
    %662 = vector.extract_strided_slice %644 {offsets = [2, 0], sizes = [2, 256], strides = [1, 1]} : vector<4x256xf32> to vector<2x256xf32>
    %663 = arith.mulf %645, %654 : vector<2x256xf32>
    %664 = arith.mulf %646, %657 : vector<2x256xf32>
    %665 = arith.addf %663, %664 : vector<2x256xf32>
    %666 = arith.mulf %647, %660 : vector<2x256xf32>
    %667 = arith.addf %665, %666 : vector<2x256xf32>
    %668 = arith.mulf %645, %655 : vector<2x256xf32>
    %669 = arith.mulf %646, %658 : vector<2x256xf32>
    %670 = arith.addf %668, %669 : vector<2x256xf32>
    %671 = arith.mulf %647, %661 : vector<2x256xf32>
    %672 = arith.addf %670, %671 : vector<2x256xf32>
    %673 = arith.mulf %645, %656 : vector<2x256xf32>
    %674 = arith.mulf %646, %659 : vector<2x256xf32>
    %675 = arith.addf %673, %674 : vector<2x256xf32>
    %676 = arith.mulf %647, %662 : vector<2x256xf32>
    %677 = arith.addf %675, %676 : vector<2x256xf32>
    %678 = arith.mulf %648, %654 : vector<2x256xf32>
    %679 = arith.mulf %649, %657 : vector<2x256xf32>
    %680 = arith.addf %678, %679 : vector<2x256xf32>
    %681 = arith.mulf %650, %660 : vector<2x256xf32>
    %682 = arith.addf %680, %681 : vector<2x256xf32>
    %683 = arith.mulf %648, %655 : vector<2x256xf32>
    %684 = arith.mulf %649, %658 : vector<2x256xf32>
    %685 = arith.addf %683, %684 : vector<2x256xf32>
    %686 = arith.mulf %650, %661 : vector<2x256xf32>
    %687 = arith.addf %685, %686 : vector<2x256xf32>
    %688 = arith.mulf %648, %656 : vector<2x256xf32>
    %689 = arith.mulf %649, %659 : vector<2x256xf32>
    %690 = arith.addf %688, %689 : vector<2x256xf32>
    %691 = arith.mulf %650, %662 : vector<2x256xf32>
    %692 = arith.addf %690, %691 : vector<2x256xf32>
    %693 = arith.mulf %651, %654 : vector<2x256xf32>
    %694 = arith.mulf %652, %657 : vector<2x256xf32>
    %695 = arith.addf %693, %694 : vector<2x256xf32>
    %696 = arith.mulf %653, %660 : vector<2x256xf32>
    %697 = arith.addf %695, %696 : vector<2x256xf32>
    %698 = arith.mulf %651, %655 : vector<2x256xf32>
    %699 = arith.mulf %652, %658 : vector<2x256xf32>
    %700 = arith.addf %698, %699 : vector<2x256xf32>
    %701 = arith.mulf %653, %661 : vector<2x256xf32>
    %702 = arith.addf %700, %701 : vector<2x256xf32>
    %703 = arith.mulf %651, %656 : vector<2x256xf32>
    %704 = arith.mulf %652, %659 : vector<2x256xf32>
    %705 = arith.addf %703, %704 : vector<2x256xf32>
    %706 = arith.mulf %653, %662 : vector<2x256xf32>
    %707 = arith.addf %705, %706 : vector<2x256xf32>
    %708 = vector.extract_strided_slice %667 {offsets = [0, 0], sizes = [1, 256], strides = [1, 1]} : vector<2x256xf32> to vector<1x256xf32>
    %709 = vector.extract_strided_slice %672 {offsets = [0, 0], sizes = [1, 256], strides = [1, 1]} : vector<2x256xf32> to vector<1x256xf32>
    %710 = vector.extract_strided_slice %677 {offsets = [0, 0], sizes = [1, 256], strides = [1, 1]} : vector<2x256xf32> to vector<1x256xf32>
    %711 = vector.extract_strided_slice %682 {offsets = [0, 0], sizes = [1, 256], strides = [1, 1]} : vector<2x256xf32> to vector<1x256xf32>
    %712 = vector.extract_strided_slice %687 {offsets = [0, 0], sizes = [1, 256], strides = [1, 1]} : vector<2x256xf32> to vector<1x256xf32>
    %713 = vector.extract_strided_slice %692 {offsets = [0, 0], sizes = [1, 256], strides = [1, 1]} : vector<2x256xf32> to vector<1x256xf32>
    %714 = vector.extract_strided_slice %697 {offsets = [0, 0], sizes = [1, 256], strides = [1, 1]} : vector<2x256xf32> to vector<1x256xf32>
    %715 = vector.extract_strided_slice %702 {offsets = [0, 0], sizes = [1, 256], strides = [1, 1]} : vector<2x256xf32> to vector<1x256xf32>
    %716 = vector.extract_strided_slice %707 {offsets = [0, 0], sizes = [1, 256], strides = [1, 1]} : vector<2x256xf32> to vector<1x256xf32>
    %717 = vector.extract_strided_slice %667 {offsets = [1, 0], sizes = [1, 256], strides = [1, 1]} : vector<2x256xf32> to vector<1x256xf32>
    %718 = vector.extract_strided_slice %672 {offsets = [1, 0], sizes = [1, 256], strides = [1, 1]} : vector<2x256xf32> to vector<1x256xf32>
    %719 = vector.extract_strided_slice %677 {offsets = [1, 0], sizes = [1, 256], strides = [1, 1]} : vector<2x256xf32> to vector<1x256xf32>
    %720 = vector.extract_strided_slice %682 {offsets = [1, 0], sizes = [1, 256], strides = [1, 1]} : vector<2x256xf32> to vector<1x256xf32>
    %721 = vector.extract_strided_slice %687 {offsets = [1, 0], sizes = [1, 256], strides = [1, 1]} : vector<2x256xf32> to vector<1x256xf32>
    %722 = vector.extract_strided_slice %692 {offsets = [1, 0], sizes = [1, 256], strides = [1, 1]} : vector<2x256xf32> to vector<1x256xf32>
    %723 = vector.extract_strided_slice %697 {offsets = [1, 0], sizes = [1, 256], strides = [1, 1]} : vector<2x256xf32> to vector<1x256xf32>
    %724 = vector.extract_strided_slice %702 {offsets = [1, 0], sizes = [1, 256], strides = [1, 1]} : vector<2x256xf32> to vector<1x256xf32>
    %725 = vector.extract_strided_slice %707 {offsets = [1, 0], sizes = [1, 256], strides = [1, 1]} : vector<2x256xf32> to vector<1x256xf32>
    %726 = arith.mulf %708, %717 : vector<1x256xf32>
    %727 = arith.mulf %709, %720 : vector<1x256xf32>
    %728 = arith.addf %726, %727 : vector<1x256xf32>
    %729 = arith.mulf %710, %723 : vector<1x256xf32>
    %730 = arith.addf %728, %729 : vector<1x256xf32>
    %731 = arith.mulf %708, %718 : vector<1x256xf32>
    %732 = arith.mulf %709, %721 : vector<1x256xf32>
    %733 = arith.addf %731, %732 : vector<1x256xf32>
    %734 = arith.mulf %710, %724 : vector<1x256xf32>
    %735 = arith.addf %733, %734 : vector<1x256xf32>
    %736 = arith.mulf %708, %719 : vector<1x256xf32>
    %737 = arith.mulf %709, %722 : vector<1x256xf32>
    %738 = arith.addf %736, %737 : vector<1x256xf32>
    %739 = arith.mulf %710, %725 : vector<1x256xf32>
    %740 = arith.addf %738, %739 : vector<1x256xf32>
    %741 = arith.mulf %711, %717 : vector<1x256xf32>
    %742 = arith.mulf %712, %720 : vector<1x256xf32>
    %743 = arith.addf %741, %742 : vector<1x256xf32>
    %744 = arith.mulf %713, %723 : vector<1x256xf32>
    %745 = arith.addf %743, %744 : vector<1x256xf32>
    %746 = arith.mulf %711, %718 : vector<1x256xf32>
    %747 = arith.mulf %712, %721 : vector<1x256xf32>
    %748 = arith.addf %746, %747 : vector<1x256xf32>
    %749 = arith.mulf %713, %724 : vector<1x256xf32>
    %750 = arith.addf %748, %749 : vector<1x256xf32>
    %751 = arith.mulf %711, %719 : vector<1x256xf32>
    %752 = arith.mulf %712, %722 : vector<1x256xf32>
    %753 = arith.addf %751, %752 : vector<1x256xf32>
    %754 = arith.mulf %713, %725 : vector<1x256xf32>
    %755 = arith.addf %753, %754 : vector<1x256xf32>
    %756 = arith.mulf %714, %717 : vector<1x256xf32>
    %757 = arith.mulf %715, %720 : vector<1x256xf32>
    %758 = arith.addf %756, %757 : vector<1x256xf32>
    %759 = arith.mulf %716, %723 : vector<1x256xf32>
    %760 = arith.addf %758, %759 : vector<1x256xf32>
    %761 = arith.mulf %714, %718 : vector<1x256xf32>
    %762 = arith.mulf %715, %721 : vector<1x256xf32>
    %763 = arith.addf %761, %762 : vector<1x256xf32>
    %764 = arith.mulf %716, %724 : vector<1x256xf32>
    %765 = arith.addf %763, %764 : vector<1x256xf32>
    %766 = arith.mulf %714, %719 : vector<1x256xf32>
    %767 = arith.mulf %715, %722 : vector<1x256xf32>
    %768 = arith.addf %766, %767 : vector<1x256xf32>
    %769 = arith.mulf %716, %725 : vector<1x256xf32>
    %770 = arith.addf %768, %769 : vector<1x256xf32>
    %771 = arith.mulf %488, %730 : vector<1x256xf32>
    %772 = arith.mulf %493, %745 : vector<1x256xf32>
    %773 = arith.addf %771, %772 : vector<1x256xf32>
    %774 = arith.mulf %498, %760 : vector<1x256xf32>
    %775 = arith.addf %773, %774 : vector<1x256xf32>
    %776 = arith.mulf %488, %735 : vector<1x256xf32>
    %777 = arith.mulf %493, %750 : vector<1x256xf32>
    %778 = arith.addf %776, %777 : vector<1x256xf32>
    %779 = arith.mulf %498, %765 : vector<1x256xf32>
    %780 = arith.addf %778, %779 : vector<1x256xf32>
    %781 = arith.mulf %488, %740 : vector<1x256xf32>
    %782 = arith.mulf %493, %755 : vector<1x256xf32>
    %783 = arith.addf %781, %782 : vector<1x256xf32>
    %784 = arith.mulf %498, %770 : vector<1x256xf32>
    %785 = arith.addf %783, %784 : vector<1x256xf32>
    %786 = arith.mulf %503, %730 : vector<1x256xf32>
    %787 = arith.mulf %508, %745 : vector<1x256xf32>
    %788 = arith.addf %786, %787 : vector<1x256xf32>
    %789 = arith.mulf %513, %760 : vector<1x256xf32>
    %790 = arith.addf %788, %789 : vector<1x256xf32>
    %791 = arith.mulf %503, %735 : vector<1x256xf32>
    %792 = arith.mulf %508, %750 : vector<1x256xf32>
    %793 = arith.addf %791, %792 : vector<1x256xf32>
    %794 = arith.mulf %513, %765 : vector<1x256xf32>
    %795 = arith.addf %793, %794 : vector<1x256xf32>
    %796 = arith.mulf %503, %740 : vector<1x256xf32>
    %797 = arith.mulf %508, %755 : vector<1x256xf32>
    %798 = arith.addf %796, %797 : vector<1x256xf32>
    %799 = arith.mulf %513, %770 : vector<1x256xf32>
    %800 = arith.addf %798, %799 : vector<1x256xf32>
    %801 = arith.mulf %518, %730 : vector<1x256xf32>
    %802 = arith.mulf %523, %745 : vector<1x256xf32>
    %803 = arith.addf %801, %802 : vector<1x256xf32>
    %804 = arith.mulf %528, %760 : vector<1x256xf32>
    %805 = arith.addf %803, %804 : vector<1x256xf32>
    %806 = arith.mulf %518, %735 : vector<1x256xf32>
    %807 = arith.mulf %523, %750 : vector<1x256xf32>
    %808 = arith.addf %806, %807 : vector<1x256xf32>
    %809 = arith.mulf %528, %765 : vector<1x256xf32>
    %810 = arith.addf %808, %809 : vector<1x256xf32>
    %811 = arith.mulf %518, %740 : vector<1x256xf32>
    %812 = arith.mulf %523, %755 : vector<1x256xf32>
    %813 = arith.addf %811, %812 : vector<1x256xf32>
    %814 = arith.mulf %528, %770 : vector<1x256xf32>
    %815 = arith.addf %813, %814 : vector<1x256xf32>
    %c0_20 = arith.constant 0 : index
    %c24 = arith.constant 24 : index
    %c0_21 = arith.constant 0 : index
    %816 = vector.load %arg1[%c0_20, %c24, %c0_21] : memref<3x32x256xf32, #tpu.memory_space<vmem>>, vector<3x8x256xf32>
    %817 = vector.extract_strided_slice %816 {offsets = [0, 0, 0], sizes = [1, 8, 256], strides = [1, 1, 1]} : vector<3x8x256xf32> to vector<1x8x256xf32>
    %818 = vector.shape_cast %817 : vector<1x8x256xf32> to vector<8x256xf32>
    %cst_22 = arith.constant 5.000000e-03 : f32
    %819 = vector.broadcast %cst_22 : f32 to vector<8x256xf32>
    %820 = arith.mulf %818, %819 : vector<8x256xf32>
    %821 = vector.extract_strided_slice %816 {offsets = [1, 0, 0], sizes = [1, 8, 256], strides = [1, 1, 1]} : vector<3x8x256xf32> to vector<1x8x256xf32>
    %822 = vector.shape_cast %821 : vector<1x8x256xf32> to vector<8x256xf32>
    %cst_23 = arith.constant 5.000000e-03 : f32
    %823 = vector.broadcast %cst_23 : f32 to vector<8x256xf32>
    %824 = arith.mulf %822, %823 : vector<8x256xf32>
    %825 = vector.extract_strided_slice %816 {offsets = [2, 0, 0], sizes = [1, 8, 256], strides = [1, 1, 1]} : vector<3x8x256xf32> to vector<1x8x256xf32>
    %826 = vector.shape_cast %825 : vector<1x8x256xf32> to vector<8x256xf32>
    %cst_24 = arith.constant 5.000000e-03 : f32
    %827 = vector.broadcast %cst_24 : f32 to vector<8x256xf32>
    %828 = arith.mulf %826, %827 : vector<8x256xf32>
    %829 = arith.mulf %820, %820 : vector<8x256xf32>
    %830 = arith.mulf %824, %824 : vector<8x256xf32>
    %831 = arith.addf %829, %830 : vector<8x256xf32>
    %832 = arith.mulf %828, %828 : vector<8x256xf32>
    %833 = arith.addf %831, %832 : vector<8x256xf32>
    %cst_25 = arith.constant 9.99999996E-13 : f32
    %834 = vector.broadcast %cst_25 : f32 to vector<8x256xf32>
    %835 = arith.maximumf %833, %834 : vector<8x256xf32>
    %836 = math.sqrt %835 : vector<8x256xf32>
    %837 = math.cos %836 : vector<8x256xf32>
    %838 = math.sin %836 : vector<8x256xf32>
    %cst_26 = arith.constant 1.000000e+00 : f32
    %839 = vector.broadcast %cst_26 : f32 to vector<8x256xf32>
    %840 = arith.subf %839, %837 : vector<8x256xf32>
    %841 = tpu.reciprocal %835 {approx = true} : vector<8x256xf32> -> vector<8x256xf32>
    %842 = arith.mulf %840, %841 : vector<8x256xf32>
    %843 = math.rsqrt %835 : vector<8x256xf32>
    %844 = arith.mulf %838, %843 : vector<8x256xf32>
    %845 = arith.mulf %842, %820 : vector<8x256xf32>
    %846 = arith.mulf %845, %820 : vector<8x256xf32>
    %847 = arith.mulf %842, %824 : vector<8x256xf32>
    %848 = arith.mulf %847, %824 : vector<8x256xf32>
    %849 = arith.mulf %842, %828 : vector<8x256xf32>
    %850 = arith.mulf %849, %828 : vector<8x256xf32>
    %851 = arith.mulf %842, %820 : vector<8x256xf32>
    %852 = arith.mulf %851, %824 : vector<8x256xf32>
    %853 = arith.mulf %842, %820 : vector<8x256xf32>
    %854 = arith.mulf %853, %828 : vector<8x256xf32>
    %855 = arith.mulf %842, %824 : vector<8x256xf32>
    %856 = arith.mulf %855, %828 : vector<8x256xf32>
    %857 = arith.mulf %844, %820 : vector<8x256xf32>
    %858 = arith.mulf %844, %824 : vector<8x256xf32>
    %859 = arith.mulf %844, %828 : vector<8x256xf32>
    %860 = arith.addf %837, %846 : vector<8x256xf32>
    %861 = arith.subf %852, %859 : vector<8x256xf32>
    %862 = arith.addf %854, %858 : vector<8x256xf32>
    %863 = arith.addf %852, %859 : vector<8x256xf32>
    %864 = arith.addf %837, %848 : vector<8x256xf32>
    %865 = arith.subf %856, %857 : vector<8x256xf32>
    %866 = arith.subf %854, %858 : vector<8x256xf32>
    %867 = arith.addf %856, %857 : vector<8x256xf32>
    %868 = arith.addf %837, %850 : vector<8x256xf32>
    %869 = vector.extract_strided_slice %860 {offsets = [0, 0], sizes = [4, 256], strides = [1, 1]} : vector<8x256xf32> to vector<4x256xf32>
    %870 = vector.extract_strided_slice %861 {offsets = [0, 0], sizes = [4, 256], strides = [1, 1]} : vector<8x256xf32> to vector<4x256xf32>
    %871 = vector.extract_strided_slice %862 {offsets = [0, 0], sizes = [4, 256], strides = [1, 1]} : vector<8x256xf32> to vector<4x256xf32>
    %872 = vector.extract_strided_slice %863 {offsets = [0, 0], sizes = [4, 256], strides = [1, 1]} : vector<8x256xf32> to vector<4x256xf32>
    %873 = vector.extract_strided_slice %864 {offsets = [0, 0], sizes = [4, 256], strides = [1, 1]} : vector<8x256xf32> to vector<4x256xf32>
    %874 = vector.extract_strided_slice %865 {offsets = [0, 0], sizes = [4, 256], strides = [1, 1]} : vector<8x256xf32> to vector<4x256xf32>
    %875 = vector.extract_strided_slice %866 {offsets = [0, 0], sizes = [4, 256], strides = [1, 1]} : vector<8x256xf32> to vector<4x256xf32>
    %876 = vector.extract_strided_slice %867 {offsets = [0, 0], sizes = [4, 256], strides = [1, 1]} : vector<8x256xf32> to vector<4x256xf32>
    %877 = vector.extract_strided_slice %868 {offsets = [0, 0], sizes = [4, 256], strides = [1, 1]} : vector<8x256xf32> to vector<4x256xf32>
    %878 = vector.extract_strided_slice %860 {offsets = [4, 0], sizes = [4, 256], strides = [1, 1]} : vector<8x256xf32> to vector<4x256xf32>
    %879 = vector.extract_strided_slice %861 {offsets = [4, 0], sizes = [4, 256], strides = [1, 1]} : vector<8x256xf32> to vector<4x256xf32>
    %880 = vector.extract_strided_slice %862 {offsets = [4, 0], sizes = [4, 256], strides = [1, 1]} : vector<8x256xf32> to vector<4x256xf32>
    %881 = vector.extract_strided_slice %863 {offsets = [4, 0], sizes = [4, 256], strides = [1, 1]} : vector<8x256xf32> to vector<4x256xf32>
    %882 = vector.extract_strided_slice %864 {offsets = [4, 0], sizes = [4, 256], strides = [1, 1]} : vector<8x256xf32> to vector<4x256xf32>
    %883 = vector.extract_strided_slice %865 {offsets = [4, 0], sizes = [4, 256], strides = [1, 1]} : vector<8x256xf32> to vector<4x256xf32>
    %884 = vector.extract_strided_slice %866 {offsets = [4, 0], sizes = [4, 256], strides = [1, 1]} : vector<8x256xf32> to vector<4x256xf32>
    %885 = vector.extract_strided_slice %867 {offsets = [4, 0], sizes = [4, 256], strides = [1, 1]} : vector<8x256xf32> to vector<4x256xf32>
    %886 = vector.extract_strided_slice %868 {offsets = [4, 0], sizes = [4, 256], strides = [1, 1]} : vector<8x256xf32> to vector<4x256xf32>
    %887 = arith.mulf %869, %878 : vector<4x256xf32>
    %888 = arith.mulf %870, %881 : vector<4x256xf32>
    %889 = arith.addf %887, %888 : vector<4x256xf32>
    %890 = arith.mulf %871, %884 : vector<4x256xf32>
    %891 = arith.addf %889, %890 : vector<4x256xf32>
    %892 = arith.mulf %869, %879 : vector<4x256xf32>
    %893 = arith.mulf %870, %882 : vector<4x256xf32>
    %894 = arith.addf %892, %893 : vector<4x256xf32>
    %895 = arith.mulf %871, %885 : vector<4x256xf32>
    %896 = arith.addf %894, %895 : vector<4x256xf32>
    %897 = arith.mulf %869, %880 : vector<4x256xf32>
    %898 = arith.mulf %870, %883 : vector<4x256xf32>
    %899 = arith.addf %897, %898 : vector<4x256xf32>
    %900 = arith.mulf %871, %886 : vector<4x256xf32>
    %901 = arith.addf %899, %900 : vector<4x256xf32>
    %902 = arith.mulf %872, %878 : vector<4x256xf32>
    %903 = arith.mulf %873, %881 : vector<4x256xf32>
    %904 = arith.addf %902, %903 : vector<4x256xf32>
    %905 = arith.mulf %874, %884 : vector<4x256xf32>
    %906 = arith.addf %904, %905 : vector<4x256xf32>
    %907 = arith.mulf %872, %879 : vector<4x256xf32>
    %908 = arith.mulf %873, %882 : vector<4x256xf32>
    %909 = arith.addf %907, %908 : vector<4x256xf32>
    %910 = arith.mulf %874, %885 : vector<4x256xf32>
    %911 = arith.addf %909, %910 : vector<4x256xf32>
    %912 = arith.mulf %872, %880 : vector<4x256xf32>
    %913 = arith.mulf %873, %883 : vector<4x256xf32>
    %914 = arith.addf %912, %913 : vector<4x256xf32>
    %915 = arith.mulf %874, %886 : vector<4x256xf32>
    %916 = arith.addf %914, %915 : vector<4x256xf32>
    %917 = arith.mulf %875, %878 : vector<4x256xf32>
    %918 = arith.mulf %876, %881 : vector<4x256xf32>
    %919 = arith.addf %917, %918 : vector<4x256xf32>
    %920 = arith.mulf %877, %884 : vector<4x256xf32>
    %921 = arith.addf %919, %920 : vector<4x256xf32>
    %922 = arith.mulf %875, %879 : vector<4x256xf32>
    %923 = arith.mulf %876, %882 : vector<4x256xf32>
    %924 = arith.addf %922, %923 : vector<4x256xf32>
    %925 = arith.mulf %877, %885 : vector<4x256xf32>
    %926 = arith.addf %924, %925 : vector<4x256xf32>
    %927 = arith.mulf %875, %880 : vector<4x256xf32>
    %928 = arith.mulf %876, %883 : vector<4x256xf32>
    %929 = arith.addf %927, %928 : vector<4x256xf32>
    %930 = arith.mulf %877, %886 : vector<4x256xf32>
    %931 = arith.addf %929, %930 : vector<4x256xf32>
    %932 = vector.extract_strided_slice %891 {offsets = [0, 0], sizes = [2, 256], strides = [1, 1]} : vector<4x256xf32> to vector<2x256xf32>
    %933 = vector.extract_strided_slice %896 {offsets = [0, 0], sizes = [2, 256], strides = [1, 1]} : vector<4x256xf32> to vector<2x256xf32>
    %934 = vector.extract_strided_slice %901 {offsets = [0, 0], sizes = [2, 256], strides = [1, 1]} : vector<4x256xf32> to vector<2x256xf32>
    %935 = vector.extract_strided_slice %906 {offsets = [0, 0], sizes = [2, 256], strides = [1, 1]} : vector<4x256xf32> to vector<2x256xf32>
    %936 = vector.extract_strided_slice %911 {offsets = [0, 0], sizes = [2, 256], strides = [1, 1]} : vector<4x256xf32> to vector<2x256xf32>
    %937 = vector.extract_strided_slice %916 {offsets = [0, 0], sizes = [2, 256], strides = [1, 1]} : vector<4x256xf32> to vector<2x256xf32>
    %938 = vector.extract_strided_slice %921 {offsets = [0, 0], sizes = [2, 256], strides = [1, 1]} : vector<4x256xf32> to vector<2x256xf32>
    %939 = vector.extract_strided_slice %926 {offsets = [0, 0], sizes = [2, 256], strides = [1, 1]} : vector<4x256xf32> to vector<2x256xf32>
    %940 = vector.extract_strided_slice %931 {offsets = [0, 0], sizes = [2, 256], strides = [1, 1]} : vector<4x256xf32> to vector<2x256xf32>
    %941 = vector.extract_strided_slice %891 {offsets = [2, 0], sizes = [2, 256], strides = [1, 1]} : vector<4x256xf32> to vector<2x256xf32>
    %942 = vector.extract_strided_slice %896 {offsets = [2, 0], sizes = [2, 256], strides = [1, 1]} : vector<4x256xf32> to vector<2x256xf32>
    %943 = vector.extract_strided_slice %901 {offsets = [2, 0], sizes = [2, 256], strides = [1, 1]} : vector<4x256xf32> to vector<2x256xf32>
    %944 = vector.extract_strided_slice %906 {offsets = [2, 0], sizes = [2, 256], strides = [1, 1]} : vector<4x256xf32> to vector<2x256xf32>
    %945 = vector.extract_strided_slice %911 {offsets = [2, 0], sizes = [2, 256], strides = [1, 1]} : vector<4x256xf32> to vector<2x256xf32>
    %946 = vector.extract_strided_slice %916 {offsets = [2, 0], sizes = [2, 256], strides = [1, 1]} : vector<4x256xf32> to vector<2x256xf32>
    %947 = vector.extract_strided_slice %921 {offsets = [2, 0], sizes = [2, 256], strides = [1, 1]} : vector<4x256xf32> to vector<2x256xf32>
    %948 = vector.extract_strided_slice %926 {offsets = [2, 0], sizes = [2, 256], strides = [1, 1]} : vector<4x256xf32> to vector<2x256xf32>
    %949 = vector.extract_strided_slice %931 {offsets = [2, 0], sizes = [2, 256], strides = [1, 1]} : vector<4x256xf32> to vector<2x256xf32>
    %950 = arith.mulf %932, %941 : vector<2x256xf32>
    %951 = arith.mulf %933, %944 : vector<2x256xf32>
    %952 = arith.addf %950, %951 : vector<2x256xf32>
    %953 = arith.mulf %934, %947 : vector<2x256xf32>
    %954 = arith.addf %952, %953 : vector<2x256xf32>
    %955 = arith.mulf %932, %942 : vector<2x256xf32>
    %956 = arith.mulf %933, %945 : vector<2x256xf32>
    %957 = arith.addf %955, %956 : vector<2x256xf32>
    %958 = arith.mulf %934, %948 : vector<2x256xf32>
    %959 = arith.addf %957, %958 : vector<2x256xf32>
    %960 = arith.mulf %932, %943 : vector<2x256xf32>
    %961 = arith.mulf %933, %946 : vector<2x256xf32>
    %962 = arith.addf %960, %961 : vector<2x256xf32>
    %963 = arith.mulf %934, %949 : vector<2x256xf32>
    %964 = arith.addf %962, %963 : vector<2x256xf32>
    %965 = arith.mulf %935, %941 : vector<2x256xf32>
    %966 = arith.mulf %936, %944 : vector<2x256xf32>
    %967 = arith.addf %965, %966 : vector<2x256xf32>
    %968 = arith.mulf %937, %947 : vector<2x256xf32>
    %969 = arith.addf %967, %968 : vector<2x256xf32>
    %970 = arith.mulf %935, %942 : vector<2x256xf32>
    %971 = arith.mulf %936, %945 : vector<2x256xf32>
    %972 = arith.addf %970, %971 : vector<2x256xf32>
    %973 = arith.mulf %937, %948 : vector<2x256xf32>
    %974 = arith.addf %972, %973 : vector<2x256xf32>
    %975 = arith.mulf %935, %943 : vector<2x256xf32>
    %976 = arith.mulf %936, %946 : vector<2x256xf32>
    %977 = arith.addf %975, %976 : vector<2x256xf32>
    %978 = arith.mulf %937, %949 : vector<2x256xf32>
    %979 = arith.addf %977, %978 : vector<2x256xf32>
    %980 = arith.mulf %938, %941 : vector<2x256xf32>
    %981 = arith.mulf %939, %944 : vector<2x256xf32>
    %982 = arith.addf %980, %981 : vector<2x256xf32>
    %983 = arith.mulf %940, %947 : vector<2x256xf32>
    %984 = arith.addf %982, %983 : vector<2x256xf32>
    %985 = arith.mulf %938, %942 : vector<2x256xf32>
    %986 = arith.mulf %939, %945 : vector<2x256xf32>
    %987 = arith.addf %985, %986 : vector<2x256xf32>
    %988 = arith.mulf %940, %948 : vector<2x256xf32>
    %989 = arith.addf %987, %988 : vector<2x256xf32>
    %990 = arith.mulf %938, %943 : vector<2x256xf32>
    %991 = arith.mulf %939, %946 : vector<2x256xf32>
    %992 = arith.addf %990, %991 : vector<2x256xf32>
    %993 = arith.mulf %940, %949 : vector<2x256xf32>
    %994 = arith.addf %992, %993 : vector<2x256xf32>
    %995 = vector.extract_strided_slice %954 {offsets = [0, 0], sizes = [1, 256], strides = [1, 1]} : vector<2x256xf32> to vector<1x256xf32>
    %996 = vector.extract_strided_slice %959 {offsets = [0, 0], sizes = [1, 256], strides = [1, 1]} : vector<2x256xf32> to vector<1x256xf32>
    %997 = vector.extract_strided_slice %964 {offsets = [0, 0], sizes = [1, 256], strides = [1, 1]} : vector<2x256xf32> to vector<1x256xf32>
    %998 = vector.extract_strided_slice %969 {offsets = [0, 0], sizes = [1, 256], strides = [1, 1]} : vector<2x256xf32> to vector<1x256xf32>
    %999 = vector.extract_strided_slice %974 {offsets = [0, 0], sizes = [1, 256], strides = [1, 1]} : vector<2x256xf32> to vector<1x256xf32>
    %1000 = vector.extract_strided_slice %979 {offsets = [0, 0], sizes = [1, 256], strides = [1, 1]} : vector<2x256xf32> to vector<1x256xf32>
    %1001 = vector.extract_strided_slice %984 {offsets = [0, 0], sizes = [1, 256], strides = [1, 1]} : vector<2x256xf32> to vector<1x256xf32>
    %1002 = vector.extract_strided_slice %989 {offsets = [0, 0], sizes = [1, 256], strides = [1, 1]} : vector<2x256xf32> to vector<1x256xf32>
    %1003 = vector.extract_strided_slice %994 {offsets = [0, 0], sizes = [1, 256], strides = [1, 1]} : vector<2x256xf32> to vector<1x256xf32>
    %1004 = vector.extract_strided_slice %954 {offsets = [1, 0], sizes = [1, 256], strides = [1, 1]} : vector<2x256xf32> to vector<1x256xf32>
    %1005 = vector.extract_strided_slice %959 {offsets = [1, 0], sizes = [1, 256], strides = [1, 1]} : vector<2x256xf32> to vector<1x256xf32>
    %1006 = vector.extract_strided_slice %964 {offsets = [1, 0], sizes = [1, 256], strides = [1, 1]} : vector<2x256xf32> to vector<1x256xf32>
    %1007 = vector.extract_strided_slice %969 {offsets = [1, 0], sizes = [1, 256], strides = [1, 1]} : vector<2x256xf32> to vector<1x256xf32>
    %1008 = vector.extract_strided_slice %974 {offsets = [1, 0], sizes = [1, 256], strides = [1, 1]} : vector<2x256xf32> to vector<1x256xf32>
    %1009 = vector.extract_strided_slice %979 {offsets = [1, 0], sizes = [1, 256], strides = [1, 1]} : vector<2x256xf32> to vector<1x256xf32>
    %1010 = vector.extract_strided_slice %984 {offsets = [1, 0], sizes = [1, 256], strides = [1, 1]} : vector<2x256xf32> to vector<1x256xf32>
    %1011 = vector.extract_strided_slice %989 {offsets = [1, 0], sizes = [1, 256], strides = [1, 1]} : vector<2x256xf32> to vector<1x256xf32>
    %1012 = vector.extract_strided_slice %994 {offsets = [1, 0], sizes = [1, 256], strides = [1, 1]} : vector<2x256xf32> to vector<1x256xf32>
    %1013 = arith.mulf %995, %1004 : vector<1x256xf32>
    %1014 = arith.mulf %996, %1007 : vector<1x256xf32>
    %1015 = arith.addf %1013, %1014 : vector<1x256xf32>
    %1016 = arith.mulf %997, %1010 : vector<1x256xf32>
    %1017 = arith.addf %1015, %1016 : vector<1x256xf32>
    %1018 = arith.mulf %995, %1005 : vector<1x256xf32>
    %1019 = arith.mulf %996, %1008 : vector<1x256xf32>
    %1020 = arith.addf %1018, %1019 : vector<1x256xf32>
    %1021 = arith.mulf %997, %1011 : vector<1x256xf32>
    %1022 = arith.addf %1020, %1021 : vector<1x256xf32>
    %1023 = arith.mulf %995, %1006 : vector<1x256xf32>
    %1024 = arith.mulf %996, %1009 : vector<1x256xf32>
    %1025 = arith.addf %1023, %1024 : vector<1x256xf32>
    %1026 = arith.mulf %997, %1012 : vector<1x256xf32>
    %1027 = arith.addf %1025, %1026 : vector<1x256xf32>
    %1028 = arith.mulf %998, %1004 : vector<1x256xf32>
    %1029 = arith.mulf %999, %1007 : vector<1x256xf32>
    %1030 = arith.addf %1028, %1029 : vector<1x256xf32>
    %1031 = arith.mulf %1000, %1010 : vector<1x256xf32>
    %1032 = arith.addf %1030, %1031 : vector<1x256xf32>
    %1033 = arith.mulf %998, %1005 : vector<1x256xf32>
    %1034 = arith.mulf %999, %1008 : vector<1x256xf32>
    %1035 = arith.addf %1033, %1034 : vector<1x256xf32>
    %1036 = arith.mulf %1000, %1011 : vector<1x256xf32>
    %1037 = arith.addf %1035, %1036 : vector<1x256xf32>
    %1038 = arith.mulf %998, %1006 : vector<1x256xf32>
    %1039 = arith.mulf %999, %1009 : vector<1x256xf32>
    %1040 = arith.addf %1038, %1039 : vector<1x256xf32>
    %1041 = arith.mulf %1000, %1012 : vector<1x256xf32>
    %1042 = arith.addf %1040, %1041 : vector<1x256xf32>
    %1043 = arith.mulf %1001, %1004 : vector<1x256xf32>
    %1044 = arith.mulf %1002, %1007 : vector<1x256xf32>
    %1045 = arith.addf %1043, %1044 : vector<1x256xf32>
    %1046 = arith.mulf %1003, %1010 : vector<1x256xf32>
    %1047 = arith.addf %1045, %1046 : vector<1x256xf32>
    %1048 = arith.mulf %1001, %1005 : vector<1x256xf32>
    %1049 = arith.mulf %1002, %1008 : vector<1x256xf32>
    %1050 = arith.addf %1048, %1049 : vector<1x256xf32>
    %1051 = arith.mulf %1003, %1011 : vector<1x256xf32>
    %1052 = arith.addf %1050, %1051 : vector<1x256xf32>
    %1053 = arith.mulf %1001, %1006 : vector<1x256xf32>
    %1054 = arith.mulf %1002, %1009 : vector<1x256xf32>
    %1055 = arith.addf %1053, %1054 : vector<1x256xf32>
    %1056 = arith.mulf %1003, %1012 : vector<1x256xf32>
    %1057 = arith.addf %1055, %1056 : vector<1x256xf32>
    %1058 = arith.mulf %775, %1017 : vector<1x256xf32>
    %1059 = arith.mulf %780, %1032 : vector<1x256xf32>
    %1060 = arith.addf %1058, %1059 : vector<1x256xf32>
    %1061 = arith.mulf %785, %1047 : vector<1x256xf32>
    %1062 = arith.addf %1060, %1061 : vector<1x256xf32>
    %1063 = arith.mulf %775, %1022 : vector<1x256xf32>
    %1064 = arith.mulf %780, %1037 : vector<1x256xf32>
    %1065 = arith.addf %1063, %1064 : vector<1x256xf32>
    %1066 = arith.mulf %785, %1052 : vector<1x256xf32>
    %1067 = arith.addf %1065, %1066 : vector<1x256xf32>
    %1068 = arith.mulf %775, %1027 : vector<1x256xf32>
    %1069 = arith.mulf %780, %1042 : vector<1x256xf32>
    %1070 = arith.addf %1068, %1069 : vector<1x256xf32>
    %1071 = arith.mulf %785, %1057 : vector<1x256xf32>
    %1072 = arith.addf %1070, %1071 : vector<1x256xf32>
    %1073 = arith.mulf %790, %1017 : vector<1x256xf32>
    %1074 = arith.mulf %795, %1032 : vector<1x256xf32>
    %1075 = arith.addf %1073, %1074 : vector<1x256xf32>
    %1076 = arith.mulf %800, %1047 : vector<1x256xf32>
    %1077 = arith.addf %1075, %1076 : vector<1x256xf32>
    %1078 = arith.mulf %790, %1022 : vector<1x256xf32>
    %1079 = arith.mulf %795, %1037 : vector<1x256xf32>
    %1080 = arith.addf %1078, %1079 : vector<1x256xf32>
    %1081 = arith.mulf %800, %1052 : vector<1x256xf32>
    %1082 = arith.addf %1080, %1081 : vector<1x256xf32>
    %1083 = arith.mulf %790, %1027 : vector<1x256xf32>
    %1084 = arith.mulf %795, %1042 : vector<1x256xf32>
    %1085 = arith.addf %1083, %1084 : vector<1x256xf32>
    %1086 = arith.mulf %800, %1057 : vector<1x256xf32>
    %1087 = arith.addf %1085, %1086 : vector<1x256xf32>
    %1088 = arith.mulf %805, %1017 : vector<1x256xf32>
    %1089 = arith.mulf %810, %1032 : vector<1x256xf32>
    %1090 = arith.addf %1088, %1089 : vector<1x256xf32>
    %1091 = arith.mulf %815, %1047 : vector<1x256xf32>
    %1092 = arith.addf %1090, %1091 : vector<1x256xf32>
    %1093 = arith.mulf %805, %1022 : vector<1x256xf32>
    %1094 = arith.mulf %810, %1037 : vector<1x256xf32>
    %1095 = arith.addf %1093, %1094 : vector<1x256xf32>
    %1096 = arith.mulf %815, %1052 : vector<1x256xf32>
    %1097 = arith.addf %1095, %1096 : vector<1x256xf32>
    %1098 = arith.mulf %805, %1027 : vector<1x256xf32>
    %1099 = arith.mulf %810, %1042 : vector<1x256xf32>
    %1100 = arith.addf %1098, %1099 : vector<1x256xf32>
    %1101 = arith.mulf %815, %1057 : vector<1x256xf32>
    %1102 = arith.addf %1100, %1101 : vector<1x256xf32>
    %c0_27 = arith.constant 0 : index
    %c0_28 = arith.constant 0 : index
    %1103 = vector.load %arg2[%c0_27, %c0_28] : memref<16x256xf32, #tpu.memory_space<vmem>>, vector<1x256xf32>
    %c1 = arith.constant 1 : index
    %c0_29 = arith.constant 0 : index
    %1104 = vector.load %arg2[%c1, %c0_29] : memref<16x256xf32, #tpu.memory_space<vmem>>, vector<1x256xf32>
    %c2 = arith.constant 2 : index
    %c0_30 = arith.constant 0 : index
    %1105 = vector.load %arg2[%c2, %c0_30] : memref<16x256xf32, #tpu.memory_space<vmem>>, vector<1x256xf32>
    %c3 = arith.constant 3 : index
    %c0_31 = arith.constant 0 : index
    %1106 = vector.load %arg2[%c3, %c0_31] : memref<16x256xf32, #tpu.memory_space<vmem>>, vector<1x256xf32>
    %c4 = arith.constant 4 : index
    %c0_32 = arith.constant 0 : index
    %1107 = vector.load %arg2[%c4, %c0_32] : memref<16x256xf32, #tpu.memory_space<vmem>>, vector<1x256xf32>
    %c5 = arith.constant 5 : index
    %c0_33 = arith.constant 0 : index
    %1108 = vector.load %arg2[%c5, %c0_33] : memref<16x256xf32, #tpu.memory_space<vmem>>, vector<1x256xf32>
    %c6 = arith.constant 6 : index
    %c0_34 = arith.constant 0 : index
    %1109 = vector.load %arg2[%c6, %c0_34] : memref<16x256xf32, #tpu.memory_space<vmem>>, vector<1x256xf32>
    %c7 = arith.constant 7 : index
    %c0_35 = arith.constant 0 : index
    %1110 = vector.load %arg2[%c7, %c0_35] : memref<16x256xf32, #tpu.memory_space<vmem>>, vector<1x256xf32>
    %c8_36 = arith.constant 8 : index
    %c0_37 = arith.constant 0 : index
    %1111 = vector.load %arg2[%c8_36, %c0_37] : memref<16x256xf32, #tpu.memory_space<vmem>>, vector<1x256xf32>
    %1112 = arith.mulf %1062, %1103 : vector<1x256xf32>
    %1113 = arith.mulf %1077, %1106 : vector<1x256xf32>
    %1114 = arith.addf %1112, %1113 : vector<1x256xf32>
    %1115 = arith.mulf %1092, %1109 : vector<1x256xf32>
    %1116 = arith.addf %1114, %1115 : vector<1x256xf32>
    %1117 = arith.mulf %1062, %1104 : vector<1x256xf32>
    %1118 = arith.mulf %1077, %1107 : vector<1x256xf32>
    %1119 = arith.addf %1117, %1118 : vector<1x256xf32>
    %1120 = arith.mulf %1092, %1110 : vector<1x256xf32>
    %1121 = arith.addf %1119, %1120 : vector<1x256xf32>
    %1122 = arith.mulf %1062, %1105 : vector<1x256xf32>
    %1123 = arith.mulf %1077, %1108 : vector<1x256xf32>
    %1124 = arith.addf %1122, %1123 : vector<1x256xf32>
    %1125 = arith.mulf %1092, %1111 : vector<1x256xf32>
    %1126 = arith.addf %1124, %1125 : vector<1x256xf32>
    %1127 = arith.mulf %1067, %1103 : vector<1x256xf32>
    %1128 = arith.mulf %1082, %1106 : vector<1x256xf32>
    %1129 = arith.addf %1127, %1128 : vector<1x256xf32>
    %1130 = arith.mulf %1097, %1109 : vector<1x256xf32>
    %1131 = arith.addf %1129, %1130 : vector<1x256xf32>
    %1132 = arith.mulf %1067, %1104 : vector<1x256xf32>
    %1133 = arith.mulf %1082, %1107 : vector<1x256xf32>
    %1134 = arith.addf %1132, %1133 : vector<1x256xf32>
    %1135 = arith.mulf %1097, %1110 : vector<1x256xf32>
    %1136 = arith.addf %1134, %1135 : vector<1x256xf32>
    %1137 = arith.mulf %1067, %1105 : vector<1x256xf32>
    %1138 = arith.mulf %1082, %1108 : vector<1x256xf32>
    %1139 = arith.addf %1137, %1138 : vector<1x256xf32>
    %1140 = arith.mulf %1097, %1111 : vector<1x256xf32>
    %1141 = arith.addf %1139, %1140 : vector<1x256xf32>
    %1142 = arith.mulf %1072, %1103 : vector<1x256xf32>
    %1143 = arith.mulf %1087, %1106 : vector<1x256xf32>
    %1144 = arith.addf %1142, %1143 : vector<1x256xf32>
    %1145 = arith.mulf %1102, %1109 : vector<1x256xf32>
    %1146 = arith.addf %1144, %1145 : vector<1x256xf32>
    %1147 = arith.mulf %1072, %1104 : vector<1x256xf32>
    %1148 = arith.mulf %1087, %1107 : vector<1x256xf32>
    %1149 = arith.addf %1147, %1148 : vector<1x256xf32>
    %1150 = arith.mulf %1102, %1110 : vector<1x256xf32>
    %1151 = arith.addf %1149, %1150 : vector<1x256xf32>
    %1152 = arith.mulf %1072, %1105 : vector<1x256xf32>
    %1153 = arith.mulf %1087, %1108 : vector<1x256xf32>
    %1154 = arith.addf %1152, %1153 : vector<1x256xf32>
    %1155 = arith.mulf %1102, %1111 : vector<1x256xf32>
    %1156 = arith.addf %1154, %1155 : vector<1x256xf32>
    %1157 = arith.addf %1116, %1136 : vector<1x256xf32>
    %1158 = arith.addf %1157, %1156 : vector<1x256xf32>
    %cst_38 = arith.constant 5.000000e-01 : f32
    %1159 = vector.broadcast %cst_38 : f32 to vector<1x256xf32>
    %1160 = arith.mulf %1159, %1158 : vector<1x256xf32>
    %cst_39 = arith.constant 5.000000e-01 : f32
    %1161 = vector.broadcast %cst_39 : f32 to vector<1x256xf32>
    %1162 = arith.subf %1160, %1161 : vector<1x256xf32>
    %cst_40 = arith.constant -0.999998986 : f32
    %cst_41 = arith.constant 0.999998986 : f32
    %1163 = vector.broadcast %cst_40 : f32 to vector<1x256xf32>
    %1164 = arith.maximumf %1163, %1162 : vector<1x256xf32>
    %1165 = vector.broadcast %cst_41 : f32 to vector<1x256xf32>
    %1166 = arith.minimumf %1165, %1164 : vector<1x256xf32>
    %1167 = arith.mulf %1166, %1166 : vector<1x256xf32>
    %cst_42 = arith.constant 1.000000e+00 : f32
    %1168 = vector.broadcast %cst_42 : f32 to vector<1x256xf32>
    %1169 = arith.subf %1168, %1167 : vector<1x256xf32>
    %cst_43 = arith.constant 9.99999996E-13 : f32
    %1170 = vector.broadcast %cst_43 : f32 to vector<1x256xf32>
    %1171 = arith.maximumf %1169, %1170 : vector<1x256xf32>
    %1172 = math.sqrt %1171 : vector<1x256xf32>
    %cst_44 = arith.constant 1.57079637 : f32
    %1173 = vector.broadcast %cst_44 : f32 to vector<1x256xf32>
    %1174 = arith.subf %1173, %1166 : vector<1x256xf32>
    %1175 = math.sin %1174 : vector<1x256xf32>
    %1176 = arith.mulf %1175, %1166 : vector<1x256xf32>
    %1177 = math.cos %1174 : vector<1x256xf32>
    %1178 = arith.mulf %1177, %1172 : vector<1x256xf32>
    %1179 = arith.subf %1176, %1178 : vector<1x256xf32>
    %1180 = arith.subf %1174, %1179 : vector<1x256xf32>
    %1181 = math.sin %1180 : vector<1x256xf32>
    %1182 = arith.mulf %1181, %1166 : vector<1x256xf32>
    %1183 = math.cos %1180 : vector<1x256xf32>
    %1184 = arith.mulf %1183, %1172 : vector<1x256xf32>
    %1185 = arith.subf %1182, %1184 : vector<1x256xf32>
    %1186 = arith.subf %1180, %1185 : vector<1x256xf32>
    %1187 = math.sin %1186 : vector<1x256xf32>
    %1188 = arith.mulf %1187, %1166 : vector<1x256xf32>
    %1189 = math.cos %1186 : vector<1x256xf32>
    %1190 = arith.mulf %1189, %1172 : vector<1x256xf32>
    %1191 = arith.subf %1188, %1190 : vector<1x256xf32>
    %1192 = arith.subf %1186, %1191 : vector<1x256xf32>
    %cst_45 = arith.constant 5.000000e-01 : f32
    %1193 = vector.broadcast %cst_45 : f32 to vector<1x256xf32>
    %1194 = arith.mulf %1193, %1192 : vector<1x256xf32>
    %1195 = tpu.reciprocal %1172 {approx = true} : vector<1x256xf32> -> vector<1x256xf32>
    %1196 = arith.mulf %1194, %1195 : vector<1x256xf32>
    %1197 = arith.subf %1151, %1141 : vector<1x256xf32>
    %1198 = arith.mulf %1196, %1197 : vector<1x256xf32>
    %1199 = arith.subf %1126, %1146 : vector<1x256xf32>
    %1200 = arith.mulf %1196, %1199 : vector<1x256xf32>
    %1201 = arith.subf %1131, %1121 : vector<1x256xf32>
    %1202 = arith.mulf %1196, %1201 : vector<1x256xf32>
    %1203 = math.absf %1198 : vector<1x256xf32>
    %cst_46 = arith.constant 5.000000e-03 : f32
    %1204 = vector.broadcast %cst_46 : f32 to vector<1x256xf32>
    %1205 = arith.cmpf ole, %1203, %1204 : vector<1x256xf32>
    %cst_47 = arith.constant 5.000000e-01 : f32
    %1206 = vector.broadcast %cst_47 : f32 to vector<1x256xf32>
    %1207 = arith.mulf %1206, %1198 : vector<1x256xf32>
    %1208 = arith.mulf %1207, %1198 : vector<1x256xf32>
    %cst_48 = arith.constant 2.500000e-03 : f32
    %1209 = vector.broadcast %cst_48 : f32 to vector<1x256xf32>
    %1210 = arith.subf %1203, %1209 : vector<1x256xf32>
    %cst_49 = arith.constant 5.000000e-03 : f32
    %1211 = vector.broadcast %cst_49 : f32 to vector<1x256xf32>
    %1212 = arith.mulf %1211, %1210 : vector<1x256xf32>
    %1213 = arith.select %1205, %1208, %1212 : vector<1x256xi1>, vector<1x256xf32>
    %1214 = vector.shape_cast %1213 : vector<1x256xf32> to vector<1x1x256xf32>
    %cst_50 = arith.constant dense<0.000000e+00> : vector<1xf32>
    %1215 = vector.multi_reduction <add>, %1214, %cst_50 [1, 2] : vector<1x1x256xf32> to vector<1xf32>
    %1216 = vector.shape_cast %1215 : vector<1xf32> to vector<1x1x1xf32>
    %1217 = vector.extract %1216[0, 0, 0] : f32 from vector<1x1x1xf32>
    %cst_51 = arith.constant 0.000000e+00 : f32
    %1218 = arith.addf %cst_51, %1217 : f32
    %1219 = math.absf %1200 : vector<1x256xf32>
    %cst_52 = arith.constant 5.000000e-03 : f32
    %1220 = vector.broadcast %cst_52 : f32 to vector<1x256xf32>
    %1221 = arith.cmpf ole, %1219, %1220 : vector<1x256xf32>
    %cst_53 = arith.constant 5.000000e-01 : f32
    %1222 = vector.broadcast %cst_53 : f32 to vector<1x256xf32>
    %1223 = arith.mulf %1222, %1200 : vector<1x256xf32>
    %1224 = arith.mulf %1223, %1200 : vector<1x256xf32>
    %cst_54 = arith.constant 2.500000e-03 : f32
    %1225 = vector.broadcast %cst_54 : f32 to vector<1x256xf32>
    %1226 = arith.subf %1219, %1225 : vector<1x256xf32>
    %cst_55 = arith.constant 5.000000e-03 : f32
    %1227 = vector.broadcast %cst_55 : f32 to vector<1x256xf32>
    %1228 = arith.mulf %1227, %1226 : vector<1x256xf32>
    %1229 = arith.select %1221, %1224, %1228 : vector<1x256xi1>, vector<1x256xf32>
    %1230 = vector.shape_cast %1229 : vector<1x256xf32> to vector<1x1x256xf32>
    %cst_56 = arith.constant dense<0.000000e+00> : vector<1xf32>
    %1231 = vector.multi_reduction <add>, %1230, %cst_56 [1, 2] : vector<1x1x256xf32> to vector<1xf32>
    %1232 = vector.shape_cast %1231 : vector<1xf32> to vector<1x1x1xf32>
    %1233 = vector.extract %1232[0, 0, 0] : f32 from vector<1x1x1xf32>
    %1234 = arith.addf %1218, %1233 : f32
    %1235 = math.absf %1202 : vector<1x256xf32>
    %cst_57 = arith.constant 5.000000e-03 : f32
    %1236 = vector.broadcast %cst_57 : f32 to vector<1x256xf32>
    %1237 = arith.cmpf ole, %1235, %1236 : vector<1x256xf32>
    %cst_58 = arith.constant 5.000000e-01 : f32
    %1238 = vector.broadcast %cst_58 : f32 to vector<1x256xf32>
    %1239 = arith.mulf %1238, %1202 : vector<1x256xf32>
    %1240 = arith.mulf %1239, %1202 : vector<1x256xf32>
    %cst_59 = arith.constant 2.500000e-03 : f32
    %1241 = vector.broadcast %cst_59 : f32 to vector<1x256xf32>
    %1242 = arith.subf %1235, %1241 : vector<1x256xf32>
    %cst_60 = arith.constant 5.000000e-03 : f32
    %1243 = vector.broadcast %cst_60 : f32 to vector<1x256xf32>
    %1244 = arith.mulf %1243, %1242 : vector<1x256xf32>
    %1245 = arith.select %1237, %1240, %1244 : vector<1x256xi1>, vector<1x256xf32>
    %1246 = vector.shape_cast %1245 : vector<1x256xf32> to vector<1x1x256xf32>
    %cst_61 = arith.constant dense<0.000000e+00> : vector<1xf32>
    %1247 = vector.multi_reduction <add>, %1246, %cst_61 [1, 2] : vector<1x1x256xf32> to vector<1xf32>
    %1248 = vector.shape_cast %1247 : vector<1xf32> to vector<1x1x1xf32>
    %1249 = vector.extract %1248[0, 0, 0] : f32 from vector<1x1x1xf32>
    %1250 = arith.addf %1234, %1249 : f32
    %1251 = vector.extract_strided_slice %1062 {offsets = [0, 0], sizes = [1, 128], strides = [1, 1]} : vector<1x256xf32> to vector<1x128xf32>
    %1252 = vector.extract_strided_slice %1067 {offsets = [0, 0], sizes = [1, 128], strides = [1, 1]} : vector<1x256xf32> to vector<1x128xf32>
    %1253 = vector.extract_strided_slice %1072 {offsets = [0, 0], sizes = [1, 128], strides = [1, 1]} : vector<1x256xf32> to vector<1x128xf32>
    %1254 = vector.extract_strided_slice %1077 {offsets = [0, 0], sizes = [1, 128], strides = [1, 1]} : vector<1x256xf32> to vector<1x128xf32>
    %1255 = vector.extract_strided_slice %1082 {offsets = [0, 0], sizes = [1, 128], strides = [1, 1]} : vector<1x256xf32> to vector<1x128xf32>
    %1256 = vector.extract_strided_slice %1087 {offsets = [0, 0], sizes = [1, 128], strides = [1, 1]} : vector<1x256xf32> to vector<1x128xf32>
    %1257 = vector.extract_strided_slice %1092 {offsets = [0, 0], sizes = [1, 128], strides = [1, 1]} : vector<1x256xf32> to vector<1x128xf32>
    %1258 = vector.extract_strided_slice %1097 {offsets = [0, 0], sizes = [1, 128], strides = [1, 1]} : vector<1x256xf32> to vector<1x128xf32>
    %1259 = vector.extract_strided_slice %1102 {offsets = [0, 0], sizes = [1, 128], strides = [1, 1]} : vector<1x256xf32> to vector<1x128xf32>
    %1260 = vector.extract_strided_slice %1062 {offsets = [0, 128], sizes = [1, 128], strides = [1, 1]} : vector<1x256xf32> to vector<1x128xf32>
    %1261 = vector.extract_strided_slice %1067 {offsets = [0, 128], sizes = [1, 128], strides = [1, 1]} : vector<1x256xf32> to vector<1x128xf32>
    %1262 = vector.extract_strided_slice %1072 {offsets = [0, 128], sizes = [1, 128], strides = [1, 1]} : vector<1x256xf32> to vector<1x128xf32>
    %1263 = vector.extract_strided_slice %1077 {offsets = [0, 128], sizes = [1, 128], strides = [1, 1]} : vector<1x256xf32> to vector<1x128xf32>
    %1264 = vector.extract_strided_slice %1082 {offsets = [0, 128], sizes = [1, 128], strides = [1, 1]} : vector<1x256xf32> to vector<1x128xf32>
    %1265 = vector.extract_strided_slice %1087 {offsets = [0, 128], sizes = [1, 128], strides = [1, 1]} : vector<1x256xf32> to vector<1x128xf32>
    %1266 = vector.extract_strided_slice %1092 {offsets = [0, 128], sizes = [1, 128], strides = [1, 1]} : vector<1x256xf32> to vector<1x128xf32>
    %1267 = vector.extract_strided_slice %1097 {offsets = [0, 128], sizes = [1, 128], strides = [1, 1]} : vector<1x256xf32> to vector<1x128xf32>
    %1268 = vector.extract_strided_slice %1102 {offsets = [0, 128], sizes = [1, 128], strides = [1, 1]} : vector<1x256xf32> to vector<1x128xf32>
    %1269 = vector.extract_strided_slice %1103 {offsets = [0, 0], sizes = [1, 128], strides = [1, 1]} : vector<1x256xf32> to vector<1x128xf32>
    %1270 = vector.extract_strided_slice %1104 {offsets = [0, 0], sizes = [1, 128], strides = [1, 1]} : vector<1x256xf32> to vector<1x128xf32>
    %1271 = vector.extract_strided_slice %1105 {offsets = [0, 0], sizes = [1, 128], strides = [1, 1]} : vector<1x256xf32> to vector<1x128xf32>
    %1272 = vector.extract_strided_slice %1106 {offsets = [0, 0], sizes = [1, 128], strides = [1, 1]} : vector<1x256xf32> to vector<1x128xf32>
    %1273 = vector.extract_strided_slice %1107 {offsets = [0, 0], sizes = [1, 128], strides = [1, 1]} : vector<1x256xf32> to vector<1x128xf32>
    %1274 = vector.extract_strided_slice %1108 {offsets = [0, 0], sizes = [1, 128], strides = [1, 1]} : vector<1x256xf32> to vector<1x128xf32>
    %1275 = vector.extract_strided_slice %1109 {offsets = [0, 0], sizes = [1, 128], strides = [1, 1]} : vector<1x256xf32> to vector<1x128xf32>
    %1276 = vector.extract_strided_slice %1110 {offsets = [0, 0], sizes = [1, 128], strides = [1, 1]} : vector<1x256xf32> to vector<1x128xf32>
    %1277 = vector.extract_strided_slice %1111 {offsets = [0, 0], sizes = [1, 128], strides = [1, 1]} : vector<1x256xf32> to vector<1x128xf32>
    %1278 = vector.extract_strided_slice %1103 {offsets = [0, 128], sizes = [1, 128], strides = [1, 1]} : vector<1x256xf32> to vector<1x128xf32>
    %1279 = vector.extract_strided_slice %1104 {offsets = [0, 128], sizes = [1, 128], strides = [1, 1]} : vector<1x256xf32> to vector<1x128xf32>
    %1280 = vector.extract_strided_slice %1105 {offsets = [0, 128], sizes = [1, 128], strides = [1, 1]} : vector<1x256xf32> to vector<1x128xf32>
    %1281 = vector.extract_strided_slice %1106 {offsets = [0, 128], sizes = [1, 128], strides = [1, 1]} : vector<1x256xf32> to vector<1x128xf32>
    %1282 = vector.extract_strided_slice %1107 {offsets = [0, 128], sizes = [1, 128], strides = [1, 1]} : vector<1x256xf32> to vector<1x128xf32>
    %1283 = vector.extract_strided_slice %1108 {offsets = [0, 128], sizes = [1, 128], strides = [1, 1]} : vector<1x256xf32> to vector<1x128xf32>
    %1284 = vector.extract_strided_slice %1109 {offsets = [0, 128], sizes = [1, 128], strides = [1, 1]} : vector<1x256xf32> to vector<1x128xf32>
    %1285 = vector.extract_strided_slice %1110 {offsets = [0, 128], sizes = [1, 128], strides = [1, 1]} : vector<1x256xf32> to vector<1x128xf32>
    %1286 = vector.extract_strided_slice %1111 {offsets = [0, 128], sizes = [1, 128], strides = [1, 1]} : vector<1x256xf32> to vector<1x128xf32>
    %1287 = arith.mulf %1251, %1260 : vector<1x128xf32>
    %1288 = arith.mulf %1252, %1263 : vector<1x128xf32>
    %1289 = arith.addf %1287, %1288 : vector<1x128xf32>
    %1290 = arith.mulf %1253, %1266 : vector<1x128xf32>
    %1291 = arith.addf %1289, %1290 : vector<1x128xf32>
    %1292 = arith.mulf %1251, %1261 : vector<1x128xf32>
    %1293 = arith.mulf %1252, %1264 : vector<1x128xf32>
    %1294 = arith.addf %1292, %1293 : vector<1x128xf32>
    %1295 = arith.mulf %1253, %1267 : vector<1x128xf32>
    %1296 = arith.addf %1294, %1295 : vector<1x128xf32>
    %1297 = arith.mulf %1251, %1262 : vector<1x128xf32>
    %1298 = arith.mulf %1252, %1265 : vector<1x128xf32>
    %1299 = arith.addf %1297, %1298 : vector<1x128xf32>
    %1300 = arith.mulf %1253, %1268 : vector<1x128xf32>
    %1301 = arith.addf %1299, %1300 : vector<1x128xf32>
    %1302 = arith.mulf %1254, %1260 : vector<1x128xf32>
    %1303 = arith.mulf %1255, %1263 : vector<1x128xf32>
    %1304 = arith.addf %1302, %1303 : vector<1x128xf32>
    %1305 = arith.mulf %1256, %1266 : vector<1x128xf32>
    %1306 = arith.addf %1304, %1305 : vector<1x128xf32>
    %1307 = arith.mulf %1254, %1261 : vector<1x128xf32>
    %1308 = arith.mulf %1255, %1264 : vector<1x128xf32>
    %1309 = arith.addf %1307, %1308 : vector<1x128xf32>
    %1310 = arith.mulf %1256, %1267 : vector<1x128xf32>
    %1311 = arith.addf %1309, %1310 : vector<1x128xf32>
    %1312 = arith.mulf %1254, %1262 : vector<1x128xf32>
    %1313 = arith.mulf %1255, %1265 : vector<1x128xf32>
    %1314 = arith.addf %1312, %1313 : vector<1x128xf32>
    %1315 = arith.mulf %1256, %1268 : vector<1x128xf32>
    %1316 = arith.addf %1314, %1315 : vector<1x128xf32>
    %1317 = arith.mulf %1257, %1260 : vector<1x128xf32>
    %1318 = arith.mulf %1258, %1263 : vector<1x128xf32>
    %1319 = arith.addf %1317, %1318 : vector<1x128xf32>
    %1320 = arith.mulf %1259, %1266 : vector<1x128xf32>
    %1321 = arith.addf %1319, %1320 : vector<1x128xf32>
    %1322 = arith.mulf %1257, %1261 : vector<1x128xf32>
    %1323 = arith.mulf %1258, %1264 : vector<1x128xf32>
    %1324 = arith.addf %1322, %1323 : vector<1x128xf32>
    %1325 = arith.mulf %1259, %1267 : vector<1x128xf32>
    %1326 = arith.addf %1324, %1325 : vector<1x128xf32>
    %1327 = arith.mulf %1257, %1262 : vector<1x128xf32>
    %1328 = arith.mulf %1258, %1265 : vector<1x128xf32>
    %1329 = arith.addf %1327, %1328 : vector<1x128xf32>
    %1330 = arith.mulf %1259, %1268 : vector<1x128xf32>
    %1331 = arith.addf %1329, %1330 : vector<1x128xf32>
    %1332 = arith.mulf %1269, %1278 : vector<1x128xf32>
    %1333 = arith.mulf %1270, %1281 : vector<1x128xf32>
    %1334 = arith.addf %1332, %1333 : vector<1x128xf32>
    %1335 = arith.mulf %1271, %1284 : vector<1x128xf32>
    %1336 = arith.addf %1334, %1335 : vector<1x128xf32>
    %1337 = arith.mulf %1269, %1279 : vector<1x128xf32>
    %1338 = arith.mulf %1270, %1282 : vector<1x128xf32>
    %1339 = arith.addf %1337, %1338 : vector<1x128xf32>
    %1340 = arith.mulf %1271, %1285 : vector<1x128xf32>
    %1341 = arith.addf %1339, %1340 : vector<1x128xf32>
    %1342 = arith.mulf %1269, %1280 : vector<1x128xf32>
    %1343 = arith.mulf %1270, %1283 : vector<1x128xf32>
    %1344 = arith.addf %1342, %1343 : vector<1x128xf32>
    %1345 = arith.mulf %1271, %1286 : vector<1x128xf32>
    %1346 = arith.addf %1344, %1345 : vector<1x128xf32>
    %1347 = arith.mulf %1272, %1278 : vector<1x128xf32>
    %1348 = arith.mulf %1273, %1281 : vector<1x128xf32>
    %1349 = arith.addf %1347, %1348 : vector<1x128xf32>
    %1350 = arith.mulf %1274, %1284 : vector<1x128xf32>
    %1351 = arith.addf %1349, %1350 : vector<1x128xf32>
    %1352 = arith.mulf %1272, %1279 : vector<1x128xf32>
    %1353 = arith.mulf %1273, %1282 : vector<1x128xf32>
    %1354 = arith.addf %1352, %1353 : vector<1x128xf32>
    %1355 = arith.mulf %1274, %1285 : vector<1x128xf32>
    %1356 = arith.addf %1354, %1355 : vector<1x128xf32>
    %1357 = arith.mulf %1272, %1280 : vector<1x128xf32>
    %1358 = arith.mulf %1273, %1283 : vector<1x128xf32>
    %1359 = arith.addf %1357, %1358 : vector<1x128xf32>
    %1360 = arith.mulf %1274, %1286 : vector<1x128xf32>
    %1361 = arith.addf %1359, %1360 : vector<1x128xf32>
    %1362 = arith.mulf %1275, %1278 : vector<1x128xf32>
    %1363 = arith.mulf %1276, %1281 : vector<1x128xf32>
    %1364 = arith.addf %1362, %1363 : vector<1x128xf32>
    %1365 = arith.mulf %1277, %1284 : vector<1x128xf32>
    %1366 = arith.addf %1364, %1365 : vector<1x128xf32>
    %1367 = arith.mulf %1275, %1279 : vector<1x128xf32>
    %1368 = arith.mulf %1276, %1282 : vector<1x128xf32>
    %1369 = arith.addf %1367, %1368 : vector<1x128xf32>
    %1370 = arith.mulf %1277, %1285 : vector<1x128xf32>
    %1371 = arith.addf %1369, %1370 : vector<1x128xf32>
    %1372 = arith.mulf %1275, %1280 : vector<1x128xf32>
    %1373 = arith.mulf %1276, %1283 : vector<1x128xf32>
    %1374 = arith.addf %1372, %1373 : vector<1x128xf32>
    %1375 = arith.mulf %1277, %1286 : vector<1x128xf32>
    %1376 = arith.addf %1374, %1375 : vector<1x128xf32>
    %1377 = arith.mulf %1291, %1336 : vector<1x128xf32>
    %1378 = arith.mulf %1306, %1351 : vector<1x128xf32>
    %1379 = arith.addf %1377, %1378 : vector<1x128xf32>
    %1380 = arith.mulf %1321, %1366 : vector<1x128xf32>
    %1381 = arith.addf %1379, %1380 : vector<1x128xf32>
    %1382 = arith.mulf %1291, %1341 : vector<1x128xf32>
    %1383 = arith.mulf %1306, %1356 : vector<1x128xf32>
    %1384 = arith.addf %1382, %1383 : vector<1x128xf32>
    %1385 = arith.mulf %1321, %1371 : vector<1x128xf32>
    %1386 = arith.addf %1384, %1385 : vector<1x128xf32>
    %1387 = arith.mulf %1291, %1346 : vector<1x128xf32>
    %1388 = arith.mulf %1306, %1361 : vector<1x128xf32>
    %1389 = arith.addf %1387, %1388 : vector<1x128xf32>
    %1390 = arith.mulf %1321, %1376 : vector<1x128xf32>
    %1391 = arith.addf %1389, %1390 : vector<1x128xf32>
    %1392 = arith.mulf %1296, %1336 : vector<1x128xf32>
    %1393 = arith.mulf %1311, %1351 : vector<1x128xf32>
    %1394 = arith.addf %1392, %1393 : vector<1x128xf32>
    %1395 = arith.mulf %1326, %1366 : vector<1x128xf32>
    %1396 = arith.addf %1394, %1395 : vector<1x128xf32>
    %1397 = arith.mulf %1296, %1341 : vector<1x128xf32>
    %1398 = arith.mulf %1311, %1356 : vector<1x128xf32>
    %1399 = arith.addf %1397, %1398 : vector<1x128xf32>
    %1400 = arith.mulf %1326, %1371 : vector<1x128xf32>
    %1401 = arith.addf %1399, %1400 : vector<1x128xf32>
    %1402 = arith.mulf %1296, %1346 : vector<1x128xf32>
    %1403 = arith.mulf %1311, %1361 : vector<1x128xf32>
    %1404 = arith.addf %1402, %1403 : vector<1x128xf32>
    %1405 = arith.mulf %1326, %1376 : vector<1x128xf32>
    %1406 = arith.addf %1404, %1405 : vector<1x128xf32>
    %1407 = arith.mulf %1301, %1336 : vector<1x128xf32>
    %1408 = arith.mulf %1316, %1351 : vector<1x128xf32>
    %1409 = arith.addf %1407, %1408 : vector<1x128xf32>
    %1410 = arith.mulf %1331, %1366 : vector<1x128xf32>
    %1411 = arith.addf %1409, %1410 : vector<1x128xf32>
    %1412 = arith.mulf %1301, %1341 : vector<1x128xf32>
    %1413 = arith.mulf %1316, %1356 : vector<1x128xf32>
    %1414 = arith.addf %1412, %1413 : vector<1x128xf32>
    %1415 = arith.mulf %1331, %1371 : vector<1x128xf32>
    %1416 = arith.addf %1414, %1415 : vector<1x128xf32>
    %1417 = arith.mulf %1301, %1346 : vector<1x128xf32>
    %1418 = arith.mulf %1316, %1361 : vector<1x128xf32>
    %1419 = arith.addf %1417, %1418 : vector<1x128xf32>
    %1420 = arith.mulf %1331, %1376 : vector<1x128xf32>
    %1421 = arith.addf %1419, %1420 : vector<1x128xf32>
    %1422 = arith.addf %1381, %1401 : vector<1x128xf32>
    %1423 = arith.addf %1422, %1421 : vector<1x128xf32>
    %cst_62 = arith.constant 5.000000e-01 : f32
    %1424 = vector.broadcast %cst_62 : f32 to vector<1x128xf32>
    %1425 = arith.mulf %1424, %1423 : vector<1x128xf32>
    %cst_63 = arith.constant 5.000000e-01 : f32
    %1426 = vector.broadcast %cst_63 : f32 to vector<1x128xf32>
    %1427 = arith.subf %1425, %1426 : vector<1x128xf32>
    %cst_64 = arith.constant -0.999998986 : f32
    %cst_65 = arith.constant 0.999998986 : f32
    %1428 = vector.broadcast %cst_64 : f32 to vector<1x128xf32>
    %1429 = arith.maximumf %1428, %1427 : vector<1x128xf32>
    %1430 = vector.broadcast %cst_65 : f32 to vector<1x128xf32>
    %1431 = arith.minimumf %1430, %1429 : vector<1x128xf32>
    %1432 = arith.mulf %1431, %1431 : vector<1x128xf32>
    %cst_66 = arith.constant 1.000000e+00 : f32
    %1433 = vector.broadcast %cst_66 : f32 to vector<1x128xf32>
    %1434 = arith.subf %1433, %1432 : vector<1x128xf32>
    %cst_67 = arith.constant 9.99999996E-13 : f32
    %1435 = vector.broadcast %cst_67 : f32 to vector<1x128xf32>
    %1436 = arith.maximumf %1434, %1435 : vector<1x128xf32>
    %1437 = math.sqrt %1436 : vector<1x128xf32>
    %cst_68 = arith.constant 1.57079637 : f32
    %1438 = vector.broadcast %cst_68 : f32 to vector<1x128xf32>
    %1439 = arith.subf %1438, %1431 : vector<1x128xf32>
    %1440 = math.sin %1439 : vector<1x128xf32>
    %1441 = arith.mulf %1440, %1431 : vector<1x128xf32>
    %1442 = math.cos %1439 : vector<1x128xf32>
    %1443 = arith.mulf %1442, %1437 : vector<1x128xf32>
    %1444 = arith.subf %1441, %1443 : vector<1x128xf32>
    %1445 = arith.subf %1439, %1444 : vector<1x128xf32>
    %1446 = math.sin %1445 : vector<1x128xf32>
    %1447 = arith.mulf %1446, %1431 : vector<1x128xf32>
    %1448 = math.cos %1445 : vector<1x128xf32>
    %1449 = arith.mulf %1448, %1437 : vector<1x128xf32>
    %1450 = arith.subf %1447, %1449 : vector<1x128xf32>
    %1451 = arith.subf %1445, %1450 : vector<1x128xf32>
    %1452 = math.sin %1451 : vector<1x128xf32>
    %1453 = arith.mulf %1452, %1431 : vector<1x128xf32>
    %1454 = math.cos %1451 : vector<1x128xf32>
    %1455 = arith.mulf %1454, %1437 : vector<1x128xf32>
    %1456 = arith.subf %1453, %1455 : vector<1x128xf32>
    %1457 = arith.subf %1451, %1456 : vector<1x128xf32>
    %cst_69 = arith.constant 5.000000e-01 : f32
    %1458 = vector.broadcast %cst_69 : f32 to vector<1x128xf32>
    %1459 = arith.mulf %1458, %1457 : vector<1x128xf32>
    %1460 = tpu.reciprocal %1437 {approx = true} : vector<1x128xf32> -> vector<1x128xf32>
    %1461 = arith.mulf %1459, %1460 : vector<1x128xf32>
    %1462 = arith.subf %1416, %1406 : vector<1x128xf32>
    %1463 = arith.mulf %1461, %1462 : vector<1x128xf32>
    %1464 = arith.subf %1391, %1411 : vector<1x128xf32>
    %1465 = arith.mulf %1461, %1464 : vector<1x128xf32>
    %1466 = arith.subf %1396, %1386 : vector<1x128xf32>
    %1467 = arith.mulf %1461, %1466 : vector<1x128xf32>
    %1468 = math.absf %1463 : vector<1x128xf32>
    %cst_70 = arith.constant 5.000000e-03 : f32
    %1469 = vector.broadcast %cst_70 : f32 to vector<1x128xf32>
    %1470 = arith.cmpf ole, %1468, %1469 : vector<1x128xf32>
    %cst_71 = arith.constant 5.000000e-01 : f32
    %1471 = vector.broadcast %cst_71 : f32 to vector<1x128xf32>
    %1472 = arith.mulf %1471, %1463 : vector<1x128xf32>
    %1473 = arith.mulf %1472, %1463 : vector<1x128xf32>
    %cst_72 = arith.constant 2.500000e-03 : f32
    %1474 = vector.broadcast %cst_72 : f32 to vector<1x128xf32>
    %1475 = arith.subf %1468, %1474 : vector<1x128xf32>
    %cst_73 = arith.constant 5.000000e-03 : f32
    %1476 = vector.broadcast %cst_73 : f32 to vector<1x128xf32>
    %1477 = arith.mulf %1476, %1475 : vector<1x128xf32>
    %1478 = arith.select %1470, %1473, %1477 : vector<1x128xi1>, vector<1x128xf32>
    %1479 = vector.shape_cast %1478 : vector<1x128xf32> to vector<1x1x128xf32>
    %cst_74 = arith.constant dense<0.000000e+00> : vector<1xf32>
    %1480 = vector.multi_reduction <add>, %1479, %cst_74 [1, 2] : vector<1x1x128xf32> to vector<1xf32>
    %1481 = vector.shape_cast %1480 : vector<1xf32> to vector<1x1x1xf32>
    %1482 = vector.extract %1481[0, 0, 0] : f32 from vector<1x1x1xf32>
    %cst_75 = arith.constant 0.000000e+00 : f32
    %1483 = arith.addf %cst_75, %1482 : f32
    %1484 = math.absf %1465 : vector<1x128xf32>
    %cst_76 = arith.constant 5.000000e-03 : f32
    %1485 = vector.broadcast %cst_76 : f32 to vector<1x128xf32>
    %1486 = arith.cmpf ole, %1484, %1485 : vector<1x128xf32>
    %cst_77 = arith.constant 5.000000e-01 : f32
    %1487 = vector.broadcast %cst_77 : f32 to vector<1x128xf32>
    %1488 = arith.mulf %1487, %1465 : vector<1x128xf32>
    %1489 = arith.mulf %1488, %1465 : vector<1x128xf32>
    %cst_78 = arith.constant 2.500000e-03 : f32
    %1490 = vector.broadcast %cst_78 : f32 to vector<1x128xf32>
    %1491 = arith.subf %1484, %1490 : vector<1x128xf32>
    %cst_79 = arith.constant 5.000000e-03 : f32
    %1492 = vector.broadcast %cst_79 : f32 to vector<1x128xf32>
    %1493 = arith.mulf %1492, %1491 : vector<1x128xf32>
    %1494 = arith.select %1486, %1489, %1493 : vector<1x128xi1>, vector<1x128xf32>
    %1495 = vector.shape_cast %1494 : vector<1x128xf32> to vector<1x1x128xf32>
    %cst_80 = arith.constant dense<0.000000e+00> : vector<1xf32>
    %1496 = vector.multi_reduction <add>, %1495, %cst_80 [1, 2] : vector<1x1x128xf32> to vector<1xf32>
    %1497 = vector.shape_cast %1496 : vector<1xf32> to vector<1x1x1xf32>
    %1498 = vector.extract %1497[0, 0, 0] : f32 from vector<1x1x1xf32>
    %1499 = arith.addf %1483, %1498 : f32
    %1500 = math.absf %1467 : vector<1x128xf32>
    %cst_81 = arith.constant 5.000000e-03 : f32
    %1501 = vector.broadcast %cst_81 : f32 to vector<1x128xf32>
    %1502 = arith.cmpf ole, %1500, %1501 : vector<1x128xf32>
    %cst_82 = arith.constant 5.000000e-01 : f32
    %1503 = vector.broadcast %cst_82 : f32 to vector<1x128xf32>
    %1504 = arith.mulf %1503, %1467 : vector<1x128xf32>
    %1505 = arith.mulf %1504, %1467 : vector<1x128xf32>
    %cst_83 = arith.constant 2.500000e-03 : f32
    %1506 = vector.broadcast %cst_83 : f32 to vector<1x128xf32>
    %1507 = arith.subf %1500, %1506 : vector<1x128xf32>
    %cst_84 = arith.constant 5.000000e-03 : f32
    %1508 = vector.broadcast %cst_84 : f32 to vector<1x128xf32>
    %1509 = arith.mulf %1508, %1507 : vector<1x128xf32>
    %1510 = arith.select %1502, %1505, %1509 : vector<1x128xi1>, vector<1x128xf32>
    %1511 = vector.shape_cast %1510 : vector<1x128xf32> to vector<1x1x128xf32>
    %cst_85 = arith.constant dense<0.000000e+00> : vector<1xf32>
    %1512 = vector.multi_reduction <add>, %1511, %cst_85 [1, 2] : vector<1x1x128xf32> to vector<1xf32>
    %1513 = vector.shape_cast %1512 : vector<1xf32> to vector<1x1x1xf32>
    %1514 = vector.extract %1513[0, 0, 0] : f32 from vector<1x1x1xf32>
    %1515 = arith.addf %1499, %1514 : f32
    %1516 = tpu.iota {dimensions = array<i32: 2>} : vector<1x8x128xi32>
    %c0_i32 = arith.constant 0 : i32
    %1517 = vector.broadcast %c0_i32 : i32 to vector<1x8x128xi32>
    %1518 = arith.cmpi eq, %1516, %1517 : vector<1x8x128xi32>
    %c1_i32 = arith.constant 1 : i32
    %1519 = vector.broadcast %c1_i32 : i32 to vector<1x8x128xi32>
    %1520 = arith.cmpi eq, %1516, %1519 : vector<1x8x128xi32>
    %cst_86 = arith.constant 0.000000e+00 : f32
    %1521 = vector.broadcast %1515 : f32 to vector<1x8x128xf32>
    %1522 = vector.broadcast %cst_86 : f32 to vector<1x8x128xf32>
    %1523 = arith.select %1520, %1521, %1522 : vector<1x8x128xi1>, vector<1x8x128xf32>
    %1524 = vector.broadcast %1250 : f32 to vector<1x8x128xf32>
    %1525 = arith.select %1518, %1524, %1523 : vector<1x8x128xi1>, vector<1x8x128xf32>
    %c0_87 = arith.constant 0 : index
    %c0_88 = arith.constant 0 : index
    %c0_89 = arith.constant 0 : index
    %1526 = vector.load %arg3[%c0_87, %c0_88, %c0_89] : memref<1x8x128xf32, #tpu.memory_space<vmem>>, vector<1x8x128xf32>
    tpu.vector_store %arg3[%c0_87, %c0_88, %c0_89], %1525 {strides = array<i32>} : memref<1x8x128xf32, #tpu.memory_space<vmem>>, vector<1x8x128xf32>,
    return
  }
  func.func @transform_0(%arg0: i32) -> (i32, i32, i32) {
    %c0_i32 = arith.constant 0 : i32
    %c0_i32_0 = arith.constant 0 : i32
    %c0_i32_1 = arith.constant 0 : i32
    return %c0_i32, %c0_i32_0, %arg0 : i32, i32, i32
  }
  func.func @transform_1(%arg0: i32) -> (i32, i32) {
    %c0_i32 = arith.constant 0 : i32
    %c0_i32_0 = arith.constant 0 : i32
    return %c0_i32, %arg0 : i32, i32
  }
  func.func @transform_2(%arg0: i32) -> (i32, i32, i32) {
    %c0_i32 = arith.constant 0 : i32
    %c0_i32_0 = arith.constant 0 : i32
    %c0_i32_1 = arith.constant 0 : i32
    return %arg0, %c0_i32, %c0_i32_0 : i32, i32, i32
  }
}

</mosaic_0001>

<llo_original>
// kernel: tpu_custom_call.1
$region0: #{tpu_custom_call.1}
  #allocation0 [shape = 'u32[]', space=smem, size = 0x4, offset = 0x4, fixed_abs, tag = 'smem constant byte address 0x4 - core index']
  #allocation1 [shape = 'u32[72,128]{1,0:T(1,128)}', space=vmem, size = 0x9000, scoped, tag = 'internal scratch']
  %s0 = inlined_call_operand.hbm [shape: f32[3,32,256], index: 0, kind: input, shape index: {}]
  %s1 = inlined_call_operand.hbm [shape: f32[16,256], index: 1, kind: input, shape index: {}]
  %s2 = inlined_call_operand.hbm [shape: f32[1,8,128], index: 2, kind: output, shape index: {}]
  %s3 = sld [smem:[#allocation0]]
  $region26: #{tpu_custom_call.1} parent=0
    _
  %s5 = ssub.s32 1, %s3
  %s6 = scalar_select 0, %s5, %s3
  $region1: #{tpu_custom_call.1} parent=0
    #allocation2 [shape = 'u8[98304]{0}', space=vmem, size = 0x18000, scoped, tag = 'input window, operand 0, single buffered']
    #allocation3 [shape = 's32[1]{0}', space=sflag, size = 0x4, scoped, tag = 'scoped memory for tpu_custom_call.1']
    #allocation4 [shape = 's32[1]{0}', space=sflag, size = 0x4, scoped, tag = 'scoped memory for tpu_custom_call.1']
    #allocation5 [shape = 'u8[16384]{0}', space=vmem, size = 0x4000, scoped, tag = 'input window, operand 1, single buffered']
    #allocation6 [shape = 's32[1]{0}', space=sflag, size = 0x4, scoped, tag = 'scoped memory for tpu_custom_call.1']
    #allocation7 [shape = 'u8[4096]{0}', space=vmem, size = 0x1000, scoped, tag = 'output window, operand 0, single buffered']
    %7 = vsyncpa [#allocation3], 0
    %8 = vsyncpa [#allocation6], 0
    %9 = vsyncpa [#allocation4], 0
    // Predicated region
    $region2: #{tpu_custom_call.1} parent=1 // pred_check
      _
    $region3: #{tpu_custom_call.1} parent=1 // pred_check_branch
      %11 = sbr.rel (0) target = $region5
    $region4: #{tpu_custom_call.1} parent=1 // pred_region
      %13 = vsyncadd [#allocation3], 0
      %s14 = sshll.u32 %s0, 4
      %s15 = int_to_ptr.hbm [resolvable:$true] %s14
      %s16 = sshll.u32 [#allocation2], 4
      %s17 = int_to_ptr.vmem [resolvable:$true] %s16
      %22 = dma.hbm_to_vmem [thread:$0]  %s15, 3072, %s17, [#allocation3], 256, 256, 16
    $region5: #{tpu_custom_call.1} parent=1 // pred_fallthru
      _
    // Predicated region
    $region6: #{tpu_custom_call.1} parent=1 // pred_check
      _
    $region7: #{tpu_custom_call.1} parent=1 // pred_check_branch
      %24 = sbr.rel (0) target = $region9
    $region8: #{tpu_custom_call.1} parent=1 // pred_region
      %26 = vsyncadd [#allocation6], 0
      %s27 = sshll.u32 %s1, 4
      %s28 = int_to_ptr.hbm [resolvable:$true] %s27
      %s29 = sshll.u32 [#allocation5], 4
      %s30 = int_to_ptr.vmem [resolvable:$true] %s29
      %35 = dma.hbm_to_vmem [thread:$0]  %s28, 512, %s30, [#allocation6], 256, 256, 16
    $region9: #{tpu_custom_call.1} parent=1 // pred_fallthru
      _
    // Predicated region
    $region10: #{tpu_custom_call.1} parent=1 // pred_check
      _
    $region11: #{tpu_custom_call.1} parent=1 // pred_check_branch
      %37 = sbr.rel (0) target = $region13
    $region12: #{tpu_custom_call.1} parent=1 // pred_region
      %39 = dma.done [#allocation3], 3072
    $region13: #{tpu_custom_call.1} parent=1 // pred_fallthru
      _
    // Predicated region
    $region14: #{tpu_custom_call.1} parent=1 // pred_check
      _
    $region15: #{tpu_custom_call.1} parent=1 // pred_check_branch
      %41 = sbr.rel (0) target = $region17
    $region16: #{tpu_custom_call.1} parent=1 // pred_region
      %43 = dma.done [#allocation6], 512
    $region17: #{tpu_custom_call.1} parent=1 // pred_fallthru
      _
    %v44 = vld [vmem:[#allocation2] sm:$0xff]
    %v45 = vld [vmem:[#allocation2 + $0x8] sm:$0xff]
    %v46 = vld [vmem:[#allocation2 + $0x40] sm:$0xff]
    %v47 = vld [vmem:[#allocation2 + $0x48] sm:$0xff]
    %v48 = vld [vmem:[#allocation2 + $0x80] sm:$0xff]
    %v49 = vld [vmem:[#allocation2 + $0x88] sm:$0xff]
    %v50 = vmul.f32 %v44, 0.005
    %v51 = vmul.f32 %v45, 0.005
    %v52 = vmul.f32 %v46, 0.005
    %v53 = vmul.f32 %v47, 0.005
    %v54 = vmul.f32 %v48, 0.005
    %v55 = vmul.f32 %v49, 0.005
    %v56 = vmul.f32 %v50, %v50
    %v57 = vmul.f32 %v51, %v51
    %v58 = vmul.f32 %v52, %v52
    %v59 = vmul.f32 %v53, %v53
    %v60 = vadd.f32 %v56, %v58
    %v61 = vadd.f32 %v57, %v59
    %v62 = vmul.f32 %v54, %v54
    %v63 = vmul.f32 %v55, %v55
    %v64 = vadd.f32 %v60, %v62
    %v65 = vadd.f32 %v61, %v63
    %v66 = vmax.f32 %v64, 1e-12
    %v67 = vmax.f32 %v65, 1e-12
    %v68 = vrsqrt.pop %v66
    %v69 = vmul.f32 %v68, %v66
    %v70 = vmul.f32 %v69, %v68
    %v71 = vmul.f32 0.5, %v70
    %v72 = vsub.f32 1.5, %v71
    %v73 = vmul.f32 %v68, %v72
    %v74 = vmul.f32 %v66, %v73
    %vm75 = vcmp.eq.f32.partialorder %v66, inf
    %v76 = vsel %vm75, %v66, %v74
    %vm77 = vcmp.eq.f32.partialorder %v66, 0.0
    %v78 = vand.u32 %v66, 2147483648
    %v79 = vsel %vm77, %v78, %v76
    %v80 = vrsqrt.pop %v67
    %v81 = vmul.f32 %v80, %v67
    %v82 = vmul.f32 %v81, %v80
    %v83 = vmul.f32 0.5, %v82
    %v84 = vsub.f32 1.5, %v83
    %v85 = vmul.f32 %v80, %v84
    %v86 = vmul.f32 %v67, %v85
    %vm87 = vcmp.eq.f32.partialorder %v67, inf
    %v88 = vsel %vm87, %v67, %v86
    %vm89 = vcmp.eq.f32.partialorder %v67, 0.0
    %v90 = vand.u32 %v67, 2147483648
    %v91 = vsel %vm89, %v90, %v88
    %v92 = vand.u32 2147483647, %v79
    %vm93 = vcmp.le.f32.partialorder %v92, 0.7853982
    %vm94 = vcmp.lt.s32.totalorder %v79, 0
    %v95 = vand.u32 %v79, 2139095040
    %v96 = vshrl.u32 %v95, 23
    %v97 = vsub.s32 %v96, 127
    %v98 = vand.u32 2147483647, %v79
    %v99 = vand.u32 %v98, 8388607
    %v100 = vor.u32 %v99, 8388608
    %v101 = vsub.s32 0, %v100
    %v102 = vadd.s32 %v97, 1
    %vm103 = vcmp.gt.s32.totalorder %v102, 0
    %v104 = vsel %vm103, %v102, 0
    %v105 = vshrl.u32 %v104, 5
    %v106 = vand.u32 %v104, 31
    %v107 = vsub.s32 32, %v106
    %v108 = vshrl.u32 683565275, %v107
    %v109 = vshll.u32 683565275, %v106
    %v110 = vshrl.u32 2475754826, %v107
    %v111 = vor.u32 %v109, %v110
    %v112 = vshll.u32 2475754826, %v106
    %v113 = vshrl.u32 2131351028, %v107
    %v114 = vor.u32 %v112, %v113
    %v115 = vshll.u32 2131351028, %v106
    %v116 = vshrl.u32 2102212464, %v107
    %v117 = vor.u32 %v115, %v116
    %v118 = vshll.u32 2102212464, %v106
    %v119 = vshrl.u32 920167782, %v107
    %v120 = vor.u32 %v118, %v119
    %v121 = vshll.u32 920167782, %v106
    %v122 = vshrl.u32 1326507024, %v107
    %v123 = vor.u32 %v121, %v122
    %vm124 = vcmp.lt.s32.totalorder %v105, 1
    %vm125 = vcmp.lt.s32.totalorder %v105, 2
    %vm126 = vcmp.lt.s32.totalorder %v105, 3
    %vm127 = vcmp.lt.s32.totalorder %v105, 4
    %v128 = vsel %vm124, %v108, %v111
    %v129 = vsel %vm127, %v117, 2102212464
    %v130 = vsel %vm126, %v114, %v129
    %v131 = vsel %vm125, %v128, %v130
    %v132 = vsel %vm124, %v111, %v114
    %v133 = vsel %vm127, %v120, 920167782
    %v134 = vsel %vm126, %v117, %v133
    %v135 = vsel %vm125, %v132, %v134
    %v136 = vsel %vm124, %v114, %v117
    %v137 = vsel %vm127, %v123, 1326507024
    %v138 = vsel %vm126, %v120, %v137
    %v139 = vsel %vm125, %v136, %v138
    %v140 = vshll.u32 %v100, 8
    %v141 = vand.u32 %v140, 65535
    %v142 = vshrl.u32 %v140, 16
    %v143 = vand.u32 %v139, 65535
    %v144 = vshrl.u32 %v139, 16
    %v145 = vmul.u32 %v141, %v143
    %v146 = vmul.u32 %v141, %v144
    %v147 = vmul.u32 %v142, %v143
    %v148 = vmul.u32 %v142, %v144
    %v149 = vshll.u32 %v146, 16
    %v150 = vshrl.u32 %v146, 16
    %v151 = vshll.u32 %v147, 16
    %v152 = vshrl.u32 %v147, 16
    %vm153 = vc.u32 %v145, %v149
    %v154 = vsel %vm153, 1, 0
    %v155 = vadd.s32 %v145, %v149
    %v156 = vadd.s32 %v148, %v154
    %vm157 = vc.u32 %v155, %v151
    %v158 = vsel %vm157, 1, 0
    %v159 = vadd.s32 %v155, %v151
    %v160 = vadd.s32 %v156, %v158
    %v161 = vadd.s32 %v160, %v150
    %v162 = vadd.s32 %v161, %v152
    %v163 = vand.u32 %v140, 65535
    %v164 = vshrl.u32 %v140, 16
    %v165 = vand.u32 %v135, 65535
    %v166 = vshrl.u32 %v135, 16
    %v167 = vmul.u32 %v163, %v165
    %v168 = vmul.u32 %v163, %v166
    %v169 = vmul.u32 %v164, %v165
    %v170 = vmul.u32 %v164, %v166
    %v171 = vshll.u32 %v168, 16
    %v172 = vshrl.u32 %v168, 16
    %v173 = vshll.u32 %v169, 16
    %v174 = vshrl.u32 %v169, 16
    %vm175 = vc.u32 %v167, %v171
    %v176 = vsel %vm175, 1, 0
    %v177 = vadd.s32 %v167, %v171
    %v178 = vadd.s32 %v170, %v176
    %vm179 = vc.u32 %v177, %v173
    %v180 = vsel %vm179, 1, 0
    %v181 = vadd.s32 %v177, %v173
    %v182 = vadd.s32 %v178, %v180
    %v183 = vadd.s32 %v182, %v172
    %v184 = vadd.s32 %v183, %v174
    %v185 = vmul.u32 %v140, %v131
    %v186 = vadd.s32 %v162, %v181
    %vm187 = vc.u32 %v162, %v181
    %v188 = vadd.s32 %v184, 1
    %v189 = vsel %vm187, %v188, %v184
    %v190 = vadd.s32 %v185, %v189
    %v191 = vadd.s32 %v190, 536870912
    %v192 = vshrl.u32 %v191, 30
    %v193 = vshll.u32 %v192, 30
    %v194 = vsub.s32 %v190, %v193
    %vm195 = vcmp.lt.s32.totalorder %v194, 0
    %v196 = vsub.s32 0, %v194
    %v197 = vsel %vm195, %v196, %v194
    %v198 = vclz %v197
    %v199 = vsub.s32 %v198, 2
    %vm200 = vcmp.gt.s32.totalorder 0, %v199
    %v201 = vsel %vm200, 0, %v199
    %v202 = vsub.s32 32, %v201
    %v203 = vshll.u32 %v194, %v201
    %v204 = vshrl.u32 %v186, %v202
    %v205 = vor.u32 %v203, %v204
    %v206 = vsub.s32 4294967266, %v201
    %v207 = vadd.s32 %v206, 127
    %v208 = vshll.u32 %v207, 23
    %v209 = vor.u32 4788187, %v208
    %v210 = vand.u32 2147483647, %v209
    %v212 = vcvt.s32.f32 %v205
    %v213 = vmul.f32 %v212, %v210
    %v214 = vxor.u32 %v213, 2147483648
    %v215 = vsel %vm94, %v214, %v213
    %v216 = vsub.s32 4, %v192
    %v217 = vsel %vm94, %v216, %v192
    %v218 = vsel %vm93, %v79, %v215
    %v219 = vsel %vm93, 0, %v217
    %v220 = vmul.f32 %v218, %v218
    %v221 = vmul.f32 %v220, -0.001358992
    %v222 = vadd.f32 %v221, 0.041655596
    %v223 = vmul.f32 %v220, %v222
    %v224 = vadd.f32 %v223, -0.4999988
    %v225 = vmul.f32 %v220, %v224
    %v226 = vadd.f32 1.0, %v225
    %v227 = vmul.f32 %v218, %v218
    %v228 = vmul.f32 %v227, -0.00019511016
    %v229 = vadd.f32 %v228, 0.008332121
    %v230 = vmul.f32 %v227, %v229
    %v231 = vadd.f32 %v230, -0.16666654
    %v232 = vmul.f32 %v227, %v231
    %v233 = vadd.f32 %v232, 1.0
    %v234 = vmul.f32 %v233, %v218
    %vm235 = vweird.f32 %v79
    %v236 = vand.u32 %v219, 3
    %vm237 = vcmp.lt.s32.totalorder %v236, 2
    %vm238 = vcmp.eq.s32.totalorder %v236, 0
    %v239 = vxor.u32 %v234, 2147483648
    %v240 = vsel %vm238, %v226, %v239
    %vm241 = vcmp.eq.s32.totalorder %v236, 2
    %v242 = vxor.u32 %v226, 2147483648
    %v243 = vsel %vm241, %v242, %v234
    %v244 = vsel %vm237, %v240, %v243
    %v245 = vsel %vm235, nan, %v244
    %v246 = vand.u32 2147483647, %v91
    %vm247 = vcmp.le.f32.partialorder %v246, 0.7853982
    %vm248 = vcmp.lt.s32.totalorder %v91, 0
    %v249 = vand.u32 %v91, 2139095040
    %v250 = vshrl.u32 %v249, 23
    %v251 = vsub.s32 %v250, 127
    %v252 = vand.u32 2147483647, %v91
    %v253 = vand.u32 %v252, 8388607
    %v254 = vor.u32 %v253, 8388608
    %v255 = vsub.s32 0, %v254
    %v256 = vadd.s32 %v251, 1
    %vm257 = vcmp.gt.s32.totalorder %v256, 0
    %v258 = vsel %vm257, %v256, 0
    %v259 = vshrl.u32 %v258, 5
    %v260 = vand.u32 %v258, 31
    %v261 = vsub.s32 32, %v260
    %v262 = vshrl.u32 683565275, %v261
    %v263 = vshll.u32 683565275, %v260
    %v264 = vshrl.u32 2475754826, %v261
    %v265 = vor.u32 %v263, %v264
    %v266 = vshll.u32 2475754826, %v260
    %v267 = vshrl.u32 2131351028, %v261
    %v268 = vor.u32 %v266, %v267
    %v269 = vshll.u32 2131351028, %v260
    %v270 = vshrl.u32 2102212464, %v261
    %v271 = vor.u32 %v269, %v270
    %v272 = vshll.u32 2102212464, %v260
    %v273 = vshrl.u32 920167782, %v261
    %v274 = vor.u32 %v272, %v273
    %v275 = vshll.u32 920167782, %v260
    %v276 = vshrl.u32 1326507024, %v261
    %v277 = vor.u32 %v275, %v276
    %vm278 = vcmp.lt.s32.totalorder %v259, 1
    %vm279 = vcmp.lt.s32.totalorder %v259, 2
    %vm280 = vcmp.lt.s32.totalorder %v259, 3
    %vm281 = vcmp.lt.s32.totalorder %v259, 4
    %v282 = vsel %vm278, %v262, %v265
    %v283 = vsel %vm281, %v271, 2102212464
    %v284 = vsel %vm280, %v268, %v283
    %v285 = vsel %vm279, %v282, %v284
    %v286 = vsel %vm278, %v265, %v268
    %v287 = vsel %vm281, %v274, 920167782
    %v288 = vsel %vm280, %v271, %v287
    %v289 = vsel %vm279, %v286, %v288
    %v290 = vsel %vm278, %v268, %v271
    %v291 = vsel %vm281, %v277, 1326507024
    %v292 = vsel %vm280, %v274, %v291
    %v293 = vsel %vm279, %v290, %v292
    %v294 = vshll.u32 %v254, 8
    %v295 = vand.u32 %v294, 65535
    %v296 = vshrl.u32 %v294, 16
    %v297 = vand.u32 %v293, 65535
    %v298 = vshrl.u32 %v293, 16
    %v299 = vmul.u32 %v295, %v297
    %v300 = vmul.u32 %v295, %v298
    %v301 = vmul.u32 %v296, %v297
    %v302 = vmul.u32 %v296, %v298
    %v303 = vshll.u32 %v300, 16
    %v304 = vshrl.u32 %v300, 16
    %v305 = vshll.u32 %v301, 16
    %v306 = vshrl.u32 %v301, 16
    %vm307 = vc.u32 %v299, %v303
    %v308 = vsel %vm307, 1, 0
    %v309 = vadd.s32 %v299, %v303
    %v310 = vadd.s32 %v302, %v308
    %vm311 = vc.u32 %v309, %v305
    %v312 = vsel %vm311, 1, 0
    %v313 = vadd.s32 %v309, %v305
    %v314 = vadd.s32 %v310, %v312
    %v315 = vadd.s32 %v314, %v304
    %v316 = vadd.s32 %v315, %v306
    %v317 = vand.u32 %v294, 65535
    %v318 = vshrl.u32 %v294, 16
    %v319 = vand.u32 %v289, 65535
    %v320 = vshrl.u32 %v289, 16
    %v321 = vmul.u32 %v317, %v319
    %v322 = vmul.u32 %v317, %v320
    %v323 = vmul.u32 %v318, %v319
    %v324 = vmul.u32 %v318, %v320
    %v325 = vshll.u32 %v322, 16
    %v326 = vshrl.u32 %v322, 16
    %v327 = vshll.u32 %v323, 16
    %v328 = vshrl.u32 %v323, 16
    %vm329 = vc.u32 %v321, %v325
    %v330 = vsel %vm329, 1, 0
    %v331 = vadd.s32 %v321, %v325
    %v332 = vadd.s32 %v324, %v330
    %vm333 = vc.u32 %v331, %v327
    %v334 = vsel %vm333, 1, 0
    %v335 = vadd.s32 %v331, %v327
    %v336 = vadd.s32 %v332, %v334
    %v337 = vadd.s32 %v336, %v326
    %v338 = vadd.s32 %v337, %v328
    %v339 = vmul.u32 %v294, %v285
    %v340 = vadd.s32 %v316, %v335
    %vm341 = vc.u32 %v316, %v335
    %v342 = vadd.s32 %v338, 1
    %v343 = vsel %vm341, %v342, %v338
    %v344 = vadd.s32 %v339, %v343
    %v345 = vadd.s32 %v344, 536870912
    %v346 = vshrl.u32 %v345, 30
    %v347 = vshll.u32 %v346, 30
    %v348 = vsub.s32 %v344, %v347
    %vm349 = vcmp.lt.s32.totalorder %v348, 0
    %v350 = vsub.s32 0, %v348
    %v351 = vsel %vm349, %v350, %v348
    %v352 = vclz %v351
    %v353 = vsub.s32 %v352, 2
    %vm354 = vcmp.gt.s32.totalorder 0, %v353
    %v355 = vsel %vm354, 0, %v353
    %v356 = vsub.s32 32, %v355
    %v357 = vshll.u32 %v348, %v355
    %v358 = vshrl.u32 %v340, %v356
    %v359 = vor.u32 %v357, %v358
    %v360 = vsub.s32 4294967266, %v355
    %v361 = vadd.s32 %v360, 127
    %v362 = vshll.u32 %v361, 23
    %v363 = vor.u32 4788187, %v362
    %v364 = vand.u32 2147483647, %v363
    %v366 = vcvt.s32.f32 %v359
    %v367 = vmul.f32 %v366, %v364
    %v368 = vxor.u32 %v367, 2147483648
    %v369 = vsel %vm248, %v368, %v367
    %v370 = vsub.s32 4, %v346
    %v371 = vsel %vm248, %v370, %v346
    %v372 = vsel %vm247, %v91, %v369
    %v373 = vsel %vm247, 0, %v371
    %v374 = vmul.f32 %v372, %v372
    %v375 = vmul.f32 %v374, -0.001358992
    %v376 = vadd.f32 %v375, 0.041655596
    %v377 = vmul.f32 %v374, %v376
    %v378 = vadd.f32 %v377, -0.4999988
    %v379 = vmul.f32 %v374, %v378
    %v380 = vadd.f32 1.0, %v379
    %v381 = vmul.f32 %v372, %v372
    %v382 = vmul.f32 %v381, -0.00019511016
    %v383 = vadd.f32 %v382, 0.008332121
    %v384 = vmul.f32 %v381, %v383
    %v385 = vadd.f32 %v384, -0.16666654
    %v386 = vmul.f32 %v381, %v385
    %v387 = vadd.f32 %v386, 1.0
    %v388 = vmul.f32 %v387, %v372
    %vm389 = vweird.f32 %v91
    %v390 = vand.u32 %v373, 3
    %vm391 = vcmp.lt.s32.totalorder %v390, 2
    %vm392 = vcmp.eq.s32.totalorder %v390, 0
    %v393 = vxor.u32 %v388, 2147483648
    %v394 = vsel %vm392, %v380, %v393
    %vm395 = vcmp.eq.s32.totalorder %v390, 2
    %v396 = vxor.u32 %v380, 2147483648
    %v397 = vsel %vm395, %v396, %v388
    %v398 = vsel %vm391, %v394, %v397
    %v399 = vsel %vm389, nan, %v398
    %v400 = vand.u32 2147483647, %v79
    %vm401 = vcmp.le.f32.partialorder %v400, 0.7853982
    %vm402 = vcmp.lt.s32.totalorder %v79, 0
    %v403 = vand.u32 %v79, 2139095040
    %v404 = vshrl.u32 %v403, 23
    %v405 = vsub.s32 %v404, 127
    %v406 = vand.u32 2147483647, %v79
    %v407 = vand.u32 %v406, 8388607
    %v408 = vor.u32 %v407, 8388608
    %v409 = vsub.s32 0, %v408
    %v410 = vadd.s32 %v405, 1
    %vm411 = vcmp.gt.s32.totalorder %v410, 0
    %v412 = vsel %vm411, %v410, 0
    %v413 = vshrl.u32 %v412, 5
    %v414 = vand.u32 %v412, 31
    %v415 = vsub.s32 32, %v414
    %v416 = vshrl.u32 683565275, %v415
    %v417 = vshll.u32 683565275, %v414
    %v418 = vshrl.u32 2475754826, %v415
    %v419 = vor.u32 %v417, %v418
    %v420 = vshll.u32 2475754826, %v414
    %v421 = vshrl.u32 2131351028, %v415
    %v422 = vor.u32 %v420, %v421
    %v423 = vshll.u32 2131351028, %v414
    %v424 = vshrl.u32 2102212464, %v415
    %v425 = vor.u32 %v423, %v424
    %v426 = vshll.u32 2102212464, %v414
    %v427 = vshrl.u32 920167782, %v415
    %v428 = vor.u32 %v426, %v427
    %v429 = vshll.u32 920167782, %v414
    %v430 = vshrl.u32 1326507024, %v415
    %v431 = vor.u32 %v429, %v430
    %vm432 = vcmp.lt.s32.totalorder %v413, 1
    %vm433 = vcmp.lt.s32.totalorder %v413, 2
    %vm434 = vcmp.lt.s32.totalorder %v413, 3
    %vm435 = vcmp.lt.s32.totalorder %v413, 4
    %v436 = vsel %vm432, %v416, %v419
    %v437 = vsel %vm435, %v425, 2102212464
    %v438 = vsel %vm434, %v422, %v437
    %v439 = vsel %vm433, %v436, %v438
    %v440 = vsel %vm432, %v419, %v422
    %v441 = vsel %vm435, %v428, 920167782
    %v442 = vsel %vm434, %v425, %v441
    %v443 = vsel %vm433, %v440, %v442
    %v444 = vsel %vm432, %v422, %v425
    %v445 = vsel %vm435, %v431, 1326507024
    %v446 = vsel %vm434, %v428, %v445
    %v447 = vsel %vm433, %v444, %v446
    %v448 = vshll.u32 %v408, 8
    %v449 = vand.u32 %v448, 65535
    %v450 = vshrl.u32 %v448, 16
    %v451 = vand.u32 %v447, 65535
    %v452 = vshrl.u32 %v447, 16
    %v453 = vmul.u32 %v449, %v451
    %v454 = vmul.u32 %v449, %v452
    %v455 = vmul.u32 %v450, %v451
    %v456 = vmul.u32 %v450, %v452
    %v457 = vshll.u32 %v454, 16
    %v458 = vshrl.u32 %v454, 16
    %v459 = vshll.u32 %v455, 16
    %v460 = vshrl.u32 %v455, 16
    %vm461 = vc.u32 %v453, %v457
    %v462 = vsel %vm461, 1, 0
    %v463 = vadd.s32 %v453, %v457
    %v464 = vadd.s32 %v456, %v462
    %vm465 = vc.u32 %v463, %v459
    %v466 = vsel %vm465, 1, 0
    %v467 = vadd.s32 %v463, %v459
    %v468 = vadd.s32 %v464, %v466
    %v469 = vadd.s32 %v468, %v458
    %v470 = vadd.s32 %v469, %v460
    %v471 = vand.u32 %v448, 65535
    %v472 = vshrl.u32 %v448, 16
    %v473 = vand.u32 %v443, 65535
    %v474 = vshrl.u32 %v443, 16
    %v475 = vmul.u32 %v471, %v473
    %v476 = vmul.u32 %v471, %v474
    %v477 = vmul.u32 %v472, %v473
    %v478 = vmul.u32 %v472, %v474
    %v479 = vshll.u32 %v476, 16
    %v480 = vshrl.u32 %v476, 16
    %v481 = vshll.u32 %v477, 16
    %v482 = vshrl.u32 %v477, 16
    %vm483 = vc.u32 %v475, %v479
    %v484 = vsel %vm483, 1, 0
    %v485 = vadd.s32 %v475, %v479
    %v486 = vadd.s32 %v478, %v484
    %vm487 = vc.u32 %v485, %v481
    %v488 = vsel %vm487, 1, 0
    %v489 = vadd.s32 %v485, %v481
    %v490 = vadd.s32 %v486, %v488
    %v491 = vadd.s32 %v490, %v480
    %v492 = vadd.s32 %v491, %v482
    %v493 = vmul.u32 %v448, %v439
    %v494 = vadd.s32 %v470, %v489
    %vm495 = vc.u32 %v470, %v489
    %v496 = vadd.s32 %v492, 1
    %v497 = vsel %vm495, %v496, %v492
    %v498 = vadd.s32 %v493, %v497
    %v499 = vadd.s32 %v498, 536870912
    %v500 = vshrl.u32 %v499, 30
    %v501 = vshll.u32 %v500, 30
    %v502 = vsub.s32 %v498, %v501
    %vm503 = vcmp.lt.s32.totalorder %v502, 0
    %v504 = vsub.s32 0, %v502
    %v505 = vsel %vm503, %v504, %v502
    %v506 = vclz %v505
    %v507 = vsub.s32 %v506, 2
    %vm508 = vcmp.gt.s32.totalorder 0, %v507
    %v509 = vsel %vm508, 0, %v507
    %v510 = vsub.s32 32, %v509
    %v511 = vshll.u32 %v502, %v509
    %v512 = vshrl.u32 %v494, %v510
    %v513 = vor.u32 %v511, %v512
    %v514 = vsub.s32 4294967266, %v509
    %v515 = vadd.s32 %v514, 127
    %v516 = vshll.u32 %v515, 23
    %v517 = vor.u32 4788187, %v516
    %v518 = vand.u32 2147483647, %v517
    %v520 = vcvt.s32.f32 %v513
    %v521 = vmul.f32 %v520, %v518
    %v522 = vxor.u32 %v521, 2147483648
    %v523 = vsel %vm402, %v522, %v521
    %v524 = vsub.s32 4, %v500
    %v525 = vsel %vm402, %v524, %v500
    %v526 = vsel %vm401, %v79, %v523
    %v527 = vsel %vm401, 0, %v525
    %v528 = vmul.f32 %v526, %v526
    %v529 = vmul.f32 %v528, -0.001358992
    %v530 = vadd.f32 %v529, 0.041655596
    %v531 = vmul.f32 %v528, %v530
    %v532 = vadd.f32 %v531, -0.4999988
    %v533 = vmul.f32 %v528, %v532
    %v534 = vadd.f32 1.0, %v533
    %v535 = vmul.f32 %v526, %v526
    %v536 = vmul.f32 %v535, -0.00019511016
    %v537 = vadd.f32 %v536, 0.008332121
    %v538 = vmul.f32 %v535, %v537
    %v539 = vadd.f32 %v538, -0.16666654
    %v540 = vmul.f32 %v535, %v539
    %v541 = vadd.f32 %v540, 1.0
    %v542 = vmul.f32 %v541, %v526
    %vm543 = vweird.f32 %v79
    %v544 = vadd.s32 %v527, 3
    %v545 = vand.u32 %v544, 3
    %vm546 = vcmp.lt.s32.totalorder %v545, 2
    %vm547 = vcmp.eq.s32.totalorder %v545, 0
    %v548 = vxor.u32 %v542, 2147483648
    %v549 = vsel %vm547, %v534, %v548
    %vm550 = vcmp.eq.s32.totalorder %v545, 2
    %v551 = vxor.u32 %v534, 2147483648
    %v552 = vsel %vm550, %v551, %v542
    %v553 = vsel %vm546, %v549, %v552
    %v554 = vsel %vm543, nan, %v553
    %v555 = vand.u32 2147483647, %v91
    %vm556 = vcmp.le.f32.partialorder %v555, 0.7853982
    %vm557 = vcmp.lt.s32.totalorder %v91, 0
    %v558 = vand.u32 %v91, 2139095040
    %v559 = vshrl.u32 %v558, 23
    %v560 = vsub.s32 %v559, 127
    %v561 = vand.u32 2147483647, %v91
    %v562 = vand.u32 %v561, 8388607
    %v563 = vor.u32 %v562, 8388608
    %v564 = vsub.s32 0, %v563
    %v565 = vadd.s32 %v560, 1
    %vm566 = vcmp.gt.s32.totalorder %v565, 0
    %v567 = vsel %vm566, %v565, 0
    %v568 = vshrl.u32 %v567, 5
    %v569 = vand.u32 %v567, 31
    %v570 = vsub.s32 32, %v569
    %v571 = vshrl.u32 683565275, %v570
    %v572 = vshll.u32 683565275, %v569
    %v573 = vshrl.u32 2475754826, %v570
    %v574 = vor.u32 %v572, %v573
    %v575 = vshll.u32 2475754826, %v569
    %v576 = vshrl.u32 2131351028, %v570
    %v577 = vor.u32 %v575, %v576
    %v578 = vshll.u32 2131351028, %v569
    %v579 = vshrl.u32 2102212464, %v570
    %v580 = vor.u32 %v578, %v579
    %v581 = vshll.u32 2102212464, %v569
    %v582 = vshrl.u32 920167782, %v570
    %v583 = vor.u32 %v581, %v582
    %v584 = vshll.u32 920167782, %v569
    %v585 = vshrl.u32 1326507024, %v570
    %v586 = vor.u32 %v584, %v585
    %vm587 = vcmp.lt.s32.totalorder %v568, 1
    %vm588 = vcmp.lt.s32.totalorder %v568, 2
    %vm589 = vcmp.lt.s32.totalorder %v568, 3
    %vm590 = vcmp.lt.s32.totalorder %v568, 4
    %v591 = vsel %vm587, %v571, %v574
    %v592 = vsel %vm590, %v580, 2102212464
    %v593 = vsel %vm589, %v577, %v592
    %v594 = vsel %vm588, %v591, %v593
    %v595 = vsel %vm587, %v574, %v577
    %v596 = vsel %vm590, %v583, 920167782
    %v597 = vsel %vm589, %v580, %v596
    %v598 = vsel %vm588, %v595, %v597
    %v599 = vsel %vm587, %v577, %v580
    %v600 = vsel %vm590, %v586, 1326507024
    %v601 = vsel %vm589, %v583, %v600
    %v602 = vsel %vm588, %v599, %v601
    %v603 = vshll.u32 %v563, 8
    %v604 = vand.u32 %v603, 65535
    %v605 = vshrl.u32 %v603, 16
    %v606 = vand.u32 %v602, 65535
    %v607 = vshrl.u32 %v602, 16
    %v608 = vmul.u32 %v604, %v606
    %v609 = vmul.u32 %v604, %v607
    %v610 = vmul.u32 %v605, %v606
    %v611 = vmul.u32 %v605, %v607
    %v612 = vshll.u32 %v609, 16
    %v613 = vshrl.u32 %v609, 16
    %v614 = vshll.u32 %v610, 16
    %v615 = vshrl.u32 %v610, 16
    %vm616 = vc.u32 %v608, %v612
    %v617 = vsel %vm616, 1, 0
    %v618 = vadd.s32 %v608, %v612
    %v619 = vadd.s32 %v611, %v617
    %vm620 = vc.u32 %v618, %v614
    %v621 = vsel %vm620, 1, 0
    %v622 = vadd.s32 %v618, %v614
    %v623 = vadd.s32 %v619, %v621
    %v624 = vadd.s32 %v623, %v613
    %v625 = vadd.s32 %v624, %v615
    %v626 = vand.u32 %v603, 65535
    %v627 = vshrl.u32 %v603, 16
    %v628 = vand.u32 %v598, 65535
    %v629 = vshrl.u32 %v598, 16
    %v630 = vmul.u32 %v626, %v628
    %v631 = vmul.u32 %v626, %v629
    %v632 = vmul.u32 %v627, %v628
    %v633 = vmul.u32 %v627, %v629
    %v634 = vshll.u32 %v631, 16
    %v635 = vshrl.u32 %v631, 16
    %v636 = vshll.u32 %v632, 16
    %v637 = vshrl.u32 %v632, 16
    %vm638 = vc.u32 %v630, %v634
    %v639 = vsel %vm638, 1, 0
    %v640 = vadd.s32 %v630, %v634
    %v641 = vadd.s32 %v633, %v639
    %vm642 = vc.u32 %v640, %v636
    %v643 = vsel %vm642, 1, 0
    %v644 = vadd.s32 %v640, %v636
    %v645 = vadd.s32 %v641, %v643
    %v646 = vadd.s32 %v645, %v635
    %v647 = vadd.s32 %v646, %v637
    %v648 = vmul.u32 %v603, %v594
    %v649 = vadd.s32 %v625, %v644
    %vm650 = vc.u32 %v625, %v644
    %v651 = vadd.s32 %v647, 1
    %v652 = vsel %vm650, %v651, %v647
    %v653 = vadd.s32 %v648, %v652
    %v654 = vadd.s32 %v653, 536870912
    %v655 = vshrl.u32 %v654, 30
    %v656 = vshll.u32 %v655, 30
    %v657 = vsub.s32 %v653, %v656
    %vm658 = vcmp.lt.s32.totalorder %v657, 0
    %v659 = vsub.s32 0, %v657
    %v660 = vsel %vm658, %v659, %v657
    %v661 = vclz %v660
    %v662 = vsub.s32 %v661, 2
    %vm663 = vcmp.gt.s32.totalorder 0, %v662
    %v664 = vsel %vm663, 0, %v662
    %v665 = vsub.s32 32, %v664
    %v666 = vshll.u32 %v657, %v664
    %v667 = vshrl.u32 %v649, %v665
    %v668 = vor.u32 %v666, %v667
    %v669 = vsub.s32 4294967266, %v664
    %v670 = vadd.s32 %v669, 127
    %v671 = vshll.u32 %v670, 23
    %v672 = vor.u32 4788187, %v671
    %v673 = vand.u32 2147483647, %v672
    %v675 = vcvt.s32.f32 %v668
    %v676 = vmul.f32 %v675, %v673
    %v677 = vxor.u32 %v676, 2147483648
    %v678 = vsel %vm557, %v677, %v676
    %v679 = vsub.s32 4, %v655
    %v680 = vsel %vm557, %v679, %v655
    %v681 = vsel %vm556, %v91, %v678
    %v682 = vsel %vm556, 0, %v680
    %v683 = vmul.f32 %v681, %v681
    %v684 = vmul.f32 %v683, -0.001358992
    %v685 = vadd.f32 %v684, 0.041655596
    %v686 = vmul.f32 %v683, %v685
    %v687 = vadd.f32 %v686, -0.4999988
    %v688 = vmul.f32 %v683, %v687
    %v689 = vadd.f32 1.0, %v688
    %v690 = vmul.f32 %v681, %v681
    %v691 = vmul.f32 %v690, -0.00019511016
    %v692 = vadd.f32 %v691, 0.008332121
    %v693 = vmul.f32 %v690, %v692
    %v694 = vadd.f32 %v693, -0.16666654
    %v695 = vmul.f32 %v690, %v694
    %v696 = vadd.f32 %v695, 1.0
    %v697 = vmul.f32 %v696, %v681
    %vm698 = vweird.f32 %v91
    %v699 = vadd.s32 %v682, 3
    %v700 = vand.u32 %v699, 3
    %vm701 = vcmp.lt.s32.totalorder %v700, 2
    %vm702 = vcmp.eq.s32.totalorder %v700, 0
    %v703 = vxor.u32 %v697, 2147483648
    %v704 = vsel %vm702, %v689, %v703
    %vm705 = vcmp.eq.s32.totalorder %v700, 2
    %v706 = vxor.u32 %v689, 2147483648
    %v707 = vsel %vm705, %v706, %v697
    %v708 = vsel %vm701, %v704, %v707
    %v709 = vsel %vm698, nan, %v708
    %v710 = vsub.f32 1.0, %v245
    %v711 = vsub.f32 1.0, %v399
    %v712 = vrcp.pop %v66
    %v713 = vrcp.pop %v67
    %v714 = vmul.f32 %v710, %v712
    %v715 = vmul.f32 %v711, %v713
    %v716 = vrsqrt.pop %v66
    %v717 = vmul.f32 %v716, %v66
    %v718 = vmul.f32 %v717, %v716
    %v719 = vmul.f32 0.5, %v718
    %v720 = vsub.f32 1.5, %v719
    %v721 = vmul.f32 %v716, %v720
    %vm722 = vweird.f32 %v66
    %vm723 = vweird.f32 %v716
    %vm724 = vmor %vm722, %vm723
    %v725 = vsel %vm724, %v716, %v721
    %v726 = vrsqrt.pop %v67
    %v727 = vmul.f32 %v726, %v67
    %v728 = vmul.f32 %v727, %v726
    %v729 = vmul.f32 0.5, %v728
    %v730 = vsub.f32 1.5, %v729
    %v731 = vmul.f32 %v726, %v730
    %vm732 = vweird.f32 %v67
    %vm733 = vweird.f32 %v726
    %vm734 = vmor %vm732, %vm733
    %v735 = vsel %vm734, %v726, %v731
    %v736 = vmul.f32 %v554, %v725
    %v737 = vmul.f32 %v709, %v735
    %v738 = vmul.f32 %v714, %v50
    %v739 = vmul.f32 %v715, %v51
    %v740 = vmul.f32 %v738, %v50
    %v741 = vmul.f32 %v739, %v51
    %v742 = vmul.f32 %v714, %v52
    %v743 = vmul.f32 %v715, %v53
    %v744 = vmul.f32 %v742, %v52
    %v745 = vmul.f32 %v743, %v53
    %v746 = vmul.f32 %v714, %v54
    %v747 = vmul.f32 %v715, %v55
    %v748 = vmul.f32 %v746, %v54
    %v749 = vmul.f32 %v747, %v55
    %v750 = vmul.f32 %v738, %v52
    %v751 = vmul.f32 %v739, %v53
    %v752 = vmul.f32 %v738, %v54
    %v753 = vmul.f32 %v739, %v55
    %v754 = vmul.f32 %v742, %v54
    %v755 = vmul.f32 %v743, %v55
    %v756 = vmul.f32 %v736, %v50
    %v757 = vmul.f32 %v737, %v51
    %v758 = vmul.f32 %v736, %v52
    %v759 = vmul.f32 %v737, %v53
    %v760 = vmul.f32 %v736, %v54
    %v761 = vmul.f32 %v737, %v55
    %v762 = vadd.f32 %v245, %v740
    %v763 = vadd.f32 %v399, %v741
    %v764 = vsub.f32 %v750, %v760
    %v765 = vsub.f32 %v751, %v761
    %v766 = vadd.f32 %v752, %v758
    %v767 = vadd.f32 %v753, %v759
    %v768 = vadd.f32 %v750, %v760
    %v769 = vadd.f32 %v751, %v761
    %v770 = vadd.f32 %v245, %v744
    %v771 = vadd.f32 %v399, %v745
    %v772 = vsub.f32 %v754, %v756
    %v773 = vsub.f32 %v755, %v757
    %v774 = vsub.f32 %v752, %v758
    %v775 = vsub.f32 %v753, %v759
    %v776 = vadd.f32 %v754, %v756
    %v777 = vadd.f32 %v755, %v757
    %v778 = vadd.f32 %v245, %v748
    %v779 = vadd.f32 %v399, %v749
    %v782 = vrot.slane %v762, 4
    %v783 = vrot.slane %v763, 4
    %v786 = vmul.f32 %v762, %v782
    %v787 = vmul.f32 %v763, %v783
    %v790 = vrot.slane %v768, 4
    %v791 = vrot.slane %v769, 4
    %v794 = vmul.f32 %v764, %v790
    %v795 = vmul.f32 %v765, %v791
    %v796 = vadd.f32 %v786, %v794
    %v797 = vadd.f32 %v787, %v795
    %v800 = vrot.slane %v774, 4
    %v801 = vrot.slane %v775, 4
    %v804 = vmul.f32 %v766, %v800
    %v805 = vmul.f32 %v767, %v801
    %v806 = vadd.f32 %v796, %v804
    %v807 = vadd.f32 %v797, %v805
    %v810 = vrot.slane %v764, 4
    %v811 = vrot.slane %v765, 4
    %v814 = vmul.f32 %v762, %v810
    %v815 = vmul.f32 %v763, %v811
    %v818 = vrot.slane %v770, 4
    %v819 = vrot.slane %v771, 4
    %v822 = vmul.f32 %v764, %v818
    %v823 = vmul.f32 %v765, %v819
    %v824 = vadd.f32 %v814, %v822
    %v825 = vadd.f32 %v815, %v823
    %v828 = vrot.slane %v776, 4
    %v829 = vrot.slane %v777, 4
    %v832 = vmul.f32 %v766, %v828
    %v833 = vmul.f32 %v767, %v829
    %v834 = vadd.f32 %v824, %v832
    %v835 = vadd.f32 %v825, %v833
    %v838 = vrot.slane %v766, 4
    %v839 = vrot.slane %v767, 4
    %v842 = vmul.f32 %v762, %v838
    %v843 = vmul.f32 %v763, %v839
    %v846 = vrot.slane %v772, 4
    %v847 = vrot.slane %v773, 4
    %v850 = vmul.f32 %v764, %v846
    %v851 = vmul.f32 %v765, %v847
    %v852 = vadd.f32 %v842, %v850
    %v853 = vadd.f32 %v843, %v851
    %v856 = vrot.slane %v778, 4
    %v857 = vrot.slane %v779, 4
    %v860 = vmul.f32 %v766, %v856
    %v861 = vmul.f32 %v767, %v857
    %v862 = vadd.f32 %v852, %v860
    %v863 = vadd.f32 %v853, %v861
    %v864 = vmul.f32 %v768, %v782
    %v865 = vmul.f32 %v769, %v783
    %v866 = vmul.f32 %v770, %v790
    %v867 = vmul.f32 %v771, %v791
    %v868 = vadd.f32 %v864, %v866
    %v869 = vadd.f32 %v865, %v867
    %v870 = vmul.f32 %v772, %v800
    %v871 = vmul.f32 %v773, %v801
    %v872 = vadd.f32 %v868, %v870
    %v873 = vadd.f32 %v869, %v871
    %v874 = vmul.f32 %v768, %v810
    %v875 = vmul.f32 %v769, %v811
    %v876 = vmul.f32 %v770, %v818
    %v877 = vmul.f32 %v771, %v819
    %v878 = vadd.f32 %v874, %v876
    %v879 = vadd.f32 %v875, %v877
    %v880 = vmul.f32 %v772, %v828
    %v881 = vmul.f32 %v773, %v829
    %v882 = vadd.f32 %v878, %v880
    %v883 = vadd.f32 %v879, %v881
    %v884 = vmul.f32 %v768, %v838
    %v885 = vmul.f32 %v769, %v839
    %v886 = vmul.f32 %v770, %v846
    %v887 = vmul.f32 %v771, %v847
    %v888 = vadd.f32 %v884, %v886
    %v889 = vadd.f32 %v885, %v887
    %v890 = vmul.f32 %v772, %v856
    %v891 = vmul.f32 %v773, %v857
    %v892 = vadd.f32 %v888, %v890
    %v893 = vadd.f32 %v889, %v891
    %v894 = vmul.f32 %v774, %v782
    %v895 = vmul.f32 %v775, %v783
    %v896 = vmul.f32 %v776, %v790
    %v897 = vmul.f32 %v777, %v791
    %v898 = vadd.f32 %v894, %v896
    %v899 = vadd.f32 %v895, %v897
    %v900 = vmul.f32 %v778, %v800
    %v901 = vmul.f32 %v779, %v801
    %v902 = vadd.f32 %v898, %v900
    %v903 = vadd.f32 %v899, %v901
    %v904 = vmul.f32 %v774, %v810
    %v905 = vmul.f32 %v775, %v811
    %v906 = vmul.f32 %v776, %v818
    %v907 = vmul.f32 %v777, %v819
    %v908 = vadd.f32 %v904, %v906
    %v909 = vadd.f32 %v905, %v907
    %v910 = vmul.f32 %v778, %v828
    %v911 = vmul.f32 %v779, %v829
    %v912 = vadd.f32 %v908, %v910
    %v913 = vadd.f32 %v909, %v911
    %v914 = vmul.f32 %v774, %v838
    %v915 = vmul.f32 %v775, %v839
    %v916 = vmul.f32 %v776, %v846
    %v917 = vmul.f32 %v777, %v847
    %v918 = vadd.f32 %v914, %v916
    %v919 = vadd.f32 %v915, %v917
    %v920 = vmul.f32 %v778, %v856
    %v921 = vmul.f32 %v779, %v857
    %v922 = vadd.f32 %v918, %v920
    %v923 = vadd.f32 %v919, %v921
    %v926 = vrot.slane %v806, 2
    %v927 = vrot.slane %v807, 2
    %v930 = vmul.f32 %v806, %v926
    %v931 = vmul.f32 %v807, %v927
    %v934 = vrot.slane %v872, 2
    %v935 = vrot.slane %v873, 2
    %v938 = vmul.f32 %v834, %v934
    %v939 = vmul.f32 %v835, %v935
    %v940 = vadd.f32 %v930, %v938
    %v941 = vadd.f32 %v931, %v939
    %v944 = vrot.slane %v902, 2
    %v945 = vrot.slane %v903, 2
    %v948 = vmul.f32 %v862, %v944
    %v949 = vmul.f32 %v863, %v945
    %v950 = vadd.f32 %v940, %v948
    %v951 = vadd.f32 %v941, %v949
    %v954 = vrot.slane %v834, 2
    %v955 = vrot.slane %v835, 2
    %v958 = vmul.f32 %v806, %v954
    %v959 = vmul.f32 %v807, %v955
    %v962 = vrot.slane %v882, 2
    %v963 = vrot.slane %v883, 2
    %v966 = vmul.f32 %v834, %v962
    %v967 = vmul.f32 %v835, %v963
    %v968 = vadd.f32 %v958, %v966
    %v969 = vadd.f32 %v959, %v967
    %v972 = vrot.slane %v912, 2
    %v973 = vrot.slane %v913, 2
    %v976 = vmul.f32 %v862, %v972
    %v977 = vmul.f32 %v863, %v973
    %v978 = vadd.f32 %v968, %v976
    %v979 = vadd.f32 %v969, %v977
    %v982 = vrot.slane %v862, 2
    %v983 = vrot.slane %v863, 2
    %v986 = vmul.f32 %v806, %v982
    %v987 = vmul.f32 %v807, %v983
    %v990 = vrot.slane %v892, 2
    %v991 = vrot.slane %v893, 2
    %v994 = vmul.f32 %v834, %v990
    %v995 = vmul.f32 %v835, %v991
    %v996 = vadd.f32 %v986, %v994
    %v997 = vadd.f32 %v987, %v995
    %v1000 = vrot.slane %v922, 2
    %v1001 = vrot.slane %v923, 2
    %v1004 = vmul.f32 %v862, %v1000
    %v1005 = vmul.f32 %v863, %v1001
    %v1006 = vadd.f32 %v996, %v1004
    %v1007 = vadd.f32 %v997, %v1005
    %v1008 = vmul.f32 %v872, %v926
    %v1009 = vmul.f32 %v873, %v927
    %v1010 = vmul.f32 %v882, %v934
    %v1011 = vmul.f32 %v883, %v935
    %v1012 = vadd.f32 %v1008, %v1010
    %v1013 = vadd.f32 %v1009, %v1011
    %v1014 = vmul.f32 %v892, %v944
    %v1015 = vmul.f32 %v893, %v945
    %v1016 = vadd.f32 %v1012, %v1014
    %v1017 = vadd.f32 %v1013, %v1015
    %v1018 = vmul.f32 %v872, %v954
    %v1019 = vmul.f32 %v873, %v955
    %v1020 = vmul.f32 %v882, %v962
    %v1021 = vmul.f32 %v883, %v963
    %v1022 = vadd.f32 %v1018, %v1020
    %v1023 = vadd.f32 %v1019, %v1021
    %v1024 = vmul.f32 %v892, %v972
    %v1025 = vmul.f32 %v893, %v973
    %v1026 = vadd.f32 %v1022, %v1024
    %v1027 = vadd.f32 %v1023, %v1025
    %v1028 = vmul.f32 %v872, %v982
    %v1029 = vmul.f32 %v873, %v983
    %v1030 = vmul.f32 %v882, %v990
    %v1031 = vmul.f32 %v883, %v991
    %v1032 = vadd.f32 %v1028, %v1030
    %v1033 = vadd.f32 %v1029, %v1031
    %v1034 = vmul.f32 %v892, %v1000
    %v1035 = vmul.f32 %v893, %v1001
    %v1036 = vadd.f32 %v1032, %v1034
    %v1037 = vadd.f32 %v1033, %v1035
    %v1038 = vmul.f32 %v902, %v926
    %v1039 = vmul.f32 %v903, %v927
    %v1040 = vmul.f32 %v912, %v934
    %v1041 = vmul.f32 %v913, %v935
    %v1042 = vadd.f32 %v1038, %v1040
    %v1043 = vadd.f32 %v1039, %v1041
    %v1044 = vmul.f32 %v922, %v944
    %v1045 = vmul.f32 %v923, %v945
    %v1046 = vadd.f32 %v1042, %v1044
    %v1047 = vadd.f32 %v1043, %v1045
    %v1048 = vmul.f32 %v902, %v954
    %v1049 = vmul.f32 %v903, %v955
    %v1050 = vmul.f32 %v912, %v962
    %v1051 = vmul.f32 %v913, %v963
    %v1052 = vadd.f32 %v1048, %v1050
    %v1053 = vadd.f32 %v1049, %v1051
    %v1054 = vmul.f32 %v922, %v972
    %v1055 = vmul.f32 %v923, %v973
    %v1056 = vadd.f32 %v1052, %v1054
    %v1057 = vadd.f32 %v1053, %v1055
    %v1058 = vmul.f32 %v902, %v982
    %v1059 = vmul.f32 %v903, %v983
    %v1060 = vmul.f32 %v912, %v990
    %v1061 = vmul.f32 %v913, %v991
    %v1062 = vadd.f32 %v1058, %v1060
    %v1063 = vadd.f32 %v1059, %v1061
    %v1064 = vmul.f32 %v922, %v1000
    %v1065 = vmul.f32 %v923, %v1001
    %v1066 = vadd.f32 %v1062, %v1064
    %v1067 = vadd.f32 %v1063, %v1065
    %v1070 = vrot.slane %v950, 1
    %v1071 = vrot.slane %v951, 1
    %v1074 = vmul.f32 %v950, %v1070
    %v1075 = vmul.f32 %v951, %v1071
    %v1078 = vrot.slane %v1016, 1
    %v1079 = vrot.slane %v1017, 1
    %v1082 = vmul.f32 %v978, %v1078
    %v1083 = vmul.f32 %v979, %v1079
    %v1084 = vadd.f32 %v1074, %v1082
    %v1085 = vadd.f32 %v1075, %v1083
    %v1088 = vrot.slane %v1046, 1
    %v1089 = vrot.slane %v1047, 1
    %v1092 = vmul.f32 %v1006, %v1088
    %v1093 = vmul.f32 %v1007, %v1089
    %v1094 = vadd.f32 %v1084, %v1092
    %v1095 = vadd.f32 %v1085, %v1093
    %v1098 = vrot.slane %v978, 1
    %v1099 = vrot.slane %v979, 1
    %v1102 = vmul.f32 %v950, %v1098
    %v1103 = vmul.f32 %v951, %v1099
    %v1106 = vrot.slane %v1026, 1
    %v1107 = vrot.slane %v1027, 1
    %v1110 = vmul.f32 %v978, %v1106
    %v1111 = vmul.f32 %v979, %v1107
    %v1112 = vadd.f32 %v1102, %v1110
    %v1113 = vadd.f32 %v1103, %v1111
    %v1116 = vrot.slane %v1056, 1
    %v1117 = vrot.slane %v1057, 1
    %v1120 = vmul.f32 %v1006, %v1116
    %v1121 = vmul.f32 %v1007, %v1117
    %v1122 = vadd.f32 %v1112, %v1120
    %v1123 = vadd.f32 %v1113, %v1121
    %v1126 = vrot.slane %v1006, 1
    %v1127 = vrot.slane %v1007, 1
    %v1130 = vmul.f32 %v950, %v1126
    %v1131 = vmul.f32 %v951, %v1127
    %v1134 = vrot.slane %v1036, 1
    %v1135 = vrot.slane %v1037, 1
    %v1138 = vmul.f32 %v978, %v1134
    %v1139 = vmul.f32 %v979, %v1135
    %v1140 = vadd.f32 %v1130, %v1138
    %v1141 = vadd.f32 %v1131, %v1139
    %v1144 = vrot.slane %v1066, 1
    %v1145 = vrot.slane %v1067, 1
    %v1148 = vmul.f32 %v1006, %v1144
    %v1149 = vmul.f32 %v1007, %v1145
    %v1150 = vadd.f32 %v1140, %v1148
    %v1151 = vadd.f32 %v1141, %v1149
    %v1152 = vmul.f32 %v1016, %v1070
    %v1153 = vmul.f32 %v1017, %v1071
    %v1154 = vmul.f32 %v1026, %v1078
    %v1155 = vmul.f32 %v1027, %v1079
    %v1156 = vadd.f32 %v1152, %v1154
    %v1157 = vadd.f32 %v1153, %v1155
    %v1158 = vmul.f32 %v1036, %v1088
    %v1159 = vmul.f32 %v1037, %v1089
    %v1160 = vadd.f32 %v1156, %v1158
    %v1161 = vadd.f32 %v1157, %v1159
    %v1162 = vmul.f32 %v1016, %v1098
    %v1163 = vmul.f32 %v1017, %v1099
    %v1164 = vmul.f32 %v1026, %v1106
    %v1165 = vmul.f32 %v1027, %v1107
    %v1166 = vadd.f32 %v1162, %v1164
    %v1167 = vadd.f32 %v1163, %v1165
    %v1168 = vmul.f32 %v1036, %v1116
    %v1169 = vmul.f32 %v1037, %v1117
    %v1170 = vadd.f32 %v1166, %v1168
    %v1171 = vadd.f32 %v1167, %v1169
    %v1172 = vmul.f32 %v1016, %v1126
    %v1173 = vmul.f32 %v1017, %v1127
    %v1174 = vmul.f32 %v1026, %v1134
    %v1175 = vmul.f32 %v1027, %v1135
    %v1176 = vadd.f32 %v1172, %v1174
    %v1177 = vadd.f32 %v1173, %v1175
    %v1178 = vmul.f32 %v1036, %v1144
    %v1179 = vmul.f32 %v1037, %v1145
    %v1180 = vadd.f32 %v1176, %v1178
    %v1181 = vadd.f32 %v1177, %v1179
    %v1182 = vmul.f32 %v1046, %v1070
    %v1183 = vmul.f32 %v1047, %v1071
    %v1184 = vmul.f32 %v1056, %v1078
    %v1185 = vmul.f32 %v1057, %v1079
    %v1186 = vadd.f32 %v1182, %v1184
    %v1187 = vadd.f32 %v1183, %v1185
    %v1188 = vmul.f32 %v1066, %v1088
    %v1189 = vmul.f32 %v1067, %v1089
    %v1190 = vadd.f32 %v1186, %v1188
    %v1191 = vadd.f32 %v1187, %v1189
    %v1192 = vmul.f32 %v1046, %v1098
    %v1193 = vmul.f32 %v1047, %v1099
    %v1194 = vmul.f32 %v1056, %v1106
    %v1195 = vmul.f32 %v1057, %v1107
    %v1196 = vadd.f32 %v1192, %v1194
    %v1197 = vadd.f32 %v1193, %v1195
    %v1198 = vmul.f32 %v1066, %v1116
    %v1199 = vmul.f32 %v1067, %v1117
    %v1200 = vadd.f32 %v1196, %v1198
    %v1201 = vadd.f32 %v1197, %v1199
    %v1202 = vmul.f32 %v1046, %v1126
    %v1203 = vmul.f32 %v1047, %v1127
    %v1204 = vmul.f32 %v1056, %v1134
    %v1205 = vmul.f32 %v1057, %v1135
    %v1206 = vadd.f32 %v1202, %v1204
    %v1207 = vadd.f32 %v1203, %v1205
    %v1208 = vmul.f32 %v1066, %v1144
    %v1209 = vmul.f32 %v1067, %v1145
    %v1210 = vadd.f32 %v1206, %v1208
    %v1211 = vadd.f32 %v1207, %v1209
    %v1212 = vld [vmem:[#allocation2 + $0x10] sm:$0xff]
    %v1213 = vld [vmem:[#allocation2 + $0x18] sm:$0xff]
    %v1214 = vld [vmem:[#allocation2 + $0x50] sm:$0xff]
    %v1215 = vld [vmem:[#allocation2 + $0x58] sm:$0xff]
    %v1216 = vld [vmem:[#allocation2 + $0x90] sm:$0xff]
    %v1217 = vld [vmem:[#allocation2 + $0x98] sm:$0xff]
    %v1218 = vmul.f32 %v1212, 0.005
    %v1219 = vmul.f32 %v1213, 0.005
    %v1220 = vmul.f32 %v1214, 0.005
    %v1221 = vmul.f32 %v1215, 0.005
    %v1222 = vmul.f32 %v1216, 0.005
    %v1223 = vmul.f32 %v1217, 0.005
    %v1224 = vmul.f32 %v1218, %v1218
    %v1225 = vmul.f32 %v1219, %v1219
    %v1226 = vmul.f32 %v1220, %v1220
    %v1227 = vmul.f32 %v1221, %v1221
    %v1228 = vadd.f32 %v1224, %v1226
    %v1229 = vadd.f32 %v1225, %v1227
    %v1230 = vmul.f32 %v1222, %v1222
    %v1231 = vmul.f32 %v1223, %v1223
    %v1232 = vadd.f32 %v1228, %v1230
    %v1233 = vadd.f32 %v1229, %v1231
    %v1234 = vmax.f32 %v1232, 1e-12
    %v1235 = vmax.f32 %v1233, 1e-12
    %v1236 = vrsqrt.pop %v1234
    %v1237 = vmul.f32 %v1236, %v1234
    %v1238 = vmul.f32 %v1237, %v1236
    %v1239 = vmul.f32 0.5, %v1238
    %v1240 = vsub.f32 1.5, %v1239
    %v1241 = vmul.f32 %v1236, %v1240
    %v1242 = vmul.f32 %v1234, %v1241
    %vm1243 = vcmp.eq.f32.partialorder %v1234, inf
    %v1244 = vsel %vm1243, %v1234, %v1242
    %vm1245 = vcmp.eq.f32.partialorder %v1234, 0.0
    %v1246 = vand.u32 %v1234, 2147483648
    %v1247 = vsel %vm1245, %v1246, %v1244
    %v1248 = vrsqrt.pop %v1235
    %v1249 = vmul.f32 %v1248, %v1235
    %v1250 = vmul.f32 %v1249, %v1248
    %v1251 = vmul.f32 0.5, %v1250
    %v1252 = vsub.f32 1.5, %v1251
    %v1253 = vmul.f32 %v1248, %v1252
    %v1254 = vmul.f32 %v1235, %v1253
    %vm1255 = vcmp.eq.f32.partialorder %v1235, inf
    %v1256 = vsel %vm1255, %v1235, %v1254
    %vm1257 = vcmp.eq.f32.partialorder %v1235, 0.0
    %v1258 = vand.u32 %v1235, 2147483648
    %v1259 = vsel %vm1257, %v1258, %v1256
    %v1260 = vand.u32 2147483647, %v1247
    %vm1261 = vcmp.le.f32.partialorder %v1260, 0.7853982
    %vm1262 = vcmp.lt.s32.totalorder %v1247, 0
    %v1263 = vand.u32 %v1247, 2139095040
    %v1264 = vshrl.u32 %v1263, 23
    %v1265 = vsub.s32 %v1264, 127
    %v1266 = vand.u32 2147483647, %v1247
    %v1267 = vand.u32 %v1266, 8388607
    %v1268 = vor.u32 %v1267, 8388608
    %v1269 = vsub.s32 0, %v1268
    %v1270 = vadd.s32 %v1265, 1
    %vm1271 = vcmp.gt.s32.totalorder %v1270, 0
    %v1272 = vsel %vm1271, %v1270, 0
    %v1273 = vshrl.u32 %v1272, 5
    %v1274 = vand.u32 %v1272, 31
    %v1275 = vsub.s32 32, %v1274
    %v1276 = vshrl.u32 683565275, %v1275
    %v1277 = vshll.u32 683565275, %v1274
    %v1278 = vshrl.u32 2475754826, %v1275
    %v1279 = vor.u32 %v1277, %v1278
    %v1280 = vshll.u32 2475754826, %v1274
    %v1281 = vshrl.u32 2131351028, %v1275
    %v1282 = vor.u32 %v1280, %v1281
    %v1283 = vshll.u32 2131351028, %v1274
    %v1284 = vshrl.u32 2102212464, %v1275
    %v1285 = vor.u32 %v1283, %v1284
    %v1286 = vshll.u32 2102212464, %v1274
    %v1287 = vshrl.u32 920167782, %v1275
    %v1288 = vor.u32 %v1286, %v1287
    %v1289 = vshll.u32 920167782, %v1274
    %v1290 = vshrl.u32 1326507024, %v1275
    %v1291 = vor.u32 %v1289, %v1290
    %vm1292 = vcmp.lt.s32.totalorder %v1273, 1
    %vm1293 = vcmp.lt.s32.totalorder %v1273, 2
    %vm1294 = vcmp.lt.s32.totalorder %v1273, 3
    %vm1295 = vcmp.lt.s32.totalorder %v1273, 4
    %v1296 = vsel %vm1292, %v1276, %v1279
    %v1297 = vsel %vm1295, %v1285, 2102212464
    %v1298 = vsel %vm1294, %v1282, %v1297
    %v1299 = vsel %vm1293, %v1296, %v1298
    %v1300 = vsel %vm1292, %v1279, %v1282
    %v1301 = vsel %vm1295, %v1288, 920167782
    %v1302 = vsel %vm1294, %v1285, %v1301
    %v1303 = vsel %vm1293, %v1300, %v1302
    %v1304 = vsel %vm1292, %v1282, %v1285
    %v1305 = vsel %vm1295, %v1291, 1326507024
    %v1306 = vsel %vm1294, %v1288, %v1305
    %v1307 = vsel %vm1293, %v1304, %v1306
    %v1308 = vshll.u32 %v1268, 8
    %v1309 = vand.u32 %v1308, 65535
    %v1310 = vshrl.u32 %v1308, 16
    %v1311 = vand.u32 %v1307, 65535
    %v1312 = vshrl.u32 %v1307, 16
    %v1313 = vmul.u32 %v1309, %v1311
    %v1314 = vmul.u32 %v1309, %v1312
    %v1315 = vmul.u32 %v1310, %v1311
    %v1316 = vmul.u32 %v1310, %v1312
    %v1317 = vshll.u32 %v1314, 16
    %v1318 = vshrl.u32 %v1314, 16
    %v1319 = vshll.u32 %v1315, 16
    %v1320 = vshrl.u32 %v1315, 16
    %vm1321 = vc.u32 %v1313, %v1317
    %v1322 = vsel %vm1321, 1, 0
    %v1323 = vadd.s32 %v1313, %v1317
    %v1324 = vadd.s32 %v1316, %v1322
    %vm1325 = vc.u32 %v1323, %v1319
    %v1326 = vsel %vm1325, 1, 0
    %v1327 = vadd.s32 %v1323, %v1319
    %v1328 = vadd.s32 %v1324, %v1326
    %v1329 = vadd.s32 %v1328, %v1318
    %v1330 = vadd.s32 %v1329, %v1320
    %v1331 = vand.u32 %v1308, 65535
    %v1332 = vshrl.u32 %v1308, 16
    %v1333 = vand.u32 %v1303, 65535
    %v1334 = vshrl.u32 %v1303, 16
    %v1335 = vmul.u32 %v1331, %v1333
    %v1336 = vmul.u32 %v1331, %v1334
    %v1337 = vmul.u32 %v1332, %v1333
    %v1338 = vmul.u32 %v1332, %v1334
    %v1339 = vshll.u32 %v1336, 16
    %v1340 = vshrl.u32 %v1336, 16
    %v1341 = vshll.u32 %v1337, 16
    %v1342 = vshrl.u32 %v1337, 16
    %vm1343 = vc.u32 %v1335, %v1339
    %v1344 = vsel %vm1343, 1, 0
    %v1345 = vadd.s32 %v1335, %v1339
    %v1346 = vadd.s32 %v1338, %v1344
    %vm1347 = vc.u32 %v1345, %v1341
    %v1348 = vsel %vm1347, 1, 0
    %v1349 = vadd.s32 %v1345, %v1341
    %v1350 = vadd.s32 %v1346, %v1348
    %v1351 = vadd.s32 %v1350, %v1340
    %v1352 = vadd.s32 %v1351, %v1342
    %v1353 = vmul.u32 %v1308, %v1299
    %v1354 = vadd.s32 %v1330, %v1349
    %vm1355 = vc.u32 %v1330, %v1349
    %v1356 = vadd.s32 %v1352, 1
    %v1357 = vsel %vm1355, %v1356, %v1352
    %v1358 = vadd.s32 %v1353, %v1357
    %v1359 = vadd.s32 %v1358, 536870912
    %v1360 = vshrl.u32 %v1359, 30
    %v1361 = vshll.u32 %v1360, 30
    %v1362 = vsub.s32 %v1358, %v1361
    %vm1363 = vcmp.lt.s32.totalorder %v1362, 0
    %v1364 = vsub.s32 0, %v1362
    %v1365 = vsel %vm1363, %v1364, %v1362
    %v1366 = vclz %v1365
    %v1367 = vsub.s32 %v1366, 2
    %vm1368 = vcmp.gt.s32.totalorder 0, %v1367
    %v1369 = vsel %vm1368, 0, %v1367
    %v1370 = vsub.s32 32, %v1369
    %v1371 = vshll.u32 %v1362, %v1369
    %v1372 = vshrl.u32 %v1354, %v1370
    %v1373 = vor.u32 %v1371, %v1372
    %v1374 = vsub.s32 4294967266, %v1369
    %v1375 = vadd.s32 %v1374, 127
    %v1376 = vshll.u32 %v1375, 23
    %v1377 = vor.u32 4788187, %v1376
    %v1378 = vand.u32 2147483647, %v1377
    %v1380 = vcvt.s32.f32 %v1373
    %v1381 = vmul.f32 %v1380, %v1378
    %v1382 = vxor.u32 %v1381, 2147483648
    %v1383 = vsel %vm1262, %v1382, %v1381
    %v1384 = vsub.s32 4, %v1360
    %v1385 = vsel %vm1262, %v1384, %v1360
    %v1386 = vsel %vm1261, %v1247, %v1383
    %v1387 = vsel %vm1261, 0, %v1385
    %v1388 = vmul.f32 %v1386, %v1386
    %v1389 = vmul.f32 %v1388, -0.001358992
    %v1390 = vadd.f32 %v1389, 0.041655596
    %v1391 = vmul.f32 %v1388, %v1390
    %v1392 = vadd.f32 %v1391, -0.4999988
    %v1393 = vmul.f32 %v1388, %v1392
    %v1394 = vadd.f32 1.0, %v1393
    %v1395 = vmul.f32 %v1386, %v1386
    %v1396 = vmul.f32 %v1395, -0.00019511016
    %v1397 = vadd.f32 %v1396, 0.008332121
    %v1398 = vmul.f32 %v1395, %v1397
    %v1399 = vadd.f32 %v1398, -0.16666654
    %v1400 = vmul.f32 %v1395, %v1399
    %v1401 = vadd.f32 %v1400, 1.0
    %v1402 = vmul.f32 %v1401, %v1386
    %vm1403 = vweird.f32 %v1247
    %v1404 = vand.u32 %v1387, 3
    %vm1405 = vcmp.lt.s32.totalorder %v1404, 2
    %vm1406 = vcmp.eq.s32.totalorder %v1404, 0
    %v1407 = vxor.u32 %v1402, 2147483648
    %v1408 = vsel %vm1406, %v1394, %v1407
    %vm1409 = vcmp.eq.s32.totalorder %v1404, 2
    %v1410 = vxor.u32 %v1394, 2147483648
    %v1411 = vsel %vm1409, %v1410, %v1402
    %v1412 = vsel %vm1405, %v1408, %v1411
    %v1413 = vsel %vm1403, nan, %v1412
    %v1414 = vand.u32 2147483647, %v1259
    %vm1415 = vcmp.le.f32.partialorder %v1414, 0.7853982
    %vm1416 = vcmp.lt.s32.totalorder %v1259, 0
    %v1417 = vand.u32 %v1259, 2139095040
    %v1418 = vshrl.u32 %v1417, 23
    %v1419 = vsub.s32 %v1418, 127
    %v1420 = vand.u32 2147483647, %v1259
    %v1421 = vand.u32 %v1420, 8388607
    %v1422 = vor.u32 %v1421, 8388608
    %v1423 = vsub.s32 0, %v1422
    %v1424 = vadd.s32 %v1419, 1
    %vm1425 = vcmp.gt.s32.totalorder %v1424, 0
    %v1426 = vsel %vm1425, %v1424, 0
    %v1427 = vshrl.u32 %v1426, 5
    %v1428 = vand.u32 %v1426, 31
    %v1429 = vsub.s32 32, %v1428
    %v1430 = vshrl.u32 683565275, %v1429
    %v1431 = vshll.u32 683565275, %v1428
    %v1432 = vshrl.u32 2475754826, %v1429
    %v1433 = vor.u32 %v1431, %v1432
    %v1434 = vshll.u32 2475754826, %v1428
    %v1435 = vshrl.u32 2131351028, %v1429
    %v1436 = vor.u32 %v1434, %v1435
    %v1437 = vshll.u32 2131351028, %v1428
    %v1438 = vshrl.u32 2102212464, %v1429
    %v1439 = vor.u32 %v1437, %v1438
    %v1440 = vshll.u32 2102212464, %v1428
    %v1441 = vshrl.u32 920167782, %v1429
    %v1442 = vor.u32 %v1440, %v1441
    %v1443 = vshll.u32 920167782, %v1428
    %v1444 = vshrl.u32 1326507024, %v1429
    %v1445 = vor.u32 %v1443, %v1444
    %vm1446 = vcmp.lt.s32.totalorder %v1427, 1
    %vm1447 = vcmp.lt.s32.totalorder %v1427, 2
    %vm1448 = vcmp.lt.s32.totalorder %v1427, 3
    %vm1449 = vcmp.lt.s32.totalorder %v1427, 4
    %v1450 = vsel %vm1446, %v1430, %v1433
    %v1451 = vsel %vm1449, %v1439, 2102212464
    %v1452 = vsel %vm1448, %v1436, %v1451
    %v1453 = vsel %vm1447, %v1450, %v1452
    %v1454 = vsel %vm1446, %v1433, %v1436
    %v1455 = vsel %vm1449, %v1442, 920167782
    %v1456 = vsel %vm1448, %v1439, %v1455
    %v1457 = vsel %vm1447, %v1454, %v1456
    %v1458 = vsel %vm1446, %v1436, %v1439
    %v1459 = vsel %vm1449, %v1445, 1326507024
    %v1460 = vsel %vm1448, %v1442, %v1459
    %v1461 = vsel %vm1447, %v1458, %v1460
    %v1462 = vshll.u32 %v1422, 8
    %v1463 = vand.u32 %v1462, 65535
    %v1464 = vshrl.u32 %v1462, 16
    %v1465 = vand.u32 %v1461, 65535
    %v1466 = vshrl.u32 %v1461, 16
    %v1467 = vmul.u32 %v1463, %v1465
    %v1468 = vmul.u32 %v1463, %v1466
    %v1469 = vmul.u32 %v1464, %v1465
    %v1470 = vmul.u32 %v1464, %v1466
    %v1471 = vshll.u32 %v1468, 16
    %v1472 = vshrl.u32 %v1468, 16
    %v1473 = vshll.u32 %v1469, 16
    %v1474 = vshrl.u32 %v1469, 16
    %vm1475 = vc.u32 %v1467, %v1471
    %v1476 = vsel %vm1475, 1, 0
    %v1477 = vadd.s32 %v1467, %v1471
    %v1478 = vadd.s32 %v1470, %v1476
    %vm1479 = vc.u32 %v1477, %v1473
    %v1480 = vsel %vm1479, 1, 0
    %v1481 = vadd.s32 %v1477, %v1473
    %v1482 = vadd.s32 %v1478, %v1480
    %v1483 = vadd.s32 %v1482, %v1472
    %v1484 = vadd.s32 %v1483, %v1474
    %v1485 = vand.u32 %v1462, 65535
    %v1486 = vshrl.u32 %v1462, 16
    %v1487 = vand.u32 %v1457, 65535
    %v1488 = vshrl.u32 %v1457, 16
    %v1489 = vmul.u32 %v1485, %v1487
    %v1490 = vmul.u32 %v1485, %v1488
    %v1491 = vmul.u32 %v1486, %v1487
    %v1492 = vmul.u32 %v1486, %v1488
    %v1493 = vshll.u32 %v1490, 16
    %v1494 = vshrl.u32 %v1490, 16
    %v1495 = vshll.u32 %v1491, 16
    %v1496 = vshrl.u32 %v1491, 16
    %vm1497 = vc.u32 %v1489, %v1493
    %v1498 = vsel %vm1497, 1, 0
    %v1499 = vadd.s32 %v1489, %v1493
    %v1500 = vadd.s32 %v1492, %v1498
    %vm1501 = vc.u32 %v1499, %v1495
    %v1502 = vsel %vm1501, 1, 0
    %v1503 = vadd.s32 %v1499, %v1495
    %v1504 = vadd.s32 %v1500, %v1502
    %v1505 = vadd.s32 %v1504, %v1494
    %v1506 = vadd.s32 %v1505, %v1496
    %v1507 = vmul.u32 %v1462, %v1453
    %v1508 = vadd.s32 %v1484, %v1503
    %vm1509 = vc.u32 %v1484, %v1503
    %v1510 = vadd.s32 %v1506, 1
    %v1511 = vsel %vm1509, %v1510, %v1506
    %v1512 = vadd.s32 %v1507, %v1511
    %v1513 = vadd.s32 %v1512, 536870912
    %v1514 = vshrl.u32 %v1513, 30
    %v1515 = vshll.u32 %v1514, 30
    %v1516 = vsub.s32 %v1512, %v1515
    %vm1517 = vcmp.lt.s32.totalorder %v1516, 0
    %v1518 = vsub.s32 0, %v1516
    %v1519 = vsel %vm1517, %v1518, %v1516
    %v1520 = vclz %v1519
    %v1521 = vsub.s32 %v1520, 2
    %vm1522 = vcmp.gt.s32.totalorder 0, %v1521
    %v1523 = vsel %vm1522, 0, %v1521
    %v1524 = vsub.s32 32, %v1523
    %v1525 = vshll.u32 %v1516, %v1523
    %v1526 = vshrl.u32 %v1508, %v1524
    %v1527 = vor.u32 %v1525, %v1526
    %v1528 = vsub.s32 4294967266, %v1523
    %v1529 = vadd.s32 %v1528, 127
    %v1530 = vshll.u32 %v1529, 23
    %v1531 = vor.u32 4788187, %v1530
    %v1532 = vand.u32 2147483647, %v1531
    %v1534 = vcvt.s32.f32 %v1527
    %v1535 = vmul.f32 %v1534, %v1532
    %v1536 = vxor.u32 %v1535, 2147483648
    %v1537 = vsel %vm1416, %v1536, %v1535
    %v1538 = vsub.s32 4, %v1514
    %v1539 = vsel %vm1416, %v1538, %v1514
    %v1540 = vsel %vm1415, %v1259, %v1537
    %v1541 = vsel %vm1415, 0, %v1539
    %v1542 = vmul.f32 %v1540, %v1540
    %v1543 = vmul.f32 %v1542, -0.001358992
    %v1544 = vadd.f32 %v1543, 0.041655596
    %v1545 = vmul.f32 %v1542, %v1544
    %v1546 = vadd.f32 %v1545, -0.4999988
    %v1547 = vmul.f32 %v1542, %v1546
    %v1548 = vadd.f32 1.0, %v1547
    %v1549 = vmul.f32 %v1540, %v1540
    %v1550 = vmul.f32 %v1549, -0.00019511016
    %v1551 = vadd.f32 %v1550, 0.008332121
    %v1552 = vmul.f32 %v1549, %v1551
    %v1553 = vadd.f32 %v1552, -0.16666654
    %v1554 = vmul.f32 %v1549, %v1553
    %v1555 = vadd.f32 %v1554, 1.0
    %v1556 = vmul.f32 %v1555, %v1540
    %vm1557 = vweird.f32 %v1259
    %v1558 = vand.u32 %v1541, 3
    %vm1559 = vcmp.lt.s32.totalorder %v1558, 2
    %vm1560 = vcmp.eq.s32.totalorder %v1558, 0
    %v1561 = vxor.u32 %v1556, 2147483648
    %v1562 = vsel %vm1560, %v1548, %v1561
    %vm1563 = vcmp.eq.s32.totalorder %v1558, 2
    %v1564 = vxor.u32 %v1548, 2147483648
    %v1565 = vsel %vm1563, %v1564, %v1556
    %v1566 = vsel %vm1559, %v1562, %v1565
    %v1567 = vsel %vm1557, nan, %v1566
    %v1568 = vand.u32 2147483647, %v1247
    %vm1569 = vcmp.le.f32.partialorder %v1568, 0.7853982
    %vm1570 = vcmp.lt.s32.totalorder %v1247, 0
    %v1571 = vand.u32 %v1247, 2139095040
    %v1572 = vshrl.u32 %v1571, 23
    %v1573 = vsub.s32 %v1572, 127
    %v1574 = vand.u32 2147483647, %v1247
    %v1575 = vand.u32 %v1574, 8388607
    %v1576 = vor.u32 %v1575, 8388608
    %v1577 = vsub.s32 0, %v1576
    %v1578 = vadd.s32 %v1573, 1
    %vm1579 = vcmp.gt.s32.totalorder %v1578, 0
    %v1580 = vsel %vm1579, %v1578, 0
    %v1581 = vshrl.u32 %v1580, 5
    %v1582 = vand.u32 %v1580, 31
    %v1583 = vsub.s32 32, %v1582
    %v1584 = vshrl.u32 683565275, %v1583
    %v1585 = vshll.u32 683565275, %v1582
    %v1586 = vshrl.u32 2475754826, %v1583
    %v1587 = vor.u32 %v1585, %v1586
    %v1588 = vshll.u32 2475754826, %v1582
    %v1589 = vshrl.u32 2131351028, %v1583
    %v1590 = vor.u32 %v1588, %v1589
    %v1591 = vshll.u32 2131351028, %v1582
    %v1592 = vshrl.u32 2102212464, %v1583
    %v1593 = vor.u32 %v1591, %v1592
    %v1594 = vshll.u32 2102212464, %v1582
    %v1595 = vshrl.u32 920167782, %v1583
    %v1596 = vor.u32 %v1594, %v1595
    %v1597 = vshll.u32 920167782, %v1582
    %v1598 = vshrl.u32 1326507024, %v1583
    %v1599 = vor.u32 %v1597, %v1598
    %vm1600 = vcmp.lt.s32.totalorder %v1581, 1
    %vm1601 = vcmp.lt.s32.totalorder %v1581, 2
    %vm1602 = vcmp.lt.s32.totalorder %v1581, 3
    %vm1603 = vcmp.lt.s32.totalorder %v1581, 4
    %v1604 = vsel %vm1600, %v1584, %v1587
    %v1605 = vsel %vm1603, %v1593, 2102212464
    %v1606 = vsel %vm1602, %v1590, %v1605
    %v1607 = vsel %vm1601, %v1604, %v1606
    %v1608 = vsel %vm1600, %v1587, %v1590
    %v1609 = vsel %vm1603, %v1596, 920167782
    %v1610 = vsel %vm1602, %v1593, %v1609
    %v1611 = vsel %vm1601, %v1608, %v1610
    %v1612 = vsel %vm1600, %v1590, %v1593
    %v1613 = vsel %vm1603, %v1599, 1326507024
    %v1614 = vsel %vm1602, %v1596, %v1613
    %v1615 = vsel %vm1601, %v1612, %v1614
    %v1616 = vshll.u32 %v1576, 8
    %v1617 = vand.u32 %v1616, 65535
    %v1618 = vshrl.u32 %v1616, 16
    %v1619 = vand.u32 %v1615, 65535
    %v1620 = vshrl.u32 %v1615, 16
    %v1621 = vmul.u32 %v1617, %v1619
    %v1622 = vmul.u32 %v1617, %v1620
    %v1623 = vmul.u32 %v1618, %v1619
    %v1624 = vmul.u32 %v1618, %v1620
    %v1625 = vshll.u32 %v1622, 16
    %v1626 = vshrl.u32 %v1622, 16
    %v1627 = vshll.u32 %v1623, 16
    %v1628 = vshrl.u32 %v1623, 16
    %vm1629 = vc.u32 %v1621, %v1625
    %v1630 = vsel %vm1629, 1, 0
    %v1631 = vadd.s32 %v1621, %v1625
    %v1632 = vadd.s32 %v1624, %v1630
    %vm1633 = vc.u32 %v1631, %v1627
    %v1634 = vsel %vm1633, 1, 0
    %v1635 = vadd.s32 %v1631, %v1627
    %v1636 = vadd.s32 %v1632, %v1634
    %v1637 = vadd.s32 %v1636, %v1626
    %v1638 = vadd.s32 %v1637, %v1628
    %v1639 = vand.u32 %v1616, 65535
    %v1640 = vshrl.u32 %v1616, 16
    %v1641 = vand.u32 %v1611, 65535
    %v1642 = vshrl.u32 %v1611, 16
    %v1643 = vmul.u32 %v1639, %v1641
    %v1644 = vmul.u32 %v1639, %v1642
    %v1645 = vmul.u32 %v1640, %v1641
    %v1646 = vmul.u32 %v1640, %v1642
    %v1647 = vshll.u32 %v1644, 16
    %v1648 = vshrl.u32 %v1644, 16
    %v1649 = vshll.u32 %v1645, 16
    %v1650 = vshrl.u32 %v1645, 16
    %vm1651 = vc.u32 %v1643, %v1647
    %v1652 = vsel %vm1651, 1, 0
    %v1653 = vadd.s32 %v1643, %v1647
    %v1654 = vadd.s32 %v1646, %v1652
    %vm1655 = vc.u32 %v1653, %v1649
    %v1656 = vsel %vm1655, 1, 0
    %v1657 = vadd.s32 %v1653, %v1649
    %v1658 = vadd.s32 %v1654, %v1656
    %v1659 = vadd.s32 %v1658, %v1648
    %v1660 = vadd.s32 %v1659, %v1650
    %v1661 = vmul.u32 %v1616, %v1607
    %v1662 = vadd.s32 %v1638, %v1657
    %vm1663 = vc.u32 %v1638, %v1657
    %v1664 = vadd.s32 %v1660, 1
    %v1665 = vsel %vm1663, %v1664, %v1660
    %v1666 = vadd.s32 %v1661, %v1665
    %v1667 = vadd.s32 %v1666, 536870912
    %v1668 = vshrl.u32 %v1667, 30
    %v1669 = vshll.u32 %v1668, 30
    %v1670 = vsub.s32 %v1666, %v1669
    %vm1671 = vcmp.lt.s32.totalorder %v1670, 0
    %v1672 = vsub.s32 0, %v1670
    %v1673 = vsel %vm1671, %v1672, %v1670
    %v1674 = vclz %v1673
    %v1675 = vsub.s32 %v1674, 2
    %vm1676 = vcmp.gt.s32.totalorder 0, %v1675
    %v1677 = vsel %vm1676, 0, %v1675
    %v1678 = vsub.s32 32, %v1677
    %v1679 = vshll.u32 %v1670, %v1677
    %v1680 = vshrl.u32 %v1662, %v1678
    %v1681 = vor.u32 %v1679, %v1680
    %v1682 = vsub.s32 4294967266, %v1677
    %v1683 = vadd.s32 %v1682, 127
    %v1684 = vshll.u32 %v1683, 23
    %v1685 = vor.u32 4788187, %v1684
    %v1686 = vand.u32 2147483647, %v1685
    %v1688 = vcvt.s32.f32 %v1681
    %v1689 = vmul.f32 %v1688, %v1686
    %v1690 = vxor.u32 %v1689, 2147483648
    %v1691 = vsel %vm1570, %v1690, %v1689
    %v1692 = vsub.s32 4, %v1668
    %v1693 = vsel %vm1570, %v1692, %v1668
    %v1694 = vsel %vm1569, %v1247, %v1691
    %v1695 = vsel %vm1569, 0, %v1693
    %v1696 = vmul.f32 %v1694, %v1694
    %v1697 = vmul.f32 %v1696, -0.001358992
    %v1698 = vadd.f32 %v1697, 0.041655596
    %v1699 = vmul.f32 %v1696, %v1698
    %v1700 = vadd.f32 %v1699, -0.4999988
    %v1701 = vmul.f32 %v1696, %v1700
    %v1702 = vadd.f32 1.0, %v1701
    %v1703 = vmul.f32 %v1694, %v1694
    %v1704 = vmul.f32 %v1703, -0.00019511016
    %v1705 = vadd.f32 %v1704, 0.008332121
    %v1706 = vmul.f32 %v1703, %v1705
    %v1707 = vadd.f32 %v1706, -0.16666654
    %v1708 = vmul.f32 %v1703, %v1707
    %v1709 = vadd.f32 %v1708, 1.0
    %v1710 = vmul.f32 %v1709, %v1694
    %vm1711 = vweird.f32 %v1247
    %v1712 = vadd.s32 %v1695, 3
    %v1713 = vand.u32 %v1712, 3
    %vm1714 = vcmp.lt.s32.totalorder %v1713, 2
    %vm1715 = vcmp.eq.s32.totalorder %v1713, 0
    %v1716 = vxor.u32 %v1710, 2147483648
    %v1717 = vsel %vm1715, %v1702, %v1716
    %vm1718 = vcmp.eq.s32.totalorder %v1713, 2
    %v1719 = vxor.u32 %v1702, 2147483648
    %v1720 = vsel %vm1718, %v1719, %v1710
    %v1721 = vsel %vm1714, %v1717, %v1720
    %v1722 = vsel %vm1711, nan, %v1721
    %v1723 = vand.u32 2147483647, %v1259
    %vm1724 = vcmp.le.f32.partialorder %v1723, 0.7853982
    %vm1725 = vcmp.lt.s32.totalorder %v1259, 0
    %v1726 = vand.u32 %v1259, 2139095040
    %v1727 = vshrl.u32 %v1726, 23
    %v1728 = vsub.s32 %v1727, 127
    %v1729 = vand.u32 2147483647, %v1259
    %v1730 = vand.u32 %v1729, 8388607
    %v1731 = vor.u32 %v1730, 8388608
    %v1732 = vsub.s32 0, %v1731
    %v1733 = vadd.s32 %v1728, 1
    %vm1734 = vcmp.gt.s32.totalorder %v1733, 0
    %v1735 = vsel %vm1734, %v1733, 0
    %v1736 = vshrl.u32 %v1735, 5
    %v1737 = vand.u32 %v1735, 31
    %v1738 = vsub.s32 32, %v1737
    %v1739 = vshrl.u32 683565275, %v1738
    %v1740 = vshll.u32 683565275, %v1737
    %v1741 = vshrl.u32 2475754826, %v1738
    %v1742 = vor.u32 %v1740, %v1741
    %v1743 = vshll.u32 2475754826, %v1737
    %v1744 = vshrl.u32 2131351028, %v1738
    %v1745 = vor.u32 %v1743, %v1744
    %v1746 = vshll.u32 2131351028, %v1737
    %v1747 = vshrl.u32 2102212464, %v1738
    %v1748 = vor.u32 %v1746, %v1747
    %v1749 = vshll.u32 2102212464, %v1737
    %v1750 = vshrl.u32 920167782, %v1738
    %v1751 = vor.u32 %v1749, %v1750
    %v1752 = vshll.u32 920167782, %v1737
    %v1753 = vshrl.u32 1326507024, %v1738
    %v1754 = vor.u32 %v1752, %v1753
    %vm1755 = vcmp.lt.s32.totalorder %v1736, 1
    %vm1756 = vcmp.lt.s32.totalorder %v1736, 2
    %vm1757 = vcmp.lt.s32.totalorder %v1736, 3
    %vm1758 = vcmp.lt.s32.totalorder %v1736, 4
    %v1759 = vsel %vm1755, %v1739, %v1742
    %v1760 = vsel %vm1758, %v1748, 2102212464
    %v1761 = vsel %vm1757, %v1745, %v1760
    %v1762 = vsel %vm1756, %v1759, %v1761
    %v1763 = vsel %vm1755, %v1742, %v1745
    %v1764 = vsel %vm1758, %v1751, 920167782
    %v1765 = vsel %vm1757, %v1748, %v1764
    %v1766 = vsel %vm1756, %v1763, %v1765
    %v1767 = vsel %vm1755, %v1745, %v1748
    %v1768 = vsel %vm1758, %v1754, 1326507024
    %v1769 = vsel %vm1757, %v1751, %v1768
    %v1770 = vsel %vm1756, %v1767, %v1769
    %v1771 = vshll.u32 %v1731, 8
    %v1772 = vand.u32 %v1771, 65535
    %v1773 = vshrl.u32 %v1771, 16
    %v1774 = vand.u32 %v1770, 65535
    %v1775 = vshrl.u32 %v1770, 16
    %v1776 = vmul.u32 %v1772, %v1774
    %v1777 = vmul.u32 %v1772, %v1775
    %v1778 = vmul.u32 %v1773, %v1774
    %v1779 = vmul.u32 %v1773, %v1775
    %v1780 = vshll.u32 %v1777, 16
    %v1781 = vshrl.u32 %v1777, 16
    %v1782 = vshll.u32 %v1778, 16
    %v1783 = vshrl.u32 %v1778, 16
    %vm1784 = vc.u32 %v1776, %v1780
    %v1785 = vsel %vm1784, 1, 0
    %v1786 = vadd.s32 %v1776, %v1780
    %v1787 = vadd.s32 %v1779, %v1785
    %vm1788 = vc.u32 %v1786, %v1782
    %v1789 = vsel %vm1788, 1, 0
    %v1790 = vadd.s32 %v1786, %v1782
    %v1791 = vadd.s32 %v1787, %v1789
    %v1792 = vadd.s32 %v1791, %v1781
    %v1793 = vadd.s32 %v1792, %v1783
    %v1794 = vand.u32 %v1771, 65535
    %v1795 = vshrl.u32 %v1771, 16
    %v1796 = vand.u32 %v1766, 65535
    %v1797 = vshrl.u32 %v1766, 16
    %v1798 = vmul.u32 %v1794, %v1796
    %v1799 = vmul.u32 %v1794, %v1797
    %v1800 = vmul.u32 %v1795, %v1796
    %v1801 = vmul.u32 %v1795, %v1797
    %v1802 = vshll.u32 %v1799, 16
    %v1803 = vshrl.u32 %v1799, 16
    %v1804 = vshll.u32 %v1800, 16
    %v1805 = vshrl.u32 %v1800, 16
    %vm1806 = vc.u32 %v1798, %v1802
    %v1807 = vsel %vm1806, 1, 0
    %v1808 = vadd.s32 %v1798, %v1802
    %v1809 = vadd.s32 %v1801, %v1807
    %vm1810 = vc.u32 %v1808, %v1804
    %v1811 = vsel %vm1810, 1, 0
    %v1812 = vadd.s32 %v1808, %v1804
    %v1813 = vadd.s32 %v1809, %v1811
    %v1814 = vadd.s32 %v1813, %v1803
    %v1815 = vadd.s32 %v1814, %v1805
    %v1816 = vmul.u32 %v1771, %v1762
    %v1817 = vadd.s32 %v1793, %v1812
    %vm1818 = vc.u32 %v1793, %v1812
    %v1819 = vadd.s32 %v1815, 1
    %v1820 = vsel %vm1818, %v1819, %v1815
    %v1821 = vadd.s32 %v1816, %v1820
    %v1822 = vadd.s32 %v1821, 536870912
    %v1823 = vshrl.u32 %v1822, 30
    %v1824 = vshll.u32 %v1823, 30
    %v1825 = vsub.s32 %v1821, %v1824
    %vm1826 = vcmp.lt.s32.totalorder %v1825, 0
    %v1827 = vsub.s32 0, %v1825
    %v1828 = vsel %vm1826, %v1827, %v1825
    %v1829 = vclz %v1828
    %v1830 = vsub.s32 %v1829, 2
    %vm1831 = vcmp.gt.s32.totalorder 0, %v1830
    %v1832 = vsel %vm1831, 0, %v1830
    %v1833 = vsub.s32 32, %v1832
    %v1834 = vshll.u32 %v1825, %v1832
    %v1835 = vshrl.u32 %v1817, %v1833
    %v1836 = vor.u32 %v1834, %v1835
    %v1837 = vsub.s32 4294967266, %v1832
    %v1838 = vadd.s32 %v1837, 127
    %v1839 = vshll.u32 %v1838, 23
    %v1840 = vor.u32 4788187, %v1839
    %v1841 = vand.u32 2147483647, %v1840
    %v1843 = vcvt.s32.f32 %v1836
    %v1844 = vmul.f32 %v1843, %v1841
    %v1845 = vxor.u32 %v1844, 2147483648
    %v1846 = vsel %vm1725, %v1845, %v1844
    %v1847 = vsub.s32 4, %v1823
    %v1848 = vsel %vm1725, %v1847, %v1823
    %v1849 = vsel %vm1724, %v1259, %v1846
    %v1850 = vsel %vm1724, 0, %v1848
    %v1851 = vmul.f32 %v1849, %v1849
    %v1852 = vmul.f32 %v1851, -0.001358992
    %v1853 = vadd.f32 %v1852, 0.041655596
    %v1854 = vmul.f32 %v1851, %v1853
    %v1855 = vadd.f32 %v1854, -0.4999988
    %v1856 = vmul.f32 %v1851, %v1855
    %v1857 = vadd.f32 1.0, %v1856
    %v1858 = vmul.f32 %v1849, %v1849
    %v1859 = vmul.f32 %v1858, -0.00019511016
    %v1860 = vadd.f32 %v1859, 0.008332121
    %v1861 = vmul.f32 %v1858, %v1860
    %v1862 = vadd.f32 %v1861, -0.16666654
    %v1863 = vmul.f32 %v1858, %v1862
    %v1864 = vadd.f32 %v1863, 1.0
    %v1865 = vmul.f32 %v1864, %v1849
    %vm1866 = vweird.f32 %v1259
    %v1867 = vadd.s32 %v1850, 3
    %v1868 = vand.u32 %v1867, 3
    %vm1869 = vcmp.lt.s32.totalorder %v1868, 2
    %vm1870 = vcmp.eq.s32.totalorder %v1868, 0
    %v1871 = vxor.u32 %v1865, 2147483648
    %v1872 = vsel %vm1870, %v1857, %v1871
    %vm1873 = vcmp.eq.s32.totalorder %v1868, 2
    %v1874 = vxor.u32 %v1857, 2147483648
    %v1875 = vsel %vm1873, %v1874, %v1865
    %v1876 = vsel %vm1869, %v1872, %v1875
    %v1877 = vsel %vm1866, nan, %v1876
    %v1878 = vsub.f32 1.0, %v1413
    %v1879 = vsub.f32 1.0, %v1567
    %v1880 = vrcp.pop %v1234
    %v1881 = vrcp.pop %v1235
    %v1882 = vmul.f32 %v1878, %v1880
    %v1883 = vmul.f32 %v1879, %v1881
    %v1884 = vrsqrt.pop %v1234
    %v1885 = vmul.f32 %v1884, %v1234
    %v1886 = vmul.f32 %v1885, %v1884
    %v1887 = vmul.f32 0.5, %v1886
    %v1888 = vsub.f32 1.5, %v1887
    %v1889 = vmul.f32 %v1884, %v1888
    %vm1890 = vweird.f32 %v1234
    %vm1891 = vweird.f32 %v1884
    %vm1892 = vmor %vm1890, %vm1891
    %v1893 = vsel %vm1892, %v1884, %v1889
    %v1894 = vrsqrt.pop %v1235
    %v1895 = vmul.f32 %v1894, %v1235
    %v1896 = vmul.f32 %v1895, %v1894
    %v1897 = vmul.f32 0.5, %v1896
    %v1898 = vsub.f32 1.5, %v1897
    %v1899 = vmul.f32 %v1894, %v1898
    %vm1900 = vweird.f32 %v1235
    %vm1901 = vweird.f32 %v1894
    %vm1902 = vmor %vm1900, %vm1901
    %v1903 = vsel %vm1902, %v1894, %v1899
    %v1904 = vmul.f32 %v1722, %v1893
    %v1905 = vmul.f32 %v1877, %v1903
    %v1906 = vmul.f32 %v1882, %v1218
    %v1907 = vmul.f32 %v1883, %v1219
    %v1908 = vmul.f32 %v1906, %v1218
    %v1909 = vmul.f32 %v1907, %v1219
    %v1910 = vmul.f32 %v1882, %v1220
    %v1911 = vmul.f32 %v1883, %v1221
    %v1912 = vmul.f32 %v1910, %v1220
    %v1913 = vmul.f32 %v1911, %v1221
    %v1914 = vmul.f32 %v1882, %v1222
    %v1915 = vmul.f32 %v1883, %v1223
    %v1916 = vmul.f32 %v1914, %v1222
    %v1917 = vmul.f32 %v1915, %v1223
    %v1918 = vmul.f32 %v1906, %v1220
    %v1919 = vmul.f32 %v1907, %v1221
    %v1920 = vmul.f32 %v1906, %v1222
    %v1921 = vmul.f32 %v1907, %v1223
    %v1922 = vmul.f32 %v1910, %v1222
    %v1923 = vmul.f32 %v1911, %v1223
    %v1924 = vmul.f32 %v1904, %v1218
    %v1925 = vmul.f32 %v1905, %v1219
    %v1926 = vmul.f32 %v1904, %v1220
    %v1927 = vmul.f32 %v1905, %v1221
    %v1928 = vmul.f32 %v1904, %v1222
    %v1929 = vmul.f32 %v1905, %v1223
    %v1930 = vadd.f32 %v1413, %v1908
    %v1931 = vadd.f32 %v1567, %v1909
    %v1932 = vsub.f32 %v1918, %v1928
    %v1933 = vsub.f32 %v1919, %v1929
    %v1934 = vadd.f32 %v1920, %v1926
    %v1935 = vadd.f32 %v1921, %v1927
    %v1936 = vadd.f32 %v1918, %v1928
    %v1937 = vadd.f32 %v1919, %v1929
    %v1938 = vadd.f32 %v1413, %v1912
    %v1939 = vadd.f32 %v1567, %v1913
    %v1940 = vsub.f32 %v1922, %v1924
    %v1941 = vsub.f32 %v1923, %v1925
    %v1942 = vsub.f32 %v1920, %v1926
    %v1943 = vsub.f32 %v1921, %v1927
    %v1944 = vadd.f32 %v1922, %v1924
    %v1945 = vadd.f32 %v1923, %v1925
    %v1946 = vadd.f32 %v1413, %v1916
    %v1947 = vadd.f32 %v1567, %v1917
    %v1950 = vrot.slane %v1930, 4
    %v1951 = vrot.slane %v1931, 4
    %v1954 = vmul.f32 %v1930, %v1950
    %v1955 = vmul.f32 %v1931, %v1951
    %v1958 = vrot.slane %v1936, 4
    %v1959 = vrot.slane %v1937, 4
    %v1962 = vmul.f32 %v1932, %v1958
    %v1963 = vmul.f32 %v1933, %v1959
    %v1964 = vadd.f32 %v1954, %v1962
    %v1965 = vadd.f32 %v1955, %v1963
    %v1968 = vrot.slane %v1942, 4
    %v1969 = vrot.slane %v1943, 4
    %v1972 = vmul.f32 %v1934, %v1968
    %v1973 = vmul.f32 %v1935, %v1969
    %v1974 = vadd.f32 %v1964, %v1972
    %v1975 = vadd.f32 %v1965, %v1973
    %v1978 = vrot.slane %v1932, 4
    %v1979 = vrot.slane %v1933, 4
    %v1982 = vmul.f32 %v1930, %v1978
    %v1983 = vmul.f32 %v1931, %v1979
    %v1986 = vrot.slane %v1938, 4
    %v1987 = vrot.slane %v1939, 4
    %v1990 = vmul.f32 %v1932, %v1986
    %v1991 = vmul.f32 %v1933, %v1987
    %v1992 = vadd.f32 %v1982, %v1990
    %v1993 = vadd.f32 %v1983, %v1991
    %v1996 = vrot.slane %v1944, 4
    %v1997 = vrot.slane %v1945, 4
    %v2000 = vmul.f32 %v1934, %v1996
    %v2001 = vmul.f32 %v1935, %v1997
    %v2002 = vadd.f32 %v1992, %v2000
    %v2003 = vadd.f32 %v1993, %v2001
    %v2006 = vrot.slane %v1934, 4
    %v2007 = vrot.slane %v1935, 4
    %v2010 = vmul.f32 %v1930, %v2006
    %v2011 = vmul.f32 %v1931, %v2007
    %v2014 = vrot.slane %v1940, 4
    %v2015 = vrot.slane %v1941, 4
    %v2018 = vmul.f32 %v1932, %v2014
    %v2019 = vmul.f32 %v1933, %v2015
    %v2020 = vadd.f32 %v2010, %v2018
    %v2021 = vadd.f32 %v2011, %v2019
    %v2024 = vrot.slane %v1946, 4
    %v2025 = vrot.slane %v1947, 4
    %v2028 = vmul.f32 %v1934, %v2024
    %v2029 = vmul.f32 %v1935, %v2025
    %v2030 = vadd.f32 %v2020, %v2028
    %v2031 = vadd.f32 %v2021, %v2029
    %v2032 = vmul.f32 %v1936, %v1950
    %v2033 = vmul.f32 %v1937, %v1951
    %v2034 = vmul.f32 %v1938, %v1958
    %v2035 = vmul.f32 %v1939, %v1959
    %v2036 = vadd.f32 %v2032, %v2034
    %v2037 = vadd.f32 %v2033, %v2035
    %v2038 = vmul.f32 %v1940, %v1968
    %v2039 = vmul.f32 %v1941, %v1969
    %v2040 = vadd.f32 %v2036, %v2038
    %v2041 = vadd.f32 %v2037, %v2039
    %v2042 = vmul.f32 %v1936, %v1978
    %v2043 = vmul.f32 %v1937, %v1979
    %v2044 = vmul.f32 %v1938, %v1986
    %v2045 = vmul.f32 %v1939, %v1987
    %v2046 = vadd.f32 %v2042, %v2044
    %v2047 = vadd.f32 %v2043, %v2045
    %v2048 = vmul.f32 %v1940, %v1996
    %v2049 = vmul.f32 %v1941, %v1997
    %v2050 = vadd.f32 %v2046, %v2048
    %v2051 = vadd.f32 %v2047, %v2049
    %v2052 = vmul.f32 %v1936, %v2006
    %v2053 = vmul.f32 %v1937, %v2007
    %v2054 = vmul.f32 %v1938, %v2014
    %v2055 = vmul.f32 %v1939, %v2015
    %v2056 = vadd.f32 %v2052, %v2054
    %v2057 = vadd.f32 %v2053, %v2055
    %v2058 = vmul.f32 %v1940, %v2024
    %v2059 = vmul.f32 %v1941, %v2025
    %v2060 = vadd.f32 %v2056, %v2058
    %v2061 = vadd.f32 %v2057, %v2059
    %v2062 = vmul.f32 %v1942, %v1950
    %v2063 = vmul.f32 %v1943, %v1951
    %v2064 = vmul.f32 %v1944, %v1958
    %v2065 = vmul.f32 %v1945, %v1959
    %v2066 = vadd.f32 %v2062, %v2064
    %v2067 = vadd.f32 %v2063, %v2065
    %v2068 = vmul.f32 %v1946, %v1968
    %v2069 = vmul.f32 %v1947, %v1969
    %v2070 = vadd.f32 %v2066, %v2068
    %v2071 = vadd.f32 %v2067, %v2069
    %v2072 = vmul.f32 %v1942, %v1978
    %v2073 = vmul.f32 %v1943, %v1979
    %v2074 = vmul.f32 %v1944, %v1986
    %v2075 = vmul.f32 %v1945, %v1987
    %v2076 = vadd.f32 %v2072, %v2074
    %v2077 = vadd.f32 %v2073, %v2075
    %v2078 = vmul.f32 %v1946, %v1996
    %v2079 = vmul.f32 %v1947, %v1997
    %v2080 = vadd.f32 %v2076, %v2078
    %v2081 = vadd.f32 %v2077, %v2079
    %v2082 = vmul.f32 %v1942, %v2006
    %v2083 = vmul.f32 %v1943, %v2007
    %v2084 = vmul.f32 %v1944, %v2014
    %v2085 = vmul.f32 %v1945, %v2015
    %v2086 = vadd.f32 %v2082, %v2084
    %v2087 = vadd.f32 %v2083, %v2085
    %v2088 = vmul.f32 %v1946, %v2024
    %v2089 = vmul.f32 %v1947, %v2025
    %v2090 = vadd.f32 %v2086, %v2088
    %v2091 = vadd.f32 %v2087, %v2089
    %v2094 = vrot.slane %v1974, 2
    %v2095 = vrot.slane %v1975, 2
    %v2098 = vmul.f32 %v1974, %v2094
    %v2099 = vmul.f32 %v1975, %v2095
    %v2102 = vrot.slane %v2040, 2
    %v2103 = vrot.slane %v2041, 2
    %v2106 = vmul.f32 %v2002, %v2102
    %v2107 = vmul.f32 %v2003, %v2103
    %v2108 = vadd.f32 %v2098, %v2106
    %v2109 = vadd.f32 %v2099, %v2107
    %v2112 = vrot.slane %v2070, 2
    %v2113 = vrot.slane %v2071, 2
    %v2116 = vmul.f32 %v2030, %v2112
    %v2117 = vmul.f32 %v2031, %v2113
    %v2118 = vadd.f32 %v2108, %v2116
    %v2119 = vadd.f32 %v2109, %v2117
    %v2122 = vrot.slane %v2002, 2
    %v2123 = vrot.slane %v2003, 2
    %v2126 = vmul.f32 %v1974, %v2122
    %v2127 = vmul.f32 %v1975, %v2123
    %v2130 = vrot.slane %v2050, 2
    %v2131 = vrot.slane %v2051, 2
    %v2134 = vmul.f32 %v2002, %v2130
    %v2135 = vmul.f32 %v2003, %v2131
    %v2136 = vadd.f32 %v2126, %v2134
    %v2137 = vadd.f32 %v2127, %v2135
    %v2140 = vrot.slane %v2080, 2
    %v2141 = vrot.slane %v2081, 2
    %v2144 = vmul.f32 %v2030, %v2140
    %v2145 = vmul.f32 %v2031, %v2141
    %v2146 = vadd.f32 %v2136, %v2144
    %v2147 = vadd.f32 %v2137, %v2145
    %v2150 = vrot.slane %v2030, 2
    %v2151 = vrot.slane %v2031, 2
    %v2154 = vmul.f32 %v1974, %v2150
    %v2155 = vmul.f32 %v1975, %v2151
    %v2158 = vrot.slane %v2060, 2
    %v2159 = vrot.slane %v2061, 2
    %v2162 = vmul.f32 %v2002, %v2158
    %v2163 = vmul.f32 %v2003, %v2159
    %v2164 = vadd.f32 %v2154, %v2162
    %v2165 = vadd.f32 %v2155, %v2163
    %v2168 = vrot.slane %v2090, 2
    %v2169 = vrot.slane %v2091, 2
    %v2172 = vmul.f32 %v2030, %v2168
    %v2173 = vmul.f32 %v2031, %v2169
    %v2174 = vadd.f32 %v2164, %v2172
    %v2175 = vadd.f32 %v2165, %v2173
    %v2176 = vmul.f32 %v2040, %v2094
    %v2177 = vmul.f32 %v2041, %v2095
    %v2178 = vmul.f32 %v2050, %v2102
    %v2179 = vmul.f32 %v2051, %v2103
    %v2180 = vadd.f32 %v2176, %v2178
    %v2181 = vadd.f32 %v2177, %v2179
    %v2182 = vmul.f32 %v2060, %v2112
    %v2183 = vmul.f32 %v2061, %v2113
    %v2184 = vadd.f32 %v2180, %v2182
    %v2185 = vadd.f32 %v2181, %v2183
    %v2186 = vmul.f32 %v2040, %v2122
    %v2187 = vmul.f32 %v2041, %v2123
    %v2188 = vmul.f32 %v2050, %v2130
    %v2189 = vmul.f32 %v2051, %v2131
    %v2190 = vadd.f32 %v2186, %v2188
    %v2191 = vadd.f32 %v2187, %v2189
    %v2192 = vmul.f32 %v2060, %v2140
    %v2193 = vmul.f32 %v2061, %v2141
    %v2194 = vadd.f32 %v2190, %v2192
    %v2195 = vadd.f32 %v2191, %v2193
    %v2196 = vmul.f32 %v2040, %v2150
    %v2197 = vmul.f32 %v2041, %v2151
    %v2198 = vmul.f32 %v2050, %v2158
    %v2199 = vmul.f32 %v2051, %v2159
    %v2200 = vadd.f32 %v2196, %v2198
    %v2201 = vadd.f32 %v2197, %v2199
    %v2202 = vmul.f32 %v2060, %v2168
    %v2203 = vmul.f32 %v2061, %v2169
    %v2204 = vadd.f32 %v2200, %v2202
    %v2205 = vadd.f32 %v2201, %v2203
    %v2206 = vmul.f32 %v2070, %v2094
    %v2207 = vmul.f32 %v2071, %v2095
    %v2208 = vmul.f32 %v2080, %v2102
    %v2209 = vmul.f32 %v2081, %v2103
    %v2210 = vadd.f32 %v2206, %v2208
    %v2211 = vadd.f32 %v2207, %v2209
    %v2212 = vmul.f32 %v2090, %v2112
    %v2213 = vmul.f32 %v2091, %v2113
    %v2214 = vadd.f32 %v2210, %v2212
    %v2215 = vadd.f32 %v2211, %v2213
    %v2216 = vmul.f32 %v2070, %v2122
    %v2217 = vmul.f32 %v2071, %v2123
    %v2218 = vmul.f32 %v2080, %v2130
    %v2219 = vmul.f32 %v2081, %v2131
    %v2220 = vadd.f32 %v2216, %v2218
    %v2221 = vadd.f32 %v2217, %v2219
    %v2222 = vmul.f32 %v2090, %v2140
    %v2223 = vmul.f32 %v2091, %v2141
    %v2224 = vadd.f32 %v2220, %v2222
    %v2225 = vadd.f32 %v2221, %v2223
    %v2226 = vmul.f32 %v2070, %v2150
    %v2227 = vmul.f32 %v2071, %v2151
    %v2228 = vmul.f32 %v2080, %v2158
    %v2229 = vmul.f32 %v2081, %v2159
    %v2230 = vadd.f32 %v2226, %v2228
    %v2231 = vadd.f32 %v2227, %v2229
    %v2232 = vmul.f32 %v2090, %v2168
    %v2233 = vmul.f32 %v2091, %v2169
    %v2234 = vadd.f32 %v2230, %v2232
    %v2235 = vadd.f32 %v2231, %v2233
    %v2238 = vrot.slane %v2118, 1
    %v2239 = vrot.slane %v2119, 1
    %v2242 = vmul.f32 %v2118, %v2238
    %v2243 = vmul.f32 %v2119, %v2239
    %v2246 = vrot.slane %v2184, 1
    %v2247 = vrot.slane %v2185, 1
    %v2250 = vmul.f32 %v2146, %v2246
    %v2251 = vmul.f32 %v2147, %v2247
    %v2252 = vadd.f32 %v2242, %v2250
    %v2253 = vadd.f32 %v2243, %v2251
    %v2256 = vrot.slane %v2214, 1
    %v2257 = vrot.slane %v2215, 1
    %v2260 = vmul.f32 %v2174, %v2256
    %v2261 = vmul.f32 %v2175, %v2257
    %v2262 = vadd.f32 %v2252, %v2260
    %v2263 = vadd.f32 %v2253, %v2261
    %v2266 = vrot.slane %v2146, 1
    %v2267 = vrot.slane %v2147, 1
    %v2270 = vmul.f32 %v2118, %v2266
    %v2271 = vmul.f32 %v2119, %v2267
    %v2274 = vrot.slane %v2194, 1
    %v2275 = vrot.slane %v2195, 1
    %v2278 = vmul.f32 %v2146, %v2274
    %v2279 = vmul.f32 %v2147, %v2275
    %v2280 = vadd.f32 %v2270, %v2278
    %v2281 = vadd.f32 %v2271, %v2279
    %v2284 = vrot.slane %v2224, 1
    %v2285 = vrot.slane %v2225, 1
    %v2288 = vmul.f32 %v2174, %v2284
    %v2289 = vmul.f32 %v2175, %v2285
    %v2290 = vadd.f32 %v2280, %v2288
    %v2291 = vadd.f32 %v2281, %v2289
    %v2294 = vrot.slane %v2174, 1
    %v2295 = vrot.slane %v2175, 1
    %v2298 = vmul.f32 %v2118, %v2294
    %v2299 = vmul.f32 %v2119, %v2295
    %v2302 = vrot.slane %v2204, 1
    %v2303 = vrot.slane %v2205, 1
    %v2306 = vmul.f32 %v2146, %v2302
    %v2307 = vmul.f32 %v2147, %v2303
    %v2308 = vadd.f32 %v2298, %v2306
    %v2309 = vadd.f32 %v2299, %v2307
    %v2312 = vrot.slane %v2234, 1
    %v2313 = vrot.slane %v2235, 1
    %v2316 = vmul.f32 %v2174, %v2312
    %v2317 = vmul.f32 %v2175, %v2313
    %v2318 = vadd.f32 %v2308, %v2316
    %v2319 = vadd.f32 %v2309, %v2317
    %v2320 = vmul.f32 %v2184, %v2238
    %v2321 = vmul.f32 %v2185, %v2239
    %v2322 = vmul.f32 %v2194, %v2246
    %v2323 = vmul.f32 %v2195, %v2247
    %v2324 = vadd.f32 %v2320, %v2322
    %v2325 = vadd.f32 %v2321, %v2323
    %v2326 = vmul.f32 %v2204, %v2256
    %v2327 = vmul.f32 %v2205, %v2257
    %v2328 = vadd.f32 %v2324, %v2326
    %v2329 = vadd.f32 %v2325, %v2327
    %v2330 = vmul.f32 %v2184, %v2266
    %v2331 = vmul.f32 %v2185, %v2267
    %v2332 = vmul.f32 %v2194, %v2274
    %v2333 = vmul.f32 %v2195, %v2275
    %v2334 = vadd.f32 %v2330, %v2332
    %v2335 = vadd.f32 %v2331, %v2333
    %v2336 = vmul.f32 %v2204, %v2284
    %v2337 = vmul.f32 %v2205, %v2285
    %v2338 = vadd.f32 %v2334, %v2336
    %v2339 = vadd.f32 %v2335, %v2337
    %v2340 = vmul.f32 %v2184, %v2294
    %v2341 = vmul.f32 %v2185, %v2295
    %v2342 = vmul.f32 %v2194, %v2302
    %v2343 = vmul.f32 %v2195, %v2303
    %v2344 = vadd.f32 %v2340, %v2342
    %v2345 = vadd.f32 %v2341, %v2343
    %v2346 = vmul.f32 %v2204, %v2312
    %v2347 = vmul.f32 %v2205, %v2313
    %v2348 = vadd.f32 %v2344, %v2346
    %v2349 = vadd.f32 %v2345, %v2347
    %v2350 = vmul.f32 %v2214, %v2238
    %v2351 = vmul.f32 %v2215, %v2239
    %v2352 = vmul.f32 %v2224, %v2246
    %v2353 = vmul.f32 %v2225, %v2247
    %v2354 = vadd.f32 %v2350, %v2352
    %v2355 = vadd.f32 %v2351, %v2353
    %v2356 = vmul.f32 %v2234, %v2256
    %v2357 = vmul.f32 %v2235, %v2257
    %v2358 = vadd.f32 %v2354, %v2356
    %v2359 = vadd.f32 %v2355, %v2357
    %v2360 = vmul.f32 %v2214, %v2266
    %v2361 = vmul.f32 %v2215, %v2267
    %v2362 = vmul.f32 %v2224, %v2274
    %v2363 = vmul.f32 %v2225, %v2275
    %v2364 = vadd.f32 %v2360, %v2362
    %v2365 = vadd.f32 %v2361, %v2363
    %v2366 = vmul.f32 %v2234, %v2284
    %v2367 = vmul.f32 %v2235, %v2285
    %v2368 = vadd.f32 %v2364, %v2366
    %v2369 = vadd.f32 %v2365, %v2367
    %v2370 = vmul.f32 %v2214, %v2294
    %v2371 = vmul.f32 %v2215, %v2295
    %v2372 = vmul.f32 %v2224, %v2302
    %v2373 = vmul.f32 %v2225, %v2303
    %v2374 = vadd.f32 %v2370, %v2372
    %v2375 = vadd.f32 %v2371, %v2373
    %v2376 = vmul.f32 %v2234, %v2312
    %v2377 = vmul.f32 %v2235, %v2313
    %v2378 = vadd.f32 %v2374, %v2376
    %v2379 = vadd.f32 %v2375, %v2377
    %v2380 = vmul.f32 %v1094, %v2262
    %v2381 = vmul.f32 %v1095, %v2263
    %v2382 = vmul.f32 %v1122, %v2328
    %v2383 = vmul.f32 %v1123, %v2329
    %v2384 = vadd.f32 %v2380, %v2382
    %v2385 = vadd.f32 %v2381, %v2383
    %v2386 = vmul.f32 %v1150, %v2358
    %v2387 = vmul.f32 %v1151, %v2359
    %v2388 = vadd.f32 %v2384, %v2386
    %v2389 = vadd.f32 %v2385, %v2387
    %v2390 = vmul.f32 %v1094, %v2290
    %v2391 = vmul.f32 %v1095, %v2291
    %v2392 = vmul.f32 %v1122, %v2338
    %v2393 = vmul.f32 %v1123, %v2339
    %v2394 = vadd.f32 %v2390, %v2392
    %v2395 = vadd.f32 %v2391, %v2393
    %v2396 = vmul.f32 %v1150, %v2368
    %v2397 = vmul.f32 %v1151, %v2369
    %v2398 = vadd.f32 %v2394, %v2396
    %v2399 = vadd.f32 %v2395, %v2397
    %v2400 = vmul.f32 %v1094, %v2318
    %v2401 = vmul.f32 %v1095, %v2319
    %v2402 = vmul.f32 %v1122, %v2348
    %v2403 = vmul.f32 %v1123, %v2349
    %v2404 = vadd.f32 %v2400, %v2402
    %v2405 = vadd.f32 %v2401, %v2403
    %v2406 = vmul.f32 %v1150, %v2378
    %v2407 = vmul.f32 %v1151, %v2379
    %v2408 = vadd.f32 %v2404, %v2406
    %v2409 = vadd.f32 %v2405, %v2407
    %v2410 = vmul.f32 %v1160, %v2262
    %v2411 = vmul.f32 %v1161, %v2263
    %v2412 = vmul.f32 %v1170, %v2328
    %v2413 = vmul.f32 %v1171, %v2329
    %v2414 = vadd.f32 %v2410, %v2412
    %v2415 = vadd.f32 %v2411, %v2413
    %v2416 = vmul.f32 %v1180, %v2358
    %v2417 = vmul.f32 %v1181, %v2359
    %v2418 = vadd.f32 %v2414, %v2416
    %v2419 = vadd.f32 %v2415, %v2417
    %v2420 = vmul.f32 %v1160, %v2290
    %v2421 = vmul.f32 %v1161, %v2291
    %v2422 = vmul.f32 %v1170, %v2338
    %v2423 = vmul.f32 %v1171, %v2339
    %v2424 = vadd.f32 %v2420, %v2422
    %v2425 = vadd.f32 %v2421, %v2423
    %v2426 = vmul.f32 %v1180, %v2368
    %v2427 = vmul.f32 %v1181, %v2369
    %v2428 = vadd.f32 %v2424, %v2426
    %v2429 = vadd.f32 %v2425, %v2427
    %v2430 = vmul.f32 %v1160, %v2318
    %v2431 = vmul.f32 %v1161, %v2319
    %v2432 = vmul.f32 %v1170, %v2348
    %v2433 = vmul.f32 %v1171, %v2349
    %v2434 = vadd.f32 %v2430, %v2432
    %v2435 = vadd.f32 %v2431, %v2433
    %v2436 = vmul.f32 %v1180, %v2378
    %v2437 = vmul.f32 %v1181, %v2379
    %v2438 = vadd.f32 %v2434, %v2436
    %v2439 = vadd.f32 %v2435, %v2437
    %v2440 = vmul.f32 %v1190, %v2262
    %v2441 = vmul.f32 %v1191, %v2263
    %v2442 = vmul.f32 %v1200, %v2328
    %v2443 = vmul.f32 %v1201, %v2329
    %v2444 = vadd.f32 %v2440, %v2442
    %v2445 = vadd.f32 %v2441, %v2443
    %v2446 = vmul.f32 %v1210, %v2358
    %v2447 = vmul.f32 %v1211, %v2359
    %v2448 = vadd.f32 %v2444, %v2446
    %v2449 = vadd.f32 %v2445, %v2447
    %v2450 = vmul.f32 %v1190, %v2290
    %v2451 = vmul.f32 %v1191, %v2291
    %v2452 = vmul.f32 %v1200, %v2338
    %v2453 = vmul.f32 %v1201, %v2339
    %v2454 = vadd.f32 %v2450, %v2452
    %v2455 = vadd.f32 %v2451, %v2453
    %v2456 = vmul.f32 %v1210, %v2368
    %v2457 = vmul.f32 %v1211, %v2369
    %v2458 = vadd.f32 %v2454, %v2456
    %v2459 = vadd.f32 %v2455, %v2457
    %v2460 = vmul.f32 %v1190, %v2318
    %v2461 = vmul.f32 %v1191, %v2319
    %v2462 = vmul.f32 %v1200, %v2348
    %v2463 = vmul.f32 %v1201, %v2349
    %v2464 = vadd.f32 %v2460, %v2462
    %v2465 = vadd.f32 %v2461, %v2463
    %v2466 = vmul.f32 %v1210, %v2378
    %v2467 = vmul.f32 %v1211, %v2379
    %v2468 = vadd.f32 %v2464, %v2466
    %v2469 = vadd.f32 %v2465, %v2467
    %v2470 = vld [vmem:[#allocation2 + $0x20] sm:$0xff]
    %v2471 = vld [vmem:[#allocation2 + $0x28] sm:$0xff]
    %v2472 = vld [vmem:[#allocation2 + $0x60] sm:$0xff]
    %v2473 = vld [vmem:[#allocation2 + $0x68] sm:$0xff]
    %v2474 = vld [vmem:[#allocation2 + $0xa0] sm:$0xff]
    %v2475 = vld [vmem:[#allocation2 + $0xa8] sm:$0xff]
    %v2476 = vmul.f32 %v2470, 0.005
    %v2477 = vmul.f32 %v2471, 0.005
    %v2478 = vmul.f32 %v2472, 0.005
    %v2479 = vmul.f32 %v2473, 0.005
    %v2480 = vmul.f32 %v2474, 0.005
    %v2481 = vmul.f32 %v2475, 0.005
    %v2482 = vmul.f32 %v2476, %v2476
    %v2483 = vmul.f32 %v2477, %v2477
    %v2484 = vmul.f32 %v2478, %v2478
    %v2485 = vmul.f32 %v2479, %v2479
    %v2486 = vadd.f32 %v2482, %v2484
    %v2487 = vadd.f32 %v2483, %v2485
    %v2488 = vmul.f32 %v2480, %v2480
    %v2489 = vmul.f32 %v2481, %v2481
    %v2490 = vadd.f32 %v2486, %v2488
    %v2491 = vadd.f32 %v2487, %v2489
    %v2492 = vmax.f32 %v2490, 1e-12
    %v2493 = vmax.f32 %v2491, 1e-12
    %v2494 = vrsqrt.pop %v2492
    %v2495 = vmul.f32 %v2494, %v2492
    %v2496 = vmul.f32 %v2495, %v2494
    %v2497 = vmul.f32 0.5, %v2496
    %v2498 = vsub.f32 1.5, %v2497
    %v2499 = vmul.f32 %v2494, %v2498
    %v2500 = vmul.f32 %v2492, %v2499
    %vm2501 = vcmp.eq.f32.partialorder %v2492, inf
    %v2502 = vsel %vm2501, %v2492, %v2500
    %vm2503 = vcmp.eq.f32.partialorder %v2492, 0.0
    %v2504 = vand.u32 %v2492, 2147483648
    %v2505 = vsel %vm2503, %v2504, %v2502
    %v2506 = vrsqrt.pop %v2493
    %v2507 = vmul.f32 %v2506, %v2493
    %v2508 = vmul.f32 %v2507, %v2506
    %v2509 = vmul.f32 0.5, %v2508
    %v2510 = vsub.f32 1.5, %v2509
    %v2511 = vmul.f32 %v2506, %v2510
    %v2512 = vmul.f32 %v2493, %v2511
    %vm2513 = vcmp.eq.f32.partialorder %v2493, inf
    %v2514 = vsel %vm2513, %v2493, %v2512
    %vm2515 = vcmp.eq.f32.partialorder %v2493, 0.0
    %v2516 = vand.u32 %v2493, 2147483648
    %v2517 = vsel %vm2515, %v2516, %v2514
    %v2518 = vand.u32 2147483647, %v2505
    %vm2519 = vcmp.le.f32.partialorder %v2518, 0.7853982
    %vm2520 = vcmp.lt.s32.totalorder %v2505, 0
    %v2521 = vand.u32 %v2505, 2139095040
    %v2522 = vshrl.u32 %v2521, 23
    %v2523 = vsub.s32 %v2522, 127
    %v2524 = vand.u32 2147483647, %v2505
    %v2525 = vand.u32 %v2524, 8388607
    %v2526 = vor.u32 %v2525, 8388608
    %v2527 = vsub.s32 0, %v2526
    %v2528 = vadd.s32 %v2523, 1
    %vm2529 = vcmp.gt.s32.totalorder %v2528, 0
    %v2530 = vsel %vm2529, %v2528, 0
    %v2531 = vshrl.u32 %v2530, 5
    %v2532 = vand.u32 %v2530, 31
    %v2533 = vsub.s32 32, %v2532
    %v2534 = vshrl.u32 683565275, %v2533
    %v2535 = vshll.u32 683565275, %v2532
    %v2536 = vshrl.u32 2475754826, %v2533
    %v2537 = vor.u32 %v2535, %v2536
    %v2538 = vshll.u32 2475754826, %v2532
    %v2539 = vshrl.u32 2131351028, %v2533
    %v2540 = vor.u32 %v2538, %v2539
    %v2541 = vshll.u32 2131351028, %v2532
    %v2542 = vshrl.u32 2102212464, %v2533
    %v2543 = vor.u32 %v2541, %v2542
    %v2544 = vshll.u32 2102212464, %v2532
    %v2545 = vshrl.u32 920167782, %v2533
    %v2546 = vor.u32 %v2544, %v2545
    %v2547 = vshll.u32 920167782, %v2532
    %v2548 = vshrl.u32 1326507024, %v2533
    %v2549 = vor.u32 %v2547, %v2548
    %vm2550 = vcmp.lt.s32.totalorder %v2531, 1
    %vm2551 = vcmp.lt.s32.totalorder %v2531, 2
    %vm2552 = vcmp.lt.s32.totalorder %v2531, 3
    %vm2553 = vcmp.lt.s32.totalorder %v2531, 4
    %v2554 = vsel %vm2550, %v2534, %v2537
    %v2555 = vsel %vm2553, %v2543, 2102212464
    %v2556 = vsel %vm2552, %v2540, %v2555
    %v2557 = vsel %vm2551, %v2554, %v2556
    %v2558 = vsel %vm2550, %v2537, %v2540
    %v2559 = vsel %vm2553, %v2546, 920167782
    %v2560 = vsel %vm2552, %v2543, %v2559
    %v2561 = vsel %vm2551, %v2558, %v2560
    %v2562 = vsel %vm2550, %v2540, %v2543
    %v2563 = vsel %vm2553, %v2549, 1326507024
    %v2564 = vsel %vm2552, %v2546, %v2563
    %v2565 = vsel %vm2551, %v2562, %v2564
    %v2566 = vshll.u32 %v2526, 8
    %v2567 = vand.u32 %v2566, 65535
    %v2568 = vshrl.u32 %v2566, 16
    %v2569 = vand.u32 %v2565, 65535
    %v2570 = vshrl.u32 %v2565, 16
    %v2571 = vmul.u32 %v2567, %v2569
    %v2572 = vmul.u32 %v2567, %v2570
    %v2573 = vmul.u32 %v2568, %v2569
    %v2574 = vmul.u32 %v2568, %v2570
    %v2575 = vshll.u32 %v2572, 16
    %v2576 = vshrl.u32 %v2572, 16
    %v2577 = vshll.u32 %v2573, 16
    %v2578 = vshrl.u32 %v2573, 16
    %vm2579 = vc.u32 %v2571, %v2575
    %v2580 = vsel %vm2579, 1, 0
    %v2581 = vadd.s32 %v2571, %v2575
    %v2582 = vadd.s32 %v2574, %v2580
    %vm2583 = vc.u32 %v2581, %v2577
    %v2584 = vsel %vm2583, 1, 0
    %v2585 = vadd.s32 %v2581, %v2577
    %v2586 = vadd.s32 %v2582, %v2584
    %v2587 = vadd.s32 %v2586, %v2576
    %v2588 = vadd.s32 %v2587, %v2578
    %v2589 = vand.u32 %v2566, 65535
    %v2590 = vshrl.u32 %v2566, 16
    %v2591 = vand.u32 %v2561, 65535
    %v2592 = vshrl.u32 %v2561, 16
    %v2593 = vmul.u32 %v2589, %v2591
    %v2594 = vmul.u32 %v2589, %v2592
    %v2595 = vmul.u32 %v2590, %v2591
    %v2596 = vmul.u32 %v2590, %v2592
    %v2597 = vshll.u32 %v2594, 16
    %v2598 = vshrl.u32 %v2594, 16
    %v2599 = vshll.u32 %v2595, 16
    %v2600 = vshrl.u32 %v2595, 16
    %vm2601 = vc.u32 %v2593, %v2597
    %v2602 = vsel %vm2601, 1, 0
    %v2603 = vadd.s32 %v2593, %v2597
    %v2604 = vadd.s32 %v2596, %v2602
    %vm2605 = vc.u32 %v2603, %v2599
    %v2606 = vsel %vm2605, 1, 0
    %v2607 = vadd.s32 %v2603, %v2599
    %v2608 = vadd.s32 %v2604, %v2606
    %v2609 = vadd.s32 %v2608, %v2598
    %v2610 = vadd.s32 %v2609, %v2600
    %v2611 = vmul.u32 %v2566, %v2557
    %v2612 = vadd.s32 %v2588, %v2607
    %vm2613 = vc.u32 %v2588, %v2607
    %v2614 = vadd.s32 %v2610, 1
    %v2615 = vsel %vm2613, %v2614, %v2610
    %v2616 = vadd.s32 %v2611, %v2615
    %v2617 = vadd.s32 %v2616, 536870912
    %v2618 = vshrl.u32 %v2617, 30
    %v2619 = vshll.u32 %v2618, 30
    %v2620 = vsub.s32 %v2616, %v2619
    %vm2621 = vcmp.lt.s32.totalorder %v2620, 0
    %v2622 = vsub.s32 0, %v2620
    %v2623 = vsel %vm2621, %v2622, %v2620
    %v2624 = vclz %v2623
    %v2625 = vsub.s32 %v2624, 2
    %vm2626 = vcmp.gt.s32.totalorder 0, %v2625
    %v2627 = vsel %vm2626, 0, %v2625
    %v2628 = vsub.s32 32, %v2627
    %v2629 = vshll.u32 %v2620, %v2627
    %v2630 = vshrl.u32 %v2612, %v2628
    %v2631 = vor.u32 %v2629, %v2630
    %v2632 = vsub.s32 4294967266, %v2627
    %v2633 = vadd.s32 %v2632, 127
    %v2634 = vshll.u32 %v2633, 23
    %v2635 = vor.u32 4788187, %v2634
    %v2636 = vand.u32 2147483647, %v2635
    %v2638 = vcvt.s32.f32 %v2631
    %v2639 = vmul.f32 %v2638, %v2636
    %v2640 = vxor.u32 %v2639, 2147483648
    %v2641 = vsel %vm2520, %v2640, %v2639
    %v2642 = vsub.s32 4, %v2618
    %v2643 = vsel %vm2520, %v2642, %v2618
    %v2644 = vsel %vm2519, %v2505, %v2641
    %v2645 = vsel %vm2519, 0, %v2643
    %v2646 = vmul.f32 %v2644, %v2644
    %v2647 = vmul.f32 %v2646, -0.001358992
    %v2648 = vadd.f32 %v2647, 0.041655596
    %v2649 = vmul.f32 %v2646, %v2648
    %v2650 = vadd.f32 %v2649, -0.4999988
    %v2651 = vmul.f32 %v2646, %v2650
    %v2652 = vadd.f32 1.0, %v2651
    %v2653 = vmul.f32 %v2644, %v2644
    %v2654 = vmul.f32 %v2653, -0.00019511016
    %v2655 = vadd.f32 %v2654, 0.008332121
    %v2656 = vmul.f32 %v2653, %v2655
    %v2657 = vadd.f32 %v2656, -0.16666654
    %v2658 = vmul.f32 %v2653, %v2657
    %v2659 = vadd.f32 %v2658, 1.0
    %v2660 = vmul.f32 %v2659, %v2644
    %vm2661 = vweird.f32 %v2505
    %v2662 = vand.u32 %v2645, 3
    %vm2663 = vcmp.lt.s32.totalorder %v2662, 2
    %vm2664 = vcmp.eq.s32.totalorder %v2662, 0
    %v2665 = vxor.u32 %v2660, 2147483648
    %v2666 = vsel %vm2664, %v2652, %v2665
    %vm2667 = vcmp.eq.s32.totalorder %v2662, 2
    %v2668 = vxor.u32 %v2652, 2147483648
    %v2669 = vsel %vm2667, %v2668, %v2660
    %v2670 = vsel %vm2663, %v2666, %v2669
    %v2671 = vsel %vm2661, nan, %v2670
    %v2672 = vand.u32 2147483647, %v2517
    %vm2673 = vcmp.le.f32.partialorder %v2672, 0.7853982
    %vm2674 = vcmp.lt.s32.totalorder %v2517, 0
    %v2675 = vand.u32 %v2517, 2139095040
    %v2676 = vshrl.u32 %v2675, 23
    %v2677 = vsub.s32 %v2676, 127
    %v2678 = vand.u32 2147483647, %v2517
    %v2679 = vand.u32 %v2678, 8388607
    %v2680 = vor.u32 %v2679, 8388608
    %v2681 = vsub.s32 0, %v2680
    %v2682 = vadd.s32 %v2677, 1
    %vm2683 = vcmp.gt.s32.totalorder %v2682, 0
    %v2684 = vsel %vm2683, %v2682, 0
    %v2685 = vshrl.u32 %v2684, 5
    %v2686 = vand.u32 %v2684, 31
    %v2687 = vsub.s32 32, %v2686
    %v2688 = vshrl.u32 683565275, %v2687
    %v2689 = vshll.u32 683565275, %v2686
    %v2690 = vshrl.u32 2475754826, %v2687
    %v2691 = vor.u32 %v2689, %v2690
    %v2692 = vshll.u32 2475754826, %v2686
    %v2693 = vshrl.u32 2131351028, %v2687
    %v2694 = vor.u32 %v2692, %v2693
    %v2695 = vshll.u32 2131351028, %v2686
    %v2696 = vshrl.u32 2102212464, %v2687
    %v2697 = vor.u32 %v2695, %v2696
    %v2698 = vshll.u32 2102212464, %v2686
    %v2699 = vshrl.u32 920167782, %v2687
    %v2700 = vor.u32 %v2698, %v2699
    %v2701 = vshll.u32 920167782, %v2686
    %v2702 = vshrl.u32 1326507024, %v2687
    %v2703 = vor.u32 %v2701, %v2702
    %vm2704 = vcmp.lt.s32.totalorder %v2685, 1
    %vm2705 = vcmp.lt.s32.totalorder %v2685, 2
    %vm2706 = vcmp.lt.s32.totalorder %v2685, 3
    %vm2707 = vcmp.lt.s32.totalorder %v2685, 4
    %v2708 = vsel %vm2704, %v2688, %v2691
    %v2709 = vsel %vm2707, %v2697, 2102212464
    %v2710 = vsel %vm2706, %v2694, %v2709
    %v2711 = vsel %vm2705, %v2708, %v2710
    %v2712 = vsel %vm2704, %v2691, %v2694
    %v2713 = vsel %vm2707, %v2700, 920167782
    %v2714 = vsel %vm2706, %v2697, %v2713
    %v2715 = vsel %vm2705, %v2712, %v2714
    %v2716 = vsel %vm2704, %v2694, %v2697
    %v2717 = vsel %vm2707, %v2703, 1326507024
    %v2718 = vsel %vm2706, %v2700, %v2717
    %v2719 = vsel %vm2705, %v2716, %v2718
    %v2720 = vshll.u32 %v2680, 8
    %v2721 = vand.u32 %v2720, 65535
    %v2722 = vshrl.u32 %v2720, 16
    %v2723 = vand.u32 %v2719, 65535
    %v2724 = vshrl.u32 %v2719, 16
    %v2725 = vmul.u32 %v2721, %v2723
    %v2726 = vmul.u32 %v2721, %v2724
    %v2727 = vmul.u32 %v2722, %v2723
    %v2728 = vmul.u32 %v2722, %v2724
    %v2729 = vshll.u32 %v2726, 16
    %v2730 = vshrl.u32 %v2726, 16
    %v2731 = vshll.u32 %v2727, 16
    %v2732 = vshrl.u32 %v2727, 16
    %vm2733 = vc.u32 %v2725, %v2729
    %v2734 = vsel %vm2733, 1, 0
    %v2735 = vadd.s32 %v2725, %v2729
    %v2736 = vadd.s32 %v2728, %v2734
    %vm2737 = vc.u32 %v2735, %v2731
    %v2738 = vsel %vm2737, 1, 0
    %v2739 = vadd.s32 %v2735, %v2731
    %v2740 = vadd.s32 %v2736, %v2738
    %v2741 = vadd.s32 %v2740, %v2730
    %v2742 = vadd.s32 %v2741, %v2732
    %v2743 = vand.u32 %v2720, 65535
    %v2744 = vshrl.u32 %v2720, 16
    %v2745 = vand.u32 %v2715, 65535
    %v2746 = vshrl.u32 %v2715, 16
    %v2747 = vmul.u32 %v2743, %v2745
    %v2748 = vmul.u32 %v2743, %v2746
    %v2749 = vmul.u32 %v2744, %v2745
    %v2750 = vmul.u32 %v2744, %v2746
    %v2751 = vshll.u32 %v2748, 16
    %v2752 = vshrl.u32 %v2748, 16
    %v2753 = vshll.u32 %v2749, 16
    %v2754 = vshrl.u32 %v2749, 16
    %vm2755 = vc.u32 %v2747, %v2751
    %v2756 = vsel %vm2755, 1, 0
    %v2757 = vadd.s32 %v2747, %v2751
    %v2758 = vadd.s32 %v2750, %v2756
    %vm2759 = vc.u32 %v2757, %v2753
    %v2760 = vsel %vm2759, 1, 0
    %v2761 = vadd.s32 %v2757, %v2753
    %v2762 = vadd.s32 %v2758, %v2760
    %v2763 = vadd.s32 %v2762, %v2752
    %v2764 = vadd.s32 %v2763, %v2754
    %v2765 = vmul.u32 %v2720, %v2711
    %v2766 = vadd.s32 %v2742, %v2761
    %vm2767 = vc.u32 %v2742, %v2761
    %v2768 = vadd.s32 %v2764, 1
    %v2769 = vsel %vm2767, %v2768, %v2764
    %v2770 = vadd.s32 %v2765, %v2769
    %v2771 = vadd.s32 %v2770, 536870912
    %v2772 = vshrl.u32 %v2771, 30
    %v2773 = vshll.u32 %v2772, 30
    %v2774 = vsub.s32 %v2770, %v2773
    %vm2775 = vcmp.lt.s32.totalorder %v2774, 0
    %v2776 = vsub.s32 0, %v2774
    %v2777 = vsel %vm2775, %v2776, %v2774
    %v2778 = vclz %v2777
    %v2779 = vsub.s32 %v2778, 2
    %vm2780 = vcmp.gt.s32.totalorder 0, %v2779
    %v2781 = vsel %vm2780, 0, %v2779
    %v2782 = vsub.s32 32, %v2781
    %v2783 = vshll.u32 %v2774, %v2781
    %v2784 = vshrl.u32 %v2766, %v2782
    %v2785 = vor.u32 %v2783, %v2784
    %v2786 = vsub.s32 4294967266, %v2781
    %v2787 = vadd.s32 %v2786, 127
    %v2788 = vshll.u32 %v2787, 23
    %v2789 = vor.u32 4788187, %v2788
    %v2790 = vand.u32 2147483647, %v2789
    %v2792 = vcvt.s32.f32 %v2785
    %v2793 = vmul.f32 %v2792, %v2790
    %v2794 = vxor.u32 %v2793, 2147483648
    %v2795 = vsel %vm2674, %v2794, %v2793
    %v2796 = vsub.s32 4, %v2772
    %v2797 = vsel %vm2674, %v2796, %v2772
    %v2798 = vsel %vm2673, %v2517, %v2795
    %v2799 = vsel %vm2673, 0, %v2797
    %v2800 = vmul.f32 %v2798, %v2798
    %v2801 = vmul.f32 %v2800, -0.001358992
    %v2802 = vadd.f32 %v2801, 0.041655596
    %v2803 = vmul.f32 %v2800, %v2802
    %v2804 = vadd.f32 %v2803, -0.4999988
    %v2805 = vmul.f32 %v2800, %v2804
    %v2806 = vadd.f32 1.0, %v2805
    %v2807 = vmul.f32 %v2798, %v2798
    %v2808 = vmul.f32 %v2807, -0.00019511016
    %v2809 = vadd.f32 %v2808, 0.008332121
    %v2810 = vmul.f32 %v2807, %v2809
    %v2811 = vadd.f32 %v2810, -0.16666654
    %v2812 = vmul.f32 %v2807, %v2811
    %v2813 = vadd.f32 %v2812, 1.0
    %v2814 = vmul.f32 %v2813, %v2798
    %vm2815 = vweird.f32 %v2517
    %v2816 = vand.u32 %v2799, 3
    %vm2817 = vcmp.lt.s32.totalorder %v2816, 2
    %vm2818 = vcmp.eq.s32.totalorder %v2816, 0
    %v2819 = vxor.u32 %v2814, 2147483648
    %v2820 = vsel %vm2818, %v2806, %v2819
    %vm2821 = vcmp.eq.s32.totalorder %v2816, 2
    %v2822 = vxor.u32 %v2806, 2147483648
    %v2823 = vsel %vm2821, %v2822, %v2814
    %v2824 = vsel %vm2817, %v2820, %v2823
    %v2825 = vsel %vm2815, nan, %v2824
    %v2826 = vand.u32 2147483647, %v2505
    %vm2827 = vcmp.le.f32.partialorder %v2826, 0.7853982
    %vm2828 = vcmp.lt.s32.totalorder %v2505, 0
    %v2829 = vand.u32 %v2505, 2139095040
    %v2830 = vshrl.u32 %v2829, 23
    %v2831 = vsub.s32 %v2830, 127
    %v2832 = vand.u32 2147483647, %v2505
    %v2833 = vand.u32 %v2832, 8388607
    %v2834 = vor.u32 %v2833, 8388608
    %v2835 = vsub.s32 0, %v2834
    %v2836 = vadd.s32 %v2831, 1
    %vm2837 = vcmp.gt.s32.totalorder %v2836, 0
    %v2838 = vsel %vm2837, %v2836, 0
    %v2839 = vshrl.u32 %v2838, 5
    %v2840 = vand.u32 %v2838, 31
    %v2841 = vsub.s32 32, %v2840
    %v2842 = vshrl.u32 683565275, %v2841
    %v2843 = vshll.u32 683565275, %v2840
    %v2844 = vshrl.u32 2475754826, %v2841
    %v2845 = vor.u32 %v2843, %v2844
    %v2846 = vshll.u32 2475754826, %v2840
    %v2847 = vshrl.u32 2131351028, %v2841
    %v2848 = vor.u32 %v2846, %v2847
    %v2849 = vshll.u32 2131351028, %v2840
    %v2850 = vshrl.u32 2102212464, %v2841
    %v2851 = vor.u32 %v2849, %v2850
    %v2852 = vshll.u32 2102212464, %v2840
    %v2853 = vshrl.u32 920167782, %v2841
    %v2854 = vor.u32 %v2852, %v2853
    %v2855 = vshll.u32 920167782, %v2840
    %v2856 = vshrl.u32 1326507024, %v2841
    %v2857 = vor.u32 %v2855, %v2856
    %vm2858 = vcmp.lt.s32.totalorder %v2839, 1
    %vm2859 = vcmp.lt.s32.totalorder %v2839, 2
    %vm2860 = vcmp.lt.s32.totalorder %v2839, 3
    %vm2861 = vcmp.lt.s32.totalorder %v2839, 4
    %v2862 = vsel %vm2858, %v2842, %v2845
    %v2863 = vsel %vm2861, %v2851, 2102212464
    %v2864 = vsel %vm2860, %v2848, %v2863
    %v2865 = vsel %vm2859, %v2862, %v2864
    %v2866 = vsel %vm2858, %v2845, %v2848
    %v2867 = vsel %vm2861, %v2854, 920167782
    %v2868 = vsel %vm2860, %v2851, %v2867
    %v2869 = vsel %vm2859, %v2866, %v2868
    %v2870 = vsel %vm2858, %v2848, %v2851
    %v2871 = vsel %vm2861, %v2857, 1326507024
    %v2872 = vsel %vm2860, %v2854, %v2871
    %v2873 = vsel %vm2859, %v2870, %v2872
    %v2874 = vshll.u32 %v2834, 8
    %v2875 = vand.u32 %v2874, 65535
    %v2876 = vshrl.u32 %v2874, 16
    %v2877 = vand.u32 %v2873, 65535
    %v2878 = vshrl.u32 %v2873, 16
    %v2879 = vmul.u32 %v2875, %v2877
    %v2880 = vmul.u32 %v2875, %v2878
    %v2881 = vmul.u32 %v2876, %v2877
    %v2882 = vmul.u32 %v2876, %v2878
    %v2883 = vshll.u32 %v2880, 16
    %v2884 = vshrl.u32 %v2880, 16
    %v2885 = vshll.u32 %v2881, 16
    %v2886 = vshrl.u32 %v2881, 16
    %vm2887 = vc.u32 %v2879, %v2883
    %v2888 = vsel %vm2887, 1, 0
    %v2889 = vadd.s32 %v2879, %v2883
    %v2890 = vadd.s32 %v2882, %v2888
    %vm2891 = vc.u32 %v2889, %v2885
    %v2892 = vsel %vm2891, 1, 0
    %v2893 = vadd.s32 %v2889, %v2885
    %v2894 = vadd.s32 %v2890, %v2892
    %v2895 = vadd.s32 %v2894, %v2884
    %v2896 = vadd.s32 %v2895, %v2886
    %v2897 = vand.u32 %v2874, 65535
    %v2898 = vshrl.u32 %v2874, 16
    %v2899 = vand.u32 %v2869, 65535
    %v2900 = vshrl.u32 %v2869, 16
    %v2901 = vmul.u32 %v2897, %v2899
    %v2902 = vmul.u32 %v2897, %v2900
    %v2903 = vmul.u32 %v2898, %v2899
    %v2904 = vmul.u32 %v2898, %v2900
    %v2905 = vshll.u32 %v2902, 16
    %v2906 = vshrl.u32 %v2902, 16
    %v2907 = vshll.u32 %v2903, 16
    %v2908 = vshrl.u32 %v2903, 16
    %vm2909 = vc.u32 %v2901, %v2905
    %v2910 = vsel %vm2909, 1, 0
    %v2911 = vadd.s32 %v2901, %v2905
    %v2912 = vadd.s32 %v2904, %v2910
    %vm2913 = vc.u32 %v2911, %v2907
    %v2914 = vsel %vm2913, 1, 0
    %v2915 = vadd.s32 %v2911, %v2907
    %v2916 = vadd.s32 %v2912, %v2914
    %v2917 = vadd.s32 %v2916, %v2906
    %v2918 = vadd.s32 %v2917, %v2908
    %v2919 = vmul.u32 %v2874, %v2865
    %v2920 = vadd.s32 %v2896, %v2915
    %vm2921 = vc.u32 %v2896, %v2915
    %v2922 = vadd.s32 %v2918, 1
    %v2923 = vsel %vm2921, %v2922, %v2918
    %v2924 = vadd.s32 %v2919, %v2923
    %v2925 = vadd.s32 %v2924, 536870912
    %v2926 = vshrl.u32 %v2925, 30
    %v2927 = vshll.u32 %v2926, 30
    %v2928 = vsub.s32 %v2924, %v2927
    %vm2929 = vcmp.lt.s32.totalorder %v2928, 0
    %v2930 = vsub.s32 0, %v2928
    %v2931 = vsel %vm2929, %v2930, %v2928
    %v2932 = vclz %v2931
    %v2933 = vsub.s32 %v2932, 2
    %vm2934 = vcmp.gt.s32.totalorder 0, %v2933
    %v2935 = vsel %vm2934, 0, %v2933
    %v2936 = vsub.s32 32, %v2935
    %v2937 = vshll.u32 %v2928, %v2935
    %v2938 = vshrl.u32 %v2920, %v2936
    %v2939 = vor.u32 %v2937, %v2938
    %v2940 = vsub.s32 4294967266, %v2935
    %v2941 = vadd.s32 %v2940, 127
    %v2942 = vshll.u32 %v2941, 23
    %v2943 = vor.u32 4788187, %v2942
    %v2944 = vand.u32 2147483647, %v2943
    %v2946 = vcvt.s32.f32 %v2939
    %v2947 = vmul.f32 %v2946, %v2944
    %v2948 = vxor.u32 %v2947, 2147483648
    %v2949 = vsel %vm2828, %v2948, %v2947
    %v2950 = vsub.s32 4, %v2926
    %v2951 = vsel %vm2828, %v2950, %v2926
    %v2952 = vsel %vm2827, %v2505, %v2949
    %v2953 = vsel %vm2827, 0, %v2951
    %v2954 = vmul.f32 %v2952, %v2952
    %v2955 = vmul.f32 %v2954, -0.001358992
    %v2956 = vadd.f32 %v2955, 0.041655596
    %v2957 = vmul.f32 %v2954, %v2956
    %v2958 = vadd.f32 %v2957, -0.4999988
    %v2959 = vmul.f32 %v2954, %v2958
    %v2960 = vadd.f32 1.0, %v2959
    %v2961 = vmul.f32 %v2952, %v2952
    %v2962 = vmul.f32 %v2961, -0.00019511016
    %v2963 = vadd.f32 %v2962, 0.008332121
    %v2964 = vmul.f32 %v2961, %v2963
    %v2965 = vadd.f32 %v2964, -0.16666654
    %v2966 = vmul.f32 %v2961, %v2965
    %v2967 = vadd.f32 %v2966, 1.0
    %v2968 = vmul.f32 %v2967, %v2952
    %vm2969 = vweird.f32 %v2505
    %v2970 = vadd.s32 %v2953, 3
    %v2971 = vand.u32 %v2970, 3
    %vm2972 = vcmp.lt.s32.totalorder %v2971, 2
    %vm2973 = vcmp.eq.s32.totalorder %v2971, 0
    %v2974 = vxor.u32 %v2968, 2147483648
    %v2975 = vsel %vm2973, %v2960, %v2974
    %vm2976 = vcmp.eq.s32.totalorder %v2971, 2
    %v2977 = vxor.u32 %v2960, 2147483648
    %v2978 = vsel %vm2976, %v2977, %v2968
    %v2979 = vsel %vm2972, %v2975, %v2978
    %v2980 = vsel %vm2969, nan, %v2979
    %v2981 = vand.u32 2147483647, %v2517
    %vm2982 = vcmp.le.f32.partialorder %v2981, 0.7853982
    %vm2983 = vcmp.lt.s32.totalorder %v2517, 0
    %v2984 = vand.u32 %v2517, 2139095040
    %v2985 = vshrl.u32 %v2984, 23
    %v2986 = vsub.s32 %v2985, 127
    %v2987 = vand.u32 2147483647, %v2517
    %v2988 = vand.u32 %v2987, 8388607
    %v2989 = vor.u32 %v2988, 8388608
    %v2990 = vsub.s32 0, %v2989
    %v2991 = vadd.s32 %v2986, 1
    %vm2992 = vcmp.gt.s32.totalorder %v2991, 0
    %v2993 = vsel %vm2992, %v2991, 0
    %v2994 = vshrl.u32 %v2993, 5
    %v2995 = vand.u32 %v2993, 31
    %v2996 = vsub.s32 32, %v2995
    %v2997 = vshrl.u32 683565275, %v2996
    %v2998 = vshll.u32 683565275, %v2995
    %v2999 = vshrl.u32 2475754826, %v2996
    %v3000 = vor.u32 %v2998, %v2999
    %v3001 = vshll.u32 2475754826, %v2995
    %v3002 = vshrl.u32 2131351028, %v2996
    %v3003 = vor.u32 %v3001, %v3002
    %v3004 = vshll.u32 2131351028, %v2995
    %v3005 = vshrl.u32 2102212464, %v2996
    %v3006 = vor.u32 %v3004, %v3005
    %v3007 = vshll.u32 2102212464, %v2995
    %v3008 = vshrl.u32 920167782, %v2996
    %v3009 = vor.u32 %v3007, %v3008
    %v3010 = vshll.u32 920167782, %v2995
    %v3011 = vshrl.u32 1326507024, %v2996
    %v3012 = vor.u32 %v3010, %v3011
    %vm3013 = vcmp.lt.s32.totalorder %v2994, 1
    %vm3014 = vcmp.lt.s32.totalorder %v2994, 2
    %vm3015 = vcmp.lt.s32.totalorder %v2994, 3
    %vm3016 = vcmp.lt.s32.totalorder %v2994, 4
    %v3017 = vsel %vm3013, %v2997, %v3000
    %v3018 = vsel %vm3016, %v3006, 2102212464
    %v3019 = vsel %vm3015, %v3003, %v3018
    %v3020 = vsel %vm3014, %v3017, %v3019
    %v3021 = vsel %vm3013, %v3000, %v3003
    %v3022 = vsel %vm3016, %v3009, 920167782
    %v3023 = vsel %vm3015, %v3006, %v3022
    %v3024 = vsel %vm3014, %v3021, %v3023
    %v3025 = vsel %vm3013, %v3003, %v3006
    %v3026 = vsel %vm3016, %v3012, 1326507024
    %v3027 = vsel %vm3015, %v3009, %v3026
    %v3028 = vsel %vm3014, %v3025, %v3027
    %v3029 = vshll.u32 %v2989, 8
    %v3030 = vand.u32 %v3029, 65535
    %v3031 = vshrl.u32 %v3029, 16
    %v3032 = vand.u32 %v3028, 65535
    %v3033 = vshrl.u32 %v3028, 16
    %v3034 = vmul.u32 %v3030, %v3032
    %v3035 = vmul.u32 %v3030, %v3033
    %v3036 = vmul.u32 %v3031, %v3032
    %v3037 = vmul.u32 %v3031, %v3033
    %v3038 = vshll.u32 %v3035, 16
    %v3039 = vshrl.u32 %v3035, 16
    %v3040 = vshll.u32 %v3036, 16
    %v3041 = vshrl.u32 %v3036, 16
    %vm3042 = vc.u32 %v3034, %v3038
    %v3043 = vsel %vm3042, 1, 0
    %v3044 = vadd.s32 %v3034, %v3038
    %v3045 = vadd.s32 %v3037, %v3043
    %vm3046 = vc.u32 %v3044, %v3040
    %v3047 = vsel %vm3046, 1, 0
    %v3048 = vadd.s32 %v3044, %v3040
    %v3049 = vadd.s32 %v3045, %v3047
    %v3050 = vadd.s32 %v3049, %v3039
    %v3051 = vadd.s32 %v3050, %v3041
    %v3052 = vand.u32 %v3029, 65535
    %v3053 = vshrl.u32 %v3029, 16
    %v3054 = vand.u32 %v3024, 65535
    %v3055 = vshrl.u32 %v3024, 16
    %v3056 = vmul.u32 %v3052, %v3054
    %v3057 = vmul.u32 %v3052, %v3055
    %v3058 = vmul.u32 %v3053, %v3054
    %v3059 = vmul.u32 %v3053, %v3055
    %v3060 = vshll.u32 %v3057, 16
    %v3061 = vshrl.u32 %v3057, 16
    %v3062 = vshll.u32 %v3058, 16
    %v3063 = vshrl.u32 %v3058, 16
    %vm3064 = vc.u32 %v3056, %v3060
    %v3065 = vsel %vm3064, 1, 0
    %v3066 = vadd.s32 %v3056, %v3060
    %v3067 = vadd.s32 %v3059, %v3065
    %vm3068 = vc.u32 %v3066, %v3062
    %v3069 = vsel %vm3068, 1, 0
    %v3070 = vadd.s32 %v3066, %v3062
    %v3071 = vadd.s32 %v3067, %v3069
    %v3072 = vadd.s32 %v3071, %v3061
    %v3073 = vadd.s32 %v3072, %v3063
    %v3074 = vmul.u32 %v3029, %v3020
    %v3075 = vadd.s32 %v3051, %v3070
    %vm3076 = vc.u32 %v3051, %v3070
    %v3077 = vadd.s32 %v3073, 1
    %v3078 = vsel %vm3076, %v3077, %v3073
    %v3079 = vadd.s32 %v3074, %v3078
    %v3080 = vadd.s32 %v3079, 536870912
    %v3081 = vshrl.u32 %v3080, 30
    %v3082 = vshll.u32 %v3081, 30
    %v3083 = vsub.s32 %v3079, %v3082
    %vm3084 = vcmp.lt.s32.totalorder %v3083, 0
    %v3085 = vsub.s32 0, %v3083
    %v3086 = vsel %vm3084, %v3085, %v3083
    %v3087 = vclz %v3086
    %v3088 = vsub.s32 %v3087, 2
    %vm3089 = vcmp.gt.s32.totalorder 0, %v3088
    %v3090 = vsel %vm3089, 0, %v3088
    %v3091 = vsub.s32 32, %v3090
    %v3092 = vshll.u32 %v3083, %v3090
    %v3093 = vshrl.u32 %v3075, %v3091
    %v3094 = vor.u32 %v3092, %v3093
    %v3095 = vsub.s32 4294967266, %v3090
    %v3096 = vadd.s32 %v3095, 127
    %v3097 = vshll.u32 %v3096, 23
    %v3098 = vor.u32 4788187, %v3097
    %v3099 = vand.u32 2147483647, %v3098
    %v3101 = vcvt.s32.f32 %v3094
    %v3102 = vmul.f32 %v3101, %v3099
    %v3103 = vxor.u32 %v3102, 2147483648
    %v3104 = vsel %vm2983, %v3103, %v3102
    %v3105 = vsub.s32 4, %v3081
    %v3106 = vsel %vm2983, %v3105, %v3081
    %v3107 = vsel %vm2982, %v2517, %v3104
    %v3108 = vsel %vm2982, 0, %v3106
    %v3109 = vmul.f32 %v3107, %v3107
    %v3110 = vmul.f32 %v3109, -0.001358992
    %v3111 = vadd.f32 %v3110, 0.041655596
    %v3112 = vmul.f32 %v3109, %v3111
    %v3113 = vadd.f32 %v3112, -0.4999988
    %v3114 = vmul.f32 %v3109, %v3113
    %v3115 = vadd.f32 1.0, %v3114
    %v3116 = vmul.f32 %v3107, %v3107
    %v3117 = vmul.f32 %v3116, -0.00019511016
    %v3118 = vadd.f32 %v3117, 0.008332121
    %v3119 = vmul.f32 %v3116, %v3118
    %v3120 = vadd.f32 %v3119, -0.16666654
    %v3121 = vmul.f32 %v3116, %v3120
    %v3122 = vadd.f32 %v3121, 1.0
    %v3123 = vmul.f32 %v3122, %v3107
    %vm3124 = vweird.f32 %v2517
    %v3125 = vadd.s32 %v3108, 3
    %v3126 = vand.u32 %v3125, 3
    %vm3127 = vcmp.lt.s32.totalorder %v3126, 2
    %vm3128 = vcmp.eq.s32.totalorder %v3126, 0
    %v3129 = vxor.u32 %v3123, 2147483648
    %v3130 = vsel %vm3128, %v3115, %v3129
    %vm3131 = vcmp.eq.s32.totalorder %v3126, 2
    %v3132 = vxor.u32 %v3115, 2147483648
    %v3133 = vsel %vm3131, %v3132, %v3123
    %v3134 = vsel %vm3127, %v3130, %v3133
    %v3135 = vsel %vm3124, nan, %v3134
    %v3136 = vsub.f32 1.0, %v2671
    %v3137 = vsub.f32 1.0, %v2825
    %v3138 = vrcp.pop %v2492
    %v3139 = vrcp.pop %v2493
    %v3140 = vmul.f32 %v3136, %v3138
    %v3141 = vmul.f32 %v3137, %v3139
    %v3142 = vrsqrt.pop %v2492
    %v3143 = vmul.f32 %v3142, %v2492
    %v3144 = vmul.f32 %v3143, %v3142
    %v3145 = vmul.f32 0.5, %v3144
    %v3146 = vsub.f32 1.5, %v3145
    %v3147 = vmul.f32 %v3142, %v3146
    %vm3148 = vweird.f32 %v2492
    %vm3149 = vweird.f32 %v3142
    %vm3150 = vmor %vm3148, %vm3149
    %v3151 = vsel %vm3150, %v3142, %v3147
    %v3152 = vrsqrt.pop %v2493
    %v3153 = vmul.f32 %v3152, %v2493
    %v3154 = vmul.f32 %v3153, %v3152
    %v3155 = vmul.f32 0.5, %v3154
    %v3156 = vsub.f32 1.5, %v3155
    %v3157 = vmul.f32 %v3152, %v3156
    %vm3158 = vweird.f32 %v2493
    %vm3159 = vweird.f32 %v3152
    %vm3160 = vmor %vm3158, %vm3159
    %v3161 = vsel %vm3160, %v3152, %v3157
    %v3162 = vmul.f32 %v2980, %v3151
    %v3163 = vmul.f32 %v3135, %v3161
    %v3164 = vmul.f32 %v3140, %v2476
    %v3165 = vmul.f32 %v3141, %v2477
    %v3166 = vmul.f32 %v3164, %v2476
    %v3167 = vmul.f32 %v3165, %v2477
    %v3168 = vmul.f32 %v3140, %v2478
    %v3169 = vmul.f32 %v3141, %v2479
    %v3170 = vmul.f32 %v3168, %v2478
    %v3171 = vmul.f32 %v3169, %v2479
    %v3172 = vmul.f32 %v3140, %v2480
    %v3173 = vmul.f32 %v3141, %v2481
    %v3174 = vmul.f32 %v3172, %v2480
    %v3175 = vmul.f32 %v3173, %v2481
    %v3176 = vmul.f32 %v3164, %v2478
    %v3177 = vmul.f32 %v3165, %v2479
    %v3178 = vmul.f32 %v3164, %v2480
    %v3179 = vmul.f32 %v3165, %v2481
    %v3180 = vmul.f32 %v3168, %v2480
    %v3181 = vmul.f32 %v3169, %v2481
    %v3182 = vmul.f32 %v3162, %v2476
    %v3183 = vmul.f32 %v3163, %v2477
    %v3184 = vmul.f32 %v3162, %v2478
    %v3185 = vmul.f32 %v3163, %v2479
    %v3186 = vmul.f32 %v3162, %v2480
    %v3187 = vmul.f32 %v3163, %v2481
    %v3188 = vadd.f32 %v2671, %v3166
    %v3189 = vadd.f32 %v2825, %v3167
    %v3190 = vsub.f32 %v3176, %v3186
    %v3191 = vsub.f32 %v3177, %v3187
    %v3192 = vadd.f32 %v3178, %v3184
    %v3193 = vadd.f32 %v3179, %v3185
    %v3194 = vadd.f32 %v3176, %v3186
    %v3195 = vadd.f32 %v3177, %v3187
    %v3196 = vadd.f32 %v2671, %v3170
    %v3197 = vadd.f32 %v2825, %v3171
    %v3198 = vsub.f32 %v3180, %v3182
    %v3199 = vsub.f32 %v3181, %v3183
    %v3200 = vsub.f32 %v3178, %v3184
    %v3201 = vsub.f32 %v3179, %v3185
    %v3202 = vadd.f32 %v3180, %v3182
    %v3203 = vadd.f32 %v3181, %v3183
    %v3204 = vadd.f32 %v2671, %v3174
    %v3205 = vadd.f32 %v2825, %v3175
    %v3208 = vrot.slane %v3188, 4
    %v3209 = vrot.slane %v3189, 4
    %v3212 = vmul.f32 %v3188, %v3208
    %v3213 = vmul.f32 %v3189, %v3209
    %v3216 = vrot.slane %v3194, 4
    %v3217 = vrot.slane %v3195, 4
    %v3220 = vmul.f32 %v3190, %v3216
    %v3221 = vmul.f32 %v3191, %v3217
    %v3222 = vadd.f32 %v3212, %v3220
    %v3223 = vadd.f32 %v3213, %v3221
    %v3226 = vrot.slane %v3200, 4
    %v3227 = vrot.slane %v3201, 4
    %v3230 = vmul.f32 %v3192, %v3226
    %v3231 = vmul.f32 %v3193, %v3227
    %v3232 = vadd.f32 %v3222, %v3230
    %v3233 = vadd.f32 %v3223, %v3231
    %v3236 = vrot.slane %v3190, 4
    %v3237 = vrot.slane %v3191, 4
    %v3240 = vmul.f32 %v3188, %v3236
    %v3241 = vmul.f32 %v3189, %v3237
    %v3244 = vrot.slane %v3196, 4
    %v3245 = vrot.slane %v3197, 4
    %v3248 = vmul.f32 %v3190, %v3244
    %v3249 = vmul.f32 %v3191, %v3245
    %v3250 = vadd.f32 %v3240, %v3248
    %v3251 = vadd.f32 %v3241, %v3249
    %v3254 = vrot.slane %v3202, 4
    %v3255 = vrot.slane %v3203, 4
    %v3258 = vmul.f32 %v3192, %v3254
    %v3259 = vmul.f32 %v3193, %v3255
    %v3260 = vadd.f32 %v3250, %v3258
    %v3261 = vadd.f32 %v3251, %v3259
    %v3264 = vrot.slane %v3192, 4
    %v3265 = vrot.slane %v3193, 4
    %v3268 = vmul.f32 %v3188, %v3264
    %v3269 = vmul.f32 %v3189, %v3265
    %v3272 = vrot.slane %v3198, 4
    %v3273 = vrot.slane %v3199, 4
    %v3276 = vmul.f32 %v3190, %v3272
    %v3277 = vmul.f32 %v3191, %v3273
    %v3278 = vadd.f32 %v3268, %v3276
    %v3279 = vadd.f32 %v3269, %v3277
    %v3282 = vrot.slane %v3204, 4
    %v3283 = vrot.slane %v3205, 4
    %v3286 = vmul.f32 %v3192, %v3282
    %v3287 = vmul.f32 %v3193, %v3283
    %v3288 = vadd.f32 %v3278, %v3286
    %v3289 = vadd.f32 %v3279, %v3287
    %v3290 = vmul.f32 %v3194, %v3208
    %v3291 = vmul.f32 %v3195, %v3209
    %v3292 = vmul.f32 %v3196, %v3216
    %v3293 = vmul.f32 %v3197, %v3217
    %v3294 = vadd.f32 %v3290, %v3292
    %v3295 = vadd.f32 %v3291, %v3293
    %v3296 = vmul.f32 %v3198, %v3226
    %v3297 = vmul.f32 %v3199, %v3227
    %v3298 = vadd.f32 %v3294, %v3296
    %v3299 = vadd.f32 %v3295, %v3297
    %v3300 = vmul.f32 %v3194, %v3236
    %v3301 = vmul.f32 %v3195, %v3237
    %v3302 = vmul.f32 %v3196, %v3244
    %v3303 = vmul.f32 %v3197, %v3245
    %v3304 = vadd.f32 %v3300, %v3302
    %v3305 = vadd.f32 %v3301, %v3303
    %v3306 = vmul.f32 %v3198, %v3254
    %v3307 = vmul.f32 %v3199, %v3255
    %v3308 = vadd.f32 %v3304, %v3306
    %v3309 = vadd.f32 %v3305, %v3307
    %v3310 = vmul.f32 %v3194, %v3264
    %v3311 = vmul.f32 %v3195, %v3265
    %v3312 = vmul.f32 %v3196, %v3272
    %v3313 = vmul.f32 %v3197, %v3273
    %v3314 = vadd.f32 %v3310, %v3312
    %v3315 = vadd.f32 %v3311, %v3313
    %v3316 = vmul.f32 %v3198, %v3282
    %v3317 = vmul.f32 %v3199, %v3283
    %v3318 = vadd.f32 %v3314, %v3316
    %v3319 = vadd.f32 %v3315, %v3317
    %v3320 = vmul.f32 %v3200, %v3208
    %v3321 = vmul.f32 %v3201, %v3209
    %v3322 = vmul.f32 %v3202, %v3216
    %v3323 = vmul.f32 %v3203, %v3217
    %v3324 = vadd.f32 %v3320, %v3322
    %v3325 = vadd.f32 %v3321, %v3323
    %v3326 = vmul.f32 %v3204, %v3226
    %v3327 = vmul.f32 %v3205, %v3227
    %v3328 = vadd.f32 %v3324, %v3326
    %v3329 = vadd.f32 %v3325, %v3327
    %v3330 = vmul.f32 %v3200, %v3236
    %v3331 = vmul.f32 %v3201, %v3237
    %v3332 = vmul.f32 %v3202, %v3244
    %v3333 = vmul.f32 %v3203, %v3245
    %v3334 = vadd.f32 %v3330, %v3332
    %v3335 = vadd.f32 %v3331, %v3333
    %v3336 = vmul.f32 %v3204, %v3254
    %v3337 = vmul.f32 %v3205, %v3255
    %v3338 = vadd.f32 %v3334, %v3336
    %v3339 = vadd.f32 %v3335, %v3337
    %v3340 = vmul.f32 %v3200, %v3264
    %v3341 = vmul.f32 %v3201, %v3265
    %v3342 = vmul.f32 %v3202, %v3272
    %v3343 = vmul.f32 %v3203, %v3273
    %v3344 = vadd.f32 %v3340, %v3342
    %v3345 = vadd.f32 %v3341, %v3343
    %v3346 = vmul.f32 %v3204, %v3282
    %v3347 = vmul.f32 %v3205, %v3283
    %v3348 = vadd.f32 %v3344, %v3346
    %v3349 = vadd.f32 %v3345, %v3347
    %v3352 = vrot.slane %v3232, 2
    %v3353 = vrot.slane %v3233, 2
    %v3356 = vmul.f32 %v3232, %v3352
    %v3357 = vmul.f32 %v3233, %v3353
    %v3360 = vrot.slane %v3298, 2
    %v3361 = vrot.slane %v3299, 2
    %v3364 = vmul.f32 %v3260, %v3360
    %v3365 = vmul.f32 %v3261, %v3361
    %v3366 = vadd.f32 %v3356, %v3364
    %v3367 = vadd.f32 %v3357, %v3365
    %v3370 = vrot.slane %v3328, 2
    %v3371 = vrot.slane %v3329, 2
    %v3374 = vmul.f32 %v3288, %v3370
    %v3375 = vmul.f32 %v3289, %v3371
    %v3376 = vadd.f32 %v3366, %v3374
    %v3377 = vadd.f32 %v3367, %v3375
    %v3380 = vrot.slane %v3260, 2
    %v3381 = vrot.slane %v3261, 2
    %v3384 = vmul.f32 %v3232, %v3380
    %v3385 = vmul.f32 %v3233, %v3381
    %v3388 = vrot.slane %v3308, 2
    %v3389 = vrot.slane %v3309, 2
    %v3392 = vmul.f32 %v3260, %v3388
    %v3393 = vmul.f32 %v3261, %v3389
    %v3394 = vadd.f32 %v3384, %v3392
    %v3395 = vadd.f32 %v3385, %v3393
    %v3398 = vrot.slane %v3338, 2
    %v3399 = vrot.slane %v3339, 2
    %v3402 = vmul.f32 %v3288, %v3398
    %v3403 = vmul.f32 %v3289, %v3399
    %v3404 = vadd.f32 %v3394, %v3402
    %v3405 = vadd.f32 %v3395, %v3403
    %v3408 = vrot.slane %v3288, 2
    %v3409 = vrot.slane %v3289, 2
    %v3412 = vmul.f32 %v3232, %v3408
    %v3413 = vmul.f32 %v3233, %v3409
    %v3416 = vrot.slane %v3318, 2
    %v3417 = vrot.slane %v3319, 2
    %v3420 = vmul.f32 %v3260, %v3416
    %v3421 = vmul.f32 %v3261, %v3417
    %v3422 = vadd.f32 %v3412, %v3420
    %v3423 = vadd.f32 %v3413, %v3421
    %v3426 = vrot.slane %v3348, 2
    %v3427 = vrot.slane %v3349, 2
    %v3430 = vmul.f32 %v3288, %v3426
    %v3431 = vmul.f32 %v3289, %v3427
    %v3432 = vadd.f32 %v3422, %v3430
    %v3433 = vadd.f32 %v3423, %v3431
    %v3434 = vmul.f32 %v3298, %v3352
    %v3435 = vmul.f32 %v3299, %v3353
    %v3436 = vmul.f32 %v3308, %v3360
    %v3437 = vmul.f32 %v3309, %v3361
    %v3438 = vadd.f32 %v3434, %v3436
    %v3439 = vadd.f32 %v3435, %v3437
    %v3440 = vmul.f32 %v3318, %v3370
    %v3441 = vmul.f32 %v3319, %v3371
    %v3442 = vadd.f32 %v3438, %v3440
    %v3443 = vadd.f32 %v3439, %v3441
    %v3444 = vmul.f32 %v3298, %v3380
    %v3445 = vmul.f32 %v3299, %v3381
    %v3446 = vmul.f32 %v3308, %v3388
    %v3447 = vmul.f32 %v3309, %v3389
    %v3448 = vadd.f32 %v3444, %v3446
    %v3449 = vadd.f32 %v3445, %v3447
    %v3450 = vmul.f32 %v3318, %v3398
    %v3451 = vmul.f32 %v3319, %v3399
    %v3452 = vadd.f32 %v3448, %v3450
    %v3453 = vadd.f32 %v3449, %v3451
    %v3454 = vmul.f32 %v3298, %v3408
    %v3455 = vmul.f32 %v3299, %v3409
    %v3456 = vmul.f32 %v3308, %v3416
    %v3457 = vmul.f32 %v3309, %v3417
    %v3458 = vadd.f32 %v3454, %v3456
    %v3459 = vadd.f32 %v3455, %v3457
    %v3460 = vmul.f32 %v3318, %v3426
    %v3461 = vmul.f32 %v3319, %v3427
    %v3462 = vadd.f32 %v3458, %v3460
    %v3463 = vadd.f32 %v3459, %v3461
    %v3464 = vmul.f32 %v3328, %v3352
    %v3465 = vmul.f32 %v3329, %v3353
    %v3466 = vmul.f32 %v3338, %v3360
    %v3467 = vmul.f32 %v3339, %v3361
    %v3468 = vadd.f32 %v3464, %v3466
    %v3469 = vadd.f32 %v3465, %v3467
    %v3470 = vmul.f32 %v3348, %v3370
    %v3471 = vmul.f32 %v3349, %v3371
    %v3472 = vadd.f32 %v3468, %v3470
    %v3473 = vadd.f32 %v3469, %v3471
    %v3474 = vmul.f32 %v3328, %v3380
    %v3475 = vmul.f32 %v3329, %v3381
    %v3476 = vmul.f32 %v3338, %v3388
    %v3477 = vmul.f32 %v3339, %v3389
    %v3478 = vadd.f32 %v3474, %v3476
    %v3479 = vadd.f32 %v3475, %v3477
    %v3480 = vmul.f32 %v3348, %v3398
    %v3481 = vmul.f32 %v3349, %v3399
    %v3482 = vadd.f32 %v3478, %v3480
    %v3483 = vadd.f32 %v3479, %v3481
    %v3484 = vmul.f32 %v3328, %v3408
    %v3485 = vmul.f32 %v3329, %v3409
    %v3486 = vmul.f32 %v3338, %v3416
    %v3487 = vmul.f32 %v3339, %v3417
    %v3488 = vadd.f32 %v3484, %v3486
    %v3489 = vadd.f32 %v3485, %v3487
    %v3490 = vmul.f32 %v3348, %v3426
    %v3491 = vmul.f32 %v3349, %v3427
    %v3492 = vadd.f32 %v3488, %v3490
    %v3493 = vadd.f32 %v3489, %v3491
    %v3496 = vrot.slane %v3376, 1
    %v3497 = vrot.slane %v3377, 1
    %v3500 = vmul.f32 %v3376, %v3496
    %v3501 = vmul.f32 %v3377, %v3497
    %v3504 = vrot.slane %v3442, 1
    %v3505 = vrot.slane %v3443, 1
    %v3508 = vmul.f32 %v3404, %v3504
    %v3509 = vmul.f32 %v3405, %v3505
    %v3510 = vadd.f32 %v3500, %v3508
    %v3511 = vadd.f32 %v3501, %v3509
    %v3514 = vrot.slane %v3472, 1
    %v3515 = vrot.slane %v3473, 1
    %v3518 = vmul.f32 %v3432, %v3514
    %v3519 = vmul.f32 %v3433, %v3515
    %v3520 = vadd.f32 %v3510, %v3518
    %v3521 = vadd.f32 %v3511, %v3519
    %v3524 = vrot.slane %v3404, 1
    %v3525 = vrot.slane %v3405, 1
    %v3528 = vmul.f32 %v3376, %v3524
    %v3529 = vmul.f32 %v3377, %v3525
    %v3532 = vrot.slane %v3452, 1
    %v3533 = vrot.slane %v3453, 1
    %v3536 = vmul.f32 %v3404, %v3532
    %v3537 = vmul.f32 %v3405, %v3533
    %v3538 = vadd.f32 %v3528, %v3536
    %v3539 = vadd.f32 %v3529, %v3537
    %v3542 = vrot.slane %v3482, 1
    %v3543 = vrot.slane %v3483, 1
    %v3546 = vmul.f32 %v3432, %v3542
    %v3547 = vmul.f32 %v3433, %v3543
    %v3548 = vadd.f32 %v3538, %v3546
    %v3549 = vadd.f32 %v3539, %v3547
    %v3552 = vrot.slane %v3432, 1
    %v3553 = vrot.slane %v3433, 1
    %v3556 = vmul.f32 %v3376, %v3552
    %v3557 = vmul.f32 %v3377, %v3553
    %v3560 = vrot.slane %v3462, 1
    %v3561 = vrot.slane %v3463, 1
    %v3564 = vmul.f32 %v3404, %v3560
    %v3565 = vmul.f32 %v3405, %v3561
    %v3566 = vadd.f32 %v3556, %v3564
    %v3567 = vadd.f32 %v3557, %v3565
    %v3570 = vrot.slane %v3492, 1
    %v3571 = vrot.slane %v3493, 1
    %v3574 = vmul.f32 %v3432, %v3570
    %v3575 = vmul.f32 %v3433, %v3571
    %v3576 = vadd.f32 %v3566, %v3574
    %v3577 = vadd.f32 %v3567, %v3575
    %v3578 = vmul.f32 %v3442, %v3496
    %v3579 = vmul.f32 %v3443, %v3497
    %v3580 = vmul.f32 %v3452, %v3504
    %v3581 = vmul.f32 %v3453, %v3505
    %v3582 = vadd.f32 %v3578, %v3580
    %v3583 = vadd.f32 %v3579, %v3581
    %v3584 = vmul.f32 %v3462, %v3514
    %v3585 = vmul.f32 %v3463, %v3515
    %v3586 = vadd.f32 %v3582, %v3584
    %v3587 = vadd.f32 %v3583, %v3585
    %v3588 = vmul.f32 %v3442, %v3524
    %v3589 = vmul.f32 %v3443, %v3525
    %v3590 = vmul.f32 %v3452, %v3532
    %v3591 = vmul.f32 %v3453, %v3533
    %v3592 = vadd.f32 %v3588, %v3590
    %v3593 = vadd.f32 %v3589, %v3591
    %v3594 = vmul.f32 %v3462, %v3542
    %v3595 = vmul.f32 %v3463, %v3543
    %v3596 = vadd.f32 %v3592, %v3594
    %v3597 = vadd.f32 %v3593, %v3595
    %v3598 = vmul.f32 %v3442, %v3552
    %v3599 = vmul.f32 %v3443, %v3553
    %v3600 = vmul.f32 %v3452, %v3560
    %v3601 = vmul.f32 %v3453, %v3561
    %v3602 = vadd.f32 %v3598, %v3600
    %v3603 = vadd.f32 %v3599, %v3601
    %v3604 = vmul.f32 %v3462, %v3570
    %v3605 = vmul.f32 %v3463, %v3571
    %v3606 = vadd.f32 %v3602, %v3604
    %v3607 = vadd.f32 %v3603, %v3605
    %v3608 = vmul.f32 %v3472, %v3496
    %v3609 = vmul.f32 %v3473, %v3497
    %v3610 = vmul.f32 %v3482, %v3504
    %v3611 = vmul.f32 %v3483, %v3505
    %v3612 = vadd.f32 %v3608, %v3610
    %v3613 = vadd.f32 %v3609, %v3611
    %v3614 = vmul.f32 %v3492, %v3514
    %v3615 = vmul.f32 %v3493, %v3515
    %v3616 = vadd.f32 %v3612, %v3614
    %v3617 = vadd.f32 %v3613, %v3615
    %v3618 = vmul.f32 %v3472, %v3524
    %v3619 = vmul.f32 %v3473, %v3525
    %v3620 = vmul.f32 %v3482, %v3532
    %v3621 = vmul.f32 %v3483, %v3533
    %v3622 = vadd.f32 %v3618, %v3620
    %v3623 = vadd.f32 %v3619, %v3621
    %v3624 = vmul.f32 %v3492, %v3542
    %v3625 = vmul.f32 %v3493, %v3543
    %v3626 = vadd.f32 %v3622, %v3624
    %v3627 = vadd.f32 %v3623, %v3625
    %v3628 = vmul.f32 %v3472, %v3552
    %v3629 = vmul.f32 %v3473, %v3553
    %v3630 = vmul.f32 %v3482, %v3560
    %v3631 = vmul.f32 %v3483, %v3561
    %v3632 = vadd.f32 %v3628, %v3630
    %v3633 = vadd.f32 %v3629, %v3631
    %v3634 = vmul.f32 %v3492, %v3570
    %v3635 = vmul.f32 %v3493, %v3571
    %v3636 = vadd.f32 %v3632, %v3634
    %v3637 = vadd.f32 %v3633, %v3635
    %v3638 = vmul.f32 %v2388, %v3520
    %v3639 = vmul.f32 %v2389, %v3521
    %v3640 = vmul.f32 %v2398, %v3586
    %v3641 = vmul.f32 %v2399, %v3587
    %v3642 = vadd.f32 %v3638, %v3640
    %v3643 = vadd.f32 %v3639, %v3641
    %v3644 = vmul.f32 %v2408, %v3616
    %v3645 = vmul.f32 %v2409, %v3617
    %v3646 = vadd.f32 %v3642, %v3644
    %v3647 = vadd.f32 %v3643, %v3645
    %v3648 = vmul.f32 %v2388, %v3548
    %v3649 = vmul.f32 %v2389, %v3549
    %v3650 = vmul.f32 %v2398, %v3596
    %v3651 = vmul.f32 %v2399, %v3597
    %v3652 = vadd.f32 %v3648, %v3650
    %v3653 = vadd.f32 %v3649, %v3651
    %v3654 = vmul.f32 %v2408, %v3626
    %v3655 = vmul.f32 %v2409, %v3627
    %v3656 = vadd.f32 %v3652, %v3654
    %v3657 = vadd.f32 %v3653, %v3655
    %v3658 = vmul.f32 %v2388, %v3576
    %v3659 = vmul.f32 %v2389, %v3577
    %v3660 = vmul.f32 %v2398, %v3606
    %v3661 = vmul.f32 %v2399, %v3607
    %v3662 = vadd.f32 %v3658, %v3660
    %v3663 = vadd.f32 %v3659, %v3661
    %v3664 = vmul.f32 %v2408, %v3636
    %v3665 = vmul.f32 %v2409, %v3637
    %v3666 = vadd.f32 %v3662, %v3664
    %v3667 = vadd.f32 %v3663, %v3665
    %v3668 = vmul.f32 %v2418, %v3520
    %v3669 = vmul.f32 %v2419, %v3521
    %v3670 = vmul.f32 %v2428, %v3586
    %v3671 = vmul.f32 %v2429, %v3587
    %v3672 = vadd.f32 %v3668, %v3670
    %v3673 = vadd.f32 %v3669, %v3671
    %v3674 = vmul.f32 %v2438, %v3616
    %v3675 = vmul.f32 %v2439, %v3617
    %v3676 = vadd.f32 %v3672, %v3674
    %v3677 = vadd.f32 %v3673, %v3675
    %v3678 = vmul.f32 %v2418, %v3548
    %v3679 = vmul.f32 %v2419, %v3549
    %v3680 = vmul.f32 %v2428, %v3596
    %v3681 = vmul.f32 %v2429, %v3597
    %v3682 = vadd.f32 %v3678, %v3680
    %v3683 = vadd.f32 %v3679, %v3681
    %v3684 = vmul.f32 %v2438, %v3626
    %v3685 = vmul.f32 %v2439, %v3627
    %v3686 = vadd.f32 %v3682, %v3684
    %v3687 = vadd.f32 %v3683, %v3685
    %v3688 = vmul.f32 %v2418, %v3576
    %v3689 = vmul.f32 %v2419, %v3577
    %v3690 = vmul.f32 %v2428, %v3606
    %v3691 = vmul.f32 %v2429, %v3607
    %v3692 = vadd.f32 %v3688, %v3690
    %v3693 = vadd.f32 %v3689, %v3691
    %v3694 = vmul.f32 %v2438, %v3636
    %v3695 = vmul.f32 %v2439, %v3637
    %v3696 = vadd.f32 %v3692, %v3694
    %v3697 = vadd.f32 %v3693, %v3695
    %v3698 = vmul.f32 %v2448, %v3520
    %v3699 = vmul.f32 %v2449, %v3521
    %v3700 = vmul.f32 %v2458, %v3586
    %v3701 = vmul.f32 %v2459, %v3587
    %v3702 = vadd.f32 %v3698, %v3700
    %v3703 = vadd.f32 %v3699, %v3701
    %v3704 = vmul.f32 %v2468, %v3616
    %v3705 = vmul.f32 %v2469, %v3617
    %v3706 = vadd.f32 %v3702, %v3704
    %v3707 = vadd.f32 %v3703, %v3705
    %v3708 = vmul.f32 %v2448, %v3548
    %v3709 = vmul.f32 %v2449, %v3549
    %v3710 = vmul.f32 %v2458, %v3596
    %v3711 = vmul.f32 %v2459, %v3597
    %v3712 = vadd.f32 %v3708, %v3710
    %v3713 = vadd.f32 %v3709, %v3711
    %v3714 = vmul.f32 %v2468, %v3626
    %v3715 = vmul.f32 %v2469, %v3627
    %v3716 = vadd.f32 %v3712, %v3714
    %v3717 = vadd.f32 %v3713, %v3715
    %v3718 = vmul.f32 %v2448, %v3576
    %v3719 = vmul.f32 %v2449, %v3577
    %v3720 = vmul.f32 %v2458, %v3606
    %v3721 = vmul.f32 %v2459, %v3607
    %v3722 = vadd.f32 %v3718, %v3720
    %v3723 = vadd.f32 %v3719, %v3721
    %v3724 = vmul.f32 %v2468, %v3636
    %v3725 = vmul.f32 %v2469, %v3637
    %v3726 = vadd.f32 %v3722, %v3724
    %v3727 = vadd.f32 %v3723, %v3725
    %v3728 = vld [vmem:[#allocation2 + $0x30] sm:$0xff]
    %v3729 = vld [vmem:[#allocation2 + $0x38] sm:$0xff]
    %v3730 = vld [vmem:[#allocation2 + $0x70] sm:$0xff]
    %v3731 = vld [vmem:[#allocation2 + $0x78] sm:$0xff]
    %v3732 = vld [vmem:[#allocation2 + $0xb0] sm:$0xff]
    %v3733 = vld [vmem:[#allocation2 + $0xb8] sm:$0xff]
    %v3734 = vmul.f32 %v3728, 0.005
    %v3735 = vmul.f32 %v3729, 0.005
    %v3736 = vmul.f32 %v3730, 0.005
    %v3737 = vmul.f32 %v3731, 0.005
    %v3738 = vmul.f32 %v3732, 0.005
    %v3739 = vmul.f32 %v3733, 0.005
    %v3740 = vmul.f32 %v3734, %v3734
    %v3741 = vmul.f32 %v3735, %v3735
    %v3742 = vmul.f32 %v3736, %v3736
    %v3743 = vmul.f32 %v3737, %v3737
    %v3744 = vadd.f32 %v3740, %v3742
    %v3745 = vadd.f32 %v3741, %v3743
    %v3746 = vmul.f32 %v3738, %v3738
    %v3747 = vmul.f32 %v3739, %v3739
    %v3748 = vadd.f32 %v3744, %v3746
    %v3749 = vadd.f32 %v3745, %v3747
    %v3750 = vmax.f32 %v3748, 1e-12
    %v3751 = vmax.f32 %v3749, 1e-12
    %v3752 = vrsqrt.pop %v3750
    %v3753 = vmul.f32 %v3752, %v3750
    %v3754 = vmul.f32 %v3753, %v3752
    %v3755 = vmul.f32 0.5, %v3754
    %v3756 = vsub.f32 1.5, %v3755
    %v3757 = vmul.f32 %v3752, %v3756
    %v3758 = vmul.f32 %v3750, %v3757
    %vm3759 = vcmp.eq.f32.partialorder %v3750, inf
    %v3760 = vsel %vm3759, %v3750, %v3758
    %vm3761 = vcmp.eq.f32.partialorder %v3750, 0.0
    %v3762 = vand.u32 %v3750, 2147483648
    %v3763 = vsel %vm3761, %v3762, %v3760
    %v3764 = vrsqrt.pop %v3751
    %v3765 = vmul.f32 %v3764, %v3751
    %v3766 = vmul.f32 %v3765, %v3764
    %v3767 = vmul.f32 0.5, %v3766
    %v3768 = vsub.f32 1.5, %v3767
    %v3769 = vmul.f32 %v3764, %v3768
    %v3770 = vmul.f32 %v3751, %v3769
    %vm3771 = vcmp.eq.f32.partialorder %v3751, inf
    %v3772 = vsel %vm3771, %v3751, %v3770
    %vm3773 = vcmp.eq.f32.partialorder %v3751, 0.0
    %v3774 = vand.u32 %v3751, 2147483648
    %v3775 = vsel %vm3773, %v3774, %v3772
    %v3776 = vand.u32 2147483647, %v3763
    %vm3777 = vcmp.le.f32.partialorder %v3776, 0.7853982
    %vm3778 = vcmp.lt.s32.totalorder %v3763, 0
    %v3779 = vand.u32 %v3763, 2139095040
    %v3780 = vshrl.u32 %v3779, 23
    %v3781 = vsub.s32 %v3780, 127
    %v3782 = vand.u32 2147483647, %v3763
    %v3783 = vand.u32 %v3782, 8388607
    %v3784 = vor.u32 %v3783, 8388608
    %v3785 = vsub.s32 0, %v3784
    %v3786 = vadd.s32 %v3781, 1
    %vm3787 = vcmp.gt.s32.totalorder %v3786, 0
    %v3788 = vsel %vm3787, %v3786, 0
    %v3789 = vshrl.u32 %v3788, 5
    %v3790 = vand.u32 %v3788, 31
    %v3791 = vsub.s32 32, %v3790
    %v3792 = vshrl.u32 683565275, %v3791
    %v3793 = vshll.u32 683565275, %v3790
    %v3794 = vshrl.u32 2475754826, %v3791
    %v3795 = vor.u32 %v3793, %v3794
    %v3796 = vshll.u32 2475754826, %v3790
    %v3797 = vshrl.u32 2131351028, %v3791
    %v3798 = vor.u32 %v3796, %v3797
    %v3799 = vshll.u32 2131351028, %v3790
    %v3800 = vshrl.u32 2102212464, %v3791
    %v3801 = vor.u32 %v3799, %v3800
    %v3802 = vshll.u32 2102212464, %v3790
    %v3803 = vshrl.u32 920167782, %v3791
    %v3804 = vor.u32 %v3802, %v3803
    %v3805 = vshll.u32 920167782, %v3790
    %v3806 = vshrl.u32 1326507024, %v3791
    %v3807 = vor.u32 %v3805, %v3806
    %vm3808 = vcmp.lt.s32.totalorder %v3789, 1
    %vm3809 = vcmp.lt.s32.totalorder %v3789, 2
    %vm3810 = vcmp.lt.s32.totalorder %v3789, 3
    %vm3811 = vcmp.lt.s32.totalorder %v3789, 4
    %v3812 = vsel %vm3808, %v3792, %v3795
    %v3813 = vsel %vm3811, %v3801, 2102212464
    %v3814 = vsel %vm3810, %v3798, %v3813
    %v3815 = vsel %vm3809, %v3812, %v3814
    %v3816 = vsel %vm3808, %v3795, %v3798
    %v3817 = vsel %vm3811, %v3804, 920167782
    %v3818 = vsel %vm3810, %v3801, %v3817
    %v3819 = vsel %vm3809, %v3816, %v3818
    %v3820 = vsel %vm3808, %v3798, %v3801
    %v3821 = vsel %vm3811, %v3807, 1326507024
    %v3822 = vsel %vm3810, %v3804, %v3821
    %v3823 = vsel %vm3809, %v3820, %v3822
    %v3824 = vshll.u32 %v3784, 8
    %v3825 = vand.u32 %v3824, 65535
    %v3826 = vshrl.u32 %v3824, 16
    %v3827 = vand.u32 %v3823, 65535
    %v3828 = vshrl.u32 %v3823, 16
    %v3829 = vmul.u32 %v3825, %v3827
    %v3830 = vmul.u32 %v3825, %v3828
    %v3831 = vmul.u32 %v3826, %v3827
    %v3832 = vmul.u32 %v3826, %v3828
    %v3833 = vshll.u32 %v3830, 16
    %v3834 = vshrl.u32 %v3830, 16
    %v3835 = vshll.u32 %v3831, 16
    %v3836 = vshrl.u32 %v3831, 16
    %vm3837 = vc.u32 %v3829, %v3833
    %v3838 = vsel %vm3837, 1, 0
    %v3839 = vadd.s32 %v3829, %v3833
    %v3840 = vadd.s32 %v3832, %v3838
    %vm3841 = vc.u32 %v3839, %v3835
    %v3842 = vsel %vm3841, 1, 0
    %v3843 = vadd.s32 %v3839, %v3835
    %v3844 = vadd.s32 %v3840, %v3842
    %v3845 = vadd.s32 %v3844, %v3834
    %v3846 = vadd.s32 %v3845, %v3836
    %v3847 = vand.u32 %v3824, 65535
    %v3848 = vshrl.u32 %v3824, 16
    %v3849 = vand.u32 %v3819, 65535
    %v3850 = vshrl.u32 %v3819, 16
    %v3851 = vmul.u32 %v3847, %v3849
    %v3852 = vmul.u32 %v3847, %v3850
    %v3853 = vmul.u32 %v3848, %v3849
    %v3854 = vmul.u32 %v3848, %v3850
    %v3855 = vshll.u32 %v3852, 16
    %v3856 = vshrl.u32 %v3852, 16
    %v3857 = vshll.u32 %v3853, 16
    %v3858 = vshrl.u32 %v3853, 16
    %vm3859 = vc.u32 %v3851, %v3855
    %v3860 = vsel %vm3859, 1, 0
    %v3861 = vadd.s32 %v3851, %v3855
    %v3862 = vadd.s32 %v3854, %v3860
    %vm3863 = vc.u32 %v3861, %v3857
    %v3864 = vsel %vm3863, 1, 0
    %v3865 = vadd.s32 %v3861, %v3857
    %v3866 = vadd.s32 %v3862, %v3864
    %v3867 = vadd.s32 %v3866, %v3856
    %v3868 = vadd.s32 %v3867, %v3858
    %v3869 = vmul.u32 %v3824, %v3815
    %v3870 = vadd.s32 %v3846, %v3865
    %vm3871 = vc.u32 %v3846, %v3865
    %v3872 = vadd.s32 %v3868, 1
    %v3873 = vsel %vm3871, %v3872, %v3868
    %v3874 = vadd.s32 %v3869, %v3873
    %v3875 = vadd.s32 %v3874, 536870912
    %v3876 = vshrl.u32 %v3875, 30
    %v3877 = vshll.u32 %v3876, 30
    %v3878 = vsub.s32 %v3874, %v3877
    %vm3879 = vcmp.lt.s32.totalorder %v3878, 0
    %v3880 = vsub.s32 0, %v3878
    %v3881 = vsel %vm3879, %v3880, %v3878
    %v3882 = vclz %v3881
    %v3883 = vsub.s32 %v3882, 2
    %vm3884 = vcmp.gt.s32.totalorder 0, %v3883
    %v3885 = vsel %vm3884, 0, %v3883
    %v3886 = vsub.s32 32, %v3885
    %v3887 = vshll.u32 %v3878, %v3885
    %v3888 = vshrl.u32 %v3870, %v3886
    %v3889 = vor.u32 %v3887, %v3888
    %v3890 = vsub.s32 4294967266, %v3885
    %v3891 = vadd.s32 %v3890, 127
    %v3892 = vshll.u32 %v3891, 23
    %v3893 = vor.u32 4788187, %v3892
    %v3894 = vand.u32 2147483647, %v3893
    %v3896 = vcvt.s32.f32 %v3889
    %v3897 = vmul.f32 %v3896, %v3894
    %v3898 = vxor.u32 %v3897, 2147483648
    %v3899 = vsel %vm3778, %v3898, %v3897
    %v3900 = vsub.s32 4, %v3876
    %v3901 = vsel %vm3778, %v3900, %v3876
    %v3902 = vsel %vm3777, %v3763, %v3899
    %v3903 = vsel %vm3777, 0, %v3901
    %v3904 = vmul.f32 %v3902, %v3902
    %v3905 = vmul.f32 %v3904, -0.001358992
    %v3906 = vadd.f32 %v3905, 0.041655596
    %v3907 = vmul.f32 %v3904, %v3906
    %v3908 = vadd.f32 %v3907, -0.4999988
    %v3909 = vmul.f32 %v3904, %v3908
    %v3910 = vadd.f32 1.0, %v3909
    %v3911 = vmul.f32 %v3902, %v3902
    %v3912 = vmul.f32 %v3911, -0.00019511016
    %v3913 = vadd.f32 %v3912, 0.008332121
    %v3914 = vmul.f32 %v3911, %v3913
    %v3915 = vadd.f32 %v3914, -0.16666654
    %v3916 = vmul.f32 %v3911, %v3915
    %v3917 = vadd.f32 %v3916, 1.0
    %v3918 = vmul.f32 %v3917, %v3902
    %vm3919 = vweird.f32 %v3763
    %v3920 = vand.u32 %v3903, 3
    %vm3921 = vcmp.lt.s32.totalorder %v3920, 2
    %vm3922 = vcmp.eq.s32.totalorder %v3920, 0
    %v3923 = vxor.u32 %v3918, 2147483648
    %v3924 = vsel %vm3922, %v3910, %v3923
    %vm3925 = vcmp.eq.s32.totalorder %v3920, 2
    %v3926 = vxor.u32 %v3910, 2147483648
    %v3927 = vsel %vm3925, %v3926, %v3918
    %v3928 = vsel %vm3921, %v3924, %v3927
    %v3929 = vsel %vm3919, nan, %v3928
    %v3930 = vand.u32 2147483647, %v3775
    %vm3931 = vcmp.le.f32.partialorder %v3930, 0.7853982
    %vm3932 = vcmp.lt.s32.totalorder %v3775, 0
    %v3933 = vand.u32 %v3775, 2139095040
    %v3934 = vshrl.u32 %v3933, 23
    %v3935 = vsub.s32 %v3934, 127
    %v3936 = vand.u32 2147483647, %v3775
    %v3937 = vand.u32 %v3936, 8388607
    %v3938 = vor.u32 %v3937, 8388608
    %v3939 = vsub.s32 0, %v3938
    %v3940 = vadd.s32 %v3935, 1
    %vm3941 = vcmp.gt.s32.totalorder %v3940, 0
    %v3942 = vsel %vm3941, %v3940, 0
    %v3943 = vshrl.u32 %v3942, 5
    %v3944 = vand.u32 %v3942, 31
    %v3945 = vsub.s32 32, %v3944
    %v3946 = vshrl.u32 683565275, %v3945
    %v3947 = vshll.u32 683565275, %v3944
    %v3948 = vshrl.u32 2475754826, %v3945
    %v3949 = vor.u32 %v3947, %v3948
    %v3950 = vshll.u32 2475754826, %v3944
    %v3951 = vshrl.u32 2131351028, %v3945
    %v3952 = vor.u32 %v3950, %v3951
    %v3953 = vshll.u32 2131351028, %v3944
    %v3954 = vshrl.u32 2102212464, %v3945
    %v3955 = vor.u32 %v3953, %v3954
    %v3956 = vshll.u32 2102212464, %v3944
    %v3957 = vshrl.u32 920167782, %v3945
    %v3958 = vor.u32 %v3956, %v3957
    %v3959 = vshll.u32 920167782, %v3944
    %v3960 = vshrl.u32 1326507024, %v3945
    %v3961 = vor.u32 %v3959, %v3960
    %vm3962 = vcmp.lt.s32.totalorder %v3943, 1
    %vm3963 = vcmp.lt.s32.totalorder %v3943, 2
    %vm3964 = vcmp.lt.s32.totalorder %v3943, 3
    %vm3965 = vcmp.lt.s32.totalorder %v3943, 4
    %v3966 = vsel %vm3962, %v3946, %v3949
    %v3967 = vsel %vm3965, %v3955, 2102212464
    %v3968 = vsel %vm3964, %v3952, %v3967
    %v3969 = vsel %vm3963, %v3966, %v3968
    %v3970 = vsel %vm3962, %v3949, %v3952
    %v3971 = vsel %vm3965, %v3958, 920167782
    %v3972 = vsel %vm3964, %v3955, %v3971
    %v3973 = vsel %vm3963, %v3970, %v3972
    %v3974 = vsel %vm3962, %v3952, %v3955
    %v3975 = vsel %vm3965, %v3961, 1326507024
    %v3976 = vsel %vm3964, %v3958, %v3975
    %v3977 = vsel %vm3963, %v3974, %v3976
    %v3978 = vshll.u32 %v3938, 8
    %v3979 = vand.u32 %v3978, 65535
    %v3980 = vshrl.u32 %v3978, 16
    %v3981 = vand.u32 %v3977, 65535
    %v3982 = vshrl.u32 %v3977, 16
    %v3983 = vmul.u32 %v3979, %v3981
    %v3984 = vmul.u32 %v3979, %v3982
    %v3985 = vmul.u32 %v3980, %v3981
    %v3986 = vmul.u32 %v3980, %v3982
    %v3987 = vshll.u32 %v3984, 16
    %v3988 = vshrl.u32 %v3984, 16
    %v3989 = vshll.u32 %v3985, 16
    %v3990 = vshrl.u32 %v3985, 16
    %vm3991 = vc.u32 %v3983, %v3987
    %v3992 = vsel %vm3991, 1, 0
    %v3993 = vadd.s32 %v3983, %v3987
    %v3994 = vadd.s32 %v3986, %v3992
    %vm3995 = vc.u32 %v3993, %v3989
    %v3996 = vsel %vm3995, 1, 0
    %v3997 = vadd.s32 %v3993, %v3989
    %v3998 = vadd.s32 %v3994, %v3996
    %v3999 = vadd.s32 %v3998, %v3988
    %v4000 = vadd.s32 %v3999, %v3990
    %v4001 = vand.u32 %v3978, 65535
    %v4002 = vshrl.u32 %v3978, 16
    %v4003 = vand.u32 %v3973, 65535
    %v4004 = vshrl.u32 %v3973, 16
    %v4005 = vmul.u32 %v4001, %v4003
    %v4006 = vmul.u32 %v4001, %v4004
    %v4007 = vmul.u32 %v4002, %v4003
    %v4008 = vmul.u32 %v4002, %v4004
    %v4009 = vshll.u32 %v4006, 16
    %v4010 = vshrl.u32 %v4006, 16
    %v4011 = vshll.u32 %v4007, 16
    %v4012 = vshrl.u32 %v4007, 16
    %vm4013 = vc.u32 %v4005, %v4009
    %v4014 = vsel %vm4013, 1, 0
    %v4015 = vadd.s32 %v4005, %v4009
    %v4016 = vadd.s32 %v4008, %v4014
    %vm4017 = vc.u32 %v4015, %v4011
    %v4018 = vsel %vm4017, 1, 0
    %v4019 = vadd.s32 %v4015, %v4011
    %v4020 = vadd.s32 %v4016, %v4018
    %v4021 = vadd.s32 %v4020, %v4010
    %v4022 = vadd.s32 %v4021, %v4012
    %v4023 = vmul.u32 %v3978, %v3969
    %v4024 = vadd.s32 %v4000, %v4019
    %vm4025 = vc.u32 %v4000, %v4019
    %v4026 = vadd.s32 %v4022, 1
    %v4027 = vsel %vm4025, %v4026, %v4022
    %v4028 = vadd.s32 %v4023, %v4027
    %v4029 = vadd.s32 %v4028, 536870912
    %v4030 = vshrl.u32 %v4029, 30
    %v4031 = vshll.u32 %v4030, 30
    %v4032 = vsub.s32 %v4028, %v4031
    %vm4033 = vcmp.lt.s32.totalorder %v4032, 0
    %v4034 = vsub.s32 0, %v4032
    %v4035 = vsel %vm4033, %v4034, %v4032
    %v4036 = vclz %v4035
    %v4037 = vsub.s32 %v4036, 2
    %vm4038 = vcmp.gt.s32.totalorder 0, %v4037
    %v4039 = vsel %vm4038, 0, %v4037
    %v4040 = vsub.s32 32, %v4039
    %v4041 = vshll.u32 %v4032, %v4039
    %v4042 = vshrl.u32 %v4024, %v4040
    %v4043 = vor.u32 %v4041, %v4042
    %v4044 = vsub.s32 4294967266, %v4039
    %v4045 = vadd.s32 %v4044, 127
    %v4046 = vshll.u32 %v4045, 23
    %v4047 = vor.u32 4788187, %v4046
    %v4048 = vand.u32 2147483647, %v4047
    %v4050 = vcvt.s32.f32 %v4043
    %v4051 = vmul.f32 %v4050, %v4048
    %v4052 = vxor.u32 %v4051, 2147483648
    %v4053 = vsel %vm3932, %v4052, %v4051
    %v4054 = vsub.s32 4, %v4030
    %v4055 = vsel %vm3932, %v4054, %v4030
    %v4056 = vsel %vm3931, %v3775, %v4053
    %v4057 = vsel %vm3931, 0, %v4055
    %v4058 = vmul.f32 %v4056, %v4056
    %v4059 = vmul.f32 %v4058, -0.001358992
    %v4060 = vadd.f32 %v4059, 0.041655596
    %v4061 = vmul.f32 %v4058, %v4060
    %v4062 = vadd.f32 %v4061, -0.4999988
    %v4063 = vmul.f32 %v4058, %v4062
    %v4064 = vadd.f32 1.0, %v4063
    %v4065 = vmul.f32 %v4056, %v4056
    %v4066 = vmul.f32 %v4065, -0.00019511016
    %v4067 = vadd.f32 %v4066, 0.008332121
    %v4068 = vmul.f32 %v4065, %v4067
    %v4069 = vadd.f32 %v4068, -0.16666654
    %v4070 = vmul.f32 %v4065, %v4069
    %v4071 = vadd.f32 %v4070, 1.0
    %v4072 = vmul.f32 %v4071, %v4056
    %vm4073 = vweird.f32 %v3775
    %v4074 = vand.u32 %v4057, 3
    %vm4075 = vcmp.lt.s32.totalorder %v4074, 2
    %vm4076 = vcmp.eq.s32.totalorder %v4074, 0
    %v4077 = vxor.u32 %v4072, 2147483648
    %v4078 = vsel %vm4076, %v4064, %v4077
    %vm4079 = vcmp.eq.s32.totalorder %v4074, 2
    %v4080 = vxor.u32 %v4064, 2147483648
    %v4081 = vsel %vm4079, %v4080, %v4072
    %v4082 = vsel %vm4075, %v4078, %v4081
    %v4083 = vsel %vm4073, nan, %v4082
    %v4084 = vand.u32 2147483647, %v3763
    %vm4085 = vcmp.le.f32.partialorder %v4084, 0.7853982
    %vm4086 = vcmp.lt.s32.totalorder %v3763, 0
    %v4087 = vand.u32 %v3763, 2139095040
    %v4088 = vshrl.u32 %v4087, 23
    %v4089 = vsub.s32 %v4088, 127
    %v4090 = vand.u32 2147483647, %v3763
    %v4091 = vand.u32 %v4090, 8388607
    %v4092 = vor.u32 %v4091, 8388608
    %v4093 = vsub.s32 0, %v4092
    %v4094 = vadd.s32 %v4089, 1
    %vm4095 = vcmp.gt.s32.totalorder %v4094, 0
    %v4096 = vsel %vm4095, %v4094, 0
    %v4097 = vshrl.u32 %v4096, 5
    %v4098 = vand.u32 %v4096, 31
    %v4099 = vsub.s32 32, %v4098
    %v4100 = vshrl.u32 683565275, %v4099
    %v4101 = vshll.u32 683565275, %v4098
    %v4102 = vshrl.u32 2475754826, %v4099
    %v4103 = vor.u32 %v4101, %v4102
    %v4104 = vshll.u32 2475754826, %v4098
    %v4105 = vshrl.u32 2131351028, %v4099
    %v4106 = vor.u32 %v4104, %v4105
    %v4107 = vshll.u32 2131351028, %v4098
    %v4108 = vshrl.u32 2102212464, %v4099
    %v4109 = vor.u32 %v4107, %v4108
    %v4110 = vshll.u32 2102212464, %v4098
    %v4111 = vshrl.u32 920167782, %v4099
    %v4112 = vor.u32 %v4110, %v4111
    %v4113 = vshll.u32 920167782, %v4098
    %v4114 = vshrl.u32 1326507024, %v4099
    %v4115 = vor.u32 %v4113, %v4114
    %vm4116 = vcmp.lt.s32.totalorder %v4097, 1
    %vm4117 = vcmp.lt.s32.totalorder %v4097, 2
    %vm4118 = vcmp.lt.s32.totalorder %v4097, 3
    %vm4119 = vcmp.lt.s32.totalorder %v4097, 4
    %v4120 = vsel %vm4116, %v4100, %v4103
    %v4121 = vsel %vm4119, %v4109, 2102212464
    %v4122 = vsel %vm4118, %v4106, %v4121
    %v4123 = vsel %vm4117, %v4120, %v4122
    %v4124 = vsel %vm4116, %v4103, %v4106
    %v4125 = vsel %vm4119, %v4112, 920167782
    %v4126 = vsel %vm4118, %v4109, %v4125
    %v4127 = vsel %vm4117, %v4124, %v4126
    %v4128 = vsel %vm4116, %v4106, %v4109
    %v4129 = vsel %vm4119, %v4115, 1326507024
    %v4130 = vsel %vm4118, %v4112, %v4129
    %v4131 = vsel %vm4117, %v4128, %v4130
    %v4132 = vshll.u32 %v4092, 8
    %v4133 = vand.u32 %v4132, 65535
    %v4134 = vshrl.u32 %v4132, 16
    %v4135 = vand.u32 %v4131, 65535
    %v4136 = vshrl.u32 %v4131, 16
    %v4137 = vmul.u32 %v4133, %v4135
    %v4138 = vmul.u32 %v4133, %v4136
    %v4139 = vmul.u32 %v4134, %v4135
    %v4140 = vmul.u32 %v4134, %v4136
    %v4141 = vshll.u32 %v4138, 16
    %v4142 = vshrl.u32 %v4138, 16
    %v4143 = vshll.u32 %v4139, 16
    %v4144 = vshrl.u32 %v4139, 16
    %vm4145 = vc.u32 %v4137, %v4141
    %v4146 = vsel %vm4145, 1, 0
    %v4147 = vadd.s32 %v4137, %v4141
    %v4148 = vadd.s32 %v4140, %v4146
    %vm4149 = vc.u32 %v4147, %v4143
    %v4150 = vsel %vm4149, 1, 0
    %v4151 = vadd.s32 %v4147, %v4143
    %v4152 = vadd.s32 %v4148, %v4150
    %v4153 = vadd.s32 %v4152, %v4142
    %v4154 = vadd.s32 %v4153, %v4144
    %v4155 = vand.u32 %v4132, 65535
    %v4156 = vshrl.u32 %v4132, 16
    %v4157 = vand.u32 %v4127, 65535
    %v4158 = vshrl.u32 %v4127, 16
    %v4159 = vmul.u32 %v4155, %v4157
    %v4160 = vmul.u32 %v4155, %v4158
    %v4161 = vmul.u32 %v4156, %v4157
    %v4162 = vmul.u32 %v4156, %v4158
    %v4163 = vshll.u32 %v4160, 16
    %v4164 = vshrl.u32 %v4160, 16
    %v4165 = vshll.u32 %v4161, 16
    %v4166 = vshrl.u32 %v4161, 16
    %vm4167 = vc.u32 %v4159, %v4163
    %v4168 = vsel %vm4167, 1, 0
    %v4169 = vadd.s32 %v4159, %v4163
    %v4170 = vadd.s32 %v4162, %v4168
    %vm4171 = vc.u32 %v4169, %v4165
    %v4172 = vsel %vm4171, 1, 0
    %v4173 = vadd.s32 %v4169, %v4165
    %v4174 = vadd.s32 %v4170, %v4172
    %v4175 = vadd.s32 %v4174, %v4164
    %v4176 = vadd.s32 %v4175, %v4166
    %v4177 = vmul.u32 %v4132, %v4123
    %v4178 = vadd.s32 %v4154, %v4173
    %vm4179 = vc.u32 %v4154, %v4173
    %v4180 = vadd.s32 %v4176, 1
    %v4181 = vsel %vm4179, %v4180, %v4176
    %v4182 = vadd.s32 %v4177, %v4181
    %v4183 = vadd.s32 %v4182, 536870912
    %v4184 = vshrl.u32 %v4183, 30
    %v4185 = vshll.u32 %v4184, 30
    %v4186 = vsub.s32 %v4182, %v4185
    %vm4187 = vcmp.lt.s32.totalorder %v4186, 0
    %v4188 = vsub.s32 0, %v4186
    %v4189 = vsel %vm4187, %v4188, %v4186
    %v4190 = vclz %v4189
    %v4191 = vsub.s32 %v4190, 2
    %vm4192 = vcmp.gt.s32.totalorder 0, %v4191
    %v4193 = vsel %vm4192, 0, %v4191
    %v4194 = vsub.s32 32, %v4193
    %v4195 = vshll.u32 %v4186, %v4193
    %v4196 = vshrl.u32 %v4178, %v4194
    %v4197 = vor.u32 %v4195, %v4196
    %v4198 = vsub.s32 4294967266, %v4193
    %v4199 = vadd.s32 %v4198, 127
    %v4200 = vshll.u32 %v4199, 23
    %v4201 = vor.u32 4788187, %v4200
    %v4202 = vand.u32 2147483647, %v4201
    %v4204 = vcvt.s32.f32 %v4197
    %v4205 = vmul.f32 %v4204, %v4202
    %v4206 = vxor.u32 %v4205, 2147483648
    %v4207 = vsel %vm4086, %v4206, %v4205
    %v4208 = vsub.s32 4, %v4184
    %v4209 = vsel %vm4086, %v4208, %v4184
    %v4210 = vsel %vm4085, %v3763, %v4207
    %v4211 = vsel %vm4085, 0, %v4209
    %v4212 = vmul.f32 %v4210, %v4210
    %v4213 = vmul.f32 %v4212, -0.001358992
    %v4214 = vadd.f32 %v4213, 0.041655596
    %v4215 = vmul.f32 %v4212, %v4214
    %v4216 = vadd.f32 %v4215, -0.4999988
    %v4217 = vmul.f32 %v4212, %v4216
    %v4218 = vadd.f32 1.0, %v4217
    %v4219 = vmul.f32 %v4210, %v4210
    %v4220 = vmul.f32 %v4219, -0.00019511016
    %v4221 = vadd.f32 %v4220, 0.008332121
    %v4222 = vmul.f32 %v4219, %v4221
    %v4223 = vadd.f32 %v4222, -0.16666654
    %v4224 = vmul.f32 %v4219, %v4223
    %v4225 = vadd.f32 %v4224, 1.0
    %v4226 = vmul.f32 %v4225, %v4210
    %vm4227 = vweird.f32 %v3763
    %v4228 = vadd.s32 %v4211, 3
    %v4229 = vand.u32 %v4228, 3
    %vm4230 = vcmp.lt.s32.totalorder %v4229, 2
    %vm4231 = vcmp.eq.s32.totalorder %v4229, 0
    %v4232 = vxor.u32 %v4226, 2147483648
    %v4233 = vsel %vm4231, %v4218, %v4232
    %vm4234 = vcmp.eq.s32.totalorder %v4229, 2
    %v4235 = vxor.u32 %v4218, 2147483648
    %v4236 = vsel %vm4234, %v4235, %v4226
    %v4237 = vsel %vm4230, %v4233, %v4236
    %v4238 = vsel %vm4227, nan, %v4237
    %v4239 = vand.u32 2147483647, %v3775
    %vm4240 = vcmp.le.f32.partialorder %v4239, 0.7853982
    %vm4241 = vcmp.lt.s32.totalorder %v3775, 0
    %v4242 = vand.u32 %v3775, 2139095040
    %v4243 = vshrl.u32 %v4242, 23
    %v4244 = vsub.s32 %v4243, 127
    %v4245 = vand.u32 2147483647, %v3775
    %v4246 = vand.u32 %v4245, 8388607
    %v4247 = vor.u32 %v4246, 8388608
    %v4248 = vsub.s32 0, %v4247
    %v4249 = vadd.s32 %v4244, 1
    %vm4250 = vcmp.gt.s32.totalorder %v4249, 0
    %v4251 = vsel %vm4250, %v4249, 0
    %v4252 = vshrl.u32 %v4251, 5
    %v4253 = vand.u32 %v4251, 31
    %v4254 = vsub.s32 32, %v4253
    %v4255 = vshrl.u32 683565275, %v4254
    %v4256 = vshll.u32 683565275, %v4253
    %v4257 = vshrl.u32 2475754826, %v4254
    %v4258 = vor.u32 %v4256, %v4257
    %v4259 = vshll.u32 2475754826, %v4253
    %v4260 = vshrl.u32 2131351028, %v4254
    %v4261 = vor.u32 %v4259, %v4260
    %v4262 = vshll.u32 2131351028, %v4253
    %v4263 = vshrl.u32 2102212464, %v4254
    %v4264 = vor.u32 %v4262, %v4263
    %v4265 = vshll.u32 2102212464, %v4253
    %v4266 = vshrl.u32 920167782, %v4254
    %v4267 = vor.u32 %v4265, %v4266
    %v4268 = vshll.u32 920167782, %v4253
    %v4269 = vshrl.u32 1326507024, %v4254
    %v4270 = vor.u32 %v4268, %v4269
    %vm4271 = vcmp.lt.s32.totalorder %v4252, 1
    %vm4272 = vcmp.lt.s32.totalorder %v4252, 2
    %vm4273 = vcmp.lt.s32.totalorder %v4252, 3
    %vm4274 = vcmp.lt.s32.totalorder %v4252, 4
    %v4275 = vsel %vm4271, %v4255, %v4258
    %v4276 = vsel %vm4274, %v4264, 2102212464
    %v4277 = vsel %vm4273, %v4261, %v4276
    %v4278 = vsel %vm4272, %v4275, %v4277
    %v4279 = vsel %vm4271, %v4258, %v4261
    %v4280 = vsel %vm4274, %v4267, 920167782
    %v4281 = vsel %vm4273, %v4264, %v4280
    %v4282 = vsel %vm4272, %v4279, %v4281
    %v4283 = vsel %vm4271, %v4261, %v4264
    %v4284 = vsel %vm4274, %v4270, 1326507024
    %v4285 = vsel %vm4273, %v4267, %v4284
    %v4286 = vsel %vm4272, %v4283, %v4285
    %v4287 = vshll.u32 %v4247, 8
    %v4288 = vand.u32 %v4287, 65535
    %v4289 = vshrl.u32 %v4287, 16
    %v4290 = vand.u32 %v4286, 65535
    %v4291 = vshrl.u32 %v4286, 16
    %v4292 = vmul.u32 %v4288, %v4290
    %v4293 = vmul.u32 %v4288, %v4291
    %v4294 = vmul.u32 %v4289, %v4290
    %v4295 = vmul.u32 %v4289, %v4291
    %v4296 = vshll.u32 %v4293, 16
    %v4297 = vshrl.u32 %v4293, 16
    %v4298 = vshll.u32 %v4294, 16
    %v4299 = vshrl.u32 %v4294, 16
    %vm4300 = vc.u32 %v4292, %v4296
    %v4301 = vsel %vm4300, 1, 0
    %v4302 = vadd.s32 %v4292, %v4296
    %v4303 = vadd.s32 %v4295, %v4301
    %vm4304 = vc.u32 %v4302, %v4298
    %v4305 = vsel %vm4304, 1, 0
    %v4306 = vadd.s32 %v4302, %v4298
    %v4307 = vadd.s32 %v4303, %v4305
    %v4308 = vadd.s32 %v4307, %v4297
    %v4309 = vadd.s32 %v4308, %v4299
    %v4310 = vand.u32 %v4287, 65535
    %v4311 = vshrl.u32 %v4287, 16
    %v4312 = vand.u32 %v4282, 65535
    %v4313 = vshrl.u32 %v4282, 16
    %v4314 = vmul.u32 %v4310, %v4312
    %v4315 = vmul.u32 %v4310, %v4313
    %v4316 = vmul.u32 %v4311, %v4312
    %v4317 = vmul.u32 %v4311, %v4313
    %v4318 = vshll.u32 %v4315, 16
    %v4319 = vshrl.u32 %v4315, 16
    %v4320 = vshll.u32 %v4316, 16
    %v4321 = vshrl.u32 %v4316, 16
    %vm4322 = vc.u32 %v4314, %v4318
    %v4323 = vsel %vm4322, 1, 0
    %v4324 = vadd.s32 %v4314, %v4318
    %v4325 = vadd.s32 %v4317, %v4323
    %vm4326 = vc.u32 %v4324, %v4320
    %v4327 = vsel %vm4326, 1, 0
    %v4328 = vadd.s32 %v4324, %v4320
    %v4329 = vadd.s32 %v4325, %v4327
    %v4330 = vadd.s32 %v4329, %v4319
    %v4331 = vadd.s32 %v4330, %v4321
    %v4332 = vmul.u32 %v4287, %v4278
    %v4333 = vadd.s32 %v4309, %v4328
    %vm4334 = vc.u32 %v4309, %v4328
    %v4335 = vadd.s32 %v4331, 1
    %v4336 = vsel %vm4334, %v4335, %v4331
    %v4337 = vadd.s32 %v4332, %v4336
    %v4338 = vadd.s32 %v4337, 536870912
    %v4339 = vshrl.u32 %v4338, 30
    %v4340 = vshll.u32 %v4339, 30
    %v4341 = vsub.s32 %v4337, %v4340
    %vm4342 = vcmp.lt.s32.totalorder %v4341, 0
    %v4343 = vsub.s32 0, %v4341
    %v4344 = vsel %vm4342, %v4343, %v4341
    %v4345 = vclz %v4344
    %v4346 = vsub.s32 %v4345, 2
    %vm4347 = vcmp.gt.s32.totalorder 0, %v4346
    %v4348 = vsel %vm4347, 0, %v4346
    %v4349 = vsub.s32 32, %v4348
    %v4350 = vshll.u32 %v4341, %v4348
    %v4351 = vshrl.u32 %v4333, %v4349
    %v4352 = vor.u32 %v4350, %v4351
    %v4353 = vsub.s32 4294967266, %v4348
    %v4354 = vadd.s32 %v4353, 127
    %v4355 = vshll.u32 %v4354, 23
    %v4356 = vor.u32 4788187, %v4355
    %v4357 = vand.u32 2147483647, %v4356
    %v4359 = vcvt.s32.f32 %v4352
    %v4360 = vmul.f32 %v4359, %v4357
    %v4361 = vxor.u32 %v4360, 2147483648
    %v4362 = vsel %vm4241, %v4361, %v4360
    %v4363 = vsub.s32 4, %v4339
    %v4364 = vsel %vm4241, %v4363, %v4339
    %v4365 = vsel %vm4240, %v3775, %v4362
    %v4366 = vsel %vm4240, 0, %v4364
    %v4367 = vmul.f32 %v4365, %v4365
    %v4368 = vmul.f32 %v4367, -0.001358992
    %v4369 = vadd.f32 %v4368, 0.041655596
    %v4370 = vmul.f32 %v4367, %v4369
    %v4371 = vadd.f32 %v4370, -0.4999988
    %v4372 = vmul.f32 %v4367, %v4371
    %v4373 = vadd.f32 1.0, %v4372
    %v4374 = vmul.f32 %v4365, %v4365
    %v4375 = vmul.f32 %v4374, -0.00019511016
    %v4376 = vadd.f32 %v4375, 0.008332121
    %v4377 = vmul.f32 %v4374, %v4376
    %v4378 = vadd.f32 %v4377, -0.16666654
    %v4379 = vmul.f32 %v4374, %v4378
    %v4380 = vadd.f32 %v4379, 1.0
    %v4381 = vmul.f32 %v4380, %v4365
    %vm4382 = vweird.f32 %v3775
    %v4383 = vadd.s32 %v4366, 3
    %v4384 = vand.u32 %v4383, 3
    %vm4385 = vcmp.lt.s32.totalorder %v4384, 2
    %vm4386 = vcmp.eq.s32.totalorder %v4384, 0
    %v4387 = vxor.u32 %v4381, 2147483648
    %v4388 = vsel %vm4386, %v4373, %v4387
    %vm4389 = vcmp.eq.s32.totalorder %v4384, 2
    %v4390 = vxor.u32 %v4373, 2147483648
    %v4391 = vsel %vm4389, %v4390, %v4381
    %v4392 = vsel %vm4385, %v4388, %v4391
    %v4393 = vsel %vm4382, nan, %v4392
    %v4394 = vsub.f32 1.0, %v3929
    %v4395 = vsub.f32 1.0, %v4083
    %v4396 = vrcp.pop %v3750
    %v4397 = vrcp.pop %v3751
    %v4398 = vmul.f32 %v4394, %v4396
    %v4399 = vmul.f32 %v4395, %v4397
    %v4400 = vrsqrt.pop %v3750
    %v4401 = vmul.f32 %v4400, %v3750
    %v4402 = vmul.f32 %v4401, %v4400
    %v4403 = vmul.f32 0.5, %v4402
    %v4404 = vsub.f32 1.5, %v4403
    %v4405 = vmul.f32 %v4400, %v4404
    %vm4406 = vweird.f32 %v3750
    %vm4407 = vweird.f32 %v4400
    %vm4408 = vmor %vm4406, %vm4407
    %v4409 = vsel %vm4408, %v4400, %v4405
    %v4410 = vrsqrt.pop %v3751
    %v4411 = vmul.f32 %v4410, %v3751
    %v4412 = vmul.f32 %v4411, %v4410
    %v4413 = vmul.f32 0.5, %v4412
    %v4414 = vsub.f32 1.5, %v4413
    %v4415 = vmul.f32 %v4410, %v4414
    %vm4416 = vweird.f32 %v3751
    %vm4417 = vweird.f32 %v4410
    %vm4418 = vmor %vm4416, %vm4417
    %v4419 = vsel %vm4418, %v4410, %v4415
    %v4420 = vmul.f32 %v4238, %v4409
    %v4421 = vmul.f32 %v4393, %v4419
    %v4422 = vmul.f32 %v4398, %v3734
    %v4423 = vmul.f32 %v4399, %v3735
    %v4424 = vmul.f32 %v4422, %v3734
    %v4425 = vmul.f32 %v4423, %v3735
    %v4426 = vmul.f32 %v4398, %v3736
    %v4427 = vmul.f32 %v4399, %v3737
    %v4428 = vmul.f32 %v4426, %v3736
    %v4429 = vmul.f32 %v4427, %v3737
    %v4430 = vmul.f32 %v4398, %v3738
    %v4431 = vmul.f32 %v4399, %v3739
    %v4432 = vmul.f32 %v4430, %v3738
    %v4433 = vmul.f32 %v4431, %v3739
    %v4434 = vmul.f32 %v4422, %v3736
    %v4435 = vmul.f32 %v4423, %v3737
    %v4436 = vmul.f32 %v4422, %v3738
    %v4437 = vmul.f32 %v4423, %v3739
    %v4438 = vmul.f32 %v4426, %v3738
    %v4439 = vmul.f32 %v4427, %v3739
    %v4440 = vmul.f32 %v4420, %v3734
    %v4441 = vmul.f32 %v4421, %v3735
    %v4442 = vmul.f32 %v4420, %v3736
    %v4443 = vmul.f32 %v4421, %v3737
    %v4444 = vmul.f32 %v4420, %v3738
    %v4445 = vmul.f32 %v4421, %v3739
    %v4446 = vadd.f32 %v3929, %v4424
    %v4447 = vadd.f32 %v4083, %v4425
    %v4448 = vsub.f32 %v4434, %v4444
    %v4449 = vsub.f32 %v4435, %v4445
    %v4450 = vadd.f32 %v4436, %v4442
    %v4451 = vadd.f32 %v4437, %v4443
    %v4452 = vadd.f32 %v4434, %v4444
    %v4453 = vadd.f32 %v4435, %v4445
    %v4454 = vadd.f32 %v3929, %v4428
    %v4455 = vadd.f32 %v4083, %v4429
    %v4456 = vsub.f32 %v4438, %v4440
    %v4457 = vsub.f32 %v4439, %v4441
    %v4458 = vsub.f32 %v4436, %v4442
    %v4459 = vsub.f32 %v4437, %v4443
    %v4460 = vadd.f32 %v4438, %v4440
    %v4461 = vadd.f32 %v4439, %v4441
    %v4462 = vadd.f32 %v3929, %v4432
    %v4463 = vadd.f32 %v4083, %v4433
    %v4466 = vrot.slane %v4446, 4
    %v4467 = vrot.slane %v4447, 4
    %v4470 = vmul.f32 %v4446, %v4466
    %v4471 = vmul.f32 %v4447, %v4467
    %v4474 = vrot.slane %v4452, 4
    %v4475 = vrot.slane %v4453, 4
    %v4478 = vmul.f32 %v4448, %v4474
    %v4479 = vmul.f32 %v4449, %v4475
    %v4480 = vadd.f32 %v4470, %v4478
    %v4481 = vadd.f32 %v4471, %v4479
    %v4484 = vrot.slane %v4458, 4
    %v4485 = vrot.slane %v4459, 4
    %v4488 = vmul.f32 %v4450, %v4484
    %v4489 = vmul.f32 %v4451, %v4485
    %v4490 = vadd.f32 %v4480, %v4488
    %v4491 = vadd.f32 %v4481, %v4489
    %v4494 = vrot.slane %v4448, 4
    %v4495 = vrot.slane %v4449, 4
    %v4498 = vmul.f32 %v4446, %v4494
    %v4499 = vmul.f32 %v4447, %v4495
    %v4502 = vrot.slane %v4454, 4
    %v4503 = vrot.slane %v4455, 4
    %v4506 = vmul.f32 %v4448, %v4502
    %v4507 = vmul.f32 %v4449, %v4503
    %v4508 = vadd.f32 %v4498, %v4506
    %v4509 = vadd.f32 %v4499, %v4507
    %v4512 = vrot.slane %v4460, 4
    %v4513 = vrot.slane %v4461, 4
    %v4516 = vmul.f32 %v4450, %v4512
    %v4517 = vmul.f32 %v4451, %v4513
    %v4518 = vadd.f32 %v4508, %v4516
    %v4519 = vadd.f32 %v4509, %v4517
    %v4522 = vrot.slane %v4450, 4
    %v4523 = vrot.slane %v4451, 4
    %v4526 = vmul.f32 %v4446, %v4522
    %v4527 = vmul.f32 %v4447, %v4523
    %v4530 = vrot.slane %v4456, 4
    %v4531 = vrot.slane %v4457, 4
    %v4534 = vmul.f32 %v4448, %v4530
    %v4535 = vmul.f32 %v4449, %v4531
    %v4536 = vadd.f32 %v4526, %v4534
    %v4537 = vadd.f32 %v4527, %v4535
    %v4540 = vrot.slane %v4462, 4
    %v4541 = vrot.slane %v4463, 4
    %v4544 = vmul.f32 %v4450, %v4540
    %v4545 = vmul.f32 %v4451, %v4541
    %v4546 = vadd.f32 %v4536, %v4544
    %v4547 = vadd.f32 %v4537, %v4545
    %v4548 = vmul.f32 %v4452, %v4466
    %v4549 = vmul.f32 %v4453, %v4467
    %v4550 = vmul.f32 %v4454, %v4474
    %v4551 = vmul.f32 %v4455, %v4475
    %v4552 = vadd.f32 %v4548, %v4550
    %v4553 = vadd.f32 %v4549, %v4551
    %v4554 = vmul.f32 %v4456, %v4484
    %v4555 = vmul.f32 %v4457, %v4485
    %v4556 = vadd.f32 %v4552, %v4554
    %v4557 = vadd.f32 %v4553, %v4555
    %v4558 = vmul.f32 %v4452, %v4494
    %v4559 = vmul.f32 %v4453, %v4495
    %v4560 = vmul.f32 %v4454, %v4502
    %v4561 = vmul.f32 %v4455, %v4503
    %v4562 = vadd.f32 %v4558, %v4560
    %v4563 = vadd.f32 %v4559, %v4561
    %v4564 = vmul.f32 %v4456, %v4512
    %v4565 = vmul.f32 %v4457, %v4513
    %v4566 = vadd.f32 %v4562, %v4564
    %v4567 = vadd.f32 %v4563, %v4565
    %v4568 = vmul.f32 %v4452, %v4522
    %v4569 = vmul.f32 %v4453, %v4523
    %v4570 = vmul.f32 %v4454, %v4530
    %v4571 = vmul.f32 %v4455, %v4531
    %v4572 = vadd.f32 %v4568, %v4570
    %v4573 = vadd.f32 %v4569, %v4571
    %v4574 = vmul.f32 %v4456, %v4540
    %v4575 = vmul.f32 %v4457, %v4541
    %v4576 = vadd.f32 %v4572, %v4574
    %v4577 = vadd.f32 %v4573, %v4575
    %v4578 = vmul.f32 %v4458, %v4466
    %v4579 = vmul.f32 %v4459, %v4467
    %v4580 = vmul.f32 %v4460, %v4474
    %v4581 = vmul.f32 %v4461, %v4475
    %v4582 = vadd.f32 %v4578, %v4580
    %v4583 = vadd.f32 %v4579, %v4581
    %v4584 = vmul.f32 %v4462, %v4484
    %v4585 = vmul.f32 %v4463, %v4485
    %v4586 = vadd.f32 %v4582, %v4584
    %v4587 = vadd.f32 %v4583, %v4585
    %v4588 = vmul.f32 %v4458, %v4494
    %v4589 = vmul.f32 %v4459, %v4495
    %v4590 = vmul.f32 %v4460, %v4502
    %v4591 = vmul.f32 %v4461, %v4503
    %v4592 = vadd.f32 %v4588, %v4590
    %v4593 = vadd.f32 %v4589, %v4591
    %v4594 = vmul.f32 %v4462, %v4512
    %v4595 = vmul.f32 %v4463, %v4513
    %v4596 = vadd.f32 %v4592, %v4594
    %v4597 = vadd.f32 %v4593, %v4595
    %v4598 = vmul.f32 %v4458, %v4522
    %v4599 = vmul.f32 %v4459, %v4523
    %v4600 = vmul.f32 %v4460, %v4530
    %v4601 = vmul.f32 %v4461, %v4531
    %v4602 = vadd.f32 %v4598, %v4600
    %v4603 = vadd.f32 %v4599, %v4601
    %v4604 = vmul.f32 %v4462, %v4540
    %v4605 = vmul.f32 %v4463, %v4541
    %v4606 = vadd.f32 %v4602, %v4604
    %v4607 = vadd.f32 %v4603, %v4605
    %v4610 = vrot.slane %v4490, 2
    %v4611 = vrot.slane %v4491, 2
    %v4614 = vmul.f32 %v4490, %v4610
    %v4615 = vmul.f32 %v4491, %v4611
    %v4618 = vrot.slane %v4556, 2
    %v4619 = vrot.slane %v4557, 2
    %v4622 = vmul.f32 %v4518, %v4618
    %v4623 = vmul.f32 %v4519, %v4619
    %v4624 = vadd.f32 %v4614, %v4622
    %v4625 = vadd.f32 %v4615, %v4623
    %v4628 = vrot.slane %v4586, 2
    %v4629 = vrot.slane %v4587, 2
    %v4632 = vmul.f32 %v4546, %v4628
    %v4633 = vmul.f32 %v4547, %v4629
    %v4634 = vadd.f32 %v4624, %v4632
    %v4635 = vadd.f32 %v4625, %v4633
    %v4638 = vrot.slane %v4518, 2
    %v4639 = vrot.slane %v4519, 2
    %v4642 = vmul.f32 %v4490, %v4638
    %v4643 = vmul.f32 %v4491, %v4639
    %v4646 = vrot.slane %v4566, 2
    %v4647 = vrot.slane %v4567, 2
    %v4650 = vmul.f32 %v4518, %v4646
    %v4651 = vmul.f32 %v4519, %v4647
    %v4652 = vadd.f32 %v4642, %v4650
    %v4653 = vadd.f32 %v4643, %v4651
    %v4656 = vrot.slane %v4596, 2
    %v4657 = vrot.slane %v4597, 2
    %v4660 = vmul.f32 %v4546, %v4656
    %v4661 = vmul.f32 %v4547, %v4657
    %v4662 = vadd.f32 %v4652, %v4660
    %v4663 = vadd.f32 %v4653, %v4661
    %v4666 = vrot.slane %v4546, 2
    %v4667 = vrot.slane %v4547, 2
    %v4670 = vmul.f32 %v4490, %v4666
    %v4671 = vmul.f32 %v4491, %v4667
    %v4674 = vrot.slane %v4576, 2
    %v4675 = vrot.slane %v4577, 2
    %v4678 = vmul.f32 %v4518, %v4674
    %v4679 = vmul.f32 %v4519, %v4675
    %v4680 = vadd.f32 %v4670, %v4678
    %v4681 = vadd.f32 %v4671, %v4679
    %v4684 = vrot.slane %v4606, 2
    %v4685 = vrot.slane %v4607, 2
    %v4688 = vmul.f32 %v4546, %v4684
    %v4689 = vmul.f32 %v4547, %v4685
    %v4690 = vadd.f32 %v4680, %v4688
    %v4691 = vadd.f32 %v4681, %v4689
    %v4692 = vmul.f32 %v4556, %v4610
    %v4693 = vmul.f32 %v4557, %v4611
    %v4694 = vmul.f32 %v4566, %v4618
    %v4695 = vmul.f32 %v4567, %v4619
    %v4696 = vadd.f32 %v4692, %v4694
    %v4697 = vadd.f32 %v4693, %v4695
    %v4698 = vmul.f32 %v4576, %v4628
    %v4699 = vmul.f32 %v4577, %v4629
    %v4700 = vadd.f32 %v4696, %v4698
    %v4701 = vadd.f32 %v4697, %v4699
    %v4702 = vmul.f32 %v4556, %v4638
    %v4703 = vmul.f32 %v4557, %v4639
    %v4704 = vmul.f32 %v4566, %v4646
    %v4705 = vmul.f32 %v4567, %v4647
    %v4706 = vadd.f32 %v4702, %v4704
    %v4707 = vadd.f32 %v4703, %v4705
    %v4708 = vmul.f32 %v4576, %v4656
    %v4709 = vmul.f32 %v4577, %v4657
    %v4710 = vadd.f32 %v4706, %v4708
    %v4711 = vadd.f32 %v4707, %v4709
    %v4712 = vmul.f32 %v4556, %v4666
    %v4713 = vmul.f32 %v4557, %v4667
    %v4714 = vmul.f32 %v4566, %v4674
    %v4715 = vmul.f32 %v4567, %v4675
    %v4716 = vadd.f32 %v4712, %v4714
    %v4717 = vadd.f32 %v4713, %v4715
    %v4718 = vmul.f32 %v4576, %v4684
    %v4719 = vmul.f32 %v4577, %v4685
    %v4720 = vadd.f32 %v4716, %v4718
    %v4721 = vadd.f32 %v4717, %v4719
    %v4722 = vmul.f32 %v4586, %v4610
    %v4723 = vmul.f32 %v4587, %v4611
    %v4724 = vmul.f32 %v4596, %v4618
    %v4725 = vmul.f32 %v4597, %v4619
    %v4726 = vadd.f32 %v4722, %v4724
    %v4727 = vadd.f32 %v4723, %v4725
    %v4728 = vmul.f32 %v4606, %v4628
    %v4729 = vmul.f32 %v4607, %v4629
    %v4730 = vadd.f32 %v4726, %v4728
    %v4731 = vadd.f32 %v4727, %v4729
    %v4732 = vmul.f32 %v4586, %v4638
    %v4733 = vmul.f32 %v4587, %v4639
    %v4734 = vmul.f32 %v4596, %v4646
    %v4735 = vmul.f32 %v4597, %v4647
    %v4736 = vadd.f32 %v4732, %v4734
    %v4737 = vadd.f32 %v4733, %v4735
    %v4738 = vmul.f32 %v4606, %v4656
    %v4739 = vmul.f32 %v4607, %v4657
    %v4740 = vadd.f32 %v4736, %v4738
    %v4741 = vadd.f32 %v4737, %v4739
    %v4742 = vmul.f32 %v4586, %v4666
    %v4743 = vmul.f32 %v4587, %v4667
    %v4744 = vmul.f32 %v4596, %v4674
    %v4745 = vmul.f32 %v4597, %v4675
    %v4746 = vadd.f32 %v4742, %v4744
    %v4747 = vadd.f32 %v4743, %v4745
    %v4748 = vmul.f32 %v4606, %v4684
    %v4749 = vmul.f32 %v4607, %v4685
    %v4750 = vadd.f32 %v4746, %v4748
    %v4751 = vadd.f32 %v4747, %v4749
    %v4754 = vrot.slane %v4634, 1
    %v4755 = vrot.slane %v4635, 1
    %v4758 = vmul.f32 %v4634, %v4754
    %v4759 = vmul.f32 %v4635, %v4755
    %v4762 = vrot.slane %v4700, 1
    %v4763 = vrot.slane %v4701, 1
    %v4766 = vmul.f32 %v4662, %v4762
    %v4767 = vmul.f32 %v4663, %v4763
    %v4768 = vadd.f32 %v4758, %v4766
    %v4769 = vadd.f32 %v4759, %v4767
    %v4772 = vrot.slane %v4730, 1
    %v4773 = vrot.slane %v4731, 1
    %v4776 = vmul.f32 %v4690, %v4772
    %v4777 = vmul.f32 %v4691, %v4773
    %v4778 = vadd.f32 %v4768, %v4776
    %v4779 = vadd.f32 %v4769, %v4777
    %v4782 = vrot.slane %v4662, 1
    %v4783 = vrot.slane %v4663, 1
    %v4786 = vmul.f32 %v4634, %v4782
    %v4787 = vmul.f32 %v4635, %v4783
    %v4790 = vrot.slane %v4710, 1
    %v4791 = vrot.slane %v4711, 1
    %v4794 = vmul.f32 %v4662, %v4790
    %v4795 = vmul.f32 %v4663, %v4791
    %v4796 = vadd.f32 %v4786, %v4794
    %v4797 = vadd.f32 %v4787, %v4795
    %v4800 = vrot.slane %v4740, 1
    %v4801 = vrot.slane %v4741, 1
    %v4804 = vmul.f32 %v4690, %v4800
    %v4805 = vmul.f32 %v4691, %v4801
    %v4806 = vadd.f32 %v4796, %v4804
    %v4807 = vadd.f32 %v4797, %v4805
    %v4810 = vrot.slane %v4690, 1
    %v4811 = vrot.slane %v4691, 1
    %v4814 = vmul.f32 %v4634, %v4810
    %v4815 = vmul.f32 %v4635, %v4811
    %v4818 = vrot.slane %v4720, 1
    %v4819 = vrot.slane %v4721, 1
    %v4822 = vmul.f32 %v4662, %v4818
    %v4823 = vmul.f32 %v4663, %v4819
    %v4824 = vadd.f32 %v4814, %v4822
    %v4825 = vadd.f32 %v4815, %v4823
    %v4828 = vrot.slane %v4750, 1
    %v4829 = vrot.slane %v4751, 1
    %v4832 = vmul.f32 %v4690, %v4828
    %v4833 = vmul.f32 %v4691, %v4829
    %v4834 = vadd.f32 %v4824, %v4832
    %v4835 = vadd.f32 %v4825, %v4833
    %v4836 = vmul.f32 %v4700, %v4754
    %v4837 = vmul.f32 %v4701, %v4755
    %v4838 = vmul.f32 %v4710, %v4762
    %v4839 = vmul.f32 %v4711, %v4763
    %v4840 = vadd.f32 %v4836, %v4838
    %v4841 = vadd.f32 %v4837, %v4839
    %v4842 = vmul.f32 %v4720, %v4772
    %v4843 = vmul.f32 %v4721, %v4773
    %v4844 = vadd.f32 %v4840, %v4842
    %v4845 = vadd.f32 %v4841, %v4843
    %v4846 = vmul.f32 %v4700, %v4782
    %v4847 = vmul.f32 %v4701, %v4783
    %v4848 = vmul.f32 %v4710, %v4790
    %v4849 = vmul.f32 %v4711, %v4791
    %v4850 = vadd.f32 %v4846, %v4848
    %v4851 = vadd.f32 %v4847, %v4849
    %v4852 = vmul.f32 %v4720, %v4800
    %v4853 = vmul.f32 %v4721, %v4801
    %v4854 = vadd.f32 %v4850, %v4852
    %v4855 = vadd.f32 %v4851, %v4853
    %v4856 = vmul.f32 %v4700, %v4810
    %v4857 = vmul.f32 %v4701, %v4811
    %v4858 = vmul.f32 %v4710, %v4818
    %v4859 = vmul.f32 %v4711, %v4819
    %v4860 = vadd.f32 %v4856, %v4858
    %v4861 = vadd.f32 %v4857, %v4859
    %v4862 = vmul.f32 %v4720, %v4828
    %v4863 = vmul.f32 %v4721, %v4829
    %v4864 = vadd.f32 %v4860, %v4862
    %v4865 = vadd.f32 %v4861, %v4863
    %v4866 = vmul.f32 %v4730, %v4754
    %v4867 = vmul.f32 %v4731, %v4755
    %v4868 = vmul.f32 %v4740, %v4762
    %v4869 = vmul.f32 %v4741, %v4763
    %v4870 = vadd.f32 %v4866, %v4868
    %v4871 = vadd.f32 %v4867, %v4869
    %v4872 = vmul.f32 %v4750, %v4772
    %v4873 = vmul.f32 %v4751, %v4773
    %v4874 = vadd.f32 %v4870, %v4872
    %v4875 = vadd.f32 %v4871, %v4873
    %v4876 = vmul.f32 %v4730, %v4782
    %v4877 = vmul.f32 %v4731, %v4783
    %v4878 = vmul.f32 %v4740, %v4790
    %v4879 = vmul.f32 %v4741, %v4791
    %v4880 = vadd.f32 %v4876, %v4878
    %v4881 = vadd.f32 %v4877, %v4879
    %v4882 = vmul.f32 %v4750, %v4800
    %v4883 = vmul.f32 %v4751, %v4801
    %v4884 = vadd.f32 %v4880, %v4882
    %v4885 = vadd.f32 %v4881, %v4883
    %v4886 = vmul.f32 %v4730, %v4810
    %v4887 = vmul.f32 %v4731, %v4811
    %v4888 = vmul.f32 %v4740, %v4818
    %v4889 = vmul.f32 %v4741, %v4819
    %v4890 = vadd.f32 %v4886, %v4888
    %v4891 = vadd.f32 %v4887, %v4889
    %v4892 = vmul.f32 %v4750, %v4828
    %v4893 = vmul.f32 %v4751, %v4829
    %v4894 = vadd.f32 %v4890, %v4892
    %v4895 = vadd.f32 %v4891, %v4893
    %v4896 = vmul.f32 %v3646, %v4778
    %v4897 = vmul.f32 %v3647, %v4779
    %v4898 = vmul.f32 %v3656, %v4844
    %v4899 = vmul.f32 %v3657, %v4845
    %v4900 = vadd.f32 %v4896, %v4898
    %v4901 = vadd.f32 %v4897, %v4899
    %v4902 = vmul.f32 %v3666, %v4874
    %v4903 = vmul.f32 %v3667, %v4875
    %v4904 = vadd.f32 %v4900, %v4902
    %v4905 = vadd.f32 %v4901, %v4903
    %v4906 = vmul.f32 %v3646, %v4806
    %v4907 = vmul.f32 %v3647, %v4807
    %v4908 = vmul.f32 %v3656, %v4854
    %v4909 = vmul.f32 %v3657, %v4855
    %v4910 = vadd.f32 %v4906, %v4908
    %v4911 = vadd.f32 %v4907, %v4909
    %v4912 = vmul.f32 %v3666, %v4884
    %v4913 = vmul.f32 %v3667, %v4885
    %v4914 = vadd.f32 %v4910, %v4912
    %v4915 = vadd.f32 %v4911, %v4913
    %v4916 = vmul.f32 %v3646, %v4834
    %v4917 = vmul.f32 %v3647, %v4835
    %v4918 = vmul.f32 %v3656, %v4864
    %v4919 = vmul.f32 %v3657, %v4865
    %v4920 = vadd.f32 %v4916, %v4918
    %v4921 = vadd.f32 %v4917, %v4919
    %v4922 = vmul.f32 %v3666, %v4894
    %v4923 = vmul.f32 %v3667, %v4895
    %v4924 = vadd.f32 %v4920, %v4922
    %v4925 = vadd.f32 %v4921, %v4923
    %v4926 = vmul.f32 %v3676, %v4778
    %v4927 = vmul.f32 %v3677, %v4779
    %v4928 = vmul.f32 %v3686, %v4844
    %v4929 = vmul.f32 %v3687, %v4845
    %v4930 = vadd.f32 %v4926, %v4928
    %v4931 = vadd.f32 %v4927, %v4929
    %v4932 = vmul.f32 %v3696, %v4874
    %v4933 = vmul.f32 %v3697, %v4875
    %v4934 = vadd.f32 %v4930, %v4932
    %v4935 = vadd.f32 %v4931, %v4933
    %v4936 = vmul.f32 %v3676, %v4806
    %v4937 = vmul.f32 %v3677, %v4807
    %v4938 = vmul.f32 %v3686, %v4854
    %v4939 = vmul.f32 %v3687, %v4855
    %v4940 = vadd.f32 %v4936, %v4938
    %v4941 = vadd.f32 %v4937, %v4939
    %v4942 = vmul.f32 %v3696, %v4884
    %v4943 = vmul.f32 %v3697, %v4885
    %v4944 = vadd.f32 %v4940, %v4942
    %v4945 = vadd.f32 %v4941, %v4943
    %v4946 = vmul.f32 %v3676, %v4834
    %v4947 = vmul.f32 %v3677, %v4835
    %v4948 = vmul.f32 %v3686, %v4864
    %v4949 = vmul.f32 %v3687, %v4865
    %v4950 = vadd.f32 %v4946, %v4948
    %v4951 = vadd.f32 %v4947, %v4949
    %v4952 = vmul.f32 %v3696, %v4894
    %v4953 = vmul.f32 %v3697, %v4895
    %v4954 = vadd.f32 %v4950, %v4952
    %v4955 = vadd.f32 %v4951, %v4953
    %v4956 = vmul.f32 %v3706, %v4778
    %v4957 = vmul.f32 %v3707, %v4779
    %v4958 = vmul.f32 %v3716, %v4844
    %v4959 = vmul.f32 %v3717, %v4845
    %v4960 = vadd.f32 %v4956, %v4958
    %v4961 = vadd.f32 %v4957, %v4959
    %v4962 = vmul.f32 %v3726, %v4874
    %v4963 = vmul.f32 %v3727, %v4875
    %v4964 = vadd.f32 %v4960, %v4962
    %v4965 = vadd.f32 %v4961, %v4963
    %v4966 = vmul.f32 %v3706, %v4806
    %v4967 = vmul.f32 %v3707, %v4807
    %v4968 = vmul.f32 %v3716, %v4854
    %v4969 = vmul.f32 %v3717, %v4855
    %v4970 = vadd.f32 %v4966, %v4968
    %v4971 = vadd.f32 %v4967, %v4969
    %v4972 = vmul.f32 %v3726, %v4884
    %v4973 = vmul.f32 %v3727, %v4885
    %v4974 = vadd.f32 %v4970, %v4972
    %v4975 = vadd.f32 %v4971, %v4973
    %v4976 = vmul.f32 %v3706, %v4834
    %v4977 = vmul.f32 %v3707, %v4835
    %v4978 = vmul.f32 %v3716, %v4864
    %v4979 = vmul.f32 %v3717, %v4865
    %v4980 = vadd.f32 %v4976, %v4978
    %v4981 = vadd.f32 %v4977, %v4979
    %v4982 = vmul.f32 %v3726, %v4894
    %v4983 = vmul.f32 %v3727, %v4895
    %v4984 = vadd.f32 %v4980, %v4982
    %v4985 = vadd.f32 %v4981, %v4983
    %v4986 = vld [vmem:[#allocation5] ss:$8 sm:$0x3]
    %s4987 = scalar_lea.vmem [#allocation5], 1
    %v4988 = vld [vmem:[%s4987] ss:$8 sm:$0x3]
    %s4989 = scalar_lea.vmem [#allocation5], 2
    %v4990 = vld [vmem:[%s4989] ss:$8 sm:$0x3]
    %s4991 = scalar_lea.vmem [#allocation5], 3
    %v4992 = vld [vmem:[%s4991] ss:$8 sm:$0x3]
    %s4993 = scalar_lea.vmem [#allocation5], 4
    %v4994 = vld [vmem:[%s4993] ss:$8 sm:$0x3]
    %s4995 = scalar_lea.vmem [#allocation5], 5
    %v4996 = vld [vmem:[%s4995] ss:$8 sm:$0x3]
    %s4997 = scalar_lea.vmem [#allocation5], 6
    %v4998 = vld [vmem:[%s4997] ss:$8 sm:$0x3]
    %s4999 = scalar_lea.vmem [#allocation5], 7
    %v5000 = vld [vmem:[%s4999] ss:$8 sm:$0x3]
    %s5001 = scalar_lea.vmem [#allocation5], 16
    %v5002 = vld [vmem:[%s5001] ss:$8 sm:$0x3]
    %v5004 = vperm.slane %v4986, 0
    %v5005 = vperm.slane %v4986, 1
    %v5008 = vmul.f32 %v4904, %v5004
    %v5009 = vmul.f32 %v4905, %v5005
    %v5011 = vperm.slane %v4992, 0
    %v5012 = vperm.slane %v4992, 1
    %v5015 = vmul.f32 %v4934, %v5011
    %v5016 = vmul.f32 %v4935, %v5012
    %v5017 = vadd.f32 %v5008, %v5015
    %v5018 = vadd.f32 %v5009, %v5016
    %v5020 = vperm.slane %v4998, 0
    %v5021 = vperm.slane %v4998, 1
    %v5024 = vmul.f32 %v4964, %v5020
    %v5025 = vmul.f32 %v4965, %v5021
    %v5026 = vadd.f32 %v5017, %v5024
    %v5027 = vadd.f32 %v5018, %v5025
    %v5029 = vperm.slane %v4988, 0
    %v5030 = vperm.slane %v4988, 1
    %v5033 = vmul.f32 %v4904, %v5029
    %v5034 = vmul.f32 %v4905, %v5030
    %v5036 = vperm.slane %v4994, 0
    %v5037 = vperm.slane %v4994, 1
    %v5040 = vmul.f32 %v4934, %v5036
    %v5041 = vmul.f32 %v4935, %v5037
    %v5042 = vadd.f32 %v5033, %v5040
    %v5043 = vadd.f32 %v5034, %v5041
    %v5045 = vperm.slane %v5000, 0
    %v5046 = vperm.slane %v5000, 1
    %v5049 = vmul.f32 %v4964, %v5045
    %v5050 = vmul.f32 %v4965, %v5046
    %v5051 = vadd.f32 %v5042, %v5049
    %v5052 = vadd.f32 %v5043, %v5050
    %v5054 = vperm.slane %v4990, 0
    %v5055 = vperm.slane %v4990, 1
    %v5058 = vmul.f32 %v4904, %v5054
    %v5059 = vmul.f32 %v4905, %v5055
    %v5061 = vperm.slane %v4996, 0
    %v5062 = vperm.slane %v4996, 1
    %v5065 = vmul.f32 %v4934, %v5061
    %v5066 = vmul.f32 %v4935, %v5062
    %v5067 = vadd.f32 %v5058, %v5065
    %v5068 = vadd.f32 %v5059, %v5066
    %v5070 = vperm.slane %v5002, 0
    %v5071 = vperm.slane %v5002, 1
    %v5074 = vmul.f32 %v4964, %v5070
    %v5075 = vmul.f32 %v4965, %v5071
    %v5076 = vadd.f32 %v5067, %v5074
    %v5077 = vadd.f32 %v5068, %v5075
    %v5078 = vmul.f32 %v4914, %v5004
    %v5079 = vmul.f32 %v4915, %v5005
    %v5080 = vmul.f32 %v4944, %v5011
    %v5081 = vmul.f32 %v4945, %v5012
    %v5082 = vadd.f32 %v5078, %v5080
    %v5083 = vadd.f32 %v5079, %v5081
    %v5084 = vmul.f32 %v4974, %v5020
    %v5085 = vmul.f32 %v4975, %v5021
    %v5086 = vadd.f32 %v5082, %v5084
    %v5087 = vadd.f32 %v5083, %v5085
    %v5088 = vmul.f32 %v4914, %v5029
    %v5089 = vmul.f32 %v4915, %v5030
    %v5090 = vmul.f32 %v4944, %v5036
    %v5091 = vmul.f32 %v4945, %v5037
    %v5092 = vadd.f32 %v5088, %v5090
    %v5093 = vadd.f32 %v5089, %v5091
    %v5094 = vmul.f32 %v4974, %v5045
    %v5095 = vmul.f32 %v4975, %v5046
    %v5096 = vadd.f32 %v5092, %v5094
    %v5097 = vadd.f32 %v5093, %v5095
    %v5098 = vmul.f32 %v4914, %v5054
    %v5099 = vmul.f32 %v4915, %v5055
    %v5100 = vmul.f32 %v4944, %v5061
    %v5101 = vmul.f32 %v4945, %v5062
    %v5102 = vadd.f32 %v5098, %v5100
    %v5103 = vadd.f32 %v5099, %v5101
    %v5104 = vmul.f32 %v4974, %v5070
    %v5105 = vmul.f32 %v4975, %v5071
    %v5106 = vadd.f32 %v5102, %v5104
    %v5107 = vadd.f32 %v5103, %v5105
    %v5108 = vmul.f32 %v4924, %v5004
    %v5109 = vmul.f32 %v4925, %v5005
    %v5110 = vmul.f32 %v4954, %v5011
    %v5111 = vmul.f32 %v4955, %v5012
    %v5112 = vadd.f32 %v5108, %v5110
    %v5113 = vadd.f32 %v5109, %v5111
    %v5114 = vmul.f32 %v4984, %v5020
    %v5115 = vmul.f32 %v4985, %v5021
    %v5116 = vadd.f32 %v5112, %v5114
    %v5117 = vadd.f32 %v5113, %v5115
    %v5118 = vmul.f32 %v4924, %v5029
    %v5119 = vmul.f32 %v4925, %v5030
    %v5120 = vmul.f32 %v4954, %v5036
    %v5121 = vmul.f32 %v4955, %v5037
    %v5122 = vadd.f32 %v5118, %v5120
    %v5123 = vadd.f32 %v5119, %v5121
    %v5124 = vmul.f32 %v4984, %v5045
    %v5125 = vmul.f32 %v4985, %v5046
    %v5126 = vadd.f32 %v5122, %v5124
    %v5127 = vadd.f32 %v5123, %v5125
    %v5128 = vmul.f32 %v4924, %v5054
    %v5129 = vmul.f32 %v4925, %v5055
    %v5130 = vmul.f32 %v4954, %v5061
    %v5131 = vmul.f32 %v4955, %v5062
    %v5132 = vadd.f32 %v5128, %v5130
    %v5133 = vadd.f32 %v5129, %v5131
    %v5134 = vmul.f32 %v4984, %v5070
    %v5135 = vmul.f32 %v4985, %v5071
    %v5136 = vadd.f32 %v5132, %v5134
    %v5137 = vadd.f32 %v5133, %v5135
    %v5138 = vadd.f32 %v5026, %v5096
    %v5139 = vadd.f32 %v5027, %v5097
    %v5140 = vadd.f32 %v5138, %v5136
    %v5141 = vadd.f32 %v5139, %v5137
    %v5142 = vmul.f32 %v5140, 0.5
    %v5143 = vmul.f32 %v5141, 0.5
    %v5144 = vsub.f32 %v5142, 0.5
    %v5145 = vsub.f32 %v5143, 0.5
    %v5146 = vmax.f32 %v5144, -0.999999
    %v5147 = vmax.f32 %v5145, -0.999999
    %v5148 = vmin.f32 %v5146, 0.999999
    %v5149 = vmin.f32 %v5147, 0.999999
    %v5150 = vmul.f32 %v5148, %v5148
    %v5151 = vmul.f32 %v5149, %v5149
    %v5152 = vsub.f32 1.0, %v5150
    %v5153 = vsub.f32 1.0, %v5151
    %v5154 = vmax.f32 %v5152, 1e-12
    %v5155 = vmax.f32 %v5153, 1e-12
    %v5156 = vrsqrt.pop %v5154
    %v5157 = vmul.f32 %v5156, %v5154
    %v5158 = vmul.f32 %v5157, %v5156
    %v5159 = vmul.f32 0.5, %v5158
    %v5160 = vsub.f32 1.5, %v5159
    %v5161 = vmul.f32 %v5156, %v5160
    %v5162 = vmul.f32 %v5154, %v5161
    %vm5163 = vcmp.eq.f32.partialorder %v5154, inf
    %v5164 = vsel %vm5163, %v5154, %v5162
    %vm5165 = vcmp.eq.f32.partialorder %v5154, 0.0
    %v5166 = vand.u32 %v5154, 2147483648
    %v5167 = vsel %vm5165, %v5166, %v5164
    %v5168 = vrsqrt.pop %v5155
    %v5169 = vmul.f32 %v5168, %v5155
    %v5170 = vmul.f32 %v5169, %v5168
    %v5171 = vmul.f32 0.5, %v5170
    %v5172 = vsub.f32 1.5, %v5171
    %v5173 = vmul.f32 %v5168, %v5172
    %v5174 = vmul.f32 %v5155, %v5173
    %vm5175 = vcmp.eq.f32.partialorder %v5155, inf
    %v5176 = vsel %vm5175, %v5155, %v5174
    %vm5177 = vcmp.eq.f32.partialorder %v5155, 0.0
    %v5178 = vand.u32 %v5155, 2147483648
    %v5179 = vsel %vm5177, %v5178, %v5176
    %v5180 = vsub.f32 1.5707964, %v5148
    %v5181 = vsub.f32 1.5707964, %v5149
    %v5182 = vand.u32 2147483647, %v5180
    %vm5183 = vcmp.le.f32.partialorder %v5182, 0.7853982
    %vm5184 = vcmp.lt.s32.totalorder %v5180, 0
    %v5185 = vand.u32 %v5180, 2139095040
    %v5186 = vshrl.u32 %v5185, 23
    %v5187 = vsub.s32 %v5186, 127
    %v5188 = vand.u32 2147483647, %v5180
    %v5189 = vand.u32 %v5188, 8388607
    %v5190 = vor.u32 %v5189, 8388608
    %v5191 = vsub.s32 0, %v5190
    %v5192 = vadd.s32 %v5187, 1
    %vm5193 = vcmp.gt.s32.totalorder %v5192, 0
    %v5194 = vsel %vm5193, %v5192, 0
    %v5195 = vshrl.u32 %v5194, 5
    %v5196 = vand.u32 %v5194, 31
    %v5197 = vsub.s32 32, %v5196
    %v5198 = vshrl.u32 683565275, %v5197
    %v5199 = vshll.u32 683565275, %v5196
    %v5200 = vshrl.u32 2475754826, %v5197
    %v5201 = vor.u32 %v5199, %v5200
    %v5202 = vshll.u32 2475754826, %v5196
    %v5203 = vshrl.u32 2131351028, %v5197
    %v5204 = vor.u32 %v5202, %v5203
    %v5205 = vshll.u32 2131351028, %v5196
    %v5206 = vshrl.u32 2102212464, %v5197
    %v5207 = vor.u32 %v5205, %v5206
    %v5208 = vshll.u32 2102212464, %v5196
    %v5209 = vshrl.u32 920167782, %v5197
    %v5210 = vor.u32 %v5208, %v5209
    %v5211 = vshll.u32 920167782, %v5196
    %v5212 = vshrl.u32 1326507024, %v5197
    %v5213 = vor.u32 %v5211, %v5212
    %vm5214 = vcmp.lt.s32.totalorder %v5195, 1
    %vm5215 = vcmp.lt.s32.totalorder %v5195, 2
    %vm5216 = vcmp.lt.s32.totalorder %v5195, 3
    %vm5217 = vcmp.lt.s32.totalorder %v5195, 4
    %v5218 = vsel %vm5214, %v5198, %v5201
    %v5219 = vsel %vm5217, %v5207, 2102212464
    %v5220 = vsel %vm5216, %v5204, %v5219
    %v5221 = vsel %vm5215, %v5218, %v5220
    %v5222 = vsel %vm5214, %v5201, %v5204
    %v5223 = vsel %vm5217, %v5210, 920167782
    %v5224 = vsel %vm5216, %v5207, %v5223
    %v5225 = vsel %vm5215, %v5222, %v5224
    %v5226 = vsel %vm5214, %v5204, %v5207
    %v5227 = vsel %vm5217, %v5213, 1326507024
    %v5228 = vsel %vm5216, %v5210, %v5227
    %v5229 = vsel %vm5215, %v5226, %v5228
    %v5230 = vshll.u32 %v5190, 8
    %v5231 = vand.u32 %v5230, 65535
    %v5232 = vshrl.u32 %v5230, 16
    %v5233 = vand.u32 %v5229, 65535
    %v5234 = vshrl.u32 %v5229, 16
    %v5235 = vmul.u32 %v5231, %v5233
    %v5236 = vmul.u32 %v5231, %v5234
    %v5237 = vmul.u32 %v5232, %v5233
    %v5238 = vmul.u32 %v5232, %v5234
    %v5239 = vshll.u32 %v5236, 16
    %v5240 = vshrl.u32 %v5236, 16
    %v5241 = vshll.u32 %v5237, 16
    %v5242 = vshrl.u32 %v5237, 16
    %vm5243 = vc.u32 %v5235, %v5239
    %v5244 = vsel %vm5243, 1, 0
    %v5245 = vadd.s32 %v5235, %v5239
    %v5246 = vadd.s32 %v5238, %v5244
    %vm5247 = vc.u32 %v5245, %v5241
    %v5248 = vsel %vm5247, 1, 0
    %v5249 = vadd.s32 %v5245, %v5241
    %v5250 = vadd.s32 %v5246, %v5248
    %v5251 = vadd.s32 %v5250, %v5240
    %v5252 = vadd.s32 %v5251, %v5242
    %v5253 = vand.u32 %v5230, 65535
    %v5254 = vshrl.u32 %v5230, 16
    %v5255 = vand.u32 %v5225, 65535
    %v5256 = vshrl.u32 %v5225, 16
    %v5257 = vmul.u32 %v5253, %v5255
    %v5258 = vmul.u32 %v5253, %v5256
    %v5259 = vmul.u32 %v5254, %v5255
    %v5260 = vmul.u32 %v5254, %v5256
    %v5261 = vshll.u32 %v5258, 16
    %v5262 = vshrl.u32 %v5258, 16
    %v5263 = vshll.u32 %v5259, 16
    %v5264 = vshrl.u32 %v5259, 16
    %vm5265 = vc.u32 %v5257, %v5261
    %v5266 = vsel %vm5265, 1, 0
    %v5267 = vadd.s32 %v5257, %v5261
    %v5268 = vadd.s32 %v5260, %v5266
    %vm5269 = vc.u32 %v5267, %v5263
    %v5270 = vsel %vm5269, 1, 0
    %v5271 = vadd.s32 %v5267, %v5263
    %v5272 = vadd.s32 %v5268, %v5270
    %v5273 = vadd.s32 %v5272, %v5262
    %v5274 = vadd.s32 %v5273, %v5264
    %v5275 = vmul.u32 %v5230, %v5221
    %v5276 = vadd.s32 %v5252, %v5271
    %vm5277 = vc.u32 %v5252, %v5271
    %v5278 = vadd.s32 %v5274, 1
    %v5279 = vsel %vm5277, %v5278, %v5274
    %v5280 = vadd.s32 %v5275, %v5279
    %v5281 = vadd.s32 %v5280, 536870912
    %v5282 = vshrl.u32 %v5281, 30
    %v5283 = vshll.u32 %v5282, 30
    %v5284 = vsub.s32 %v5280, %v5283
    %vm5285 = vcmp.lt.s32.totalorder %v5284, 0
    %v5286 = vsub.s32 0, %v5284
    %v5287 = vsel %vm5285, %v5286, %v5284
    %v5288 = vclz %v5287
    %v5289 = vsub.s32 %v5288, 2
    %vm5290 = vcmp.gt.s32.totalorder 0, %v5289
    %v5291 = vsel %vm5290, 0, %v5289
    %v5292 = vsub.s32 32, %v5291
    %v5293 = vshll.u32 %v5284, %v5291
    %v5294 = vshrl.u32 %v5276, %v5292
    %v5295 = vor.u32 %v5293, %v5294
    %v5296 = vsub.s32 4294967266, %v5291
    %v5297 = vadd.s32 %v5296, 127
    %v5298 = vshll.u32 %v5297, 23
    %v5299 = vor.u32 4788187, %v5298
    %v5300 = vand.u32 2147483647, %v5299
    %v5302 = vcvt.s32.f32 %v5295
    %v5303 = vmul.f32 %v5302, %v5300
    %v5304 = vxor.u32 %v5303, 2147483648
    %v5305 = vsel %vm5184, %v5304, %v5303
    %v5306 = vsub.s32 4, %v5282
    %v5307 = vsel %vm5184, %v5306, %v5282
    %v5308 = vsel %vm5183, %v5180, %v5305
    %v5309 = vsel %vm5183, 0, %v5307
    %v5310 = vmul.f32 %v5308, %v5308
    %v5311 = vmul.f32 %v5310, -0.001358992
    %v5312 = vadd.f32 %v5311, 0.041655596
    %v5313 = vmul.f32 %v5310, %v5312
    %v5314 = vadd.f32 %v5313, -0.4999988
    %v5315 = vmul.f32 %v5310, %v5314
    %v5316 = vadd.f32 1.0, %v5315
    %v5317 = vmul.f32 %v5308, %v5308
    %v5318 = vmul.f32 %v5317, -0.00019511016
    %v5319 = vadd.f32 %v5318, 0.008332121
    %v5320 = vmul.f32 %v5317, %v5319
    %v5321 = vadd.f32 %v5320, -0.16666654
    %v5322 = vmul.f32 %v5317, %v5321
    %v5323 = vadd.f32 %v5322, 1.0
    %v5324 = vmul.f32 %v5323, %v5308
    %vm5325 = vweird.f32 %v5180
    %v5326 = vadd.s32 %v5309, 3
    %v5327 = vand.u32 %v5326, 3
    %vm5328 = vcmp.lt.s32.totalorder %v5327, 2
    %vm5329 = vcmp.eq.s32.totalorder %v5327, 0
    %v5330 = vxor.u32 %v5324, 2147483648
    %v5331 = vsel %vm5329, %v5316, %v5330
    %vm5332 = vcmp.eq.s32.totalorder %v5327, 2
    %v5333 = vxor.u32 %v5316, 2147483648
    %v5334 = vsel %vm5332, %v5333, %v5324
    %v5335 = vsel %vm5328, %v5331, %v5334
    %v5336 = vsel %vm5325, nan, %v5335
    %v5337 = vand.u32 2147483647, %v5181
    %vm5338 = vcmp.le.f32.partialorder %v5337, 0.7853982
    %vm5339 = vcmp.lt.s32.totalorder %v5181, 0
    %v5340 = vand.u32 %v5181, 2139095040
    %v5341 = vshrl.u32 %v5340, 23
    %v5342 = vsub.s32 %v5341, 127
    %v5343 = vand.u32 2147483647, %v5181
    %v5344 = vand.u32 %v5343, 8388607
    %v5345 = vor.u32 %v5344, 8388608
    %v5346 = vsub.s32 0, %v5345
    %v5347 = vadd.s32 %v5342, 1
    %vm5348 = vcmp.gt.s32.totalorder %v5347, 0
    %v5349 = vsel %vm5348, %v5347, 0
    %v5350 = vshrl.u32 %v5349, 5
    %v5351 = vand.u32 %v5349, 31
    %v5352 = vsub.s32 32, %v5351
    %v5353 = vshrl.u32 683565275, %v5352
    %v5354 = vshll.u32 683565275, %v5351
    %v5355 = vshrl.u32 2475754826, %v5352
    %v5356 = vor.u32 %v5354, %v5355
    %v5357 = vshll.u32 2475754826, %v5351
    %v5358 = vshrl.u32 2131351028, %v5352
    %v5359 = vor.u32 %v5357, %v5358
    %v5360 = vshll.u32 2131351028, %v5351
    %v5361 = vshrl.u32 2102212464, %v5352
    %v5362 = vor.u32 %v5360, %v5361
    %v5363 = vshll.u32 2102212464, %v5351
    %v5364 = vshrl.u32 920167782, %v5352
    %v5365 = vor.u32 %v5363, %v5364
    %v5366 = vshll.u32 920167782, %v5351
    %v5367 = vshrl.u32 1326507024, %v5352
    %v5368 = vor.u32 %v5366, %v5367
    %vm5369 = vcmp.lt.s32.totalorder %v5350, 1
    %vm5370 = vcmp.lt.s32.totalorder %v5350, 2
    %vm5371 = vcmp.lt.s32.totalorder %v5350, 3
    %vm5372 = vcmp.lt.s32.totalorder %v5350, 4
    %v5373 = vsel %vm5369, %v5353, %v5356
    %v5374 = vsel %vm5372, %v5362, 2102212464
    %v5375 = vsel %vm5371, %v5359, %v5374
    %v5376 = vsel %vm5370, %v5373, %v5375
    %v5377 = vsel %vm5369, %v5356, %v5359
    %v5378 = vsel %vm5372, %v5365, 920167782
    %v5379 = vsel %vm5371, %v5362, %v5378
    %v5380 = vsel %vm5370, %v5377, %v5379
    %v5381 = vsel %vm5369, %v5359, %v5362
    %v5382 = vsel %vm5372, %v5368, 1326507024
    %v5383 = vsel %vm5371, %v5365, %v5382
    %v5384 = vsel %vm5370, %v5381, %v5383
    %v5385 = vshll.u32 %v5345, 8
    %v5386 = vand.u32 %v5385, 65535
    %v5387 = vshrl.u32 %v5385, 16
    %v5388 = vand.u32 %v5384, 65535
    %v5389 = vshrl.u32 %v5384, 16
    %v5390 = vmul.u32 %v5386, %v5388
    %v5391 = vmul.u32 %v5386, %v5389
    %v5392 = vmul.u32 %v5387, %v5388
    %v5393 = vmul.u32 %v5387, %v5389
    %v5394 = vshll.u32 %v5391, 16
    %v5395 = vshrl.u32 %v5391, 16
    %v5396 = vshll.u32 %v5392, 16
    %v5397 = vshrl.u32 %v5392, 16
    %vm5398 = vc.u32 %v5390, %v5394
    %v5399 = vsel %vm5398, 1, 0
    %v5400 = vadd.s32 %v5390, %v5394
    %v5401 = vadd.s32 %v5393, %v5399
    %vm5402 = vc.u32 %v5400, %v5396
    %v5403 = vsel %vm5402, 1, 0
    %v5404 = vadd.s32 %v5400, %v5396
    %v5405 = vadd.s32 %v5401, %v5403
    %v5406 = vadd.s32 %v5405, %v5395
    %v5407 = vadd.s32 %v5406, %v5397
    %v5408 = vand.u32 %v5385, 65535
    %v5409 = vshrl.u32 %v5385, 16
    %v5410 = vand.u32 %v5380, 65535
    %v5411 = vshrl.u32 %v5380, 16
    %v5412 = vmul.u32 %v5408, %v5410
    %v5413 = vmul.u32 %v5408, %v5411
    %v5414 = vmul.u32 %v5409, %v5410
    %v5415 = vmul.u32 %v5409, %v5411
    %v5416 = vshll.u32 %v5413, 16
    %v5417 = vshrl.u32 %v5413, 16
    %v5418 = vshll.u32 %v5414, 16
    %v5419 = vshrl.u32 %v5414, 16
    %vm5420 = vc.u32 %v5412, %v5416
    %v5421 = vsel %vm5420, 1, 0
    %v5422 = vadd.s32 %v5412, %v5416
    %v5423 = vadd.s32 %v5415, %v5421
    %vm5424 = vc.u32 %v5422, %v5418
    %v5425 = vsel %vm5424, 1, 0
    %v5426 = vadd.s32 %v5422, %v5418
    %v5427 = vadd.s32 %v5423, %v5425
    %v5428 = vadd.s32 %v5427, %v5417
    %v5429 = vadd.s32 %v5428, %v5419
    %v5430 = vmul.u32 %v5385, %v5376
    %v5431 = vadd.s32 %v5407, %v5426
    %vm5432 = vc.u32 %v5407, %v5426
    %v5433 = vadd.s32 %v5429, 1
    %v5434 = vsel %vm5432, %v5433, %v5429
    %v5435 = vadd.s32 %v5430, %v5434
    %v5436 = vadd.s32 %v5435, 536870912
    %v5437 = vshrl.u32 %v5436, 30
    %v5438 = vshll.u32 %v5437, 30
    %v5439 = vsub.s32 %v5435, %v5438
    %vm5440 = vcmp.lt.s32.totalorder %v5439, 0
    %v5441 = vsub.s32 0, %v5439
    %v5442 = vsel %vm5440, %v5441, %v5439
    %v5443 = vclz %v5442
    %v5444 = vsub.s32 %v5443, 2
    %vm5445 = vcmp.gt.s32.totalorder 0, %v5444
    %v5446 = vsel %vm5445, 0, %v5444
    %v5447 = vsub.s32 32, %v5446
    %v5448 = vshll.u32 %v5439, %v5446
    %v5449 = vshrl.u32 %v5431, %v5447
    %v5450 = vor.u32 %v5448, %v5449
    %v5451 = vsub.s32 4294967266, %v5446
    %v5452 = vadd.s32 %v5451, 127
    %v5453 = vshll.u32 %v5452, 23
    %v5454 = vor.u32 4788187, %v5453
    %v5455 = vand.u32 2147483647, %v5454
    %v5457 = vcvt.s32.f32 %v5450
    %v5458 = vmul.f32 %v5457, %v5455
    %v5459 = vxor.u32 %v5458, 2147483648
    %v5460 = vsel %vm5339, %v5459, %v5458
    %v5461 = vsub.s32 4, %v5437
    %v5462 = vsel %vm5339, %v5461, %v5437
    %v5463 = vsel %vm5338, %v5181, %v5460
    %v5464 = vsel %vm5338, 0, %v5462
    %v5465 = vmul.f32 %v5463, %v5463
    %v5466 = vmul.f32 %v5465, -0.001358992
    %v5467 = vadd.f32 %v5466, 0.041655596
    %v5468 = vmul.f32 %v5465, %v5467
    %v5469 = vadd.f32 %v5468, -0.4999988
    %v5470 = vmul.f32 %v5465, %v5469
    %v5471 = vadd.f32 1.0, %v5470
    %v5472 = vmul.f32 %v5463, %v5463
    %v5473 = vmul.f32 %v5472, -0.00019511016
    %v5474 = vadd.f32 %v5473, 0.008332121
    %v5475 = vmul.f32 %v5472, %v5474
    %v5476 = vadd.f32 %v5475, -0.16666654
    %v5477 = vmul.f32 %v5472, %v5476
    %v5478 = vadd.f32 %v5477, 1.0
    %v5479 = vmul.f32 %v5478, %v5463
    %vm5480 = vweird.f32 %v5181
    %v5481 = vadd.s32 %v5464, 3
    %v5482 = vand.u32 %v5481, 3
    %vm5483 = vcmp.lt.s32.totalorder %v5482, 2
    %vm5484 = vcmp.eq.s32.totalorder %v5482, 0
    %v5485 = vxor.u32 %v5479, 2147483648
    %v5486 = vsel %vm5484, %v5471, %v5485
    %vm5487 = vcmp.eq.s32.totalorder %v5482, 2
    %v5488 = vxor.u32 %v5471, 2147483648
    %v5489 = vsel %vm5487, %v5488, %v5479
    %v5490 = vsel %vm5483, %v5486, %v5489
    %v5491 = vsel %vm5480, nan, %v5490
    %v5492 = vmul.f32 %v5336, %v5148
    %v5493 = vmul.f32 %v5491, %v5149
    %v5494 = vand.u32 2147483647, %v5180
    %vm5495 = vcmp.le.f32.partialorder %v5494, 0.7853982
    %vm5496 = vcmp.lt.s32.totalorder %v5180, 0
    %v5497 = vand.u32 %v5180, 2139095040
    %v5498 = vshrl.u32 %v5497, 23
    %v5499 = vsub.s32 %v5498, 127
    %v5500 = vand.u32 2147483647, %v5180
    %v5501 = vand.u32 %v5500, 8388607
    %v5502 = vor.u32 %v5501, 8388608
    %v5503 = vsub.s32 0, %v5502
    %v5504 = vadd.s32 %v5499, 1
    %vm5505 = vcmp.gt.s32.totalorder %v5504, 0
    %v5506 = vsel %vm5505, %v5504, 0
    %v5507 = vshrl.u32 %v5506, 5
    %v5508 = vand.u32 %v5506, 31
    %v5509 = vsub.s32 32, %v5508
    %v5510 = vshrl.u32 683565275, %v5509
    %v5511 = vshll.u32 683565275, %v5508
    %v5512 = vshrl.u32 2475754826, %v5509
    %v5513 = vor.u32 %v5511, %v5512
    %v5514 = vshll.u32 2475754826, %v5508
    %v5515 = vshrl.u32 2131351028, %v5509
    %v5516 = vor.u32 %v5514, %v5515
    %v5517 = vshll.u32 2131351028, %v5508
    %v5518 = vshrl.u32 2102212464, %v5509
    %v5519 = vor.u32 %v5517, %v5518
    %v5520 = vshll.u32 2102212464, %v5508
    %v5521 = vshrl.u32 920167782, %v5509
    %v5522 = vor.u32 %v5520, %v5521
    %v5523 = vshll.u32 920167782, %v5508
    %v5524 = vshrl.u32 1326507024, %v5509
    %v5525 = vor.u32 %v5523, %v5524
    %vm5526 = vcmp.lt.s32.totalorder %v5507, 1
    %vm5527 = vcmp.lt.s32.totalorder %v5507, 2
    %vm5528 = vcmp.lt.s32.totalorder %v5507, 3
    %vm5529 = vcmp.lt.s32.totalorder %v5507, 4
    %v5530 = vsel %vm5526, %v5510, %v5513
    %v5531 = vsel %vm5529, %v5519, 2102212464
    %v5532 = vsel %vm5528, %v5516, %v5531
    %v5533 = vsel %vm5527, %v5530, %v5532
    %v5534 = vsel %vm5526, %v5513, %v5516
    %v5535 = vsel %vm5529, %v5522, 920167782
    %v5536 = vsel %vm5528, %v5519, %v5535
    %v5537 = vsel %vm5527, %v5534, %v5536
    %v5538 = vsel %vm5526, %v5516, %v5519
    %v5539 = vsel %vm5529, %v5525, 1326507024
    %v5540 = vsel %vm5528, %v5522, %v5539
    %v5541 = vsel %vm5527, %v5538, %v5540
    %v5542 = vshll.u32 %v5502, 8
    %v5543 = vand.u32 %v5542, 65535
    %v5544 = vshrl.u32 %v5542, 16
    %v5545 = vand.u32 %v5541, 65535
    %v5546 = vshrl.u32 %v5541, 16
    %v5547 = vmul.u32 %v5543, %v5545
    %v5548 = vmul.u32 %v5543, %v5546
    %v5549 = vmul.u32 %v5544, %v5545
    %v5550 = vmul.u32 %v5544, %v5546
    %v5551 = vshll.u32 %v5548, 16
    %v5552 = vshrl.u32 %v5548, 16
    %v5553 = vshll.u32 %v5549, 16
    %v5554 = vshrl.u32 %v5549, 16
    %vm5555 = vc.u32 %v5547, %v5551
    %v5556 = vsel %vm5555, 1, 0
    %v5557 = vadd.s32 %v5547, %v5551
    %v5558 = vadd.s32 %v5550, %v5556
    %vm5559 = vc.u32 %v5557, %v5553
    %v5560 = vsel %vm5559, 1, 0
    %v5561 = vadd.s32 %v5557, %v5553
    %v5562 = vadd.s32 %v5558, %v5560
    %v5563 = vadd.s32 %v5562, %v5552
    %v5564 = vadd.s32 %v5563, %v5554
    %v5565 = vand.u32 %v5542, 65535
    %v5566 = vshrl.u32 %v5542, 16
    %v5567 = vand.u32 %v5537, 65535
    %v5568 = vshrl.u32 %v5537, 16
    %v5569 = vmul.u32 %v5565, %v5567
    %v5570 = vmul.u32 %v5565, %v5568
    %v5571 = vmul.u32 %v5566, %v5567
    %v5572 = vmul.u32 %v5566, %v5568
    %v5573 = vshll.u32 %v5570, 16
    %v5574 = vshrl.u32 %v5570, 16
    %v5575 = vshll.u32 %v5571, 16
    %v5576 = vshrl.u32 %v5571, 16
    %vm5577 = vc.u32 %v5569, %v5573
    %v5578 = vsel %vm5577, 1, 0
    %v5579 = vadd.s32 %v5569, %v5573
    %v5580 = vadd.s32 %v5572, %v5578
    %vm5581 = vc.u32 %v5579, %v5575
    %v5582 = vsel %vm5581, 1, 0
    %v5583 = vadd.s32 %v5579, %v5575
    %v5584 = vadd.s32 %v5580, %v5582
    %v5585 = vadd.s32 %v5584, %v5574
    %v5586 = vadd.s32 %v5585, %v5576
    %v5587 = vmul.u32 %v5542, %v5533
    %v5588 = vadd.s32 %v5564, %v5583
    %vm5589 = vc.u32 %v5564, %v5583
    %v5590 = vadd.s32 %v5586, 1
    %v5591 = vsel %vm5589, %v5590, %v5586
    %v5592 = vadd.s32 %v5587, %v5591
    %v5593 = vadd.s32 %v5592, 536870912
    %v5594 = vshrl.u32 %v5593, 30
    %v5595 = vshll.u32 %v5594, 30
    %v5596 = vsub.s32 %v5592, %v5595
    %vm5597 = vcmp.lt.s32.totalorder %v5596, 0
    %v5598 = vsub.s32 0, %v5596
    %v5599 = vsel %vm5597, %v5598, %v5596
    %v5600 = vclz %v5599
    %v5601 = vsub.s32 %v5600, 2
    %vm5602 = vcmp.gt.s32.totalorder 0, %v5601
    %v5603 = vsel %vm5602, 0, %v5601
    %v5604 = vsub.s32 32, %v5603
    %v5605 = vshll.u32 %v5596, %v5603
    %v5606 = vshrl.u32 %v5588, %v5604
    %v5607 = vor.u32 %v5605, %v5606
    %v5608 = vsub.s32 4294967266, %v5603
    %v5609 = vadd.s32 %v5608, 127
    %v5610 = vshll.u32 %v5609, 23
    %v5611 = vor.u32 4788187, %v5610
    %v5612 = vand.u32 2147483647, %v5611
    %v5614 = vcvt.s32.f32 %v5607
    %v5615 = vmul.f32 %v5614, %v5612
    %v5616 = vxor.u32 %v5615, 2147483648
    %v5617 = vsel %vm5496, %v5616, %v5615
    %v5618 = vsub.s32 4, %v5594
    %v5619 = vsel %vm5496, %v5618, %v5594
    %v5620 = vsel %vm5495, %v5180, %v5617
    %v5621 = vsel %vm5495, 0, %v5619
    %v5622 = vmul.f32 %v5620, %v5620
    %v5623 = vmul.f32 %v5622, -0.001358992
    %v5624 = vadd.f32 %v5623, 0.041655596
    %v5625 = vmul.f32 %v5622, %v5624
    %v5626 = vadd.f32 %v5625, -0.4999988
    %v5627 = vmul.f32 %v5622, %v5626
    %v5628 = vadd.f32 1.0, %v5627
    %v5629 = vmul.f32 %v5620, %v5620
    %v5630 = vmul.f32 %v5629, -0.00019511016
    %v5631 = vadd.f32 %v5630, 0.008332121
    %v5632 = vmul.f32 %v5629, %v5631
    %v5633 = vadd.f32 %v5632, -0.16666654
    %v5634 = vmul.f32 %v5629, %v5633
    %v5635 = vadd.f32 %v5634, 1.0
    %v5636 = vmul.f32 %v5635, %v5620
    %vm5637 = vweird.f32 %v5180
    %v5638 = vand.u32 %v5621, 3
    %vm5639 = vcmp.lt.s32.totalorder %v5638, 2
    %vm5640 = vcmp.eq.s32.totalorder %v5638, 0
    %v5641 = vxor.u32 %v5636, 2147483648
    %v5642 = vsel %vm5640, %v5628, %v5641
    %vm5643 = vcmp.eq.s32.totalorder %v5638, 2
    %v5644 = vxor.u32 %v5628, 2147483648
    %v5645 = vsel %vm5643, %v5644, %v5636
    %v5646 = vsel %vm5639, %v5642, %v5645
    %v5647 = vsel %vm5637, nan, %v5646
    %v5648 = vand.u32 2147483647, %v5181
    %vm5649 = vcmp.le.f32.partialorder %v5648, 0.7853982
    %vm5650 = vcmp.lt.s32.totalorder %v5181, 0
    %v5651 = vand.u32 %v5181, 2139095040
    %v5652 = vshrl.u32 %v5651, 23
    %v5653 = vsub.s32 %v5652, 127
    %v5654 = vand.u32 2147483647, %v5181
    %v5655 = vand.u32 %v5654, 8388607
    %v5656 = vor.u32 %v5655, 8388608
    %v5657 = vsub.s32 0, %v5656
    %v5658 = vadd.s32 %v5653, 1
    %vm5659 = vcmp.gt.s32.totalorder %v5658, 0
    %v5660 = vsel %vm5659, %v5658, 0
    %v5661 = vshrl.u32 %v5660, 5
    %v5662 = vand.u32 %v5660, 31
    %v5663 = vsub.s32 32, %v5662
    %v5664 = vshrl.u32 683565275, %v5663
    %v5665 = vshll.u32 683565275, %v5662
    %v5666 = vshrl.u32 2475754826, %v5663
    %v5667 = vor.u32 %v5665, %v5666
    %v5668 = vshll.u32 2475754826, %v5662
    %v5669 = vshrl.u32 2131351028, %v5663
    %v5670 = vor.u32 %v5668, %v5669
    %v5671 = vshll.u32 2131351028, %v5662
    %v5672 = vshrl.u32 2102212464, %v5663
    %v5673 = vor.u32 %v5671, %v5672
    %v5674 = vshll.u32 2102212464, %v5662
    %v5675 = vshrl.u32 920167782, %v5663
    %v5676 = vor.u32 %v5674, %v5675
    %v5677 = vshll.u32 920167782, %v5662
    %v5678 = vshrl.u32 1326507024, %v5663
    %v5679 = vor.u32 %v5677, %v5678
    %vm5680 = vcmp.lt.s32.totalorder %v5661, 1
    %vm5681 = vcmp.lt.s32.totalorder %v5661, 2
    %vm5682 = vcmp.lt.s32.totalorder %v5661, 3
    %vm5683 = vcmp.lt.s32.totalorder %v5661, 4
    %v5684 = vsel %vm5680, %v5664, %v5667
    %v5685 = vsel %vm5683, %v5673, 2102212464
    %v5686 = vsel %vm5682, %v5670, %v5685
    %v5687 = vsel %vm5681, %v5684, %v5686
    %v5688 = vsel %vm5680, %v5667, %v5670
    %v5689 = vsel %vm5683, %v5676, 920167782
    %v5690 = vsel %vm5682, %v5673, %v5689
    %v5691 = vsel %vm5681, %v5688, %v5690
    %v5692 = vsel %vm5680, %v5670, %v5673
    %v5693 = vsel %vm5683, %v5679, 1326507024
    %v5694 = vsel %vm5682, %v5676, %v5693
    %v5695 = vsel %vm5681, %v5692, %v5694
    %v5696 = vshll.u32 %v5656, 8
    %v5697 = vand.u32 %v5696, 65535
    %v5698 = vshrl.u32 %v5696, 16
    %v5699 = vand.u32 %v5695, 65535
    %v5700 = vshrl.u32 %v5695, 16
    %v5701 = vmul.u32 %v5697, %v5699
    %v5702 = vmul.u32 %v5697, %v5700
    %v5703 = vmul.u32 %v5698, %v5699
    %v5704 = vmul.u32 %v5698, %v5700
    %v5705 = vshll.u32 %v5702, 16
    %v5706 = vshrl.u32 %v5702, 16
    %v5707 = vshll.u32 %v5703, 16
    %v5708 = vshrl.u32 %v5703, 16
    %vm5709 = vc.u32 %v5701, %v5705
    %v5710 = vsel %vm5709, 1, 0
    %v5711 = vadd.s32 %v5701, %v5705
    %v5712 = vadd.s32 %v5704, %v5710
    %vm5713 = vc.u32 %v5711, %v5707
    %v5714 = vsel %vm5713, 1, 0
    %v5715 = vadd.s32 %v5711, %v5707
    %v5716 = vadd.s32 %v5712, %v5714
    %v5717 = vadd.s32 %v5716, %v5706
    %v5718 = vadd.s32 %v5717, %v5708
    %v5719 = vand.u32 %v5696, 65535
    %v5720 = vshrl.u32 %v5696, 16
    %v5721 = vand.u32 %v5691, 65535
    %v5722 = vshrl.u32 %v5691, 16
    %v5723 = vmul.u32 %v5719, %v5721
    %v5724 = vmul.u32 %v5719, %v5722
    %v5725 = vmul.u32 %v5720, %v5721
    %v5726 = vmul.u32 %v5720, %v5722
    %v5727 = vshll.u32 %v5724, 16
    %v5728 = vshrl.u32 %v5724, 16
    %v5729 = vshll.u32 %v5725, 16
    %v5730 = vshrl.u32 %v5725, 16
    %vm5731 = vc.u32 %v5723, %v5727
    %v5732 = vsel %vm5731, 1, 0
    %v5733 = vadd.s32 %v5723, %v5727
    %v5734 = vadd.s32 %v5726, %v5732
    %vm5735 = vc.u32 %v5733, %v5729
    %v5736 = vsel %vm5735, 1, 0
    %v5737 = vadd.s32 %v5733, %v5729
    %v5738 = vadd.s32 %v5734, %v5736
    %v5739 = vadd.s32 %v5738, %v5728
    %v5740 = vadd.s32 %v5739, %v5730
    %v5741 = vmul.u32 %v5696, %v5687
    %v5742 = vadd.s32 %v5718, %v5737
    %vm5743 = vc.u32 %v5718, %v5737
    %v5744 = vadd.s32 %v5740, 1
    %v5745 = vsel %vm5743, %v5744, %v5740
    %v5746 = vadd.s32 %v5741, %v5745
    %v5747 = vadd.s32 %v5746, 536870912
    %v5748 = vshrl.u32 %v5747, 30
    %v5749 = vshll.u32 %v5748, 30
    %v5750 = vsub.s32 %v5746, %v5749
    %vm5751 = vcmp.lt.s32.totalorder %v5750, 0
    %v5752 = vsub.s32 0, %v5750
    %v5753 = vsel %vm5751, %v5752, %v5750
    %v5754 = vclz %v5753
    %v5755 = vsub.s32 %v5754, 2
    %vm5756 = vcmp.gt.s32.totalorder 0, %v5755
    %v5757 = vsel %vm5756, 0, %v5755
    %v5758 = vsub.s32 32, %v5757
    %v5759 = vshll.u32 %v5750, %v5757
    %v5760 = vshrl.u32 %v5742, %v5758
    %v5761 = vor.u32 %v5759, %v5760
    %v5762 = vsub.s32 4294967266, %v5757
    %v5763 = vadd.s32 %v5762, 127
    %v5764 = vshll.u32 %v5763, 23
    %v5765 = vor.u32 4788187, %v5764
    %v5766 = vand.u32 2147483647, %v5765
    %v5768 = vcvt.s32.f32 %v5761
    %v5769 = vmul.f32 %v5768, %v5766
    %v5770 = vxor.u32 %v5769, 2147483648
    %v5771 = vsel %vm5650, %v5770, %v5769
    %v5772 = vsub.s32 4, %v5748
    %v5773 = vsel %vm5650, %v5772, %v5748
    %v5774 = vsel %vm5649, %v5181, %v5771
    %v5775 = vsel %vm5649, 0, %v5773
    %v5776 = vmul.f32 %v5774, %v5774
    %v5777 = vmul.f32 %v5776, -0.001358992
    %v5778 = vadd.f32 %v5777, 0.041655596
    %v5779 = vmul.f32 %v5776, %v5778
    %v5780 = vadd.f32 %v5779, -0.4999988
    %v5781 = vmul.f32 %v5776, %v5780
    %v5782 = vadd.f32 1.0, %v5781
    %v5783 = vmul.f32 %v5774, %v5774
    %v5784 = vmul.f32 %v5783, -0.00019511016
    %v5785 = vadd.f32 %v5784, 0.008332121
    %v5786 = vmul.f32 %v5783, %v5785
    %v5787 = vadd.f32 %v5786, -0.16666654
    %v5788 = vmul.f32 %v5783, %v5787
    %v5789 = vadd.f32 %v5788, 1.0
    %v5790 = vmul.f32 %v5789, %v5774
    %vm5791 = vweird.f32 %v5181
    %v5792 = vand.u32 %v5775, 3
    %vm5793 = vcmp.lt.s32.totalorder %v5792, 2
    %vm5794 = vcmp.eq.s32.totalorder %v5792, 0
    %v5795 = vxor.u32 %v5790, 2147483648
    %v5796 = vsel %vm5794, %v5782, %v5795
    %vm5797 = vcmp.eq.s32.totalorder %v5792, 2
    %v5798 = vxor.u32 %v5782, 2147483648
    %v5799 = vsel %vm5797, %v5798, %v5790
    %v5800 = vsel %vm5793, %v5796, %v5799
    %v5801 = vsel %vm5791, nan, %v5800
    %v5802 = vmul.f32 %v5647, %v5167
    %v5803 = vmul.f32 %v5801, %v5179
    %v5804 = vsub.f32 %v5492, %v5802
    %v5805 = vsub.f32 %v5493, %v5803
    %v5806 = vsub.f32 %v5180, %v5804
    %v5807 = vsub.f32 %v5181, %v5805
    %v5808 = vand.u32 2147483647, %v5806
    %vm5809 = vcmp.le.f32.partialorder %v5808, 0.7853982
    %vm5810 = vcmp.lt.s32.totalorder %v5806, 0
    %v5811 = vand.u32 %v5806, 2139095040
    %v5812 = vshrl.u32 %v5811, 23
    %v5813 = vsub.s32 %v5812, 127
    %v5814 = vand.u32 2147483647, %v5806
    %v5815 = vand.u32 %v5814, 8388607
    %v5816 = vor.u32 %v5815, 8388608
    %v5817 = vsub.s32 0, %v5816
    %v5818 = vadd.s32 %v5813, 1
    %vm5819 = vcmp.gt.s32.totalorder %v5818, 0
    %v5820 = vsel %vm5819, %v5818, 0
    %v5821 = vshrl.u32 %v5820, 5
    %v5822 = vand.u32 %v5820, 31
    %v5823 = vsub.s32 32, %v5822
    %v5824 = vshrl.u32 683565275, %v5823
    %v5825 = vshll.u32 683565275, %v5822
    %v5826 = vshrl.u32 2475754826, %v5823
    %v5827 = vor.u32 %v5825, %v5826
    %v5828 = vshll.u32 2475754826, %v5822
    %v5829 = vshrl.u32 2131351028, %v5823
    %v5830 = vor.u32 %v5828, %v5829
    %v5831 = vshll.u32 2131351028, %v5822
    %v5832 = vshrl.u32 2102212464, %v5823
    %v5833 = vor.u32 %v5831, %v5832
    %v5834 = vshll.u32 2102212464, %v5822
    %v5835 = vshrl.u32 920167782, %v5823
    %v5836 = vor.u32 %v5834, %v5835
    %v5837 = vshll.u32 920167782, %v5822
    %v5838 = vshrl.u32 1326507024, %v5823
    %v5839 = vor.u32 %v5837, %v5838
    %vm5840 = vcmp.lt.s32.totalorder %v5821, 1
    %vm5841 = vcmp.lt.s32.totalorder %v5821, 2
    %vm5842 = vcmp.lt.s32.totalorder %v5821, 3
    %vm5843 = vcmp.lt.s32.totalorder %v5821, 4
    %v5844 = vsel %vm5840, %v5824, %v5827
    %v5845 = vsel %vm5843, %v5833, 2102212464
    %v5846 = vsel %vm5842, %v5830, %v5845
    %v5847 = vsel %vm5841, %v5844, %v5846
    %v5848 = vsel %vm5840, %v5827, %v5830
    %v5849 = vsel %vm5843, %v5836, 920167782
    %v5850 = vsel %vm5842, %v5833, %v5849
    %v5851 = vsel %vm5841, %v5848, %v5850
    %v5852 = vsel %vm5840, %v5830, %v5833
    %v5853 = vsel %vm5843, %v5839, 1326507024
    %v5854 = vsel %vm5842, %v5836, %v5853
    %v5855 = vsel %vm5841, %v5852, %v5854
    %v5856 = vshll.u32 %v5816, 8
    %v5857 = vand.u32 %v5856, 65535
    %v5858 = vshrl.u32 %v5856, 16
    %v5859 = vand.u32 %v5855, 65535
    %v5860 = vshrl.u32 %v5855, 16
    %v5861 = vmul.u32 %v5857, %v5859
    %v5862 = vmul.u32 %v5857, %v5860
    %v5863 = vmul.u32 %v5858, %v5859
    %v5864 = vmul.u32 %v5858, %v5860
    %v5865 = vshll.u32 %v5862, 16
    %v5866 = vshrl.u32 %v5862, 16
    %v5867 = vshll.u32 %v5863, 16
    %v5868 = vshrl.u32 %v5863, 16
    %vm5869 = vc.u32 %v5861, %v5865
    %v5870 = vsel %vm5869, 1, 0
    %v5871 = vadd.s32 %v5861, %v5865
    %v5872 = vadd.s32 %v5864, %v5870
    %vm5873 = vc.u32 %v5871, %v5867
    %v5874 = vsel %vm5873, 1, 0
    %v5875 = vadd.s32 %v5871, %v5867
    %v5876 = vadd.s32 %v5872, %v5874
    %v5877 = vadd.s32 %v5876, %v5866
    %v5878 = vadd.s32 %v5877, %v5868
    %v5879 = vand.u32 %v5856, 65535
    %v5880 = vshrl.u32 %v5856, 16
    %v5881 = vand.u32 %v5851, 65535
    %v5882 = vshrl.u32 %v5851, 16
    %v5883 = vmul.u32 %v5879, %v5881
    %v5884 = vmul.u32 %v5879, %v5882
    %v5885 = vmul.u32 %v5880, %v5881
    %v5886 = vmul.u32 %v5880, %v5882
    %v5887 = vshll.u32 %v5884, 16
    %v5888 = vshrl.u32 %v5884, 16
    %v5889 = vshll.u32 %v5885, 16
    %v5890 = vshrl.u32 %v5885, 16
    %vm5891 = vc.u32 %v5883, %v5887
    %v5892 = vsel %vm5891, 1, 0
    %v5893 = vadd.s32 %v5883, %v5887
    %v5894 = vadd.s32 %v5886, %v5892
    %vm5895 = vc.u32 %v5893, %v5889
    %v5896 = vsel %vm5895, 1, 0
    %v5897 = vadd.s32 %v5893, %v5889
    %v5898 = vadd.s32 %v5894, %v5896
    %v5899 = vadd.s32 %v5898, %v5888
    %v5900 = vadd.s32 %v5899, %v5890
    %v5901 = vmul.u32 %v5856, %v5847
    %v5902 = vadd.s32 %v5878, %v5897
    %vm5903 = vc.u32 %v5878, %v5897
    %v5904 = vadd.s32 %v5900, 1
    %v5905 = vsel %vm5903, %v5904, %v5900
    %v5906 = vadd.s32 %v5901, %v5905
    %v5907 = vadd.s32 %v5906, 536870912
    %v5908 = vshrl.u32 %v5907, 30
    %v5909 = vshll.u32 %v5908, 30
    %v5910 = vsub.s32 %v5906, %v5909
    %vm5911 = vcmp.lt.s32.totalorder %v5910, 0
    %v5912 = vsub.s32 0, %v5910
    %v5913 = vsel %vm5911, %v5912, %v5910
    %v5914 = vclz %v5913
    %v5915 = vsub.s32 %v5914, 2
    %vm5916 = vcmp.gt.s32.totalorder 0, %v5915
    %v5917 = vsel %vm5916, 0, %v5915
    %v5918 = vsub.s32 32, %v5917
    %v5919 = vshll.u32 %v5910, %v5917
    %v5920 = vshrl.u32 %v5902, %v5918
    %v5921 = vor.u32 %v5919, %v5920
    %v5922 = vsub.s32 4294967266, %v5917
    %v5923 = vadd.s32 %v5922, 127
    %v5924 = vshll.u32 %v5923, 23
    %v5925 = vor.u32 4788187, %v5924
    %v5926 = vand.u32 2147483647, %v5925
    %v5928 = vcvt.s32.f32 %v5921
    %v5929 = vmul.f32 %v5928, %v5926
    %v5930 = vxor.u32 %v5929, 2147483648
    %v5931 = vsel %vm5810, %v5930, %v5929
    %v5932 = vsub.s32 4, %v5908
    %v5933 = vsel %vm5810, %v5932, %v5908
    %v5934 = vsel %vm5809, %v5806, %v5931
    %v5935 = vsel %vm5809, 0, %v5933
    %v5936 = vmul.f32 %v5934, %v5934
    %v5937 = vmul.f32 %v5936, -0.001358992
    %v5938 = vadd.f32 %v5937, 0.041655596
    %v5939 = vmul.f32 %v5936, %v5938
    %v5940 = vadd.f32 %v5939, -0.4999988
    %v5941 = vmul.f32 %v5936, %v5940
    %v5942 = vadd.f32 1.0, %v5941
    %v5943 = vmul.f32 %v5934, %v5934
    %v5944 = vmul.f32 %v5943, -0.00019511016
    %v5945 = vadd.f32 %v5944, 0.008332121
    %v5946 = vmul.f32 %v5943, %v5945
    %v5947 = vadd.f32 %v5946, -0.16666654
    %v5948 = vmul.f32 %v5943, %v5947
    %v5949 = vadd.f32 %v5948, 1.0
    %v5950 = vmul.f32 %v5949, %v5934
    %vm5951 = vweird.f32 %v5806
    %v5952 = vadd.s32 %v5935, 3
    %v5953 = vand.u32 %v5952, 3
    %vm5954 = vcmp.lt.s32.totalorder %v5953, 2
    %vm5955 = vcmp.eq.s32.totalorder %v5953, 0
    %v5956 = vxor.u32 %v5950, 2147483648
    %v5957 = vsel %vm5955, %v5942, %v5956
    %vm5958 = vcmp.eq.s32.totalorder %v5953, 2
    %v5959 = vxor.u32 %v5942, 2147483648
    %v5960 = vsel %vm5958, %v5959, %v5950
    %v5961 = vsel %vm5954, %v5957, %v5960
    %v5962 = vsel %vm5951, nan, %v5961
    %v5963 = vand.u32 2147483647, %v5807
    %vm5964 = vcmp.le.f32.partialorder %v5963, 0.7853982
    %vm5965 = vcmp.lt.s32.totalorder %v5807, 0
    %v5966 = vand.u32 %v5807, 2139095040
    %v5967 = vshrl.u32 %v5966, 23
    %v5968 = vsub.s32 %v5967, 127
    %v5969 = vand.u32 2147483647, %v5807
    %v5970 = vand.u32 %v5969, 8388607
    %v5971 = vor.u32 %v5970, 8388608
    %v5972 = vsub.s32 0, %v5971
    %v5973 = vadd.s32 %v5968, 1
    %vm5974 = vcmp.gt.s32.totalorder %v5973, 0
    %v5975 = vsel %vm5974, %v5973, 0
    %v5976 = vshrl.u32 %v5975, 5
    %v5977 = vand.u32 %v5975, 31
    %v5978 = vsub.s32 32, %v5977
    %v5979 = vshrl.u32 683565275, %v5978
    %v5980 = vshll.u32 683565275, %v5977
    %v5981 = vshrl.u32 2475754826, %v5978
    %v5982 = vor.u32 %v5980, %v5981
    %v5983 = vshll.u32 2475754826, %v5977
    %v5984 = vshrl.u32 2131351028, %v5978
    %v5985 = vor.u32 %v5983, %v5984
    %v5986 = vshll.u32 2131351028, %v5977
    %v5987 = vshrl.u32 2102212464, %v5978
    %v5988 = vor.u32 %v5986, %v5987
    %v5989 = vshll.u32 2102212464, %v5977
    %v5990 = vshrl.u32 920167782, %v5978
    %v5991 = vor.u32 %v5989, %v5990
    %v5992 = vshll.u32 920167782, %v5977
    %v5993 = vshrl.u32 1326507024, %v5978
    %v5994 = vor.u32 %v5992, %v5993
    %vm5995 = vcmp.lt.s32.totalorder %v5976, 1
    %vm5996 = vcmp.lt.s32.totalorder %v5976, 2
    %vm5997 = vcmp.lt.s32.totalorder %v5976, 3
    %vm5998 = vcmp.lt.s32.totalorder %v5976, 4
    %v5999 = vsel %vm5995, %v5979, %v5982
    %v6000 = vsel %vm5998, %v5988, 2102212464
    %v6001 = vsel %vm5997, %v5985, %v6000
    %v6002 = vsel %vm5996, %v5999, %v6001
    %v6003 = vsel %vm5995, %v5982, %v5985
    %v6004 = vsel %vm5998, %v5991, 920167782
    %v6005 = vsel %vm5997, %v5988, %v6004
    %v6006 = vsel %vm5996, %v6003, %v6005
    %v6007 = vsel %vm5995, %v5985, %v5988
    %v6008 = vsel %vm5998, %v5994, 1326507024
    %v6009 = vsel %vm5997, %v5991, %v6008
    %v6010 = vsel %vm5996, %v6007, %v6009
    %v6011 = vshll.u32 %v5971, 8
    %v6012 = vand.u32 %v6011, 65535
    %v6013 = vshrl.u32 %v6011, 16
    %v6014 = vand.u32 %v6010, 65535
    %v6015 = vshrl.u32 %v6010, 16
    %v6016 = vmul.u32 %v6012, %v6014
    %v6017 = vmul.u32 %v6012, %v6015
    %v6018 = vmul.u32 %v6013, %v6014
    %v6019 = vmul.u32 %v6013, %v6015
    %v6020 = vshll.u32 %v6017, 16
    %v6021 = vshrl.u32 %v6017, 16
    %v6022 = vshll.u32 %v6018, 16
    %v6023 = vshrl.u32 %v6018, 16
    %vm6024 = vc.u32 %v6016, %v6020
    %v6025 = vsel %vm6024, 1, 0
    %v6026 = vadd.s32 %v6016, %v6020
    %v6027 = vadd.s32 %v6019, %v6025
    %vm6028 = vc.u32 %v6026, %v6022
    %v6029 = vsel %vm6028, 1, 0
    %v6030 = vadd.s32 %v6026, %v6022
    %v6031 = vadd.s32 %v6027, %v6029
    %v6032 = vadd.s32 %v6031, %v6021
    %v6033 = vadd.s32 %v6032, %v6023
    %v6034 = vand.u32 %v6011, 65535
    %v6035 = vshrl.u32 %v6011, 16
    %v6036 = vand.u32 %v6006, 65535
    %v6037 = vshrl.u32 %v6006, 16
    %v6038 = vmul.u32 %v6034, %v6036
    %v6039 = vmul.u32 %v6034, %v6037
    %v6040 = vmul.u32 %v6035, %v6036
    %v6041 = vmul.u32 %v6035, %v6037
    %v6042 = vshll.u32 %v6039, 16
    %v6043 = vshrl.u32 %v6039, 16
    %v6044 = vshll.u32 %v6040, 16
    %v6045 = vshrl.u32 %v6040, 16
    %vm6046 = vc.u32 %v6038, %v6042
    %v6047 = vsel %vm6046, 1, 0
    %v6048 = vadd.s32 %v6038, %v6042
    %v6049 = vadd.s32 %v6041, %v6047
    %vm6050 = vc.u32 %v6048, %v6044
    %v6051 = vsel %vm6050, 1, 0
    %v6052 = vadd.s32 %v6048, %v6044
    %v6053 = vadd.s32 %v6049, %v6051
    %v6054 = vadd.s32 %v6053, %v6043
    %v6055 = vadd.s32 %v6054, %v6045
    %v6056 = vmul.u32 %v6011, %v6002
    %v6057 = vadd.s32 %v6033, %v6052
    %vm6058 = vc.u32 %v6033, %v6052
    %v6059 = vadd.s32 %v6055, 1
    %v6060 = vsel %vm6058, %v6059, %v6055
    %v6061 = vadd.s32 %v6056, %v6060
    %v6062 = vadd.s32 %v6061, 536870912
    %v6063 = vshrl.u32 %v6062, 30
    %v6064 = vshll.u32 %v6063, 30
    %v6065 = vsub.s32 %v6061, %v6064
    %vm6066 = vcmp.lt.s32.totalorder %v6065, 0
    %v6067 = vsub.s32 0, %v6065
    %v6068 = vsel %vm6066, %v6067, %v6065
    %v6069 = vclz %v6068
    %v6070 = vsub.s32 %v6069, 2
    %vm6071 = vcmp.gt.s32.totalorder 0, %v6070
    %v6072 = vsel %vm6071, 0, %v6070
    %v6073 = vsub.s32 32, %v6072
    %v6074 = vshll.u32 %v6065, %v6072
    %v6075 = vshrl.u32 %v6057, %v6073
    %v6076 = vor.u32 %v6074, %v6075
    %v6077 = vsub.s32 4294967266, %v6072
    %v6078 = vadd.s32 %v6077, 127
    %v6079 = vshll.u32 %v6078, 23
    %v6080 = vor.u32 4788187, %v6079
    %v6081 = vand.u32 2147483647, %v6080
    %v6083 = vcvt.s32.f32 %v6076
    %v6084 = vmul.f32 %v6083, %v6081
    %v6085 = vxor.u32 %v6084, 2147483648
    %v6086 = vsel %vm5965, %v6085, %v6084
    %v6087 = vsub.s32 4, %v6063
    %v6088 = vsel %vm5965, %v6087, %v6063
    %v6089 = vsel %vm5964, %v5807, %v6086
    %v6090 = vsel %vm5964, 0, %v6088
    %v6091 = vmul.f32 %v6089, %v6089
    %v6092 = vmul.f32 %v6091, -0.001358992
    %v6093 = vadd.f32 %v6092, 0.041655596
    %v6094 = vmul.f32 %v6091, %v6093
    %v6095 = vadd.f32 %v6094, -0.4999988
    %v6096 = vmul.f32 %v6091, %v6095
    %v6097 = vadd.f32 1.0, %v6096
    %v6098 = vmul.f32 %v6089, %v6089
    %v6099 = vmul.f32 %v6098, -0.00019511016
    %v6100 = vadd.f32 %v6099, 0.008332121
    %v6101 = vmul.f32 %v6098, %v6100
    %v6102 = vadd.f32 %v6101, -0.16666654
    %v6103 = vmul.f32 %v6098, %v6102
    %v6104 = vadd.f32 %v6103, 1.0
    %v6105 = vmul.f32 %v6104, %v6089
    %vm6106 = vweird.f32 %v5807
    %v6107 = vadd.s32 %v6090, 3
    %v6108 = vand.u32 %v6107, 3
    %vm6109 = vcmp.lt.s32.totalorder %v6108, 2
    %vm6110 = vcmp.eq.s32.totalorder %v6108, 0
    %v6111 = vxor.u32 %v6105, 2147483648
    %v6112 = vsel %vm6110, %v6097, %v6111
    %vm6113 = vcmp.eq.s32.totalorder %v6108, 2
    %v6114 = vxor.u32 %v6097, 2147483648
    %v6115 = vsel %vm6113, %v6114, %v6105
    %v6116 = vsel %vm6109, %v6112, %v6115
    %v6117 = vsel %vm6106, nan, %v6116
    %v6118 = vmul.f32 %v5962, %v5148
    %v6119 = vmul.f32 %v6117, %v5149
    %v6120 = vand.u32 2147483647, %v5806
    %vm6121 = vcmp.le.f32.partialorder %v6120, 0.7853982
    %vm6122 = vcmp.lt.s32.totalorder %v5806, 0
    %v6123 = vand.u32 %v5806, 2139095040
    %v6124 = vshrl.u32 %v6123, 23
    %v6125 = vsub.s32 %v6124, 127
    %v6126 = vand.u32 2147483647, %v5806
    %v6127 = vand.u32 %v6126, 8388607
    %v6128 = vor.u32 %v6127, 8388608
    %v6129 = vsub.s32 0, %v6128
    %v6130 = vadd.s32 %v6125, 1
    %vm6131 = vcmp.gt.s32.totalorder %v6130, 0
    %v6132 = vsel %vm6131, %v6130, 0
    %v6133 = vshrl.u32 %v6132, 5
    %v6134 = vand.u32 %v6132, 31
    %v6135 = vsub.s32 32, %v6134
    %v6136 = vshrl.u32 683565275, %v6135
    %v6137 = vshll.u32 683565275, %v6134
    %v6138 = vshrl.u32 2475754826, %v6135
    %v6139 = vor.u32 %v6137, %v6138
    %v6140 = vshll.u32 2475754826, %v6134
    %v6141 = vshrl.u32 2131351028, %v6135
    %v6142 = vor.u32 %v6140, %v6141
    %v6143 = vshll.u32 2131351028, %v6134
    %v6144 = vshrl.u32 2102212464, %v6135
    %v6145 = vor.u32 %v6143, %v6144
    %v6146 = vshll.u32 2102212464, %v6134
    %v6147 = vshrl.u32 920167782, %v6135
    %v6148 = vor.u32 %v6146, %v6147
    %v6149 = vshll.u32 920167782, %v6134
    %v6150 = vshrl.u32 1326507024, %v6135
    %v6151 = vor.u32 %v6149, %v6150
    %vm6152 = vcmp.lt.s32.totalorder %v6133, 1
    %vm6153 = vcmp.lt.s32.totalorder %v6133, 2
    %vm6154 = vcmp.lt.s32.totalorder %v6133, 3
    %vm6155 = vcmp.lt.s32.totalorder %v6133, 4
    %v6156 = vsel %vm6152, %v6136, %v6139
    %v6157 = vsel %vm6155, %v6145, 2102212464
    %v6158 = vsel %vm6154, %v6142, %v6157
    %v6159 = vsel %vm6153, %v6156, %v6158
    %v6160 = vsel %vm6152, %v6139, %v6142
    %v6161 = vsel %vm6155, %v6148, 920167782
    %v6162 = vsel %vm6154, %v6145, %v6161
    %v6163 = vsel %vm6153, %v6160, %v6162
    %v6164 = vsel %vm6152, %v6142, %v6145
    %v6165 = vsel %vm6155, %v6151, 1326507024
    %v6166 = vsel %vm6154, %v6148, %v6165
    %v6167 = vsel %vm6153, %v6164, %v6166
    %v6168 = vshll.u32 %v6128, 8
    %v6169 = vand.u32 %v6168, 65535
    %v6170 = vshrl.u32 %v6168, 16
    %v6171 = vand.u32 %v6167, 65535
    %v6172 = vshrl.u32 %v6167, 16
    %v6173 = vmul.u32 %v6169, %v6171
    %v6174 = vmul.u32 %v6169, %v6172
    %v6175 = vmul.u32 %v6170, %v6171
    %v6176 = vmul.u32 %v6170, %v6172
    %v6177 = vshll.u32 %v6174, 16
    %v6178 = vshrl.u32 %v6174, 16
    %v6179 = vshll.u32 %v6175, 16
    %v6180 = vshrl.u32 %v6175, 16
    %vm6181 = vc.u32 %v6173, %v6177
    %v6182 = vsel %vm6181, 1, 0
    %v6183 = vadd.s32 %v6173, %v6177
    %v6184 = vadd.s32 %v6176, %v6182
    %vm6185 = vc.u32 %v6183, %v6179
    %v6186 = vsel %vm6185, 1, 0
    %v6187 = vadd.s32 %v6183, %v6179
    %v6188 = vadd.s32 %v6184, %v6186
    %v6189 = vadd.s32 %v6188, %v6178
    %v6190 = vadd.s32 %v6189, %v6180
    %v6191 = vand.u32 %v6168, 65535
    %v6192 = vshrl.u32 %v6168, 16
    %v6193 = vand.u32 %v6163, 65535
    %v6194 = vshrl.u32 %v6163, 16
    %v6195 = vmul.u32 %v6191, %v6193
    %v6196 = vmul.u32 %v6191, %v6194
    %v6197 = vmul.u32 %v6192, %v6193
    %v6198 = vmul.u32 %v6192, %v6194
    %v6199 = vshll.u32 %v6196, 16
    %v6200 = vshrl.u32 %v6196, 16
    %v6201 = vshll.u32 %v6197, 16
    %v6202 = vshrl.u32 %v6197, 16
    %vm6203 = vc.u32 %v6195, %v6199
    %v6204 = vsel %vm6203, 1, 0
    %v6205 = vadd.s32 %v6195, %v6199
    %v6206 = vadd.s32 %v6198, %v6204
    %vm6207 = vc.u32 %v6205, %v6201
    %v6208 = vsel %vm6207, 1, 0
    %v6209 = vadd.s32 %v6205, %v6201
    %v6210 = vadd.s32 %v6206, %v6208
    %v6211 = vadd.s32 %v6210, %v6200
    %v6212 = vadd.s32 %v6211, %v6202
    %v6213 = vmul.u32 %v6168, %v6159
    %v6214 = vadd.s32 %v6190, %v6209
    %vm6215 = vc.u32 %v6190, %v6209
    %v6216 = vadd.s32 %v6212, 1
    %v6217 = vsel %vm6215, %v6216, %v6212
    %v6218 = vadd.s32 %v6213, %v6217
    %v6219 = vadd.s32 %v6218, 536870912
    %v6220 = vshrl.u32 %v6219, 30
    %v6221 = vshll.u32 %v6220, 30
    %v6222 = vsub.s32 %v6218, %v6221
    %vm6223 = vcmp.lt.s32.totalorder %v6222, 0
    %v6224 = vsub.s32 0, %v6222
    %v6225 = vsel %vm6223, %v6224, %v6222
    %v6226 = vclz %v6225
    %v6227 = vsub.s32 %v6226, 2
    %vm6228 = vcmp.gt.s32.totalorder 0, %v6227
    %v6229 = vsel %vm6228, 0, %v6227
    %v6230 = vsub.s32 32, %v6229
    %v6231 = vshll.u32 %v6222, %v6229
    %v6232 = vshrl.u32 %v6214, %v6230
    %v6233 = vor.u32 %v6231, %v6232
    %v6234 = vsub.s32 4294967266, %v6229
    %v6235 = vadd.s32 %v6234, 127
    %v6236 = vshll.u32 %v6235, 23
    %v6237 = vor.u32 4788187, %v6236
    %v6238 = vand.u32 2147483647, %v6237
    %v6240 = vcvt.s32.f32 %v6233
    %v6241 = vmul.f32 %v6240, %v6238
    %v6242 = vxor.u32 %v6241, 2147483648
    %v6243 = vsel %vm6122, %v6242, %v6241
    %v6244 = vsub.s32 4, %v6220
    %v6245 = vsel %vm6122, %v6244, %v6220
    %v6246 = vsel %vm6121, %v5806, %v6243
    %v6247 = vsel %vm6121, 0, %v6245
    %v6248 = vmul.f32 %v6246, %v6246
    %v6249 = vmul.f32 %v6248, -0.001358992
    %v6250 = vadd.f32 %v6249, 0.041655596
    %v6251 = vmul.f32 %v6248, %v6250
    %v6252 = vadd.f32 %v6251, -0.4999988
    %v6253 = vmul.f32 %v6248, %v6252
    %v6254 = vadd.f32 1.0, %v6253
    %v6255 = vmul.f32 %v6246, %v6246
    %v6256 = vmul.f32 %v6255, -0.00019511016
    %v6257 = vadd.f32 %v6256, 0.008332121
    %v6258 = vmul.f32 %v6255, %v6257
    %v6259 = vadd.f32 %v6258, -0.16666654
    %v6260 = vmul.f32 %v6255, %v6259
    %v6261 = vadd.f32 %v6260, 1.0
    %v6262 = vmul.f32 %v6261, %v6246
    %vm6263 = vweird.f32 %v5806
    %v6264 = vand.u32 %v6247, 3
    %vm6265 = vcmp.lt.s32.totalorder %v6264, 2
    %vm6266 = vcmp.eq.s32.totalorder %v6264, 0
    %v6267 = vxor.u32 %v6262, 2147483648
    %v6268 = vsel %vm6266, %v6254, %v6267
    %vm6269 = vcmp.eq.s32.totalorder %v6264, 2
    %v6270 = vxor.u32 %v6254, 2147483648
    %v6271 = vsel %vm6269, %v6270, %v6262
    %v6272 = vsel %vm6265, %v6268, %v6271
    %v6273 = vsel %vm6263, nan, %v6272
    %v6274 = vand.u32 2147483647, %v5807
    %vm6275 = vcmp.le.f32.partialorder %v6274, 0.7853982
    %vm6276 = vcmp.lt.s32.totalorder %v5807, 0
    %v6277 = vand.u32 %v5807, 2139095040
    %v6278 = vshrl.u32 %v6277, 23
    %v6279 = vsub.s32 %v6278, 127
    %v6280 = vand.u32 2147483647, %v5807
    %v6281 = vand.u32 %v6280, 8388607
    %v6282 = vor.u32 %v6281, 8388608
    %v6283 = vsub.s32 0, %v6282
    %v6284 = vadd.s32 %v6279, 1
    %vm6285 = vcmp.gt.s32.totalorder %v6284, 0
    %v6286 = vsel %vm6285, %v6284, 0
    %v6287 = vshrl.u32 %v6286, 5
    %v6288 = vand.u32 %v6286, 31
    %v6289 = vsub.s32 32, %v6288
    %v6290 = vshrl.u32 683565275, %v6289
    %v6291 = vshll.u32 683565275, %v6288
    %v6292 = vshrl.u32 2475754826, %v6289
    %v6293 = vor.u32 %v6291, %v6292
    %v6294 = vshll.u32 2475754826, %v6288
    %v6295 = vshrl.u32 2131351028, %v6289
    %v6296 = vor.u32 %v6294, %v6295
    %v6297 = vshll.u32 2131351028, %v6288
    %v6298 = vshrl.u32 2102212464, %v6289
    %v6299 = vor.u32 %v6297, %v6298
    %v6300 = vshll.u32 2102212464, %v6288
    %v6301 = vshrl.u32 920167782, %v6289
    %v6302 = vor.u32 %v6300, %v6301
    %v6303 = vshll.u32 920167782, %v6288
    %v6304 = vshrl.u32 1326507024, %v6289
    %v6305 = vor.u32 %v6303, %v6304
    %vm6306 = vcmp.lt.s32.totalorder %v6287, 1
    %vm6307 = vcmp.lt.s32.totalorder %v6287, 2
    %vm6308 = vcmp.lt.s32.totalorder %v6287, 3
    %vm6309 = vcmp.lt.s32.totalorder %v6287, 4
    %v6310 = vsel %vm6306, %v6290, %v6293
    %v6311 = vsel %vm6309, %v6299, 2102212464
    %v6312 = vsel %vm6308, %v6296, %v6311
    %v6313 = vsel %vm6307, %v6310, %v6312
    %v6314 = vsel %vm6306, %v6293, %v6296
    %v6315 = vsel %vm6309, %v6302, 920167782
    %v6316 = vsel %vm6308, %v6299, %v6315
    %v6317 = vsel %vm6307, %v6314, %v6316
    %v6318 = vsel %vm6306, %v6296, %v6299
    %v6319 = vsel %vm6309, %v6305, 1326507024
    %v6320 = vsel %vm6308, %v6302, %v6319
    %v6321 = vsel %vm6307, %v6318, %v6320
    %v6322 = vshll.u32 %v6282, 8
    %v6323 = vand.u32 %v6322, 65535
    %v6324 = vshrl.u32 %v6322, 16
    %v6325 = vand.u32 %v6321, 65535
    %v6326 = vshrl.u32 %v6321, 16
    %v6327 = vmul.u32 %v6323, %v6325
    %v6328 = vmul.u32 %v6323, %v6326
    %v6329 = vmul.u32 %v6324, %v6325
    %v6330 = vmul.u32 %v6324, %v6326
    %v6331 = vshll.u32 %v6328, 16
    %v6332 = vshrl.u32 %v6328, 16
    %v6333 = vshll.u32 %v6329, 16
    %v6334 = vshrl.u32 %v6329, 16
    %vm6335 = vc.u32 %v6327, %v6331
    %v6336 = vsel %vm6335, 1, 0
    %v6337 = vadd.s32 %v6327, %v6331
    %v6338 = vadd.s32 %v6330, %v6336
    %vm6339 = vc.u32 %v6337, %v6333
    %v6340 = vsel %vm6339, 1, 0
    %v6341 = vadd.s32 %v6337, %v6333
    %v6342 = vadd.s32 %v6338, %v6340
    %v6343 = vadd.s32 %v6342, %v6332
    %v6344 = vadd.s32 %v6343, %v6334
    %v6345 = vand.u32 %v6322, 65535
    %v6346 = vshrl.u32 %v6322, 16
    %v6347 = vand.u32 %v6317, 65535
    %v6348 = vshrl.u32 %v6317, 16
    %v6349 = vmul.u32 %v6345, %v6347
    %v6350 = vmul.u32 %v6345, %v6348
    %v6351 = vmul.u32 %v6346, %v6347
    %v6352 = vmul.u32 %v6346, %v6348
    %v6353 = vshll.u32 %v6350, 16
    %v6354 = vshrl.u32 %v6350, 16
    %v6355 = vshll.u32 %v6351, 16
    %v6356 = vshrl.u32 %v6351, 16
    %vm6357 = vc.u32 %v6349, %v6353
    %v6358 = vsel %vm6357, 1, 0
    %v6359 = vadd.s32 %v6349, %v6353
    %v6360 = vadd.s32 %v6352, %v6358
    %vm6361 = vc.u32 %v6359, %v6355
    %v6362 = vsel %vm6361, 1, 0
    %v6363 = vadd.s32 %v6359, %v6355
    %v6364 = vadd.s32 %v6360, %v6362
    %v6365 = vadd.s32 %v6364, %v6354
    %v6366 = vadd.s32 %v6365, %v6356
    %v6367 = vmul.u32 %v6322, %v6313
    %v6368 = vadd.s32 %v6344, %v6363
    %vm6369 = vc.u32 %v6344, %v6363
    %v6370 = vadd.s32 %v6366, 1
    %v6371 = vsel %vm6369, %v6370, %v6366
    %v6372 = vadd.s32 %v6367, %v6371
    %v6373 = vadd.s32 %v6372, 536870912
    %v6374 = vshrl.u32 %v6373, 30
    %v6375 = vshll.u32 %v6374, 30
    %v6376 = vsub.s32 %v6372, %v6375
    %vm6377 = vcmp.lt.s32.totalorder %v6376, 0
    %v6378 = vsub.s32 0, %v6376
    %v6379 = vsel %vm6377, %v6378, %v6376
    %v6380 = vclz %v6379
    %v6381 = vsub.s32 %v6380, 2
    %vm6382 = vcmp.gt.s32.totalorder 0, %v6381
    %v6383 = vsel %vm6382, 0, %v6381
    %v6384 = vsub.s32 32, %v6383
    %v6385 = vshll.u32 %v6376, %v6383
    %v6386 = vshrl.u32 %v6368, %v6384
    %v6387 = vor.u32 %v6385, %v6386
    %v6388 = vsub.s32 4294967266, %v6383
    %v6389 = vadd.s32 %v6388, 127
    %v6390 = vshll.u32 %v6389, 23
    %v6391 = vor.u32 4788187, %v6390
    %v6392 = vand.u32 2147483647, %v6391
    %v6394 = vcvt.s32.f32 %v6387
    %v6395 = vmul.f32 %v6394, %v6392
    %v6396 = vxor.u32 %v6395, 2147483648
    %v6397 = vsel %vm6276, %v6396, %v6395
    %v6398 = vsub.s32 4, %v6374
    %v6399 = vsel %vm6276, %v6398, %v6374
    %v6400 = vsel %vm6275, %v5807, %v6397
    %v6401 = vsel %vm6275, 0, %v6399
    %v6402 = vmul.f32 %v6400, %v6400
    %v6403 = vmul.f32 %v6402, -0.001358992
    %v6404 = vadd.f32 %v6403, 0.041655596
    %v6405 = vmul.f32 %v6402, %v6404
    %v6406 = vadd.f32 %v6405, -0.4999988
    %v6407 = vmul.f32 %v6402, %v6406
    %v6408 = vadd.f32 1.0, %v6407
    %v6409 = vmul.f32 %v6400, %v6400
    %v6410 = vmul.f32 %v6409, -0.00019511016
    %v6411 = vadd.f32 %v6410, 0.008332121
    %v6412 = vmul.f32 %v6409, %v6411
    %v6413 = vadd.f32 %v6412, -0.16666654
    %v6414 = vmul.f32 %v6409, %v6413
    %v6415 = vadd.f32 %v6414, 1.0
    %v6416 = vmul.f32 %v6415, %v6400
    %vm6417 = vweird.f32 %v5807
    %v6418 = vand.u32 %v6401, 3
    %vm6419 = vcmp.lt.s32.totalorder %v6418, 2
    %vm6420 = vcmp.eq.s32.totalorder %v6418, 0
    %v6421 = vxor.u32 %v6416, 2147483648
    %v6422 = vsel %vm6420, %v6408, %v6421
    %vm6423 = vcmp.eq.s32.totalorder %v6418, 2
    %v6424 = vxor.u32 %v6408, 2147483648
    %v6425 = vsel %vm6423, %v6424, %v6416
    %v6426 = vsel %vm6419, %v6422, %v6425
    %v6427 = vsel %vm6417, nan, %v6426
    %v6428 = vmul.f32 %v6273, %v5167
    %v6429 = vmul.f32 %v6427, %v5179
    %v6430 = vsub.f32 %v6118, %v6428
    %v6431 = vsub.f32 %v6119, %v6429
    %v6432 = vsub.f32 %v5806, %v6430
    %v6433 = vsub.f32 %v5807, %v6431
    %v6434 = vand.u32 2147483647, %v6432
    %vm6435 = vcmp.le.f32.partialorder %v6434, 0.7853982
    %vm6436 = vcmp.lt.s32.totalorder %v6432, 0
    %v6437 = vand.u32 %v6432, 2139095040
    %v6438 = vshrl.u32 %v6437, 23
    %v6439 = vsub.s32 %v6438, 127
    %v6440 = vand.u32 2147483647, %v6432
    %v6441 = vand.u32 %v6440, 8388607
    %v6442 = vor.u32 %v6441, 8388608
    %v6443 = vsub.s32 0, %v6442
    %v6444 = vadd.s32 %v6439, 1
    %vm6445 = vcmp.gt.s32.totalorder %v6444, 0
    %v6446 = vsel %vm6445, %v6444, 0
    %v6447 = vshrl.u32 %v6446, 5
    %v6448 = vand.u32 %v6446, 31
    %v6449 = vsub.s32 32, %v6448
    %v6450 = vshrl.u32 683565275, %v6449
    %v6451 = vshll.u32 683565275, %v6448
    %v6452 = vshrl.u32 2475754826, %v6449
    %v6453 = vor.u32 %v6451, %v6452
    %v6454 = vshll.u32 2475754826, %v6448
    %v6455 = vshrl.u32 2131351028, %v6449
    %v6456 = vor.u32 %v6454, %v6455
    %v6457 = vshll.u32 2131351028, %v6448
    %v6458 = vshrl.u32 2102212464, %v6449
    %v6459 = vor.u32 %v6457, %v6458
    %v6460 = vshll.u32 2102212464, %v6448
    %v6461 = vshrl.u32 920167782, %v6449
    %v6462 = vor.u32 %v6460, %v6461
    %v6463 = vshll.u32 920167782, %v6448
    %v6464 = vshrl.u32 1326507024, %v6449
    %v6465 = vor.u32 %v6463, %v6464
    %vm6466 = vcmp.lt.s32.totalorder %v6447, 1
    %vm6467 = vcmp.lt.s32.totalorder %v6447, 2
    %vm6468 = vcmp.lt.s32.totalorder %v6447, 3
    %vm6469 = vcmp.lt.s32.totalorder %v6447, 4
    %v6470 = vsel %vm6466, %v6450, %v6453
    %v6471 = vsel %vm6469, %v6459, 2102212464
    %v6472 = vsel %vm6468, %v6456, %v6471
    %v6473 = vsel %vm6467, %v6470, %v6472
    %v6474 = vsel %vm6466, %v6453, %v6456
    %v6475 = vsel %vm6469, %v6462, 920167782
    %v6476 = vsel %vm6468, %v6459, %v6475
    %v6477 = vsel %vm6467, %v6474, %v6476
    %v6478 = vsel %vm6466, %v6456, %v6459
    %v6479 = vsel %vm6469, %v6465, 1326507024
    %v6480 = vsel %vm6468, %v6462, %v6479
    %v6481 = vsel %vm6467, %v6478, %v6480
    %v6482 = vshll.u32 %v6442, 8
    %v6483 = vand.u32 %v6482, 65535
    %v6484 = vshrl.u32 %v6482, 16
    %v6485 = vand.u32 %v6481, 65535
    %v6486 = vshrl.u32 %v6481, 16
    %v6487 = vmul.u32 %v6483, %v6485
    %v6488 = vmul.u32 %v6483, %v6486
    %v6489 = vmul.u32 %v6484, %v6485
    %v6490 = vmul.u32 %v6484, %v6486
    %v6491 = vshll.u32 %v6488, 16
    %v6492 = vshrl.u32 %v6488, 16
    %v6493 = vshll.u32 %v6489, 16
    %v6494 = vshrl.u32 %v6489, 16
    %vm6495 = vc.u32 %v6487, %v6491
    %v6496 = vsel %vm6495, 1, 0
    %v6497 = vadd.s32 %v6487, %v6491
    %v6498 = vadd.s32 %v6490, %v6496
    %vm6499 = vc.u32 %v6497, %v6493
    %v6500 = vsel %vm6499, 1, 0
    %v6501 = vadd.s32 %v6497, %v6493
    %v6502 = vadd.s32 %v6498, %v6500
    %v6503 = vadd.s32 %v6502, %v6492
    %v6504 = vadd.s32 %v6503, %v6494
    %v6505 = vand.u32 %v6482, 65535
    %v6506 = vshrl.u32 %v6482, 16
    %v6507 = vand.u32 %v6477, 65535
    %v6508 = vshrl.u32 %v6477, 16
    %v6509 = vmul.u32 %v6505, %v6507
    %v6510 = vmul.u32 %v6505, %v6508
    %v6511 = vmul.u32 %v6506, %v6507
    %v6512 = vmul.u32 %v6506, %v6508
    %v6513 = vshll.u32 %v6510, 16
    %v6514 = vshrl.u32 %v6510, 16
    %v6515 = vshll.u32 %v6511, 16
    %v6516 = vshrl.u32 %v6511, 16
    %vm6517 = vc.u32 %v6509, %v6513
    %v6518 = vsel %vm6517, 1, 0
    %v6519 = vadd.s32 %v6509, %v6513
    %v6520 = vadd.s32 %v6512, %v6518
    %vm6521 = vc.u32 %v6519, %v6515
    %v6522 = vsel %vm6521, 1, 0
    %v6523 = vadd.s32 %v6519, %v6515
    %v6524 = vadd.s32 %v6520, %v6522
    %v6525 = vadd.s32 %v6524, %v6514
    %v6526 = vadd.s32 %v6525, %v6516
    %v6527 = vmul.u32 %v6482, %v6473
    %v6528 = vadd.s32 %v6504, %v6523
    %vm6529 = vc.u32 %v6504, %v6523
    %v6530 = vadd.s32 %v6526, 1
    %v6531 = vsel %vm6529, %v6530, %v6526
    %v6532 = vadd.s32 %v6527, %v6531
    %v6533 = vadd.s32 %v6532, 536870912
    %v6534 = vshrl.u32 %v6533, 30
    %v6535 = vshll.u32 %v6534, 30
    %v6536 = vsub.s32 %v6532, %v6535
    %vm6537 = vcmp.lt.s32.totalorder %v6536, 0
    %v6538 = vsub.s32 0, %v6536
    %v6539 = vsel %vm6537, %v6538, %v6536
    %v6540 = vclz %v6539
    %v6541 = vsub.s32 %v6540, 2
    %vm6542 = vcmp.gt.s32.totalorder 0, %v6541
    %v6543 = vsel %vm6542, 0, %v6541
    %v6544 = vsub.s32 32, %v6543
    %v6545 = vshll.u32 %v6536, %v6543
    %v6546 = vshrl.u32 %v6528, %v6544
    %v6547 = vor.u32 %v6545, %v6546
    %v6548 = vsub.s32 4294967266, %v6543
    %v6549 = vadd.s32 %v6548, 127
    %v6550 = vshll.u32 %v6549, 23
    %v6551 = vor.u32 4788187, %v6550
    %v6552 = vand.u32 2147483647, %v6551
    %v6554 = vcvt.s32.f32 %v6547
    %v6555 = vmul.f32 %v6554, %v6552
    %v6556 = vxor.u32 %v6555, 2147483648
    %v6557 = vsel %vm6436, %v6556, %v6555
    %v6558 = vsub.s32 4, %v6534
    %v6559 = vsel %vm6436, %v6558, %v6534
    %v6560 = vsel %vm6435, %v6432, %v6557
    %v6561 = vsel %vm6435, 0, %v6559
    %v6562 = vmul.f32 %v6560, %v6560
    %v6563 = vmul.f32 %v6562, -0.001358992
    %v6564 = vadd.f32 %v6563, 0.041655596
    %v6565 = vmul.f32 %v6562, %v6564
    %v6566 = vadd.f32 %v6565, -0.4999988
    %v6567 = vmul.f32 %v6562, %v6566
    %v6568 = vadd.f32 1.0, %v6567
    %v6569 = vmul.f32 %v6560, %v6560
    %v6570 = vmul.f32 %v6569, -0.00019511016
    %v6571 = vadd.f32 %v6570, 0.008332121
    %v6572 = vmul.f32 %v6569, %v6571
    %v6573 = vadd.f32 %v6572, -0.16666654
    %v6574 = vmul.f32 %v6569, %v6573
    %v6575 = vadd.f32 %v6574, 1.0
    %v6576 = vmul.f32 %v6575, %v6560
    %vm6577 = vweird.f32 %v6432
    %v6578 = vadd.s32 %v6561, 3
    %v6579 = vand.u32 %v6578, 3
    %vm6580 = vcmp.lt.s32.totalorder %v6579, 2
    %vm6581 = vcmp.eq.s32.totalorder %v6579, 0
    %v6582 = vxor.u32 %v6576, 2147483648
    %v6583 = vsel %vm6581, %v6568, %v6582
    %vm6584 = vcmp.eq.s32.totalorder %v6579, 2
    %v6585 = vxor.u32 %v6568, 2147483648
    %v6586 = vsel %vm6584, %v6585, %v6576
    %v6587 = vsel %vm6580, %v6583, %v6586
    %v6588 = vsel %vm6577, nan, %v6587
    %v6589 = vand.u32 2147483647, %v6433
    %vm6590 = vcmp.le.f32.partialorder %v6589, 0.7853982
    %vm6591 = vcmp.lt.s32.totalorder %v6433, 0
    %v6592 = vand.u32 %v6433, 2139095040
    %v6593 = vshrl.u32 %v6592, 23
    %v6594 = vsub.s32 %v6593, 127
    %v6595 = vand.u32 2147483647, %v6433
    %v6596 = vand.u32 %v6595, 8388607
    %v6597 = vor.u32 %v6596, 8388608
    %v6598 = vsub.s32 0, %v6597
    %v6599 = vadd.s32 %v6594, 1
    %vm6600 = vcmp.gt.s32.totalorder %v6599, 0
    %v6601 = vsel %vm6600, %v6599, 0
    %v6602 = vshrl.u32 %v6601, 5
    %v6603 = vand.u32 %v6601, 31
    %v6604 = vsub.s32 32, %v6603
    %v6605 = vshrl.u32 683565275, %v6604
    %v6606 = vshll.u32 683565275, %v6603
    %v6607 = vshrl.u32 2475754826, %v6604
    %v6608 = vor.u32 %v6606, %v6607
    %v6609 = vshll.u32 2475754826, %v6603
    %v6610 = vshrl.u32 2131351028, %v6604
    %v6611 = vor.u32 %v6609, %v6610
    %v6612 = vshll.u32 2131351028, %v6603
    %v6613 = vshrl.u32 2102212464, %v6604
    %v6614 = vor.u32 %v6612, %v6613
    %v6615 = vshll.u32 2102212464, %v6603
    %v6616 = vshrl.u32 920167782, %v6604
    %v6617 = vor.u32 %v6615, %v6616
    %v6618 = vshll.u32 920167782, %v6603
    %v6619 = vshrl.u32 1326507024, %v6604
    %v6620 = vor.u32 %v6618, %v6619
    %vm6621 = vcmp.lt.s32.totalorder %v6602, 1
    %vm6622 = vcmp.lt.s32.totalorder %v6602, 2
    %vm6623 = vcmp.lt.s32.totalorder %v6602, 3
    %vm6624 = vcmp.lt.s32.totalorder %v6602, 4
    %v6625 = vsel %vm6621, %v6605, %v6608
    %v6626 = vsel %vm6624, %v6614, 2102212464
    %v6627 = vsel %vm6623, %v6611, %v6626
    %v6628 = vsel %vm6622, %v6625, %v6627
    %v6629 = vsel %vm6621, %v6608, %v6611
    %v6630 = vsel %vm6624, %v6617, 920167782
    %v6631 = vsel %vm6623, %v6614, %v6630
    %v6632 = vsel %vm6622, %v6629, %v6631
    %v6633 = vsel %vm6621, %v6611, %v6614
    %v6634 = vsel %vm6624, %v6620, 1326507024
    %v6635 = vsel %vm6623, %v6617, %v6634
    %v6636 = vsel %vm6622, %v6633, %v6635
    %v6637 = vshll.u32 %v6597, 8
    %v6638 = vand.u32 %v6637, 65535
    %v6639 = vshrl.u32 %v6637, 16
    %v6640 = vand.u32 %v6636, 65535
    %v6641 = vshrl.u32 %v6636, 16
    %v6642 = vmul.u32 %v6638, %v6640
    %v6643 = vmul.u32 %v6638, %v6641
    %v6644 = vmul.u32 %v6639, %v6640
    %v6645 = vmul.u32 %v6639, %v6641
    %v6646 = vshll.u32 %v6643, 16
    %v6647 = vshrl.u32 %v6643, 16
    %v6648 = vshll.u32 %v6644, 16
    %v6649 = vshrl.u32 %v6644, 16
    %vm6650 = vc.u32 %v6642, %v6646
    %v6651 = vsel %vm6650, 1, 0
    %v6652 = vadd.s32 %v6642, %v6646
    %v6653 = vadd.s32 %v6645, %v6651
    %vm6654 = vc.u32 %v6652, %v6648
    %v6655 = vsel %vm6654, 1, 0
    %v6656 = vadd.s32 %v6652, %v6648
    %v6657 = vadd.s32 %v6653, %v6655
    %v6658 = vadd.s32 %v6657, %v6647
    %v6659 = vadd.s32 %v6658, %v6649
    %v6660 = vand.u32 %v6637, 65535
    %v6661 = vshrl.u32 %v6637, 16
    %v6662 = vand.u32 %v6632, 65535
    %v6663 = vshrl.u32 %v6632, 16
    %v6664 = vmul.u32 %v6660, %v6662
    %v6665 = vmul.u32 %v6660, %v6663
    %v6666 = vmul.u32 %v6661, %v6662
    %v6667 = vmul.u32 %v6661, %v6663
    %v6668 = vshll.u32 %v6665, 16
    %v6669 = vshrl.u32 %v6665, 16
    %v6670 = vshll.u32 %v6666, 16
    %v6671 = vshrl.u32 %v6666, 16
    %vm6672 = vc.u32 %v6664, %v6668
    %v6673 = vsel %vm6672, 1, 0
    %v6674 = vadd.s32 %v6664, %v6668
    %v6675 = vadd.s32 %v6667, %v6673
    %vm6676 = vc.u32 %v6674, %v6670
    %v6677 = vsel %vm6676, 1, 0
    %v6678 = vadd.s32 %v6674, %v6670
    %v6679 = vadd.s32 %v6675, %v6677
    %v6680 = vadd.s32 %v6679, %v6669
    %v6681 = vadd.s32 %v6680, %v6671
    %v6682 = vmul.u32 %v6637, %v6628
    %v6683 = vadd.s32 %v6659, %v6678
    %vm6684 = vc.u32 %v6659, %v6678
    %v6685 = vadd.s32 %v6681, 1
    %v6686 = vsel %vm6684, %v6685, %v6681
    %v6687 = vadd.s32 %v6682, %v6686
    %v6688 = vadd.s32 %v6687, 536870912
    %v6689 = vshrl.u32 %v6688, 30
    %v6690 = vshll.u32 %v6689, 30
    %v6691 = vsub.s32 %v6687, %v6690
    %vm6692 = vcmp.lt.s32.totalorder %v6691, 0
    %v6693 = vsub.s32 0, %v6691
    %v6694 = vsel %vm6692, %v6693, %v6691
    %v6695 = vclz %v6694
    %v6696 = vsub.s32 %v6695, 2
    %vm6697 = vcmp.gt.s32.totalorder 0, %v6696
    %v6698 = vsel %vm6697, 0, %v6696
    %v6699 = vsub.s32 32, %v6698
    %v6700 = vshll.u32 %v6691, %v6698
    %v6701 = vshrl.u32 %v6683, %v6699
    %v6702 = vor.u32 %v6700, %v6701
    %v6703 = vsub.s32 4294967266, %v6698
    %v6704 = vadd.s32 %v6703, 127
    %v6705 = vshll.u32 %v6704, 23
    %v6706 = vor.u32 4788187, %v6705
    %v6707 = vand.u32 2147483647, %v6706
    %v6709 = vcvt.s32.f32 %v6702
    %v6710 = vmul.f32 %v6709, %v6707
    %v6711 = vxor.u32 %v6710, 2147483648
    %v6712 = vsel %vm6591, %v6711, %v6710
    %v6713 = vsub.s32 4, %v6689
    %v6714 = vsel %vm6591, %v6713, %v6689
    %v6715 = vsel %vm6590, %v6433, %v6712
    %v6716 = vsel %vm6590, 0, %v6714
    %v6717 = vmul.f32 %v6715, %v6715
    %v6718 = vmul.f32 %v6717, -0.001358992
    %v6719 = vadd.f32 %v6718, 0.041655596
    %v6720 = vmul.f32 %v6717, %v6719
    %v6721 = vadd.f32 %v6720, -0.4999988
    %v6722 = vmul.f32 %v6717, %v6721
    %v6723 = vadd.f32 1.0, %v6722
    %v6724 = vmul.f32 %v6715, %v6715
    %v6725 = vmul.f32 %v6724, -0.00019511016
    %v6726 = vadd.f32 %v6725, 0.008332121
    %v6727 = vmul.f32 %v6724, %v6726
    %v6728 = vadd.f32 %v6727, -0.16666654
    %v6729 = vmul.f32 %v6724, %v6728
    %v6730 = vadd.f32 %v6729, 1.0
    %v6731 = vmul.f32 %v6730, %v6715
    %vm6732 = vweird.f32 %v6433
    %v6733 = vadd.s32 %v6716, 3
    %v6734 = vand.u32 %v6733, 3
    %vm6735 = vcmp.lt.s32.totalorder %v6734, 2
    %vm6736 = vcmp.eq.s32.totalorder %v6734, 0
    %v6737 = vxor.u32 %v6731, 2147483648
    %v6738 = vsel %vm6736, %v6723, %v6737
    %vm6739 = vcmp.eq.s32.totalorder %v6734, 2
    %v6740 = vxor.u32 %v6723, 2147483648
    %v6741 = vsel %vm6739, %v6740, %v6731
    %v6742 = vsel %vm6735, %v6738, %v6741
    %v6743 = vsel %vm6732, nan, %v6742
    %v6744 = vmul.f32 %v6588, %v5148
    %v6745 = vmul.f32 %v6743, %v5149
    %v6746 = vand.u32 2147483647, %v6432
    %vm6747 = vcmp.le.f32.partialorder %v6746, 0.7853982
    %vm6748 = vcmp.lt.s32.totalorder %v6432, 0
    %v6749 = vand.u32 %v6432, 2139095040
    %v6750 = vshrl.u32 %v6749, 23
    %v6751 = vsub.s32 %v6750, 127
    %v6752 = vand.u32 2147483647, %v6432
    %v6753 = vand.u32 %v6752, 8388607
    %v6754 = vor.u32 %v6753, 8388608
    %v6755 = vsub.s32 0, %v6754
    %v6756 = vadd.s32 %v6751, 1
    %vm6757 = vcmp.gt.s32.totalorder %v6756, 0
    %v6758 = vsel %vm6757, %v6756, 0
    %v6759 = vshrl.u32 %v6758, 5
    %v6760 = vand.u32 %v6758, 31
    %v6761 = vsub.s32 32, %v6760
    %v6762 = vshrl.u32 683565275, %v6761
    %v6763 = vshll.u32 683565275, %v6760
    %v6764 = vshrl.u32 2475754826, %v6761
    %v6765 = vor.u32 %v6763, %v6764
    %v6766 = vshll.u32 2475754826, %v6760
    %v6767 = vshrl.u32 2131351028, %v6761
    %v6768 = vor.u32 %v6766, %v6767
    %v6769 = vshll.u32 2131351028, %v6760
    %v6770 = vshrl.u32 2102212464, %v6761
    %v6771 = vor.u32 %v6769, %v6770
    %v6772 = vshll.u32 2102212464, %v6760
    %v6773 = vshrl.u32 920167782, %v6761
    %v6774 = vor.u32 %v6772, %v6773
    %v6775 = vshll.u32 920167782, %v6760
    %v6776 = vshrl.u32 1326507024, %v6761
    %v6777 = vor.u32 %v6775, %v6776
    %vm6778 = vcmp.lt.s32.totalorder %v6759, 1
    %vm6779 = vcmp.lt.s32.totalorder %v6759, 2
    %vm6780 = vcmp.lt.s32.totalorder %v6759, 3
    %vm6781 = vcmp.lt.s32.totalorder %v6759, 4
    %v6782 = vsel %vm6778, %v6762, %v6765
    %v6783 = vsel %vm6781, %v6771, 2102212464
    %v6784 = vsel %vm6780, %v6768, %v6783
    %v6785 = vsel %vm6779, %v6782, %v6784
    %v6786 = vsel %vm6778, %v6765, %v6768
    %v6787 = vsel %vm6781, %v6774, 920167782
    %v6788 = vsel %vm6780, %v6771, %v6787
    %v6789 = vsel %vm6779, %v6786, %v6788
    %v6790 = vsel %vm6778, %v6768, %v6771
    %v6791 = vsel %vm6781, %v6777, 1326507024
    %v6792 = vsel %vm6780, %v6774, %v6791
    %v6793 = vsel %vm6779, %v6790, %v6792
    %v6794 = vshll.u32 %v6754, 8
    %v6795 = vand.u32 %v6794, 65535
    %v6796 = vshrl.u32 %v6794, 16
    %v6797 = vand.u32 %v6793, 65535
    %v6798 = vshrl.u32 %v6793, 16
    %v6799 = vmul.u32 %v6795, %v6797
    %v6800 = vmul.u32 %v6795, %v6798
    %v6801 = vmul.u32 %v6796, %v6797
    %v6802 = vmul.u32 %v6796, %v6798
    %v6803 = vshll.u32 %v6800, 16
    %v6804 = vshrl.u32 %v6800, 16
    %v6805 = vshll.u32 %v6801, 16
    %v6806 = vshrl.u32 %v6801, 16
    %vm6807 = vc.u32 %v6799, %v6803
    %v6808 = vsel %vm6807, 1, 0
    %v6809 = vadd.s32 %v6799, %v6803
    %v6810 = vadd.s32 %v6802, %v6808
    %vm6811 = vc.u32 %v6809, %v6805
    %v6812 = vsel %vm6811, 1, 0
    %v6813 = vadd.s32 %v6809, %v6805
    %v6814 = vadd.s32 %v6810, %v6812
    %v6815 = vadd.s32 %v6814, %v6804
    %v6816 = vadd.s32 %v6815, %v6806
    %v6817 = vand.u32 %v6794, 65535
    %v6818 = vshrl.u32 %v6794, 16
    %v6819 = vand.u32 %v6789, 65535
    %v6820 = vshrl.u32 %v6789, 16
    %v6821 = vmul.u32 %v6817, %v6819
    %v6822 = vmul.u32 %v6817, %v6820
    %v6823 = vmul.u32 %v6818, %v6819
    %v6824 = vmul.u32 %v6818, %v6820
    %v6825 = vshll.u32 %v6822, 16
    %v6826 = vshrl.u32 %v6822, 16
    %v6827 = vshll.u32 %v6823, 16
    %v6828 = vshrl.u32 %v6823, 16
    %vm6829 = vc.u32 %v6821, %v6825
    %v6830 = vsel %vm6829, 1, 0
    %v6831 = vadd.s32 %v6821, %v6825
    %v6832 = vadd.s32 %v6824, %v6830
    %vm6833 = vc.u32 %v6831, %v6827
    %v6834 = vsel %vm6833, 1, 0
    %v6835 = vadd.s32 %v6831, %v6827
    %v6836 = vadd.s32 %v6832, %v6834
    %v6837 = vadd.s32 %v6836, %v6826
    %v6838 = vadd.s32 %v6837, %v6828
    %v6839 = vmul.u32 %v6794, %v6785
    %v6840 = vadd.s32 %v6816, %v6835
    %vm6841 = vc.u32 %v6816, %v6835
    %v6842 = vadd.s32 %v6838, 1
    %v6843 = vsel %vm6841, %v6842, %v6838
    %v6844 = vadd.s32 %v6839, %v6843
    %v6845 = vadd.s32 %v6844, 536870912
    %v6846 = vshrl.u32 %v6845, 30
    %v6847 = vshll.u32 %v6846, 30
    %v6848 = vsub.s32 %v6844, %v6847
    %vm6849 = vcmp.lt.s32.totalorder %v6848, 0
    %v6850 = vsub.s32 0, %v6848
    %v6851 = vsel %vm6849, %v6850, %v6848
    %v6852 = vclz %v6851
    %v6853 = vsub.s32 %v6852, 2
    %vm6854 = vcmp.gt.s32.totalorder 0, %v6853
    %v6855 = vsel %vm6854, 0, %v6853
    %v6856 = vsub.s32 32, %v6855
    %v6857 = vshll.u32 %v6848, %v6855
    %v6858 = vshrl.u32 %v6840, %v6856
    %v6859 = vor.u32 %v6857, %v6858
    %v6860 = vsub.s32 4294967266, %v6855
    %v6861 = vadd.s32 %v6860, 127
    %v6862 = vshll.u32 %v6861, 23
    %v6863 = vor.u32 4788187, %v6862
    %v6864 = vand.u32 2147483647, %v6863
    %v6866 = vcvt.s32.f32 %v6859
    %v6867 = vmul.f32 %v6866, %v6864
    %v6868 = vxor.u32 %v6867, 2147483648
    %v6869 = vsel %vm6748, %v6868, %v6867
    %v6870 = vsub.s32 4, %v6846
    %v6871 = vsel %vm6748, %v6870, %v6846
    %v6872 = vsel %vm6747, %v6432, %v6869
    %v6873 = vsel %vm6747, 0, %v6871
    %v6874 = vmul.f32 %v6872, %v6872
    %v6875 = vmul.f32 %v6874, -0.001358992
    %v6876 = vadd.f32 %v6875, 0.041655596
    %v6877 = vmul.f32 %v6874, %v6876
    %v6878 = vadd.f32 %v6877, -0.4999988
    %v6879 = vmul.f32 %v6874, %v6878
    %v6880 = vadd.f32 1.0, %v6879
    %v6881 = vmul.f32 %v6872, %v6872
    %v6882 = vmul.f32 %v6881, -0.00019511016
    %v6883 = vadd.f32 %v6882, 0.008332121
    %v6884 = vmul.f32 %v6881, %v6883
    %v6885 = vadd.f32 %v6884, -0.16666654
    %v6886 = vmul.f32 %v6881, %v6885
    %v6887 = vadd.f32 %v6886, 1.0
    %v6888 = vmul.f32 %v6887, %v6872
    %vm6889 = vweird.f32 %v6432
    %v6890 = vand.u32 %v6873, 3
    %vm6891 = vcmp.lt.s32.totalorder %v6890, 2
    %vm6892 = vcmp.eq.s32.totalorder %v6890, 0
    %v6893 = vxor.u32 %v6888, 2147483648
    %v6894 = vsel %vm6892, %v6880, %v6893
    %vm6895 = vcmp.eq.s32.totalorder %v6890, 2
    %v6896 = vxor.u32 %v6880, 2147483648
    %v6897 = vsel %vm6895, %v6896, %v6888
    %v6898 = vsel %vm6891, %v6894, %v6897
    %v6899 = vsel %vm6889, nan, %v6898
    %v6900 = vand.u32 2147483647, %v6433
    %vm6901 = vcmp.le.f32.partialorder %v6900, 0.7853982
    %vm6902 = vcmp.lt.s32.totalorder %v6433, 0
    %v6903 = vand.u32 %v6433, 2139095040
    %v6904 = vshrl.u32 %v6903, 23
    %v6905 = vsub.s32 %v6904, 127
    %v6906 = vand.u32 2147483647, %v6433
    %v6907 = vand.u32 %v6906, 8388607
    %v6908 = vor.u32 %v6907, 8388608
    %v6909 = vsub.s32 0, %v6908
    %v6910 = vadd.s32 %v6905, 1
    %vm6911 = vcmp.gt.s32.totalorder %v6910, 0
    %v6912 = vsel %vm6911, %v6910, 0
    %v6913 = vshrl.u32 %v6912, 5
    %v6914 = vand.u32 %v6912, 31
    %v6915 = vsub.s32 32, %v6914
    %v6916 = vshrl.u32 683565275, %v6915
    %v6917 = vshll.u32 683565275, %v6914
    %v6918 = vshrl.u32 2475754826, %v6915
    %v6919 = vor.u32 %v6917, %v6918
    %v6920 = vshll.u32 2475754826, %v6914
    %v6921 = vshrl.u32 2131351028, %v6915
    %v6922 = vor.u32 %v6920, %v6921
    %v6923 = vshll.u32 2131351028, %v6914
    %v6924 = vshrl.u32 2102212464, %v6915
    %v6925 = vor.u32 %v6923, %v6924
    %v6926 = vshll.u32 2102212464, %v6914
    %v6927 = vshrl.u32 920167782, %v6915
    %v6928 = vor.u32 %v6926, %v6927
    %v6929 = vshll.u32 920167782, %v6914
    %v6930 = vshrl.u32 1326507024, %v6915
    %v6931 = vor.u32 %v6929, %v6930
    %vm6932 = vcmp.lt.s32.totalorder %v6913, 1
    %vm6933 = vcmp.lt.s32.totalorder %v6913, 2
    %vm6934 = vcmp.lt.s32.totalorder %v6913, 3
    %vm6935 = vcmp.lt.s32.totalorder %v6913, 4
    %v6936 = vsel %vm6932, %v6916, %v6919
    %v6937 = vsel %vm6935, %v6925, 2102212464
    %v6938 = vsel %vm6934, %v6922, %v6937
    %v6939 = vsel %vm6933, %v6936, %v6938
    %v6940 = vsel %vm6932, %v6919, %v6922
    %v6941 = vsel %vm6935, %v6928, 920167782
    %v6942 = vsel %vm6934, %v6925, %v6941
    %v6943 = vsel %vm6933, %v6940, %v6942
    %v6944 = vsel %vm6932, %v6922, %v6925
    %v6945 = vsel %vm6935, %v6931, 1326507024
    %v6946 = vsel %vm6934, %v6928, %v6945
    %v6947 = vsel %vm6933, %v6944, %v6946
    %v6948 = vshll.u32 %v6908, 8
    %v6949 = vand.u32 %v6948, 65535
    %v6950 = vshrl.u32 %v6948, 16
    %v6951 = vand.u32 %v6947, 65535
    %v6952 = vshrl.u32 %v6947, 16
    %v6953 = vmul.u32 %v6949, %v6951
    %v6954 = vmul.u32 %v6949, %v6952
    %v6955 = vmul.u32 %v6950, %v6951
    %v6956 = vmul.u32 %v6950, %v6952
    %v6957 = vshll.u32 %v6954, 16
    %v6958 = vshrl.u32 %v6954, 16
    %v6959 = vshll.u32 %v6955, 16
    %v6960 = vshrl.u32 %v6955, 16
    %vm6961 = vc.u32 %v6953, %v6957
    %v6962 = vsel %vm6961, 1, 0
    %v6963 = vadd.s32 %v6953, %v6957
    %v6964 = vadd.s32 %v6956, %v6962
    %vm6965 = vc.u32 %v6963, %v6959
    %v6966 = vsel %vm6965, 1, 0
    %v6967 = vadd.s32 %v6963, %v6959
    %v6968 = vadd.s32 %v6964, %v6966
    %v6969 = vadd.s32 %v6968, %v6958
    %v6970 = vadd.s32 %v6969, %v6960
    %v6971 = vand.u32 %v6948, 65535
    %v6972 = vshrl.u32 %v6948, 16
    %v6973 = vand.u32 %v6943, 65535
    %v6974 = vshrl.u32 %v6943, 16
    %v6975 = vmul.u32 %v6971, %v6973
    %v6976 = vmul.u32 %v6971, %v6974
    %v6977 = vmul.u32 %v6972, %v6973
    %v6978 = vmul.u32 %v6972, %v6974
    %v6979 = vshll.u32 %v6976, 16
    %v6980 = vshrl.u32 %v6976, 16
    %v6981 = vshll.u32 %v6977, 16
    %v6982 = vshrl.u32 %v6977, 16
    %vm6983 = vc.u32 %v6975, %v6979
    %v6984 = vsel %vm6983, 1, 0
    %v6985 = vadd.s32 %v6975, %v6979
    %v6986 = vadd.s32 %v6978, %v6984
    %vm6987 = vc.u32 %v6985, %v6981
    %v6988 = vsel %vm6987, 1, 0
    %v6989 = vadd.s32 %v6985, %v6981
    %v6990 = vadd.s32 %v6986, %v6988
    %v6991 = vadd.s32 %v6990, %v6980
    %v6992 = vadd.s32 %v6991, %v6982
    %v6993 = vmul.u32 %v6948, %v6939
    %v6994 = vadd.s32 %v6970, %v6989
    %vm6995 = vc.u32 %v6970, %v6989
    %v6996 = vadd.s32 %v6992, 1
    %v6997 = vsel %vm6995, %v6996, %v6992
    %v6998 = vadd.s32 %v6993, %v6997
    %v6999 = vadd.s32 %v6998, 536870912
    %v7000 = vshrl.u32 %v6999, 30
    %v7001 = vshll.u32 %v7000, 30
    %v7002 = vsub.s32 %v6998, %v7001
    %vm7003 = vcmp.lt.s32.totalorder %v7002, 0
    %v7004 = vsub.s32 0, %v7002
    %v7005 = vsel %vm7003, %v7004, %v7002
    %v7006 = vclz %v7005
    %v7007 = vsub.s32 %v7006, 2
    %vm7008 = vcmp.gt.s32.totalorder 0, %v7007
    %v7009 = vsel %vm7008, 0, %v7007
    %v7010 = vsub.s32 32, %v7009
    %v7011 = vshll.u32 %v7002, %v7009
    %v7012 = vshrl.u32 %v6994, %v7010
    %v7013 = vor.u32 %v7011, %v7012
    %v7014 = vsub.s32 4294967266, %v7009
    %v7015 = vadd.s32 %v7014, 127
    %v7016 = vshll.u32 %v7015, 23
    %v7017 = vor.u32 4788187, %v7016
    %v7018 = vand.u32 2147483647, %v7017
    %v7020 = vcvt.s32.f32 %v7013
    %v7021 = vmul.f32 %v7020, %v7018
    %v7022 = vxor.u32 %v7021, 2147483648
    %v7023 = vsel %vm6902, %v7022, %v7021
    %v7024 = vsub.s32 4, %v7000
    %v7025 = vsel %vm6902, %v7024, %v7000
    %v7026 = vsel %vm6901, %v6433, %v7023
    %v7027 = vsel %vm6901, 0, %v7025
    %v7028 = vmul.f32 %v7026, %v7026
    %v7029 = vmul.f32 %v7028, -0.001358992
    %v7030 = vadd.f32 %v7029, 0.041655596
    %v7031 = vmul.f32 %v7028, %v7030
    %v7032 = vadd.f32 %v7031, -0.4999988
    %v7033 = vmul.f32 %v7028, %v7032
    %v7034 = vadd.f32 1.0, %v7033
    %v7035 = vmul.f32 %v7026, %v7026
    %v7036 = vmul.f32 %v7035, -0.00019511016
    %v7037 = vadd.f32 %v7036, 0.008332121
    %v7038 = vmul.f32 %v7035, %v7037
    %v7039 = vadd.f32 %v7038, -0.16666654
    %v7040 = vmul.f32 %v7035, %v7039
    %v7041 = vadd.f32 %v7040, 1.0
    %v7042 = vmul.f32 %v7041, %v7026
    %vm7043 = vweird.f32 %v6433
    %v7044 = vand.u32 %v7027, 3
    %vm7045 = vcmp.lt.s32.totalorder %v7044, 2
    %vm7046 = vcmp.eq.s32.totalorder %v7044, 0
    %v7047 = vxor.u32 %v7042, 2147483648
    %v7048 = vsel %vm7046, %v7034, %v7047
    %vm7049 = vcmp.eq.s32.totalorder %v7044, 2
    %v7050 = vxor.u32 %v7034, 2147483648
    %v7051 = vsel %vm7049, %v7050, %v7042
    %v7052 = vsel %vm7045, %v7048, %v7051
    %v7053 = vsel %vm7043, nan, %v7052
    %v7054 = vmul.f32 %v6899, %v5167
    %v7055 = vmul.f32 %v7053, %v5179
    %v7056 = vsub.f32 %v6744, %v7054
    %v7057 = vsub.f32 %v6745, %v7055
    %v7058 = vsub.f32 %v6432, %v7056
    %v7059 = vsub.f32 %v6433, %v7057
    %v7060 = vmul.f32 %v7058, 0.5
    %v7061 = vmul.f32 %v7059, 0.5
    %v7062 = vrcp.pop %v5167
    %v7063 = vrcp.pop %v5179
    %v7064 = vmul.f32 %v7060, %v7062
    %v7065 = vmul.f32 %v7061, %v7063
    %v7066 = vsub.f32 %v5126, %v5106
    %v7067 = vsub.f32 %v5127, %v5107
    %v7068 = vmul.f32 %v7064, %v7066
    %v7069 = vmul.f32 %v7065, %v7067
    %v7070 = vsub.f32 %v5076, %v5116
    %v7071 = vsub.f32 %v5077, %v5117
    %v7072 = vmul.f32 %v7064, %v7070
    %v7073 = vmul.f32 %v7065, %v7071
    %v7074 = vsub.f32 %v5086, %v5051
    %v7075 = vsub.f32 %v5087, %v5052
    %v7076 = vmul.f32 %v7064, %v7074
    %v7077 = vmul.f32 %v7065, %v7075
    %v7078 = vand.u32 2147483647, %v7068
    %v7079 = vand.u32 2147483647, %v7069
    %vm7080 = vcmp.le.f32.partialorder %v7078, 0.005
    %vm7081 = vcmp.le.f32.partialorder %v7079, 0.005
    %v7082 = vmul.f32 %v7068, 0.5
    %v7083 = vmul.f32 %v7069, 0.5
    %v7084 = vmul.f32 %v7082, %v7068
    %v7085 = vmul.f32 %v7083, %v7069
    %v7086 = vsub.f32 %v7078, 0.0025
    %v7087 = vsub.f32 %v7079, 0.0025
    %v7088 = vmul.f32 %v7086, 0.005
    %v7089 = vmul.f32 %v7087, 0.005
    %v7090 = vsel %vm7080, %v7084, %v7088
    %v7091 = vsel %vm7081, %v7085, %v7089
    %vm7092 = vcmask 1040384
    %v7093 = vsel %vm7092, %v7090, 0.0
    %v7094 = vsel %vm7092, %v7091, 0.0
    %v7095 = vadd.f32 %v7093, %v7094
    %7096 = vadd.xlane.f32.xlu0 %v7095
    %v7097 = vpop.xlane.xlu0 %7096
    %v7098 = vrot.slane %v7097, 4
    %v7099 = vadd.f32 %v7097, %v7098
    %v7100 = vrot.slane %v7099, 2
    %v7101 = vadd.f32 %v7099, %v7100
    %v7102 = vrot.slane %v7101, 1
    %v7103 = vadd.f32 %v7101, %v7102
    %s7104 = vtos %v7103
    %s7105 = sadd.f32 %s7104, 0.0
    %v7106 = vand.u32 2147483647, %v7072
    %v7107 = vand.u32 2147483647, %v7073
    %vm7108 = vcmp.le.f32.partialorder %v7106, 0.005
    %vm7109 = vcmp.le.f32.partialorder %v7107, 0.005
    %v7110 = vmul.f32 %v7072, 0.5
    %v7111 = vmul.f32 %v7073, 0.5
    %v7112 = vmul.f32 %v7110, %v7072
    %v7113 = vmul.f32 %v7111, %v7073
    %v7114 = vsub.f32 %v7106, 0.0025
    %v7115 = vsub.f32 %v7107, 0.0025
    %v7116 = vmul.f32 %v7114, 0.005
    %v7117 = vmul.f32 %v7115, 0.005
    %v7118 = vsel %vm7108, %v7112, %v7116
    %v7119 = vsel %vm7109, %v7113, %v7117
    %v7120 = vsel %vm7092, %v7118, 0.0
    %v7121 = vsel %vm7092, %v7119, 0.0
    %v7122 = vadd.f32 %v7120, %v7121
    %7123 = vadd.xlane.f32.xlu0 %v7122
    %v7124 = vpop.xlane.xlu0 %7123
    %v7125 = vrot.slane %v7124, 4
    %v7126 = vadd.f32 %v7124, %v7125
    %v7127 = vrot.slane %v7126, 2
    %v7128 = vadd.f32 %v7126, %v7127
    %v7129 = vrot.slane %v7128, 1
    %v7130 = vadd.f32 %v7128, %v7129
    %s7131 = vtos %v7130
    %s7132 = sadd.f32 %s7105, %s7131
    %v7133 = vand.u32 2147483647, %v7076
    %v7134 = vand.u32 2147483647, %v7077
    %vm7135 = vcmp.le.f32.partialorder %v7133, 0.005
    %vm7136 = vcmp.le.f32.partialorder %v7134, 0.005
    %v7137 = vmul.f32 %v7076, 0.5
    %v7138 = vmul.f32 %v7077, 0.5
    %v7139 = vmul.f32 %v7137, %v7076
    %v7140 = vmul.f32 %v7138, %v7077
    %v7141 = vsub.f32 %v7133, 0.0025
    %v7142 = vsub.f32 %v7134, 0.0025
    %v7143 = vmul.f32 %v7141, 0.005
    %v7144 = vmul.f32 %v7142, 0.005
    %v7145 = vsel %vm7135, %v7139, %v7143
    %v7146 = vsel %vm7136, %v7140, %v7144
    %v7147 = vsel %vm7092, %v7145, 0.0
    %v7148 = vsel %vm7092, %v7146, 0.0
    %v7149 = vadd.f32 %v7147, %v7148
    %7150 = vadd.xlane.f32.xlu0 %v7149
    %v7151 = vpop.xlane.xlu0 %7150
    %v7152 = vrot.slane %v7151, 4
    %v7153 = vadd.f32 %v7151, %v7152
    %v7154 = vrot.slane %v7153, 2
    %v7155 = vadd.f32 %v7153, %v7154
    %v7156 = vrot.slane %v7155, 1
    %v7157 = vadd.f32 %v7155, %v7156
    %s7158 = vtos %v7157
    %s7159 = sadd.f32 %s7132, %s7158
    %v7160 = vmul.f32 %v4904, %v4905
    %v7161 = vmul.f32 %v4914, %v4935
    %v7162 = vadd.f32 %v7160, %v7161
    %v7163 = vmul.f32 %v4924, %v4965
    %v7164 = vadd.f32 %v7162, %v7163
    %v7165 = vmul.f32 %v4904, %v4915
    %v7166 = vmul.f32 %v4914, %v4945
    %v7167 = vadd.f32 %v7165, %v7166
    %v7168 = vmul.f32 %v4924, %v4975
    %v7169 = vadd.f32 %v7167, %v7168
    %v7170 = vmul.f32 %v4904, %v4925
    %v7171 = vmul.f32 %v4914, %v4955
    %v7172 = vadd.f32 %v7170, %v7171
    %v7173 = vmul.f32 %v4924, %v4985
    %v7174 = vadd.f32 %v7172, %v7173
    %v7175 = vmul.f32 %v4934, %v4905
    %v7176 = vmul.f32 %v4944, %v4935
    %v7177 = vadd.f32 %v7175, %v7176
    %v7178 = vmul.f32 %v4954, %v4965
    %v7179 = vadd.f32 %v7177, %v7178
    %v7180 = vmul.f32 %v4934, %v4915
    %v7181 = vmul.f32 %v4944, %v4945
    %v7182 = vadd.f32 %v7180, %v7181
    %v7183 = vmul.f32 %v4954, %v4975
    %v7184 = vadd.f32 %v7182, %v7183
    %v7185 = vmul.f32 %v4934, %v4925
    %v7186 = vmul.f32 %v4944, %v4955
    %v7187 = vadd.f32 %v7185, %v7186
    %v7188 = vmul.f32 %v4954, %v4985
    %v7189 = vadd.f32 %v7187, %v7188
    %v7190 = vmul.f32 %v4964, %v4905
    %v7191 = vmul.f32 %v4974, %v4935
    %v7192 = vadd.f32 %v7190, %v7191
    %v7193 = vmul.f32 %v4984, %v4965
    %v7194 = vadd.f32 %v7192, %v7193
    %v7195 = vmul.f32 %v4964, %v4915
    %v7196 = vmul.f32 %v4974, %v4945
    %v7197 = vadd.f32 %v7195, %v7196
    %v7198 = vmul.f32 %v4984, %v4975
    %v7199 = vadd.f32 %v7197, %v7198
    %v7200 = vmul.f32 %v4964, %v4925
    %v7201 = vmul.f32 %v4974, %v4955
    %v7202 = vadd.f32 %v7200, %v7201
    %v7203 = vmul.f32 %v4984, %v4985
    %v7204 = vadd.f32 %v7202, %v7203
    %v7205 = vrot.slane %v4986, 1
    %v7207 = vmul.f32 %v4986, %v7205
    %v7208 = vrot.slane %v4992, 1
    %v7210 = vmul.f32 %v4988, %v7208
    %v7211 = vadd.f32 %v7207, %v7210
    %v7212 = vrot.slane %v4998, 1
    %v7214 = vmul.f32 %v4990, %v7212
    %v7215 = vadd.f32 %v7211, %v7214
    %v7216 = vrot.slane %v4988, 1
    %v7218 = vmul.f32 %v4986, %v7216
    %v7219 = vrot.slane %v4994, 1
    %v7221 = vmul.f32 %v4988, %v7219
    %v7222 = vadd.f32 %v7218, %v7221
    %v7223 = vrot.slane %v5000, 1
    %v7225 = vmul.f32 %v4990, %v7223
    %v7226 = vadd.f32 %v7222, %v7225
    %v7227 = vrot.slane %v4990, 1
    %v7229 = vmul.f32 %v4986, %v7227
    %v7230 = vrot.slane %v4996, 1
    %v7232 = vmul.f32 %v4988, %v7230
    %v7233 = vadd.f32 %v7229, %v7232
    %v7234 = vrot.slane %v5002, 1
    %v7236 = vmul.f32 %v4990, %v7234
    %v7237 = vadd.f32 %v7233, %v7236
    %v7238 = vmul.f32 %v4992, %v7205
    %v7239 = vmul.f32 %v4994, %v7208
    %v7240 = vadd.f32 %v7238, %v7239
    %v7241 = vmul.f32 %v4996, %v7212
    %v7242 = vadd.f32 %v7240, %v7241
    %v7243 = vmul.f32 %v4992, %v7216
    %v7244 = vmul.f32 %v4994, %v7219
    %v7245 = vadd.f32 %v7243, %v7244
    %v7246 = vmul.f32 %v4996, %v7223
    %v7247 = vadd.f32 %v7245, %v7246
    %v7248 = vmul.f32 %v4992, %v7227
    %v7249 = vmul.f32 %v4994, %v7230
    %v7250 = vadd.f32 %v7248, %v7249
    %v7251 = vmul.f32 %v4996, %v7234
    %v7252 = vadd.f32 %v7250, %v7251
    %v7253 = vmul.f32 %v4998, %v7205
    %v7254 = vmul.f32 %v5000, %v7208
    %v7255 = vadd.f32 %v7253, %v7254
    %v7256 = vmul.f32 %v5002, %v7212
    %v7257 = vadd.f32 %v7255, %v7256
    %v7258 = vmul.f32 %v4998, %v7216
    %v7259 = vmul.f32 %v5000, %v7219
    %v7260 = vadd.f32 %v7258, %v7259
    %v7261 = vmul.f32 %v5002, %v7223
    %v7262 = vadd.f32 %v7260, %v7261
    %v7263 = vmul.f32 %v4998, %v7227
    %v7264 = vmul.f32 %v5000, %v7230
    %v7265 = vadd.f32 %v7263, %v7264
    %v7266 = vmul.f32 %v5002, %v7234
    %v7267 = vadd.f32 %v7265, %v7266
    %v7268 = vmul.f32 %v7164, %v7215
    %v7269 = vmul.f32 %v7179, %v7242
    %v7270 = vadd.f32 %v7268, %v7269
    %v7271 = vmul.f32 %v7194, %v7257
    %v7272 = vadd.f32 %v7270, %v7271
    %v7273 = vmul.f32 %v7164, %v7226
    %v7274 = vmul.f32 %v7179, %v7247
    %v7275 = vadd.f32 %v7273, %v7274
    %v7276 = vmul.f32 %v7194, %v7262
    %v7277 = vadd.f32 %v7275, %v7276
    %v7278 = vmul.f32 %v7164, %v7237
    %v7279 = vmul.f32 %v7179, %v7252
    %v7280 = vadd.f32 %v7278, %v7279
    %v7281 = vmul.f32 %v7194, %v7267
    %v7282 = vadd.f32 %v7280, %v7281
    %v7283 = vmul.f32 %v7169, %v7215
    %v7284 = vmul.f32 %v7184, %v7242
    %v7285 = vadd.f32 %v7283, %v7284
    %v7286 = vmul.f32 %v7199, %v7257
    %v7287 = vadd.f32 %v7285, %v7286
    %v7288 = vmul.f32 %v7169, %v7226
    %v7289 = vmul.f32 %v7184, %v7247
    %v7290 = vadd.f32 %v7288, %v7289
    %v7291 = vmul.f32 %v7199, %v7262
    %v7292 = vadd.f32 %v7290, %v7291
    %v7293 = vmul.f32 %v7169, %v7237
    %v7294 = vmul.f32 %v7184, %v7252
    %v7295 = vadd.f32 %v7293, %v7294
    %v7296 = vmul.f32 %v7199, %v7267
    %v7297 = vadd.f32 %v7295, %v7296
    %v7298 = vmul.f32 %v7174, %v7215
    %v7299 = vmul.f32 %v7189, %v7242
    %v7300 = vadd.f32 %v7298, %v7299
    %v7301 = vmul.f32 %v7204, %v7257
    %v7302 = vadd.f32 %v7300, %v7301
    %v7303 = vmul.f32 %v7174, %v7226
    %v7304 = vmul.f32 %v7189, %v7247
    %v7305 = vadd.f32 %v7303, %v7304
    %v7306 = vmul.f32 %v7204, %v7262
    %v7307 = vadd.f32 %v7305, %v7306
    %v7308 = vmul.f32 %v7174, %v7237
    %v7309 = vmul.f32 %v7189, %v7252
    %v7310 = vadd.f32 %v7308, %v7309
    %v7311 = vmul.f32 %v7204, %v7267
    %v7312 = vadd.f32 %v7310, %v7311
    %v7313 = vadd.f32 %v7272, %v7292
    %v7314 = vadd.f32 %v7313, %v7312
    %v7315 = vmul.f32 %v7314, 0.5
    %v7316 = vsub.f32 %v7315, 0.5
    %v7317 = vmax.f32 %v7316, -0.999999
    %v7318 = vmin.f32 %v7317, 0.999999
    %v7319 = vmul.f32 %v7318, %v7318
    %v7320 = vsub.f32 1.0, %v7319
    %v7321 = vmax.f32 %v7320, 1e-12
    %v7322 = vrsqrt.pop %v7321
    %v7323 = vmul.f32 %v7322, %v7321
    %v7324 = vmul.f32 %v7323, %v7322
    %v7325 = vmul.f32 0.5, %v7324
    %v7326 = vsub.f32 1.5, %v7325
    %v7327 = vmul.f32 %v7322, %v7326
    %v7328 = vmul.f32 %v7321, %v7327
    %vm7329 = vcmp.eq.f32.partialorder %v7321, inf
    %v7330 = vsel %vm7329, %v7321, %v7328
    %vm7331 = vcmp.eq.f32.partialorder %v7321, 0.0
    %v7332 = vand.u32 %v7321, 2147483648
    %v7333 = vsel %vm7331, %v7332, %v7330
    %v7334 = vsub.f32 1.5707964, %v7318
    %v7335 = vand.u32 2147483647, %v7334
    %vm7336 = vcmp.le.f32.partialorder %v7335, 0.7853982
    %vm7337 = vcmp.lt.s32.totalorder %v7334, 0
    %v7338 = vand.u32 %v7334, 2139095040
    %v7339 = vshrl.u32 %v7338, 23
    %v7340 = vsub.s32 %v7339, 127
    %v7341 = vand.u32 2147483647, %v7334
    %v7342 = vand.u32 %v7341, 8388607
    %v7343 = vor.u32 %v7342, 8388608
    %v7344 = vsub.s32 0, %v7343
    %v7345 = vadd.s32 %v7340, 1
    %vm7346 = vcmp.gt.s32.totalorder %v7345, 0
    %v7347 = vsel %vm7346, %v7345, 0
    %v7348 = vshrl.u32 %v7347, 5
    %v7349 = vand.u32 %v7347, 31
    %v7350 = vsub.s32 32, %v7349
    %v7351 = vshrl.u32 683565275, %v7350
    %v7352 = vshll.u32 683565275, %v7349
    %v7353 = vshrl.u32 2475754826, %v7350
    %v7354 = vor.u32 %v7352, %v7353
    %v7355 = vshll.u32 2475754826, %v7349
    %v7356 = vshrl.u32 2131351028, %v7350
    %v7357 = vor.u32 %v7355, %v7356
    %v7358 = vshll.u32 2131351028, %v7349
    %v7359 = vshrl.u32 2102212464, %v7350
    %v7360 = vor.u32 %v7358, %v7359
    %v7361 = vshll.u32 2102212464, %v7349
    %v7362 = vshrl.u32 920167782, %v7350
    %v7363 = vor.u32 %v7361, %v7362
    %v7364 = vshll.u32 920167782, %v7349
    %v7365 = vshrl.u32 1326507024, %v7350
    %v7366 = vor.u32 %v7364, %v7365
    %vm7367 = vcmp.lt.s32.totalorder %v7348, 1
    %vm7368 = vcmp.lt.s32.totalorder %v7348, 2
    %vm7369 = vcmp.lt.s32.totalorder %v7348, 3
    %vm7370 = vcmp.lt.s32.totalorder %v7348, 4
    %v7371 = vsel %vm7367, %v7351, %v7354
    %v7372 = vsel %vm7370, %v7360, 2102212464
    %v7373 = vsel %vm7369, %v7357, %v7372
    %v7374 = vsel %vm7368, %v7371, %v7373
    %v7375 = vsel %vm7367, %v7354, %v7357
    %v7376 = vsel %vm7370, %v7363, 920167782
    %v7377 = vsel %vm7369, %v7360, %v7376
    %v7378 = vsel %vm7368, %v7375, %v7377
    %v7379 = vsel %vm7367, %v7357, %v7360
    %v7380 = vsel %vm7370, %v7366, 1326507024
    %v7381 = vsel %vm7369, %v7363, %v7380
    %v7382 = vsel %vm7368, %v7379, %v7381
    %v7383 = vshll.u32 %v7343, 8
    %v7384 = vand.u32 %v7383, 65535
    %v7385 = vshrl.u32 %v7383, 16
    %v7386 = vand.u32 %v7382, 65535
    %v7387 = vshrl.u32 %v7382, 16
    %v7388 = vmul.u32 %v7384, %v7386
    %v7389 = vmul.u32 %v7384, %v7387
    %v7390 = vmul.u32 %v7385, %v7386
    %v7391 = vmul.u32 %v7385, %v7387
    %v7392 = vshll.u32 %v7389, 16
    %v7393 = vshrl.u32 %v7389, 16
    %v7394 = vshll.u32 %v7390, 16
    %v7395 = vshrl.u32 %v7390, 16
    %vm7396 = vc.u32 %v7388, %v7392
    %v7397 = vsel %vm7396, 1, 0
    %v7398 = vadd.s32 %v7388, %v7392
    %v7399 = vadd.s32 %v7391, %v7397
    %vm7400 = vc.u32 %v7398, %v7394
    %v7401 = vsel %vm7400, 1, 0
    %v7402 = vadd.s32 %v7398, %v7394
    %v7403 = vadd.s32 %v7399, %v7401
    %v7404 = vadd.s32 %v7403, %v7393
    %v7405 = vadd.s32 %v7404, %v7395
    %v7406 = vand.u32 %v7383, 65535
    %v7407 = vshrl.u32 %v7383, 16
    %v7408 = vand.u32 %v7378, 65535
    %v7409 = vshrl.u32 %v7378, 16
    %v7410 = vmul.u32 %v7406, %v7408
    %v7411 = vmul.u32 %v7406, %v7409
    %v7412 = vmul.u32 %v7407, %v7408
    %v7413 = vmul.u32 %v7407, %v7409
    %v7414 = vshll.u32 %v7411, 16
    %v7415 = vshrl.u32 %v7411, 16
    %v7416 = vshll.u32 %v7412, 16
    %v7417 = vshrl.u32 %v7412, 16
    %vm7418 = vc.u32 %v7410, %v7414
    %v7419 = vsel %vm7418, 1, 0
    %v7420 = vadd.s32 %v7410, %v7414
    %v7421 = vadd.s32 %v7413, %v7419
    %vm7422 = vc.u32 %v7420, %v7416
    %v7423 = vsel %vm7422, 1, 0
    %v7424 = vadd.s32 %v7420, %v7416
    %v7425 = vadd.s32 %v7421, %v7423
    %v7426 = vadd.s32 %v7425, %v7415
    %v7427 = vadd.s32 %v7426, %v7417
    %v7428 = vmul.u32 %v7383, %v7374
    %v7429 = vadd.s32 %v7405, %v7424
    %vm7430 = vc.u32 %v7405, %v7424
    %v7431 = vadd.s32 %v7427, 1
    %v7432 = vsel %vm7430, %v7431, %v7427
    %v7433 = vadd.s32 %v7428, %v7432
    %v7434 = vadd.s32 %v7433, 536870912
    %v7435 = vshrl.u32 %v7434, 30
    %v7436 = vshll.u32 %v7435, 30
    %v7437 = vsub.s32 %v7433, %v7436
    %vm7438 = vcmp.lt.s32.totalorder %v7437, 0
    %v7439 = vsub.s32 0, %v7437
    %v7440 = vsel %vm7438, %v7439, %v7437
    %v7441 = vclz %v7440
    %v7442 = vsub.s32 %v7441, 2
    %vm7443 = vcmp.gt.s32.totalorder 0, %v7442
    %v7444 = vsel %vm7443, 0, %v7442
    %v7445 = vsub.s32 32, %v7444
    %v7446 = vshll.u32 %v7437, %v7444
    %v7447 = vshrl.u32 %v7429, %v7445
    %v7448 = vor.u32 %v7446, %v7447
    %v7449 = vsub.s32 4294967266, %v7444
    %v7450 = vadd.s32 %v7449, 127
    %v7451 = vshll.u32 %v7450, 23
    %v7452 = vor.u32 4788187, %v7451
    %v7453 = vand.u32 2147483647, %v7452
    %v7455 = vcvt.s32.f32 %v7448
    %v7456 = vmul.f32 %v7455, %v7453
    %v7457 = vxor.u32 %v7456, 2147483648
    %v7458 = vsel %vm7337, %v7457, %v7456
    %v7459 = vsub.s32 4, %v7435
    %v7460 = vsel %vm7337, %v7459, %v7435
    %v7461 = vsel %vm7336, %v7334, %v7458
    %v7462 = vsel %vm7336, 0, %v7460
    %v7463 = vmul.f32 %v7461, %v7461
    %v7464 = vmul.f32 %v7463, -0.001358992
    %v7465 = vadd.f32 %v7464, 0.041655596
    %v7466 = vmul.f32 %v7463, %v7465
    %v7467 = vadd.f32 %v7466, -0.4999988
    %v7468 = vmul.f32 %v7463, %v7467
    %v7469 = vadd.f32 1.0, %v7468
    %v7470 = vmul.f32 %v7461, %v7461
    %v7471 = vmul.f32 %v7470, -0.00019511016
    %v7472 = vadd.f32 %v7471, 0.008332121
    %v7473 = vmul.f32 %v7470, %v7472
    %v7474 = vadd.f32 %v7473, -0.16666654
    %v7475 = vmul.f32 %v7470, %v7474
    %v7476 = vadd.f32 %v7475, 1.0
    %v7477 = vmul.f32 %v7476, %v7461
    %vm7478 = vweird.f32 %v7334
    %v7479 = vadd.s32 %v7462, 3
    %v7480 = vand.u32 %v7479, 3
    %vm7481 = vcmp.lt.s32.totalorder %v7480, 2
    %vm7482 = vcmp.eq.s32.totalorder %v7480, 0
    %v7483 = vxor.u32 %v7477, 2147483648
    %v7484 = vsel %vm7482, %v7469, %v7483
    %vm7485 = vcmp.eq.s32.totalorder %v7480, 2
    %v7486 = vxor.u32 %v7469, 2147483648
    %v7487 = vsel %vm7485, %v7486, %v7477
    %v7488 = vsel %vm7481, %v7484, %v7487
    %v7489 = vsel %vm7478, nan, %v7488
    %v7490 = vmul.f32 %v7489, %v7318
    %v7491 = vand.u32 2147483647, %v7334
    %vm7492 = vcmp.le.f32.partialorder %v7491, 0.7853982
    %vm7493 = vcmp.lt.s32.totalorder %v7334, 0
    %v7494 = vand.u32 %v7334, 2139095040
    %v7495 = vshrl.u32 %v7494, 23
    %v7496 = vsub.s32 %v7495, 127
    %v7497 = vand.u32 2147483647, %v7334
    %v7498 = vand.u32 %v7497, 8388607
    %v7499 = vor.u32 %v7498, 8388608
    %v7500 = vsub.s32 0, %v7499
    %v7501 = vadd.s32 %v7496, 1
    %vm7502 = vcmp.gt.s32.totalorder %v7501, 0
    %v7503 = vsel %vm7502, %v7501, 0
    %v7504 = vshrl.u32 %v7503, 5
    %v7505 = vand.u32 %v7503, 31
    %v7506 = vsub.s32 32, %v7505
    %v7507 = vshrl.u32 683565275, %v7506
    %v7508 = vshll.u32 683565275, %v7505
    %v7509 = vshrl.u32 2475754826, %v7506
    %v7510 = vor.u32 %v7508, %v7509
    %v7511 = vshll.u32 2475754826, %v7505
    %v7512 = vshrl.u32 2131351028, %v7506
    %v7513 = vor.u32 %v7511, %v7512
    %v7514 = vshll.u32 2131351028, %v7505
    %v7515 = vshrl.u32 2102212464, %v7506
    %v7516 = vor.u32 %v7514, %v7515
    %v7517 = vshll.u32 2102212464, %v7505
    %v7518 = vshrl.u32 920167782, %v7506
    %v7519 = vor.u32 %v7517, %v7518
    %v7520 = vshll.u32 920167782, %v7505
    %v7521 = vshrl.u32 1326507024, %v7506
    %v7522 = vor.u32 %v7520, %v7521
    %vm7523 = vcmp.lt.s32.totalorder %v7504, 1
    %vm7524 = vcmp.lt.s32.totalorder %v7504, 2
    %vm7525 = vcmp.lt.s32.totalorder %v7504, 3
    %vm7526 = vcmp.lt.s32.totalorder %v7504, 4
    %v7527 = vsel %vm7523, %v7507, %v7510
    %v7528 = vsel %vm7526, %v7516, 2102212464
    %v7529 = vsel %vm7525, %v7513, %v7528
    %v7530 = vsel %vm7524, %v7527, %v7529
    %v7531 = vsel %vm7523, %v7510, %v7513
    %v7532 = vsel %vm7526, %v7519, 920167782
    %v7533 = vsel %vm7525, %v7516, %v7532
    %v7534 = vsel %vm7524, %v7531, %v7533
    %v7535 = vsel %vm7523, %v7513, %v7516
    %v7536 = vsel %vm7526, %v7522, 1326507024
    %v7537 = vsel %vm7525, %v7519, %v7536
    %v7538 = vsel %vm7524, %v7535, %v7537
    %v7539 = vshll.u32 %v7499, 8
    %v7540 = vand.u32 %v7539, 65535
    %v7541 = vshrl.u32 %v7539, 16
    %v7542 = vand.u32 %v7538, 65535
    %v7543 = vshrl.u32 %v7538, 16
    %v7544 = vmul.u32 %v7540, %v7542
    %v7545 = vmul.u32 %v7540, %v7543
    %v7546 = vmul.u32 %v7541, %v7542
    %v7547 = vmul.u32 %v7541, %v7543
    %v7548 = vshll.u32 %v7545, 16
    %v7549 = vshrl.u32 %v7545, 16
    %v7550 = vshll.u32 %v7546, 16
    %v7551 = vshrl.u32 %v7546, 16
    %vm7552 = vc.u32 %v7544, %v7548
    %v7553 = vsel %vm7552, 1, 0
    %v7554 = vadd.s32 %v7544, %v7548
    %v7555 = vadd.s32 %v7547, %v7553
    %vm7556 = vc.u32 %v7554, %v7550
    %v7557 = vsel %vm7556, 1, 0
    %v7558 = vadd.s32 %v7554, %v7550
    %v7559 = vadd.s32 %v7555, %v7557
    %v7560 = vadd.s32 %v7559, %v7549
    %v7561 = vadd.s32 %v7560, %v7551
    %v7562 = vand.u32 %v7539, 65535
    %v7563 = vshrl.u32 %v7539, 16
    %v7564 = vand.u32 %v7534, 65535
    %v7565 = vshrl.u32 %v7534, 16
    %v7566 = vmul.u32 %v7562, %v7564
    %v7567 = vmul.u32 %v7562, %v7565
    %v7568 = vmul.u32 %v7563, %v7564
    %v7569 = vmul.u32 %v7563, %v7565
    %v7570 = vshll.u32 %v7567, 16
    %v7571 = vshrl.u32 %v7567, 16
    %v7572 = vshll.u32 %v7568, 16
    %v7573 = vshrl.u32 %v7568, 16
    %vm7574 = vc.u32 %v7566, %v7570
    %v7575 = vsel %vm7574, 1, 0
    %v7576 = vadd.s32 %v7566, %v7570
    %v7577 = vadd.s32 %v7569, %v7575
    %vm7578 = vc.u32 %v7576, %v7572
    %v7579 = vsel %vm7578, 1, 0
    %v7580 = vadd.s32 %v7576, %v7572
    %v7581 = vadd.s32 %v7577, %v7579
    %v7582 = vadd.s32 %v7581, %v7571
    %v7583 = vadd.s32 %v7582, %v7573
    %v7584 = vmul.u32 %v7539, %v7530
    %v7585 = vadd.s32 %v7561, %v7580
    %vm7586 = vc.u32 %v7561, %v7580
    %v7587 = vadd.s32 %v7583, 1
    %v7588 = vsel %vm7586, %v7587, %v7583
    %v7589 = vadd.s32 %v7584, %v7588
    %v7590 = vadd.s32 %v7589, 536870912
    %v7591 = vshrl.u32 %v7590, 30
    %v7592 = vshll.u32 %v7591, 30
    %v7593 = vsub.s32 %v7589, %v7592
    %vm7594 = vcmp.lt.s32.totalorder %v7593, 0
    %v7595 = vsub.s32 0, %v7593
    %v7596 = vsel %vm7594, %v7595, %v7593
    %v7597 = vclz %v7596
    %v7598 = vsub.s32 %v7597, 2
    %vm7599 = vcmp.gt.s32.totalorder 0, %v7598
    %v7600 = vsel %vm7599, 0, %v7598
    %v7601 = vsub.s32 32, %v7600
    %v7602 = vshll.u32 %v7593, %v7600
    %v7603 = vshrl.u32 %v7585, %v7601
    %v7604 = vor.u32 %v7602, %v7603
    %v7605 = vsub.s32 4294967266, %v7600
    %v7606 = vadd.s32 %v7605, 127
    %v7607 = vshll.u32 %v7606, 23
    %v7608 = vor.u32 4788187, %v7607
    %v7609 = vand.u32 2147483647, %v7608
    %v7611 = vcvt.s32.f32 %v7604
    %v7612 = vmul.f32 %v7611, %v7609
    %v7613 = vxor.u32 %v7612, 2147483648
    %v7614 = vsel %vm7493, %v7613, %v7612
    %v7615 = vsub.s32 4, %v7591
    %v7616 = vsel %vm7493, %v7615, %v7591
    %v7617 = vsel %vm7492, %v7334, %v7614
    %v7618 = vsel %vm7492, 0, %v7616
    %v7619 = vmul.f32 %v7617, %v7617
    %v7620 = vmul.f32 %v7619, -0.001358992
    %v7621 = vadd.f32 %v7620, 0.041655596
    %v7622 = vmul.f32 %v7619, %v7621
    %v7623 = vadd.f32 %v7622, -0.4999988
    %v7624 = vmul.f32 %v7619, %v7623
    %v7625 = vadd.f32 1.0, %v7624
    %v7626 = vmul.f32 %v7617, %v7617
    %v7627 = vmul.f32 %v7626, -0.00019511016
    %v7628 = vadd.f32 %v7627, 0.008332121
    %v7629 = vmul.f32 %v7626, %v7628
    %v7630 = vadd.f32 %v7629, -0.16666654
    %v7631 = vmul.f32 %v7626, %v7630
    %v7632 = vadd.f32 %v7631, 1.0
    %v7633 = vmul.f32 %v7632, %v7617
    %vm7634 = vweird.f32 %v7334
    %v7635 = vand.u32 %v7618, 3
    %vm7636 = vcmp.lt.s32.totalorder %v7635, 2
    %vm7637 = vcmp.eq.s32.totalorder %v7635, 0
    %v7638 = vxor.u32 %v7633, 2147483648
    %v7639 = vsel %vm7637, %v7625, %v7638
    %vm7640 = vcmp.eq.s32.totalorder %v7635, 2
    %v7641 = vxor.u32 %v7625, 2147483648
    %v7642 = vsel %vm7640, %v7641, %v7633
    %v7643 = vsel %vm7636, %v7639, %v7642
    %v7644 = vsel %vm7634, nan, %v7643
    %v7645 = vmul.f32 %v7644, %v7333
    %v7646 = vsub.f32 %v7490, %v7645
    %v7647 = vsub.f32 %v7334, %v7646
    %v7648 = vand.u32 2147483647, %v7647
    %vm7649 = vcmp.le.f32.partialorder %v7648, 0.7853982
    %vm7650 = vcmp.lt.s32.totalorder %v7647, 0
    %v7651 = vand.u32 %v7647, 2139095040
    %v7652 = vshrl.u32 %v7651, 23
    %v7653 = vsub.s32 %v7652, 127
    %v7654 = vand.u32 2147483647, %v7647
    %v7655 = vand.u32 %v7654, 8388607
    %v7656 = vor.u32 %v7655, 8388608
    %v7657 = vsub.s32 0, %v7656
    %v7658 = vadd.s32 %v7653, 1
    %vm7659 = vcmp.gt.s32.totalorder %v7658, 0
    %v7660 = vsel %vm7659, %v7658, 0
    %v7661 = vshrl.u32 %v7660, 5
    %v7662 = vand.u32 %v7660, 31
    %v7663 = vsub.s32 32, %v7662
    %v7664 = vshrl.u32 683565275, %v7663
    %v7665 = vshll.u32 683565275, %v7662
    %v7666 = vshrl.u32 2475754826, %v7663
    %v7667 = vor.u32 %v7665, %v7666
    %v7668 = vshll.u32 2475754826, %v7662
    %v7669 = vshrl.u32 2131351028, %v7663
    %v7670 = vor.u32 %v7668, %v7669
    %v7671 = vshll.u32 2131351028, %v7662
    %v7672 = vshrl.u32 2102212464, %v7663
    %v7673 = vor.u32 %v7671, %v7672
    %v7674 = vshll.u32 2102212464, %v7662
    %v7675 = vshrl.u32 920167782, %v7663
    %v7676 = vor.u32 %v7674, %v7675
    %v7677 = vshll.u32 920167782, %v7662
    %v7678 = vshrl.u32 1326507024, %v7663
    %v7679 = vor.u32 %v7677, %v7678
    %vm7680 = vcmp.lt.s32.totalorder %v7661, 1
    %vm7681 = vcmp.lt.s32.totalorder %v7661, 2
    %vm7682 = vcmp.lt.s32.totalorder %v7661, 3
    %vm7683 = vcmp.lt.s32.totalorder %v7661, 4
    %v7684 = vsel %vm7680, %v7664, %v7667
    %v7685 = vsel %vm7683, %v7673, 2102212464
    %v7686 = vsel %vm7682, %v7670, %v7685
    %v7687 = vsel %vm7681, %v7684, %v7686
    %v7688 = vsel %vm7680, %v7667, %v7670
    %v7689 = vsel %vm7683, %v7676, 920167782
    %v7690 = vsel %vm7682, %v7673, %v7689
    %v7691 = vsel %vm7681, %v7688, %v7690
    %v7692 = vsel %vm7680, %v7670, %v7673
    %v7693 = vsel %vm7683, %v7679, 1326507024
    %v7694 = vsel %vm7682, %v7676, %v7693
    %v7695 = vsel %vm7681, %v7692, %v7694
    %v7696 = vshll.u32 %v7656, 8
    %v7697 = vand.u32 %v7696, 65535
    %v7698 = vshrl.u32 %v7696, 16
    %v7699 = vand.u32 %v7695, 65535
    %v7700 = vshrl.u32 %v7695, 16
    %v7701 = vmul.u32 %v7697, %v7699
    %v7702 = vmul.u32 %v7697, %v7700
    %v7703 = vmul.u32 %v7698, %v7699
    %v7704 = vmul.u32 %v7698, %v7700
    %v7705 = vshll.u32 %v7702, 16
    %v7706 = vshrl.u32 %v7702, 16
    %v7707 = vshll.u32 %v7703, 16
    %v7708 = vshrl.u32 %v7703, 16
    %vm7709 = vc.u32 %v7701, %v7705
    %v7710 = vsel %vm7709, 1, 0
    %v7711 = vadd.s32 %v7701, %v7705
    %v7712 = vadd.s32 %v7704, %v7710
    %vm7713 = vc.u32 %v7711, %v7707
    %v7714 = vsel %vm7713, 1, 0
    %v7715 = vadd.s32 %v7711, %v7707
    %v7716 = vadd.s32 %v7712, %v7714
    %v7717 = vadd.s32 %v7716, %v7706
    %v7718 = vadd.s32 %v7717, %v7708
    %v7719 = vand.u32 %v7696, 65535
    %v7720 = vshrl.u32 %v7696, 16
    %v7721 = vand.u32 %v7691, 65535
    %v7722 = vshrl.u32 %v7691, 16
    %v7723 = vmul.u32 %v7719, %v7721
    %v7724 = vmul.u32 %v7719, %v7722
    %v7725 = vmul.u32 %v7720, %v7721
    %v7726 = vmul.u32 %v7720, %v7722
    %v7727 = vshll.u32 %v7724, 16
    %v7728 = vshrl.u32 %v7724, 16
    %v7729 = vshll.u32 %v7725, 16
    %v7730 = vshrl.u32 %v7725, 16
    %vm7731 = vc.u32 %v7723, %v7727
    %v7732 = vsel %vm7731, 1, 0
    %v7733 = vadd.s32 %v7723, %v7727
    %v7734 = vadd.s32 %v7726, %v7732
    %vm7735 = vc.u32 %v7733, %v7729
    %v7736 = vsel %vm7735, 1, 0
    %v7737 = vadd.s32 %v7733, %v7729
    %v7738 = vadd.s32 %v7734, %v7736
    %v7739 = vadd.s32 %v7738, %v7728
    %v7740 = vadd.s32 %v7739, %v7730
    %v7741 = vmul.u32 %v7696, %v7687
    %v7742 = vadd.s32 %v7718, %v7737
    %vm7743 = vc.u32 %v7718, %v7737
    %v7744 = vadd.s32 %v7740, 1
    %v7745 = vsel %vm7743, %v7744, %v7740
    %v7746 = vadd.s32 %v7741, %v7745
    %v7747 = vadd.s32 %v7746, 536870912
    %v7748 = vshrl.u32 %v7747, 30
    %v7749 = vshll.u32 %v7748, 30
    %v7750 = vsub.s32 %v7746, %v7749
    %vm7751 = vcmp.lt.s32.totalorder %v7750, 0
    %v7752 = vsub.s32 0, %v7750
    %v7753 = vsel %vm7751, %v7752, %v7750
    %v7754 = vclz %v7753
    %v7755 = vsub.s32 %v7754, 2
    %vm7756 = vcmp.gt.s32.totalorder 0, %v7755
    %v7757 = vsel %vm7756, 0, %v7755
    %v7758 = vsub.s32 32, %v7757
    %v7759 = vshll.u32 %v7750, %v7757
    %v7760 = vshrl.u32 %v7742, %v7758
    %v7761 = vor.u32 %v7759, %v7760
    %v7762 = vsub.s32 4294967266, %v7757
    %v7763 = vadd.s32 %v7762, 127
    %v7764 = vshll.u32 %v7763, 23
    %v7765 = vor.u32 4788187, %v7764
    %v7766 = vand.u32 2147483647, %v7765
    %v7768 = vcvt.s32.f32 %v7761
    %v7769 = vmul.f32 %v7768, %v7766
    %v7770 = vxor.u32 %v7769, 2147483648
    %v7771 = vsel %vm7650, %v7770, %v7769
    %v7772 = vsub.s32 4, %v7748
    %v7773 = vsel %vm7650, %v7772, %v7748
    %v7774 = vsel %vm7649, %v7647, %v7771
    %v7775 = vsel %vm7649, 0, %v7773
    %v7776 = vmul.f32 %v7774, %v7774
    %v7777 = vmul.f32 %v7776, -0.001358992
    %v7778 = vadd.f32 %v7777, 0.041655596
    %v7779 = vmul.f32 %v7776, %v7778
    %v7780 = vadd.f32 %v7779, -0.4999988
    %v7781 = vmul.f32 %v7776, %v7780
    %v7782 = vadd.f32 1.0, %v7781
    %v7783 = vmul.f32 %v7774, %v7774
    %v7784 = vmul.f32 %v7783, -0.00019511016
    %v7785 = vadd.f32 %v7784, 0.008332121
    %v7786 = vmul.f32 %v7783, %v7785
    %v7787 = vadd.f32 %v7786, -0.16666654
    %v7788 = vmul.f32 %v7783, %v7787
    %v7789 = vadd.f32 %v7788, 1.0
    %v7790 = vmul.f32 %v7789, %v7774
    %vm7791 = vweird.f32 %v7647
    %v7792 = vadd.s32 %v7775, 3
    %v7793 = vand.u32 %v7792, 3
    %vm7794 = vcmp.lt.s32.totalorder %v7793, 2
    %vm7795 = vcmp.eq.s32.totalorder %v7793, 0
    %v7796 = vxor.u32 %v7790, 2147483648
    %v7797 = vsel %vm7795, %v7782, %v7796
    %vm7798 = vcmp.eq.s32.totalorder %v7793, 2
    %v7799 = vxor.u32 %v7782, 2147483648
    %v7800 = vsel %vm7798, %v7799, %v7790
    %v7801 = vsel %vm7794, %v7797, %v7800
    %v7802 = vsel %vm7791, nan, %v7801
    %v7803 = vmul.f32 %v7802, %v7318
    %v7804 = vand.u32 2147483647, %v7647
    %vm7805 = vcmp.le.f32.partialorder %v7804, 0.7853982
    %vm7806 = vcmp.lt.s32.totalorder %v7647, 0
    %v7807 = vand.u32 %v7647, 2139095040
    %v7808 = vshrl.u32 %v7807, 23
    %v7809 = vsub.s32 %v7808, 127
    %v7810 = vand.u32 2147483647, %v7647
    %v7811 = vand.u32 %v7810, 8388607
    %v7812 = vor.u32 %v7811, 8388608
    %v7813 = vsub.s32 0, %v7812
    %v7814 = vadd.s32 %v7809, 1
    %vm7815 = vcmp.gt.s32.totalorder %v7814, 0
    %v7816 = vsel %vm7815, %v7814, 0
    %v7817 = vshrl.u32 %v7816, 5
    %v7818 = vand.u32 %v7816, 31
    %v7819 = vsub.s32 32, %v7818
    %v7820 = vshrl.u32 683565275, %v7819
    %v7821 = vshll.u32 683565275, %v7818
    %v7822 = vshrl.u32 2475754826, %v7819
    %v7823 = vor.u32 %v7821, %v7822
    %v7824 = vshll.u32 2475754826, %v7818
    %v7825 = vshrl.u32 2131351028, %v7819
    %v7826 = vor.u32 %v7824, %v7825
    %v7827 = vshll.u32 2131351028, %v7818
    %v7828 = vshrl.u32 2102212464, %v7819
    %v7829 = vor.u32 %v7827, %v7828
    %v7830 = vshll.u32 2102212464, %v7818
    %v7831 = vshrl.u32 920167782, %v7819
    %v7832 = vor.u32 %v7830, %v7831
    %v7833 = vshll.u32 920167782, %v7818
    %v7834 = vshrl.u32 1326507024, %v7819
    %v7835 = vor.u32 %v7833, %v7834
    %vm7836 = vcmp.lt.s32.totalorder %v7817, 1
    %vm7837 = vcmp.lt.s32.totalorder %v7817, 2
    %vm7838 = vcmp.lt.s32.totalorder %v7817, 3
    %vm7839 = vcmp.lt.s32.totalorder %v7817, 4
    %v7840 = vsel %vm7836, %v7820, %v7823
    %v7841 = vsel %vm7839, %v7829, 2102212464
    %v7842 = vsel %vm7838, %v7826, %v7841
    %v7843 = vsel %vm7837, %v7840, %v7842
    %v7844 = vsel %vm7836, %v7823, %v7826
    %v7845 = vsel %vm7839, %v7832, 920167782
    %v7846 = vsel %vm7838, %v7829, %v7845
    %v7847 = vsel %vm7837, %v7844, %v7846
    %v7848 = vsel %vm7836, %v7826, %v7829
    %v7849 = vsel %vm7839, %v7835, 1326507024
    %v7850 = vsel %vm7838, %v7832, %v7849
    %v7851 = vsel %vm7837, %v7848, %v7850
    %v7852 = vshll.u32 %v7812, 8
    %v7853 = vand.u32 %v7852, 65535
    %v7854 = vshrl.u32 %v7852, 16
    %v7855 = vand.u32 %v7851, 65535
    %v7856 = vshrl.u32 %v7851, 16
    %v7857 = vmul.u32 %v7853, %v7855
    %v7858 = vmul.u32 %v7853, %v7856
    %v7859 = vmul.u32 %v7854, %v7855
    %v7860 = vmul.u32 %v7854, %v7856
    %v7861 = vshll.u32 %v7858, 16
    %v7862 = vshrl.u32 %v7858, 16
    %v7863 = vshll.u32 %v7859, 16
    %v7864 = vshrl.u32 %v7859, 16
    %vm7865 = vc.u32 %v7857, %v7861
    %v7866 = vsel %vm7865, 1, 0
    %v7867 = vadd.s32 %v7857, %v7861
    %v7868 = vadd.s32 %v7860, %v7866
    %vm7869 = vc.u32 %v7867, %v7863
    %v7870 = vsel %vm7869, 1, 0
    %v7871 = vadd.s32 %v7867, %v7863
    %v7872 = vadd.s32 %v7868, %v7870
    %v7873 = vadd.s32 %v7872, %v7862
    %v7874 = vadd.s32 %v7873, %v7864
    %v7875 = vand.u32 %v7852, 65535
    %v7876 = vshrl.u32 %v7852, 16
    %v7877 = vand.u32 %v7847, 65535
    %v7878 = vshrl.u32 %v7847, 16
    %v7879 = vmul.u32 %v7875, %v7877
    %v7880 = vmul.u32 %v7875, %v7878
    %v7881 = vmul.u32 %v7876, %v7877
    %v7882 = vmul.u32 %v7876, %v7878
    %v7883 = vshll.u32 %v7880, 16
    %v7884 = vshrl.u32 %v7880, 16
    %v7885 = vshll.u32 %v7881, 16
    %v7886 = vshrl.u32 %v7881, 16
    %vm7887 = vc.u32 %v7879, %v7883
    %v7888 = vsel %vm7887, 1, 0
    %v7889 = vadd.s32 %v7879, %v7883
    %v7890 = vadd.s32 %v7882, %v7888
    %vm7891 = vc.u32 %v7889, %v7885
    %v7892 = vsel %vm7891, 1, 0
    %v7893 = vadd.s32 %v7889, %v7885
    %v7894 = vadd.s32 %v7890, %v7892
    %v7895 = vadd.s32 %v7894, %v7884
    %v7896 = vadd.s32 %v7895, %v7886
    %v7897 = vmul.u32 %v7852, %v7843
    %v7898 = vadd.s32 %v7874, %v7893
    %vm7899 = vc.u32 %v7874, %v7893
    %v7900 = vadd.s32 %v7896, 1
    %v7901 = vsel %vm7899, %v7900, %v7896
    %v7902 = vadd.s32 %v7897, %v7901
    %v7903 = vadd.s32 %v7902, 536870912
    %v7904 = vshrl.u32 %v7903, 30
    %v7905 = vshll.u32 %v7904, 30
    %v7906 = vsub.s32 %v7902, %v7905
    %vm7907 = vcmp.lt.s32.totalorder %v7906, 0
    %v7908 = vsub.s32 0, %v7906
    %v7909 = vsel %vm7907, %v7908, %v7906
    %v7910 = vclz %v7909
    %v7911 = vsub.s32 %v7910, 2
    %vm7912 = vcmp.gt.s32.totalorder 0, %v7911
    %v7913 = vsel %vm7912, 0, %v7911
    %v7914 = vsub.s32 32, %v7913
    %v7915 = vshll.u32 %v7906, %v7913
    %v7916 = vshrl.u32 %v7898, %v7914
    %v7917 = vor.u32 %v7915, %v7916
    %v7918 = vsub.s32 4294967266, %v7913
    %v7919 = vadd.s32 %v7918, 127
    %v7920 = vshll.u32 %v7919, 23
    %v7921 = vor.u32 4788187, %v7920
    %v7922 = vand.u32 2147483647, %v7921
    %v7924 = vcvt.s32.f32 %v7917
    %v7925 = vmul.f32 %v7924, %v7922
    %v7926 = vxor.u32 %v7925, 2147483648
    %v7927 = vsel %vm7806, %v7926, %v7925
    %v7928 = vsub.s32 4, %v7904
    %v7929 = vsel %vm7806, %v7928, %v7904
    %v7930 = vsel %vm7805, %v7647, %v7927
    %v7931 = vsel %vm7805, 0, %v7929
    %v7932 = vmul.f32 %v7930, %v7930
    %v7933 = vmul.f32 %v7932, -0.001358992
    %v7934 = vadd.f32 %v7933, 0.041655596
    %v7935 = vmul.f32 %v7932, %v7934
    %v7936 = vadd.f32 %v7935, -0.4999988
    %v7937 = vmul.f32 %v7932, %v7936
    %v7938 = vadd.f32 1.0, %v7937
    %v7939 = vmul.f32 %v7930, %v7930
    %v7940 = vmul.f32 %v7939, -0.00019511016
    %v7941 = vadd.f32 %v7940, 0.008332121
    %v7942 = vmul.f32 %v7939, %v7941
    %v7943 = vadd.f32 %v7942, -0.16666654
    %v7944 = vmul.f32 %v7939, %v7943
    %v7945 = vadd.f32 %v7944, 1.0
    %v7946 = vmul.f32 %v7945, %v7930
    %vm7947 = vweird.f32 %v7647
    %v7948 = vand.u32 %v7931, 3
    %vm7949 = vcmp.lt.s32.totalorder %v7948, 2
    %vm7950 = vcmp.eq.s32.totalorder %v7948, 0
    %v7951 = vxor.u32 %v7946, 2147483648
    %v7952 = vsel %vm7950, %v7938, %v7951
    %vm7953 = vcmp.eq.s32.totalorder %v7948, 2
    %v7954 = vxor.u32 %v7938, 2147483648
    %v7955 = vsel %vm7953, %v7954, %v7946
    %v7956 = vsel %vm7949, %v7952, %v7955
    %v7957 = vsel %vm7947, nan, %v7956
    %v7958 = vmul.f32 %v7957, %v7333
    %v7959 = vsub.f32 %v7803, %v7958
    %v7960 = vsub.f32 %v7647, %v7959
    %v7961 = vand.u32 2147483647, %v7960
    %vm7962 = vcmp.le.f32.partialorder %v7961, 0.7853982
    %vm7963 = vcmp.lt.s32.totalorder %v7960, 0
    %v7964 = vand.u32 %v7960, 2139095040
    %v7965 = vshrl.u32 %v7964, 23
    %v7966 = vsub.s32 %v7965, 127
    %v7967 = vand.u32 2147483647, %v7960
    %v7968 = vand.u32 %v7967, 8388607
    %v7969 = vor.u32 %v7968, 8388608
    %v7970 = vsub.s32 0, %v7969
    %v7971 = vadd.s32 %v7966, 1
    %vm7972 = vcmp.gt.s32.totalorder %v7971, 0
    %v7973 = vsel %vm7972, %v7971, 0
    %v7974 = vshrl.u32 %v7973, 5
    %v7975 = vand.u32 %v7973, 31
    %v7976 = vsub.s32 32, %v7975
    %v7977 = vshrl.u32 683565275, %v7976
    %v7978 = vshll.u32 683565275, %v7975
    %v7979 = vshrl.u32 2475754826, %v7976
    %v7980 = vor.u32 %v7978, %v7979
    %v7981 = vshll.u32 2475754826, %v7975
    %v7982 = vshrl.u32 2131351028, %v7976
    %v7983 = vor.u32 %v7981, %v7982
    %v7984 = vshll.u32 2131351028, %v7975
    %v7985 = vshrl.u32 2102212464, %v7976
    %v7986 = vor.u32 %v7984, %v7985
    %v7987 = vshll.u32 2102212464, %v7975
    %v7988 = vshrl.u32 920167782, %v7976
    %v7989 = vor.u32 %v7987, %v7988
    %v7990 = vshll.u32 920167782, %v7975
    %v7991 = vshrl.u32 1326507024, %v7976
    %v7992 = vor.u32 %v7990, %v7991
    %vm7993 = vcmp.lt.s32.totalorder %v7974, 1
    %vm7994 = vcmp.lt.s32.totalorder %v7974, 2
    %vm7995 = vcmp.lt.s32.totalorder %v7974, 3
    %vm7996 = vcmp.lt.s32.totalorder %v7974, 4
    %v7997 = vsel %vm7993, %v7977, %v7980
    %v7998 = vsel %vm7996, %v7986, 2102212464
    %v7999 = vsel %vm7995, %v7983, %v7998
    %v8000 = vsel %vm7994, %v7997, %v7999
    %v8001 = vsel %vm7993, %v7980, %v7983
    %v8002 = vsel %vm7996, %v7989, 920167782
    %v8003 = vsel %vm7995, %v7986, %v8002
    %v8004 = vsel %vm7994, %v8001, %v8003
    %v8005 = vsel %vm7993, %v7983, %v7986
    %v8006 = vsel %vm7996, %v7992, 1326507024
    %v8007 = vsel %vm7995, %v7989, %v8006
    %v8008 = vsel %vm7994, %v8005, %v8007
    %v8009 = vshll.u32 %v7969, 8
    %v8010 = vand.u32 %v8009, 65535
    %v8011 = vshrl.u32 %v8009, 16
    %v8012 = vand.u32 %v8008, 65535
    %v8013 = vshrl.u32 %v8008, 16
    %v8014 = vmul.u32 %v8010, %v8012
    %v8015 = vmul.u32 %v8010, %v8013
    %v8016 = vmul.u32 %v8011, %v8012
    %v8017 = vmul.u32 %v8011, %v8013
    %v8018 = vshll.u32 %v8015, 16
    %v8019 = vshrl.u32 %v8015, 16
    %v8020 = vshll.u32 %v8016, 16
    %v8021 = vshrl.u32 %v8016, 16
    %vm8022 = vc.u32 %v8014, %v8018
    %v8023 = vsel %vm8022, 1, 0
    %v8024 = vadd.s32 %v8014, %v8018
    %v8025 = vadd.s32 %v8017, %v8023
    %vm8026 = vc.u32 %v8024, %v8020
    %v8027 = vsel %vm8026, 1, 0
    %v8028 = vadd.s32 %v8024, %v8020
    %v8029 = vadd.s32 %v8025, %v8027
    %v8030 = vadd.s32 %v8029, %v8019
    %v8031 = vadd.s32 %v8030, %v8021
    %v8032 = vand.u32 %v8009, 65535
    %v8033 = vshrl.u32 %v8009, 16
    %v8034 = vand.u32 %v8004, 65535
    %v8035 = vshrl.u32 %v8004, 16
    %v8036 = vmul.u32 %v8032, %v8034
    %v8037 = vmul.u32 %v8032, %v8035
    %v8038 = vmul.u32 %v8033, %v8034
    %v8039 = vmul.u32 %v8033, %v8035
    %v8040 = vshll.u32 %v8037, 16
    %v8041 = vshrl.u32 %v8037, 16
    %v8042 = vshll.u32 %v8038, 16
    %v8043 = vshrl.u32 %v8038, 16
    %vm8044 = vc.u32 %v8036, %v8040
    %v8045 = vsel %vm8044, 1, 0
    %v8046 = vadd.s32 %v8036, %v8040
    %v8047 = vadd.s32 %v8039, %v8045
    %vm8048 = vc.u32 %v8046, %v8042
    %v8049 = vsel %vm8048, 1, 0
    %v8050 = vadd.s32 %v8046, %v8042
    %v8051 = vadd.s32 %v8047, %v8049
    %v8052 = vadd.s32 %v8051, %v8041
    %v8053 = vadd.s32 %v8052, %v8043
    %v8054 = vmul.u32 %v8009, %v8000
    %v8055 = vadd.s32 %v8031, %v8050
    %vm8056 = vc.u32 %v8031, %v8050
    %v8057 = vadd.s32 %v8053, 1
    %v8058 = vsel %vm8056, %v8057, %v8053
    %v8059 = vadd.s32 %v8054, %v8058
    %v8060 = vadd.s32 %v8059, 536870912
    %v8061 = vshrl.u32 %v8060, 30
    %v8062 = vshll.u32 %v8061, 30
    %v8063 = vsub.s32 %v8059, %v8062
    %vm8064 = vcmp.lt.s32.totalorder %v8063, 0
    %v8065 = vsub.s32 0, %v8063
    %v8066 = vsel %vm8064, %v8065, %v8063
    %v8067 = vclz %v8066
    %v8068 = vsub.s32 %v8067, 2
    %vm8069 = vcmp.gt.s32.totalorder 0, %v8068
    %v8070 = vsel %vm8069, 0, %v8068
    %v8071 = vsub.s32 32, %v8070
    %v8072 = vshll.u32 %v8063, %v8070
    %v8073 = vshrl.u32 %v8055, %v8071
    %v8074 = vor.u32 %v8072, %v8073
    %v8075 = vsub.s32 4294967266, %v8070
    %v8076 = vadd.s32 %v8075, 127
    %v8077 = vshll.u32 %v8076, 23
    %v8078 = vor.u32 4788187, %v8077
    %v8079 = vand.u32 2147483647, %v8078
    %v8081 = vcvt.s32.f32 %v8074
    %v8082 = vmul.f32 %v8081, %v8079
    %v8083 = vxor.u32 %v8082, 2147483648
    %v8084 = vsel %vm7963, %v8083, %v8082
    %v8085 = vsub.s32 4, %v8061
    %v8086 = vsel %vm7963, %v8085, %v8061
    %v8087 = vsel %vm7962, %v7960, %v8084
    %v8088 = vsel %vm7962, 0, %v8086
    %v8089 = vmul.f32 %v8087, %v8087
    %v8090 = vmul.f32 %v8089, -0.001358992
    %v8091 = vadd.f32 %v8090, 0.041655596
    %v8092 = vmul.f32 %v8089, %v8091
    %v8093 = vadd.f32 %v8092, -0.4999988
    %v8094 = vmul.f32 %v8089, %v8093
    %v8095 = vadd.f32 1.0, %v8094
    %v8096 = vmul.f32 %v8087, %v8087
    %v8097 = vmul.f32 %v8096, -0.00019511016
    %v8098 = vadd.f32 %v8097, 0.008332121
    %v8099 = vmul.f32 %v8096, %v8098
    %v8100 = vadd.f32 %v8099, -0.16666654
    %v8101 = vmul.f32 %v8096, %v8100
    %v8102 = vadd.f32 %v8101, 1.0
    %v8103 = vmul.f32 %v8102, %v8087
    %vm8104 = vweird.f32 %v7960
    %v8105 = vadd.s32 %v8088, 3
    %v8106 = vand.u32 %v8105, 3
    %vm8107 = vcmp.lt.s32.totalorder %v8106, 2
    %vm8108 = vcmp.eq.s32.totalorder %v8106, 0
    %v8109 = vxor.u32 %v8103, 2147483648
    %v8110 = vsel %vm8108, %v8095, %v8109
    %vm8111 = vcmp.eq.s32.totalorder %v8106, 2
    %v8112 = vxor.u32 %v8095, 2147483648
    %v8113 = vsel %vm8111, %v8112, %v8103
    %v8114 = vsel %vm8107, %v8110, %v8113
    %v8115 = vsel %vm8104, nan, %v8114
    %v8116 = vmul.f32 %v8115, %v7318
    %v8117 = vand.u32 2147483647, %v7960
    %vm8118 = vcmp.le.f32.partialorder %v8117, 0.7853982
    %vm8119 = vcmp.lt.s32.totalorder %v7960, 0
    %v8120 = vand.u32 %v7960, 2139095040
    %v8121 = vshrl.u32 %v8120, 23
    %v8122 = vsub.s32 %v8121, 127
    %v8123 = vand.u32 2147483647, %v7960
    %v8124 = vand.u32 %v8123, 8388607
    %v8125 = vor.u32 %v8124, 8388608
    %v8126 = vsub.s32 0, %v8125
    %v8127 = vadd.s32 %v8122, 1
    %vm8128 = vcmp.gt.s32.totalorder %v8127, 0
    %v8129 = vsel %vm8128, %v8127, 0
    %v8130 = vshrl.u32 %v8129, 5
    %v8131 = vand.u32 %v8129, 31
    %v8132 = vsub.s32 32, %v8131
    %v8133 = vshrl.u32 683565275, %v8132
    %v8134 = vshll.u32 683565275, %v8131
    %v8135 = vshrl.u32 2475754826, %v8132
    %v8136 = vor.u32 %v8134, %v8135
    %v8137 = vshll.u32 2475754826, %v8131
    %v8138 = vshrl.u32 2131351028, %v8132
    %v8139 = vor.u32 %v8137, %v8138
    %v8140 = vshll.u32 2131351028, %v8131
    %v8141 = vshrl.u32 2102212464, %v8132
    %v8142 = vor.u32 %v8140, %v8141
    %v8143 = vshll.u32 2102212464, %v8131
    %v8144 = vshrl.u32 920167782, %v8132
    %v8145 = vor.u32 %v8143, %v8144
    %v8146 = vshll.u32 920167782, %v8131
    %v8147 = vshrl.u32 1326507024, %v8132
    %v8148 = vor.u32 %v8146, %v8147
    %vm8149 = vcmp.lt.s32.totalorder %v8130, 1
    %vm8150 = vcmp.lt.s32.totalorder %v8130, 2
    %vm8151 = vcmp.lt.s32.totalorder %v8130, 3
    %vm8152 = vcmp.lt.s32.totalorder %v8130, 4
    %v8153 = vsel %vm8149, %v8133, %v8136
    %v8154 = vsel %vm8152, %v8142, 2102212464
    %v8155 = vsel %vm8151, %v8139, %v8154
    %v8156 = vsel %vm8150, %v8153, %v8155
    %v8157 = vsel %vm8149, %v8136, %v8139
    %v8158 = vsel %vm8152, %v8145, 920167782
    %v8159 = vsel %vm8151, %v8142, %v8158
    %v8160 = vsel %vm8150, %v8157, %v8159
    %v8161 = vsel %vm8149, %v8139, %v8142
    %v8162 = vsel %vm8152, %v8148, 1326507024
    %v8163 = vsel %vm8151, %v8145, %v8162
    %v8164 = vsel %vm8150, %v8161, %v8163
    %v8165 = vshll.u32 %v8125, 8
    %v8166 = vand.u32 %v8165, 65535
    %v8167 = vshrl.u32 %v8165, 16
    %v8168 = vand.u32 %v8164, 65535
    %v8169 = vshrl.u32 %v8164, 16
    %v8170 = vmul.u32 %v8166, %v8168
    %v8171 = vmul.u32 %v8166, %v8169
    %v8172 = vmul.u32 %v8167, %v8168
    %v8173 = vmul.u32 %v8167, %v8169
    %v8174 = vshll.u32 %v8171, 16
    %v8175 = vshrl.u32 %v8171, 16
    %v8176 = vshll.u32 %v8172, 16
    %v8177 = vshrl.u32 %v8172, 16
    %vm8178 = vc.u32 %v8170, %v8174
    %v8179 = vsel %vm8178, 1, 0
    %v8180 = vadd.s32 %v8170, %v8174
    %v8181 = vadd.s32 %v8173, %v8179
    %vm8182 = vc.u32 %v8180, %v8176
    %v8183 = vsel %vm8182, 1, 0
    %v8184 = vadd.s32 %v8180, %v8176
    %v8185 = vadd.s32 %v8181, %v8183
    %v8186 = vadd.s32 %v8185, %v8175
    %v8187 = vadd.s32 %v8186, %v8177
    %v8188 = vand.u32 %v8165, 65535
    %v8189 = vshrl.u32 %v8165, 16
    %v8190 = vand.u32 %v8160, 65535
    %v8191 = vshrl.u32 %v8160, 16
    %v8192 = vmul.u32 %v8188, %v8190
    %v8193 = vmul.u32 %v8188, %v8191
    %v8194 = vmul.u32 %v8189, %v8190
    %v8195 = vmul.u32 %v8189, %v8191
    %v8196 = vshll.u32 %v8193, 16
    %v8197 = vshrl.u32 %v8193, 16
    %v8198 = vshll.u32 %v8194, 16
    %v8199 = vshrl.u32 %v8194, 16
    %vm8200 = vc.u32 %v8192, %v8196
    %v8201 = vsel %vm8200, 1, 0
    %v8202 = vadd.s32 %v8192, %v8196
    %v8203 = vadd.s32 %v8195, %v8201
    %vm8204 = vc.u32 %v8202, %v8198
    %v8205 = vsel %vm8204, 1, 0
    %v8206 = vadd.s32 %v8202, %v8198
    %v8207 = vadd.s32 %v8203, %v8205
    %v8208 = vadd.s32 %v8207, %v8197
    %v8209 = vadd.s32 %v8208, %v8199
    %v8210 = vmul.u32 %v8165, %v8156
    %v8211 = vadd.s32 %v8187, %v8206
    %vm8212 = vc.u32 %v8187, %v8206
    %v8213 = vadd.s32 %v8209, 1
    %v8214 = vsel %vm8212, %v8213, %v8209
    %v8215 = vadd.s32 %v8210, %v8214
    %v8216 = vadd.s32 %v8215, 536870912
    %v8217 = vshrl.u32 %v8216, 30
    %v8218 = vshll.u32 %v8217, 30
    %v8219 = vsub.s32 %v8215, %v8218
    %vm8220 = vcmp.lt.s32.totalorder %v8219, 0
    %v8221 = vsub.s32 0, %v8219
    %v8222 = vsel %vm8220, %v8221, %v8219
    %v8223 = vclz %v8222
    %v8224 = vsub.s32 %v8223, 2
    %vm8225 = vcmp.gt.s32.totalorder 0, %v8224
    %v8226 = vsel %vm8225, 0, %v8224
    %v8227 = vsub.s32 32, %v8226
    %v8228 = vshll.u32 %v8219, %v8226
    %v8229 = vshrl.u32 %v8211, %v8227
    %v8230 = vor.u32 %v8228, %v8229
    %v8231 = vsub.s32 4294967266, %v8226
    %v8232 = vadd.s32 %v8231, 127
    %v8233 = vshll.u32 %v8232, 23
    %v8234 = vor.u32 4788187, %v8233
    %v8235 = vand.u32 2147483647, %v8234
    %v8237 = vcvt.s32.f32 %v8230
    %v8238 = vmul.f32 %v8237, %v8235
    %v8239 = vxor.u32 %v8238, 2147483648
    %v8240 = vsel %vm8119, %v8239, %v8238
    %v8241 = vsub.s32 4, %v8217
    %v8242 = vsel %vm8119, %v8241, %v8217
    %v8243 = vsel %vm8118, %v7960, %v8240
    %v8244 = vsel %vm8118, 0, %v8242
    %v8245 = vmul.f32 %v8243, %v8243
    %v8246 = vmul.f32 %v8245, -0.001358992
    %v8247 = vadd.f32 %v8246, 0.041655596
    %v8248 = vmul.f32 %v8245, %v8247
    %v8249 = vadd.f32 %v8248, -0.4999988
    %v8250 = vmul.f32 %v8245, %v8249
    %v8251 = vadd.f32 1.0, %v8250
    %v8252 = vmul.f32 %v8243, %v8243
    %v8253 = vmul.f32 %v8252, -0.00019511016
    %v8254 = vadd.f32 %v8253, 0.008332121
    %v8255 = vmul.f32 %v8252, %v8254
    %v8256 = vadd.f32 %v8255, -0.16666654
    %v8257 = vmul.f32 %v8252, %v8256
    %v8258 = vadd.f32 %v8257, 1.0
    %v8259 = vmul.f32 %v8258, %v8243
    %vm8260 = vweird.f32 %v7960
    %v8261 = vand.u32 %v8244, 3
    %vm8262 = vcmp.lt.s32.totalorder %v8261, 2
    %vm8263 = vcmp.eq.s32.totalorder %v8261, 0
    %v8264 = vxor.u32 %v8259, 2147483648
    %v8265 = vsel %vm8263, %v8251, %v8264
    %vm8266 = vcmp.eq.s32.totalorder %v8261, 2
    %v8267 = vxor.u32 %v8251, 2147483648
    %v8268 = vsel %vm8266, %v8267, %v8259
    %v8269 = vsel %vm8262, %v8265, %v8268
    %v8270 = vsel %vm8260, nan, %v8269
    %v8271 = vmul.f32 %v8270, %v7333
    %v8272 = vsub.f32 %v8116, %v8271
    %v8273 = vsub.f32 %v7960, %v8272
    %v8274 = vmul.f32 %v8273, 0.5
    %v8275 = vrcp.pop %v7333
    %v8276 = vmul.f32 %v8274, %v8275
    %v8277 = vsub.f32 %v7307, %v7297
    %v8278 = vmul.f32 %v8276, %v8277
    %v8279 = vsub.f32 %v7282, %v7302
    %v8280 = vmul.f32 %v8276, %v8279
    %v8281 = vsub.f32 %v7287, %v7277
    %v8282 = vmul.f32 %v8276, %v8281
    %v8283 = vand.u32 2147483647, %v8278
    %vm8284 = vcmp.le.f32.partialorder %v8283, 0.005
    %v8285 = vmul.f32 %v8278, 0.5
    %v8286 = vmul.f32 %v8285, %v8278
    %v8287 = vsub.f32 %v8283, 0.0025
    %v8288 = vmul.f32 %v8287, 0.005
    %v8289 = vsel %vm8284, %v8286, %v8288
    %v8290 = vsel %vm7092, %v8289, 0.0
    %8291 = vadd.xlane.f32.xlu0 %v8290
    %v8292 = vpop.xlane.xlu0 %8291
    %v8293 = vrot.slane %v8292, 4
    %v8294 = vadd.f32 %v8292, %v8293
    %v8295 = vrot.slane %v8294, 2
    %v8296 = vadd.f32 %v8294, %v8295
    %v8297 = vrot.slane %v8296, 1
    %v8298 = vadd.f32 %v8296, %v8297
    %s8299 = vtos %v8298
    %s8300 = sadd.f32 %s8299, 0.0
    %v8301 = vand.u32 2147483647, %v8280
    %vm8302 = vcmp.le.f32.partialorder %v8301, 0.005
    %v8303 = vmul.f32 %v8280, 0.5
    %v8304 = vmul.f32 %v8303, %v8280
    %v8305 = vsub.f32 %v8301, 0.0025
    %v8306 = vmul.f32 %v8305, 0.005
    %v8307 = vsel %vm8302, %v8304, %v8306
    %v8308 = vsel %vm7092, %v8307, 0.0
    %8309 = vadd.xlane.f32.xlu0 %v8308
    %v8310 = vpop.xlane.xlu0 %8309
    %v8311 = vrot.slane %v8310, 4
    %v8312 = vadd.f32 %v8310, %v8311
    %v8313 = vrot.slane %v8312, 2
    %v8314 = vadd.f32 %v8312, %v8313
    %v8315 = vrot.slane %v8314, 1
    %v8316 = vadd.f32 %v8314, %v8315
    %s8317 = vtos %v8316
    %s8318 = sadd.f32 %s8300, %s8317
    %v8319 = vand.u32 2147483647, %v8282
    %vm8320 = vcmp.le.f32.partialorder %v8319, 0.005
    %v8321 = vmul.f32 %v8282, 0.5
    %v8322 = vmul.f32 %v8321, %v8282
    %v8323 = vsub.f32 %v8319, 0.0025
    %v8324 = vmul.f32 %v8323, 0.005
    %v8325 = vsel %vm8320, %v8322, %v8324
    %v8326 = vsel %vm7092, %v8325, 0.0
    %8327 = vadd.xlane.f32.xlu0 %v8326
    %v8328 = vpop.xlane.xlu0 %8327
    %v8329 = vrot.slane %v8328, 4
    %v8330 = vadd.f32 %v8328, %v8329
    %v8331 = vrot.slane %v8330, 2
    %v8332 = vadd.f32 %v8330, %v8331
    %v8333 = vrot.slane %v8332, 1
    %v8334 = vadd.f32 %v8332, %v8333
    %s8335 = vtos %v8334
    %s8336 = sadd.f32 %s8318, %s8335
    %v8337 = vlaneseq
    %v8338 = vand.u32 %v8337, 127
    %vm8339 = vcmp.eq.s32.totalorder %v8338, 0
    %vm8340 = vcmp.eq.s32.totalorder %v8338, 1
    %v8341 = vstv %s8336
    %v8342 = vsel %vm8340, %v8341, 0.0
    %v8343 = vstv %s7159
    %v8344 = vsel %vm8339, %v8343, %v8342
    %8345 = vst [vmem:[#allocation7] sm:$0xff] %v8344
    // Predicated region
    $region18: #{tpu_custom_call.1} parent=1 // pred_check
      _
    $region19: #{tpu_custom_call.1} parent=1 // pred_check_branch
      %8347 = sbr.rel (0) target = $region21
    $region20: #{tpu_custom_call.1} parent=1 // pred_region
      %8349 = vsyncadd [#allocation4], 0
      %s8351 = sshll.u32 [#allocation7], 4
      %s8352 = int_to_ptr.vmem [resolvable:$true] %s8351
      %s8353 = sshll.u32 %s2, 4
      %s8354 = int_to_ptr.hbm [resolvable:$true] %s8353
      %8356 = dma.vmem_to_hbm [thread:$0]  %s8352, 128, %s8354, [#allocation4]
    $region21: #{tpu_custom_call.1} parent=1 // pred_fallthru
      _
    // Predicated region
    $region22: #{tpu_custom_call.1} parent=1 // pred_check
      _
    $region23: #{tpu_custom_call.1} parent=1 // pred_check_branch
      %8358 = sbr.rel (0) target = $region25
    $region24: #{tpu_custom_call.1} parent=1 // pred_region
      %8360 = dma.done [#allocation4], 128
    $region25: #{tpu_custom_call.1} parent=1 // pred_fallthru
      _
    %8361 = vsyncpa [#allocation3], 1
    %8362 = vsyncpa [#allocation6], 1
    %8363 = vsyncpa [#allocation4], 1

</llo_original>
